<compile_context>
chip_gen: v7x
topology: tpu7x:2x2x1
jax: 0.10.0
libtpu: 0.0.40
codegen_flags: <defaults>
</compile_context>

<pallas_src>
import math

import jax
import jax.numpy as jnp
from jax import lax
from jax.experimental import pallas as pl
from jax.experimental.pallas import tpu as pltpu

F_NODE = 78        # logical node-feature width
FP = 128           # node-feature lane width (78 zero-padded -> 128)
ODIM = 128
EMB = 128
SEQ = 1000
VOC = 26
_BN_EPS = 1e-5
NEG = -1e30


def _bn_scale_shift(n):
    """Eval-mode BN fold (scale, shift). Defaults: mean=0, var=1, gamma=1, beta=0."""
    gamma = jnp.ones((n,), jnp.float32)
    beta = jnp.zeros((n,), jnp.float32)
    mean = jnp.zeros((n,), jnp.float32)
    var = jnp.ones((n,), jnp.float32)
    s = gamma / jnp.sqrt(var + _BN_EPS)
    t = beta - mean * s
    return s, t


def _pad2(w, rows, cols):
    out = jnp.zeros((rows, cols), w.dtype)
    return out.at[: w.shape[0], : w.shape[1]].set(w)


def _nbytes(*arrs):
    return sum(int(a.size) * a.dtype.itemsize for a in arrs)


# ----------------------------------------------------------------------------
# Kernel 1: fused graph branch (bf16 MXU, concat-free, single-pass pooling)
# ----------------------------------------------------------------------------
def _make_graph_kernel(B, Npg):
    def kernel(a_ref, x_ref,
               w1_ref, t1_ref, w2_ref, t2_ref, w3_ref, t3_ref,
               wp1_ref, wp2_ref, wp3_ref, bp_ref,
               neg_ref, mbn_ref,
               wx1_ref, wx2_ref, wx3_ref,
               wm1_ref, wm2_ref, wm3_ref, b4_ref,
               o_ref):
        a = a_ref[...]                                            # [N, N] bf16

        def gcn_bn_relu(xb, w_ref, t_ref):
            # GCNConv + BN (folded into W columns / bias) + ReLU, all bf16 MXU.
            xw = jnp.dot(xb, w_ref[...], preferred_element_type=jnp.float32)
            y = jnp.dot(a, xw.astype(jnp.bfloat16),
                        preferred_element_type=jnp.float32)
            return jnp.maximum(y + t_ref[...], 0.0)               # f32 [N, 128]

        h1 = gcn_bn_relu(x_ref[...], w1_ref, t1_ref)
        h1b = h1.astype(jnp.bfloat16)
        h2 = gcn_bn_relu(h1b, w2_ref, t2_ref)
        h2b = h2.astype(jnp.bfloat16)
        h3 = gcn_bn_relu(h2b, w3_ref, t3_ref)
        h3b = h3.astype(jnp.bfloat16)

        # SAGPooling(ratio=1.0): score = GCNConv([h1|h2|h3] -> 1); the lane
        # concat is replaced by three split dots.  x <- x * tanh(score); the
        # top-k permutation is a no-op for the permutation-invariant pooling.
        sc = (jnp.dot(h1b, wp1_ref[...], preferred_element_type=jnp.float32)
              + jnp.dot(h2b, wp2_ref[...], preferred_element_type=jnp.float32)
              + jnp.dot(h3b, wp3_ref[...], preferred_element_type=jnp.float32))
        score = jnp.dot(a, sc.astype(jnp.bfloat16),
                        preferred_element_type=jnp.float32) + bp_ref[...]
        g = jnp.tanh(score)                                       # [N, 1] f32
        neg = neg_ref[...]                                        # [N, 1] 0 / -1e30
        mbn = mbn_ref[...]                                        # [B, N] 1/count

        def pools(h):
            xs = h * g                                            # [N, 128] f32
            # gmp: one reshape + axis-1 reduce (graphs padded to Npg nodes).
            gmax = jnp.max((xs + neg).reshape(B, Npg, FP), axis=1)       # [B,128]
            # gap: tiny mask matmul handles per-graph 1/count and padded nodes.
            gmean = jnp.dot(mbn, xs, preferred_element_type=jnp.float32)  # [B,128]
            return gmax.astype(jnp.bfloat16), gmean.astype(jnp.bfloat16)

        mx1, mn1 = pools(h1)
        mx2, mn2 = pools(h2)
        mx3, mn3 = pools(h3)

        # fc_g1 on [gmp | gap] via split weights (bn4 pre-folded into columns).
        y = (jnp.dot(mx1, wx1_ref[...], preferred_element_type=jnp.float32)
             + jnp.dot(mx2, wx2_ref[...], preferred_element_type=jnp.float32)
             + jnp.dot(mx3, wx3_ref[...], preferred_element_type=jnp.float32)
             + jnp.dot(mn1, wm1_ref[...], preferred_element_type=jnp.float32)
             + jnp.dot(mn2, wm2_ref[...], preferred_element_type=jnp.float32)
             + jnp.dot(mn3, wm3_ref[...], preferred_element_type=jnp.float32)
             + b4_ref[...])
        o_ref[...] = jnp.maximum(y, 0.0).astype(o_ref.dtype)
    return kernel


def graph_branch(a_bf, x_bf, negmask, mask_bn, kp):
    N = a_bf.shape[0]
    B = mask_bn.shape[0]
    # TODO(synk): variable-size graphs need host-side padding to a uniform
    # nodes-per-graph so the in-kernel gmp reshape is valid.
    assert N % B == 0, "graphs must be padded to a uniform node count"
    Npg = N // B
    args = (a_bf, x_bf,
            kp["w_g1"], kp["t_g1"], kp["w_g2"], kp["t_g2"], kp["w_g3"], kp["t_g3"],
            kp["w_pool1"], kp["w_pool2"], kp["w_pool3"], kp["b_pool"],
            negmask, mask_bn,
            kp["w_fcg1_max1"], kp["w_fcg1_max2"], kp["w_fcg1_max3"],
            kp["w_fcg1_mean1"], kp["w_fcg1_mean2"], kp["w_fcg1_mean3"],
            kp["b_fcg1"])
    flops = 2 * (3 * N * FP * FP + 3 * N * N * FP + 3 * N * FP + N * N
                 + 3 * B * N * FP + 6 * B * FP * FP)
    return pl.pallas_call(
        _make_graph_kernel(B, Npg),
        out_shape=jax.ShapeDtypeStruct((B, FP), jnp.bfloat16),
        compiler_params=pltpu.CompilerParams(vmem_limit_bytes=64 * 1024 * 1024),
        cost_estimate=pl.CostEstimate(
            flops=int(flops), transcendentals=int(N),
            bytes_accessed=int(_nbytes(*args) + B * FP * 2)),
    )(*args)


# ----------------------------------------------------------------------------
# Kernel 2: fused protein Conv1d stack (grid over batch, bf16 in/out)
# ----------------------------------------------------------------------------
def _protein_conv_kernel(x_ref,
                         w1_ref, t1_ref, w2_ref, t2_ref, w3_ref, t3_ref,
                         o_ref):
    def conv_bn_relu(xb, w_ref, t_ref, cout):
        # Conv1d(k=3, pad=1) as ONE stacked [3*Cout, Cin] bf16 MXU matmul; the
        # +-1 tap shifts are done on the small [Cout, L] outputs with XLU rolls.
        y3 = jnp.dot(w_ref[...], xb, preferred_element_type=jnp.float32)  # [3C, L]
        y0, y1, y2 = y3[:cout], y3[cout:2 * cout], y3[2 * cout:]
        L = y1.shape[1]
        lane = lax.broadcasted_iota(jnp.int32, (cout, L), 1)
        left = jnp.where(lane == 0, 0.0, pltpu.roll(y0, 1, 1))          # tap x[l-1]
        right = jnp.where(lane == L - 1, 0.0, pltpu.roll(y2, L - 1, 1))  # tap x[l+1]
        y = left + y1 + right
        # BN folded into weight rows; only the shift remains, then ReLU.
        return jnp.maximum(y + t_ref[...], 0.0).astype(jnp.bfloat16)

    x0 = x_ref[0]                                                 # [1000, 128] bf16
    c1 = conv_bn_relu(x0, w1_ref, t1_ref, 128)
    c2 = conv_bn_relu(c1, w2_ref, t2_ref, 64)
    c3 = conv_bn_relu(c2, w3_ref, t3_ref, 32)
    o_ref[0, :, :] = c3


def protein_conv(emb_b, kp):
    B, Cin1, L = emb_b.shape
    const = lambda shape: pl.BlockSpec(shape, lambda b: (0,) * len(shape))
    return pl.pallas_call(
        _protein_conv_kernel,
        out_shape=jax.ShapeDtypeStruct((B, 32, L), jnp.bfloat16),
        grid=(B,),
        in_specs=[
            pl.BlockSpec((1, Cin1, L), lambda b: (b, 0, 0)),
            const(kp["cw1"].shape), const(kp["ct1"].shape),
            const(kp["cw2"].shape), const(kp["ct2"].shape),
            const(kp["cw3"].shape), const(kp["ct3"].shape),
        ],
        out_specs=pl.BlockSpec((1, 32, L), lambda b: (b, 0, 0)),
        compiler_params=pltpu.CompilerParams(dimension_semantics=("parallel",)),
    )(emb_b,
      kp["cw1"], kp["ct1"], kp["cw2"], kp["ct2"], kp["cw3"], kp["ct3"])


# ----------------------------------------------------------------------------
# Kernel 3: fused dense head (bf16 inputs/weights, post-ReLU BN folded forward)
# ----------------------------------------------------------------------------
def _head_kernel(xg_ref, xt_ref,
                 wxt_ref, bxt_ref,
                 wcg_ref, wct_ref, bc1_ref,
                 w2_ref, b2_ref,
                 wo_ref, bo_ref, o_ref):
    # fc1_xt -> relu  (bn6 is folded into wct / bc1)
    xt = jnp.maximum(jnp.dot(xt_ref[...], wxt_ref[...],
                             preferred_element_type=jnp.float32) + bxt_ref[...], 0.0)
    # fc1 on concat(xg, xt) via split weights -> relu  (bn7 folded into w2 / b2)
    xc = jnp.maximum(
        jnp.dot(xg_ref[...], wcg_ref[...], preferred_element_type=jnp.float32)
        + jnp.dot(xt.astype(jnp.bfloat16), wct_ref[...],
                  preferred_element_type=jnp.float32)
        + bc1_ref[...], 0.0)
    # fc2 -> relu  (bn8 folded into wo / bo)
    xc = jnp.maximum(jnp.dot(xc.astype(jnp.bfloat16), w2_ref[...],
                             preferred_element_type=jnp.float32) + b2_ref[...], 0.0)
    # out
    o_ref[...] = jnp.dot(xc.astype(jnp.bfloat16), wo_ref[...],
                         preferred_element_type=jnp.float32) + bo_ref[...]


def head(xg, xt_flat, kp):
    B = xg.shape[0]
    args = (xg, xt_flat,
            kp["w_fc1xt"], kp["b_fc1xt"],
            kp["w_fc1_g"], kp["w_fc1_t"], kp["b_fc1"],
            kp["w_fc2"], kp["b_fc2"],
            kp["w_out"], kp["b_out"])
    flops = 2 * B * (32 * EMB * ODIM + ODIM * 1024 + ODIM * 1024 + 1024 * 512 + 512)
    return pl.pallas_call(
        _head_kernel,
        out_shape=jax.ShapeDtypeStruct((B, 1), jnp.float32),
        compiler_params=pltpu.CompilerParams(vmem_limit_bytes=32 * 1024 * 1024),
        cost_estimate=pl.CostEstimate(
            flops=int(flops), transcendentals=0,
            bytes_accessed=int(_nbytes(*args) + B * 4)),
    )(*args)


# ----------------------------------------------------------------------------
# Parameters: logical (PyTorch-shaped) init + kernel-ready preparation
# ----------------------------------------------------------------------------
def init_params(key):
    F = F_NODE
    keys = iter(jax.random.split(key, 40))
    u = lambda shape, s=0.05: jax.random.uniform(next(keys), shape, jnp.float32, -s, s)
    p = {}
    for i in (1, 2, 3):
        p[f"w_g{i}"], p[f"b_g{i}"] = u((F, F)), u((F,))
    p["w_pool"], p["b_pool"] = u((3 * F, 1)), u((1,))
    p["w_fcg1"], p["b_fcg1"] = u((2 * 3 * F, ODIM)), u((ODIM,))
    p["emb"] = u((VOC, EMB))
    p["convxt1_w"], p["convxt1_b"] = u((128, SEQ, 3)), u((128,))
    p["convxt2_w"], p["convxt2_b"] = u((64, 128, 3)), u((64,))
    p["convxt3_w"], p["convxt3_b"] = u((32, 64, 3)), u((32,))
    p["w_fc1xt"], p["b_fc1xt"] = u((32 * 128, ODIM)), u((ODIM,))
    p["w_fc1"], p["b_fc1"] = u((2 * ODIM, 1024)), u((1024,))
    p["w_fc2"], p["b_fc2"] = u((1024, 512)), u((512,))
    p["w_out"], p["b_out"] = u((512, 1)), u((1,))
    # NOTE: fc_g2 / bn5 exist in __init__ but are unused in forward -> skipped.
    return p


def prepare_params(p):
    """Fold eval-mode BN into weights, lane-pad 78->128, split concats, cast bf16."""
    F = F_NODE
    kp = {}
    # --- graph GCN layers: bn_i is BEFORE ReLU -> fold into W columns + bias ---
    for i in (1, 2, 3):
        s, t = _bn_scale_shift(F)
        w = p[f"w_g{i}"] * s[None, :]
        b = p[f"b_g{i}"] * s + t
        kp[f"w_g{i}"] = _pad2(w, FP, FP).astype(jnp.bfloat16)
        kp[f"t_g{i}"] = _pad2(b[None, :], 1, FP)
    # --- SAGPool score GCN weight split per 78-chunk, rows padded to 128 ---
    for i in range(3):
        kp[f"w_pool{i+1}"] = _pad2(p["w_pool"][i * F:(i + 1) * F], FP, 1
                                   ).astype(jnp.bfloat16)
    kp["b_pool"] = p["b_pool"][None, :]
    # --- fc_g1 + bn4 (BEFORE ReLU): fold into columns, split gmp/gap chunks ---
    s4, t4 = _bn_scale_shift(ODIM)
    wf = p["w_fcg1"] * s4[None, :]
    for i in range(3):
        kp[f"w_fcg1_max{i+1}"] = _pad2(wf[i * F:(i + 1) * F], FP, ODIM
                                       ).astype(jnp.bfloat16)
        kp[f"w_fcg1_mean{i+1}"] = _pad2(wf[3 * F + i * F:3 * F + (i + 1) * F], FP, ODIM
                                        ).astype(jnp.bfloat16)
    kp["b_fcg1"] = (p["b_fcg1"] * s4 + t4)[None, :]
    # --- protein branch: bf16 embedding table; conv BN folded into weight rows ---
    kp["emb"] = p["emb"].astype(jnp.bfloat16)
    for i, cout in ((1, 128), (2, 64), (3, 32)):
        s, t = _bn_scale_shift(cout)
        w = p[f"convxt{i}_w"] * s[:, None, None]                  # [Cout, Cin, 3]
        kp[f"cw{i}"] = jnp.concatenate([w[:, :, 0], w[:, :, 1], w[:, :, 2]],
                                       axis=0).astype(jnp.bfloat16)  # [3*Cout, Cin]
        kp[f"ct{i}"] = (p[f"convxt{i}_b"] * s + t)[:, None]       # [Cout, 1]
    # --- head: bn6/7/8 are AFTER ReLU -> fold into the NEXT layer's weights ---
    kp["w_fc1xt"] = p["w_fc1xt"].astype(jnp.bfloat16)
    kp["b_fc1xt"] = p["b_fc1xt"][None, :]
    s6, t6 = _bn_scale_shift(ODIM)
    kp["w_fc1_g"] = p["w_fc1"][:ODIM].astype(jnp.bfloat16)
    kp["w_fc1_t"] = (p["w_fc1"][ODIM:] * s6[:, None]).astype(jnp.bfloat16)
    kp["b_fc1"] = (p["b_fc1"] + t6 @ p["w_fc1"][ODIM:])[None, :]
    s7, t7 = _bn_scale_shift(1024)
    kp["w_fc2"] = (p["w_fc2"] * s7[:, None]).astype(jnp.bfloat16)
    kp["b_fc2"] = (p["b_fc2"] + t7 @ p["w_fc2"])[None, :]
    s8, t8 = _bn_scale_shift(512)
    kp["w_out"] = (p["w_out"] * s8[:, None]).astype(jnp.bfloat16)
    kp["b_out"] = (p["b_out"] + t8 @ p["w_out"])[None, :]
    return kp


def build_norm_adj(edge_index, num_nodes):
    """Dense D^{-1/2}(A+I)D^{-1/2} as used by GCNConv (gcn_norm)."""
    src, dst = edge_index[0], edge_index[1]
    A = jnp.zeros((num_nodes, num_nodes), jnp.float32)
    A = A.at[dst, src].add(1.0)
    A = A + jnp.eye(num_nodes, dtype=jnp.float32)
    deg = jnp.sum(A, axis=1)
    dinv = 1.0 / jnp.sqrt(deg)
    return A * dinv[:, None] * dinv[None, :]


# ----------------------------------------------------------------------------
# Forward pass
# ----------------------------------------------------------------------------
@jax.jit
def sagnet_forward(kp, x_nodes, a_norm, mask_nb, target):
    B = target.shape[0]
    N, F = x_nodes.shape
    x_pad = jnp.pad(x_nodes, ((0, 0), (0, FP - F))).astype(jnp.bfloat16)  # 78->128
    a_bf = a_norm.astype(jnp.bfloat16)
    mask_bn = mask_nb.T                                           # [B, N] 1/count
    valid = jnp.sum(mask_nb, axis=1, keepdims=True) > 0.0
    negmask = jnp.where(valid, 0.0, NEG).astype(jnp.float32)      # [N, 1]

    # ---- graph branch: one fused kernel (bf16 out) ---------------------------
    xg = graph_branch(a_bf, x_pad, negmask, mask_bn, kp)          # [B, 128] bf16
    # TODO(synk): dropout layers are identity (inference mode).

    # ---- protein branch: bf16 embedding gather (XLA) + one fused conv kernel -
    emb = jnp.take(kp["emb"], target, axis=0)                     # [B, 1000, 128] bf16
    c3 = protein_conv(emb, kp)                                    # [B, 32, 128] bf16
    xt_flat = c3.reshape(B, 32 * EMB)                             # contiguous reshape

    # ---- combined head: one fused kernel --------------------------------------
    return head(xg, xt_flat, kp)                                  # [B, 1] f32


# ----------------------------------------------------------------------------
if __name__ == "__main__":
    key = jax.random.PRNGKey(0)
    k_par, k_x, k_t = jax.random.split(key, 3)
    params = init_params(k_par)
    kparams = prepare_params(params)

    B, NODES_PER_GRAPH = 2, 8
    N = B * NODES_PER_GRAPH
    x_nodes = jax.random.normal(k_x, (N, F_NODE), jnp.float32)

    # small undirected ring graph per sample (uniform nodes-per-graph)
    src, dst = [], []
    for g in range(B):
        off = g * NODES_PER_GRAPH
        for i in range(NODES_PER_GRAPH):
            j = (i + 1) % NODES_PER_GRAPH
            src += [off + i, off + j]
            dst += [off + j, off + i]
    edge_index = jnp.array([src, dst], dtype=jnp.int32)
    batch = jnp.repeat(jnp.arange(B), NODES_PER_GRAPH)

    a_norm = build_norm_adj(edge_index, N)
    counts = jnp.bincount(batch, length=B).astype(jnp.float32)
    mask_nb = (batch[:, None] == jnp.arange(B)[None, :]).astype(jnp.float32)  # [N, B]
    mask_nb = mask_nb / counts[None, :]   # column b holds 1/count_b on its nodes

    target = jax.random.randint(k_t, (B, SEQ), 0, VOC)

    out = sagnet_forward(kparams, x_nodes, a_norm, mask_nb, target)
    out = jax.block_until_ready(out)
    assert out.shape == (B, 1) and out.dtype == jnp.float32
    print("KERNEL_OK")
</pallas_src>

<mosaic_0001>
module attributes {stable_mosaic.version = 11 : i64} {
  func.func @_protein_conv_kernel(%arg0: i32, %arg1: memref<1x1000x128xbf16, #tpu.memory_space<vmem>>, %arg2: memref<384x1000xbf16, #tpu.memory_space<vmem>>, %arg3: memref<128x1xf32, #tpu.memory_space<vmem>>, %arg4: memref<192x128xbf16, #tpu.memory_space<vmem>>, %arg5: memref<64x1xf32, #tpu.memory_space<vmem>>, %arg6: memref<96x64xbf16, #tpu.memory_space<vmem>>, %arg7: memref<32x1xf32, #tpu.memory_space<vmem>>, %arg8: memref<1x32x128xbf16, #tpu.memory_space<vmem>>) attributes {dimension_semantics = [#tpu.dimension_semantics<parallel>], iteration_bounds = array<i64: 2>, scalar_prefetch = 0 : i64, scratch_operands = 0 : i64, tpu.core_type = #tpu.core_type<tc>, window_params = [{transform_indices = @transform_0, window_bounds = array<i64: 1, 1000, 128>}, {pipeline_mode = #tpu.pipeline_mode<synchronous>, transform_indices = @transform_1, window_bounds = array<i64: 384, 1000>}, {pipeline_mode = #tpu.pipeline_mode<synchronous>, transform_indices = @transform_2, window_bounds = array<i64: 128, 1>}, {pipeline_mode = #tpu.pipeline_mode<synchronous>, transform_indices = @transform_3, window_bounds = array<i64: 192, 128>}, {pipeline_mode = #tpu.pipeline_mode<synchronous>, transform_indices = @transform_4, window_bounds = array<i64: 64, 1>}, {pipeline_mode = #tpu.pipeline_mode<synchronous>, transform_indices = @transform_5, window_bounds = array<i64: 96, 64>}, {pipeline_mode = #tpu.pipeline_mode<synchronous>, transform_indices = @transform_6, window_bounds = array<i64: 32, 1>}, {transform_indices = @transform_7, window_bounds = array<i64: 1, 32, 128>}]} {
    %c0 = arith.constant 0 : index
    %c0_0 = arith.constant 0 : index
    %c0_1 = arith.constant 0 : index
    %0 = vector.load %arg1[%c0, %c0_0, %c0_1] : memref<1x1000x128xbf16, #tpu.memory_space<vmem>>, vector<1x1000x128xbf16>
    %1 = vector.shape_cast %0 : vector<1x1000x128xbf16> to vector<1000x128xbf16>
    %c0_2 = arith.constant 0 : index
    %c0_3 = arith.constant 0 : index
    %2 = vector.load %arg2[%c0_2, %c0_3] : memref<384x1000xbf16, #tpu.memory_space<vmem>>, vector<384x1000xbf16>
    %cst = arith.constant dense<0.000000e+00> : vector<384x128xf32>
    %3 = tpu.matmul %2, %1, %cst {dimension_numbers = #tpu.dot_dimension_numbers<[1], [0], [0], [1], [0, 0, 1, 1], [], []>} : vector<384x1000xbf16>, vector<1000x128xbf16>, vector<384x128xf32> -> vector<384x128xf32>
    %4 = vector.extract_strided_slice %3 {offsets = [0, 0], sizes = [128, 128], strides = [1, 1]} : vector<384x128xf32> to vector<128x128xf32>
    %5 = vector.extract_strided_slice %3 {offsets = [128, 0], sizes = [128, 128], strides = [1, 1]} : vector<384x128xf32> to vector<128x128xf32>
    %6 = vector.extract_strided_slice %3 {offsets = [256, 0], sizes = [128, 128], strides = [1, 1]} : vector<384x128xf32> to vector<128x128xf32>
    %7 = tpu.iota {dimensions = array<i32: 1>} : vector<128x128xi32>
    %c0_i32 = arith.constant 0 : i32
    %8 = vector.broadcast %c0_i32 : i32 to vector<128x128xi32>
    %9 = arith.cmpi eq, %7, %8 : vector<128x128xi32>
    %c1_i32 = arith.constant 1 : i32
    %10 = tpu.dynamic_rotate %4 by %c1_i32 dim 1 : vector<128x128xf32>, i32 -> vector<128x128xf32>
    %cst_4 = arith.constant 0.000000e+00 : f32
    %11 = vector.broadcast %cst_4 : f32 to vector<128x128xf32>
    %12 = arith.select %9, %11, %10 : vector<128x128xi1>, vector<128x128xf32>
    %c127_i32 = arith.constant 127 : i32
    %13 = vector.broadcast %c127_i32 : i32 to vector<128x128xi32>
    %14 = arith.cmpi eq, %7, %13 : vector<128x128xi32>
    %c127_i32_5 = arith.constant 127 : i32
    %15 = tpu.dynamic_rotate %6 by %c127_i32_5 dim 1 : vector<128x128xf32>, i32 -> vector<128x128xf32>
    %cst_6 = arith.constant 0.000000e+00 : f32
    %16 = vector.broadcast %cst_6 : f32 to vector<128x128xf32>
    %17 = arith.select %14, %16, %15 : vector<128x128xi1>, vector<128x128xf32>
    %18 = arith.addf %12, %5 : vector<128x128xf32>
    %19 = arith.addf %18, %17 : vector<128x128xf32>
    %c0_7 = arith.constant 0 : index
    %c0_8 = arith.constant 0 : index
    %20 = vector.load %arg3[%c0_7, %c0_8] : memref<128x1xf32, #tpu.memory_space<vmem>>, vector<128x1xf32>
    %21 = vector.broadcast %20 : vector<128x1xf32> to vector<128x128xf32>
    %22 = arith.addf %19, %21 : vector<128x128xf32>
    %cst_9 = arith.constant 0.000000e+00 : f32
    %23 = vector.broadcast %cst_9 : f32 to vector<128x128xf32>
    %24 = arith.maximumf %22, %23 : vector<128x128xf32>
    %25 = arith.truncf %24 : vector<128x128xf32> to vector<128x128xbf16>
    %c0_10 = arith.constant 0 : index
    %c0_11 = arith.constant 0 : index
    %26 = vector.load %arg4[%c0_10, %c0_11] : memref<192x128xbf16, #tpu.memory_space<vmem>>, vector<192x128xbf16>
    %cst_12 = arith.constant dense<0.000000e+00> : vector<192x128xf32>
    %27 = tpu.matmul %26, %25, %cst_12 {dimension_numbers = #tpu.dot_dimension_numbers<[1], [0], [0], [1], [0, 0, 1, 1], [], []>} : vector<192x128xbf16>, vector<128x128xbf16>, vector<192x128xf32> -> vector<192x128xf32>
    %28 = vector.extract_strided_slice %27 {offsets = [0, 0], sizes = [64, 128], strides = [1, 1]} : vector<192x128xf32> to vector<64x128xf32>
    %29 = vector.extract_strided_slice %27 {offsets = [64, 0], sizes = [64, 128], strides = [1, 1]} : vector<192x128xf32> to vector<64x128xf32>
    %30 = vector.extract_strided_slice %27 {offsets = [128, 0], sizes = [64, 128], strides = [1, 1]} : vector<192x128xf32> to vector<64x128xf32>
    %31 = tpu.iota {dimensions = array<i32: 1>} : vector<64x128xi32>
    %c0_i32_13 = arith.constant 0 : i32
    %32 = vector.broadcast %c0_i32_13 : i32 to vector<64x128xi32>
    %33 = arith.cmpi eq, %31, %32 : vector<64x128xi32>
    %c1_i32_14 = arith.constant 1 : i32
    %34 = tpu.dynamic_rotate %28 by %c1_i32_14 dim 1 : vector<64x128xf32>, i32 -> vector<64x128xf32>
    %cst_15 = arith.constant 0.000000e+00 : f32
    %35 = vector.broadcast %cst_15 : f32 to vector<64x128xf32>
    %36 = arith.select %33, %35, %34 : vector<64x128xi1>, vector<64x128xf32>
    %c127_i32_16 = arith.constant 127 : i32
    %37 = vector.broadcast %c127_i32_16 : i32 to vector<64x128xi32>
    %38 = arith.cmpi eq, %31, %37 : vector<64x128xi32>
    %c127_i32_17 = arith.constant 127 : i32
    %39 = tpu.dynamic_rotate %30 by %c127_i32_17 dim 1 : vector<64x128xf32>, i32 -> vector<64x128xf32>
    %cst_18 = arith.constant 0.000000e+00 : f32
    %40 = vector.broadcast %cst_18 : f32 to vector<64x128xf32>
    %41 = arith.select %38, %40, %39 : vector<64x128xi1>, vector<64x128xf32>
    %42 = arith.addf %36, %29 : vector<64x128xf32>
    %43 = arith.addf %42, %41 : vector<64x128xf32>
    %c0_19 = arith.constant 0 : index
    %c0_20 = arith.constant 0 : index
    %44 = vector.load %arg5[%c0_19, %c0_20] : memref<64x1xf32, #tpu.memory_space<vmem>>, vector<64x1xf32>
    %45 = vector.broadcast %44 : vector<64x1xf32> to vector<64x128xf32>
    %46 = arith.addf %43, %45 : vector<64x128xf32>
    %cst_21 = arith.constant 0.000000e+00 : f32
    %47 = vector.broadcast %cst_21 : f32 to vector<64x128xf32>
    %48 = arith.maximumf %46, %47 : vector<64x128xf32>
    %49 = arith.truncf %48 : vector<64x128xf32> to vector<64x128xbf16>
    %c0_22 = arith.constant 0 : index
    %c0_23 = arith.constant 0 : index
    %50 = vector.load %arg6[%c0_22, %c0_23] : memref<96x64xbf16, #tpu.memory_space<vmem>>, vector<96x64xbf16>
    %cst_24 = arith.constant dense<0.000000e+00> : vector<96x128xf32>
    %51 = tpu.matmul %50, %49, %cst_24 {dimension_numbers = #tpu.dot_dimension_numbers<[1], [0], [0], [1], [0, 0, 1, 1], [], []>} : vector<96x64xbf16>, vector<64x128xbf16>, vector<96x128xf32> -> vector<96x128xf32>
    %52 = vector.extract_strided_slice %51 {offsets = [0, 0], sizes = [32, 128], strides = [1, 1]} : vector<96x128xf32> to vector<32x128xf32>
    %53 = vector.extract_strided_slice %51 {offsets = [32, 0], sizes = [32, 128], strides = [1, 1]} : vector<96x128xf32> to vector<32x128xf32>
    %54 = vector.extract_strided_slice %51 {offsets = [64, 0], sizes = [32, 128], strides = [1, 1]} : vector<96x128xf32> to vector<32x128xf32>
    %55 = tpu.iota {dimensions = array<i32: 1>} : vector<32x128xi32>
    %c0_i32_25 = arith.constant 0 : i32
    %56 = vector.broadcast %c0_i32_25 : i32 to vector<32x128xi32>
    %57 = arith.cmpi eq, %55, %56 : vector<32x128xi32>
    %c1_i32_26 = arith.constant 1 : i32
    %58 = tpu.dynamic_rotate %52 by %c1_i32_26 dim 1 : vector<32x128xf32>, i32 -> vector<32x128xf32>
    %cst_27 = arith.constant 0.000000e+00 : f32
    %59 = vector.broadcast %cst_27 : f32 to vector<32x128xf32>
    %60 = arith.select %57, %59, %58 : vector<32x128xi1>, vector<32x128xf32>
    %c127_i32_28 = arith.constant 127 : i32
    %61 = vector.broadcast %c127_i32_28 : i32 to vector<32x128xi32>
    %62 = arith.cmpi eq, %55, %61 : vector<32x128xi32>
    %c127_i32_29 = arith.constant 127 : i32
    %63 = tpu.dynamic_rotate %54 by %c127_i32_29 dim 1 : vector<32x128xf32>, i32 -> vector<32x128xf32>
    %cst_30 = arith.constant 0.000000e+00 : f32
    %64 = vector.broadcast %cst_30 : f32 to vector<32x128xf32>
    %65 = arith.select %62, %64, %63 : vector<32x128xi1>, vector<32x128xf32>
    %66 = arith.addf %60, %53 : vector<32x128xf32>
    %67 = arith.addf %66, %65 : vector<32x128xf32>
    %c0_31 = arith.constant 0 : index
    %c0_32 = arith.constant 0 : index
    %68 = vector.load %arg7[%c0_31, %c0_32] : memref<32x1xf32, #tpu.memory_space<vmem>>, vector<32x1xf32>
    %69 = vector.broadcast %68 : vector<32x1xf32> to vector<32x128xf32>
    %70 = arith.addf %67, %69 : vector<32x128xf32>
    %cst_33 = arith.constant 0.000000e+00 : f32
    %71 = vector.broadcast %cst_33 : f32 to vector<32x128xf32>
    %72 = arith.maximumf %70, %71 : vector<32x128xf32>
    %73 = arith.truncf %72 : vector<32x128xf32> to vector<32x128xbf16>
    %c0_34 = arith.constant 0 : index
    %c0_35 = arith.constant 0 : index
    %c0_36 = arith.constant 0 : index
    %74 = vector.load %arg8[%c0_34, %c0_35, %c0_36] : memref<1x32x128xbf16, #tpu.memory_space<vmem>>, vector<1x32x128xbf16>
    %75 = vector.shape_cast %74 : vector<1x32x128xbf16> to vector<32x128xbf16>
    %76 = vector.shape_cast %73 : vector<32x128xbf16> to vector<1x32x128xbf16>
    tpu.vector_store %arg8[%c0_34, %c0_35, %c0_36], %76 {strides = array<i32>} : memref<1x32x128xbf16, #tpu.memory_space<vmem>>, vector<1x32x128xbf16>,
    return
  }
  func.func @transform_0(%arg0: i32) -> (i32, i32, i32) {
    %c0_i32 = arith.constant 0 : i32
    %c0_i32_0 = arith.constant 0 : i32
    %c0_i32_1 = arith.constant 0 : i32
    return %arg0, %c0_i32, %c0_i32_0 : i32, i32, i32
  }
  func.func @transform_1(%arg0: i32) -> (i32, i32) {
    %c0_i32 = arith.constant 0 : i32
    %c0_i32_0 = arith.constant 0 : i32
    %c0_i32_1 = arith.constant 0 : i32
    return %c0_i32, %c0_i32_0 : i32, i32
  }
  func.func @transform_2(%arg0: i32) -> (i32, i32) {
    %c0_i32 = arith.constant 0 : i32
    %c0_i32_0 = arith.constant 0 : i32
    %c0_i32_1 = arith.constant 0 : i32
    return %c0_i32, %c0_i32_0 : i32, i32
  }
  func.func @transform_3(%arg0: i32) -> (i32, i32) {
    %c0_i32 = arith.constant 0 : i32
    %c0_i32_0 = arith.constant 0 : i32
    %c0_i32_1 = arith.constant 0 : i32
    return %c0_i32, %c0_i32_0 : i32, i32
  }
  func.func @transform_4(%arg0: i32) -> (i32, i32) {
    %c0_i32 = arith.constant 0 : i32
    %c0_i32_0 = arith.constant 0 : i32
    %c0_i32_1 = arith.constant 0 : i32
    return %c0_i32, %c0_i32_0 : i32, i32
  }
  func.func @transform_5(%arg0: i32) -> (i32, i32) {
    %c0_i32 = arith.constant 0 : i32
    %c0_i32_0 = arith.constant 0 : i32
    %c0_i32_1 = arith.constant 0 : i32
    return %c0_i32, %c0_i32_0 : i32, i32
  }
  func.func @transform_6(%arg0: i32) -> (i32, i32) {
    %c0_i32 = arith.constant 0 : i32
    %c0_i32_0 = arith.constant 0 : i32
    %c0_i32_1 = arith.constant 0 : i32
    return %c0_i32, %c0_i32_0 : i32, i32
  }
  func.func @transform_7(%arg0: i32) -> (i32, i32, i32) {
    %c0_i32 = arith.constant 0 : i32
    %c0_i32_0 = arith.constant 0 : i32
    %c0_i32_1 = arith.constant 0 : i32
    return %arg0, %c0_i32, %c0_i32_0 : i32, i32, i32
  }
}

module attributes {stable_mosaic.version = 11 : i64} {
  func.func @_head_kernel(%arg0: memref<2x128xbf16, #tpu.memory_space<vmem>>, %arg1: memref<2x4096xbf16, #tpu.memory_space<vmem>>, %arg2: memref<4096x128xbf16, #tpu.memory_space<vmem>>, %arg3: memref<1x128xf32, #tpu.memory_space<vmem>>, %arg4: memref<128x1024xbf16, #tpu.memory_space<vmem>>, %arg5: memref<128x1024xbf16, #tpu.memory_space<vmem>>, %arg6: memref<1x1024xf32, #tpu.memory_space<vmem>>, %arg7: memref<1024x512xbf16, #tpu.memory_space<vmem>>, %arg8: memref<1x512xf32, #tpu.memory_space<vmem>>, %arg9: memref<512x1xbf16, #tpu.memory_space<vmem>>, %arg10: memref<1x1xf32, #tpu.memory_space<vmem>>, %arg11: memref<2x1xf32, #tpu.memory_space<vmem>>) attributes {dimension_semantics = [], scalar_prefetch = 0 : i64, scratch_operands = 0 : i64, tpu.core_type = #tpu.core_type<tc>} {
    %c0 = arith.constant 0 : index
    %c0_0 = arith.constant 0 : index
    %0 = vector.load %arg1[%c0, %c0_0] : memref<2x4096xbf16, #tpu.memory_space<vmem>>, vector<2x4096xbf16>
    %c0_1 = arith.constant 0 : index
    %c0_2 = arith.constant 0 : index
    %1 = vector.load %arg2[%c0_1, %c0_2] : memref<4096x128xbf16, #tpu.memory_space<vmem>>, vector<4096x128xbf16>
    %cst = arith.constant dense<0.000000e+00> : vector<2x128xf32>
    %2 = tpu.matmul %0, %1, %cst {dimension_numbers = #tpu.dot_dimension_numbers<[1], [0], [0], [1], [0, 0, 1, 1], [], []>} : vector<2x4096xbf16>, vector<4096x128xbf16>, vector<2x128xf32> -> vector<2x128xf32>
    %c0_3 = arith.constant 0 : index
    %c0_4 = arith.constant 0 : index
    %3 = vector.load %arg3[%c0_3, %c0_4] : memref<1x128xf32, #tpu.memory_space<vmem>>, vector<1x128xf32>
    %4 = vector.broadcast %3 : vector<1x128xf32> to vector<2x128xf32>
    %5 = arith.addf %2, %4 : vector<2x128xf32>
    %cst_5 = arith.constant 0.000000e+00 : f32
    %6 = vector.broadcast %cst_5 : f32 to vector<2x128xf32>
    %7 = arith.maximumf %5, %6 : vector<2x128xf32>
    %c0_6 = arith.constant 0 : index
    %c0_7 = arith.constant 0 : index
    %8 = vector.load %arg0[%c0_6, %c0_7] : memref<2x128xbf16, #tpu.memory_space<vmem>>, vector<2x128xbf16>
    %c0_8 = arith.constant 0 : index
    %c0_9 = arith.constant 0 : index
    %9 = vector.load %arg4[%c0_8, %c0_9] : memref<128x1024xbf16, #tpu.memory_space<vmem>>, vector<128x1024xbf16>
    %cst_10 = arith.constant dense<0.000000e+00> : vector<2x1024xf32>
    %10 = tpu.matmul %8, %9, %cst_10 {dimension_numbers = #tpu.dot_dimension_numbers<[1], [0], [0], [1], [0, 0, 1, 1], [], []>} : vector<2x128xbf16>, vector<128x1024xbf16>, vector<2x1024xf32> -> vector<2x1024xf32>
    %11 = arith.truncf %7 : vector<2x128xf32> to vector<2x128xbf16>
    %c0_11 = arith.constant 0 : index
    %c0_12 = arith.constant 0 : index
    %12 = vector.load %arg5[%c0_11, %c0_12] : memref<128x1024xbf16, #tpu.memory_space<vmem>>, vector<128x1024xbf16>
    %cst_13 = arith.constant dense<0.000000e+00> : vector<2x1024xf32>
    %13 = tpu.matmul %11, %12, %cst_13 {dimension_numbers = #tpu.dot_dimension_numbers<[1], [0], [0], [1], [0, 0, 1, 1], [], []>} : vector<2x128xbf16>, vector<128x1024xbf16>, vector<2x1024xf32> -> vector<2x1024xf32>
    %14 = arith.addf %10, %13 : vector<2x1024xf32>
    %c0_14 = arith.constant 0 : index
    %c0_15 = arith.constant 0 : index
    %15 = vector.load %arg6[%c0_14, %c0_15] : memref<1x1024xf32, #tpu.memory_space<vmem>>, vector<1x1024xf32>
    %16 = vector.broadcast %15 : vector<1x1024xf32> to vector<2x1024xf32>
    %17 = arith.addf %14, %16 : vector<2x1024xf32>
    %cst_16 = arith.constant 0.000000e+00 : f32
    %18 = vector.broadcast %cst_16 : f32 to vector<2x1024xf32>
    %19 = arith.maximumf %17, %18 : vector<2x1024xf32>
    %20 = arith.truncf %19 : vector<2x1024xf32> to vector<2x1024xbf16>
    %c0_17 = arith.constant 0 : index
    %c0_18 = arith.constant 0 : index
    %21 = vector.load %arg7[%c0_17, %c0_18] : memref<1024x512xbf16, #tpu.memory_space<vmem>>, vector<1024x512xbf16>
    %cst_19 = arith.constant dense<0.000000e+00> : vector<2x512xf32>
    %22 = tpu.matmul %20, %21, %cst_19 {dimension_numbers = #tpu.dot_dimension_numbers<[1], [0], [0], [1], [0, 0, 1, 1], [], []>} : vector<2x1024xbf16>, vector<1024x512xbf16>, vector<2x512xf32> -> vector<2x512xf32>
    %c0_20 = arith.constant 0 : index
    %c0_21 = arith.constant 0 : index
    %23 = vector.load %arg8[%c0_20, %c0_21] : memref<1x512xf32, #tpu.memory_space<vmem>>, vector<1x512xf32>
    %24 = vector.broadcast %23 : vector<1x512xf32> to vector<2x512xf32>
    %25 = arith.addf %22, %24 : vector<2x512xf32>
    %cst_22 = arith.constant 0.000000e+00 : f32
    %26 = vector.broadcast %cst_22 : f32 to vector<2x512xf32>
    %27 = arith.maximumf %25, %26 : vector<2x512xf32>
    %28 = arith.truncf %27 : vector<2x512xf32> to vector<2x512xbf16>
    %c0_23 = arith.constant 0 : index
    %c0_24 = arith.constant 0 : index
    %29 = vector.load %arg9[%c0_23, %c0_24] : memref<512x1xbf16, #tpu.memory_space<vmem>>, vector<512x1xbf16>
    %cst_25 = arith.constant dense<0.000000e+00> : vector<2x1xf32>
    %30 = tpu.matmul %28, %29, %cst_25 {dimension_numbers = #tpu.dot_dimension_numbers<[1], [0], [0], [1], [0, 0, 1, 1], [], []>} : vector<2x512xbf16>, vector<512x1xbf16>, vector<2x1xf32> -> vector<2x1xf32>
    %c0_26 = arith.constant 0 : index
    %c0_27 = arith.constant 0 : index
    %31 = vector.load %arg10[%c0_26, %c0_27] : memref<1x1xf32, #tpu.memory_space<vmem>>, vector<1x1xf32>
    %32 = vector.broadcast %31 : vector<1x1xf32> to vector<2x1xf32>
    %33 = arith.addf %30, %32 : vector<2x1xf32>
    %c0_28 = arith.constant 0 : index
    %c0_29 = arith.constant 0 : index
    %34 = vector.load %arg11[%c0_28, %c0_29] : memref<2x1xf32, #tpu.memory_space<vmem>>, vector<2x1xf32>
    tpu.vector_store %arg11[%c0_28, %c0_29], %33 {strides = array<i32>} : memref<2x1xf32, #tpu.memory_space<vmem>>, vector<2x1xf32>,
    return
  }
}

module attributes {stable_mosaic.version = 11 : i64} {
  func.func @kernel(%arg0: memref<16x16xbf16, #tpu.memory_space<vmem>>, %arg1: memref<16x128xbf16, #tpu.memory_space<vmem>>, %arg2: memref<128x128xbf16, #tpu.memory_space<vmem>>, %arg3: memref<1x128xf32, #tpu.memory_space<vmem>>, %arg4: memref<128x128xbf16, #tpu.memory_space<vmem>>, %arg5: memref<1x128xf32, #tpu.memory_space<vmem>>, %arg6: memref<128x128xbf16, #tpu.memory_space<vmem>>, %arg7: memref<1x128xf32, #tpu.memory_space<vmem>>, %arg8: memref<128x1xbf16, #tpu.memory_space<vmem>>, %arg9: memref<128x1xbf16, #tpu.memory_space<vmem>>, %arg10: memref<128x1xbf16, #tpu.memory_space<vmem>>, %arg11: memref<1x1xf32, #tpu.memory_space<vmem>>, %arg12: memref<16x1xf32, #tpu.memory_space<vmem>>, %arg13: memref<2x16xf32, #tpu.memory_space<vmem>>, %arg14: memref<128x128xbf16, #tpu.memory_space<vmem>>, %arg15: memref<128x128xbf16, #tpu.memory_space<vmem>>, %arg16: memref<128x128xbf16, #tpu.memory_space<vmem>>, %arg17: memref<128x128xbf16, #tpu.memory_space<vmem>>, %arg18: memref<128x128xbf16, #tpu.memory_space<vmem>>, %arg19: memref<128x128xbf16, #tpu.memory_space<vmem>>, %arg20: memref<1x128xf32, #tpu.memory_space<vmem>>, %arg21: memref<2x128xbf16, #tpu.memory_space<vmem>>) attributes {dimension_semantics = [], scalar_prefetch = 0 : i64, scratch_operands = 0 : i64, tpu.core_type = #tpu.core_type<tc>} {
    %c0 = arith.constant 0 : index
    %c0_0 = arith.constant 0 : index
    %0 = vector.load %arg0[%c0, %c0_0] : memref<16x16xbf16, #tpu.memory_space<vmem>>, vector<16x16xbf16>
    %c0_1 = arith.constant 0 : index
    %c0_2 = arith.constant 0 : index
    %1 = vector.load %arg1[%c0_1, %c0_2] : memref<16x128xbf16, #tpu.memory_space<vmem>>, vector<16x128xbf16>
    %c0_3 = arith.constant 0 : index
    %c0_4 = arith.constant 0 : index
    %2 = vector.load %arg2[%c0_3, %c0_4] : memref<128x128xbf16, #tpu.memory_space<vmem>>, vector<128x128xbf16>
    %cst = arith.constant dense<0.000000e+00> : vector<16x128xf32>
    %3 = tpu.matmul %1, %2, %cst {dimension_numbers = #tpu.dot_dimension_numbers<[1], [0], [0], [1], [0, 0, 1, 1], [], []>} : vector<16x128xbf16>, vector<128x128xbf16>, vector<16x128xf32> -> vector<16x128xf32>
    %4 = arith.truncf %3 : vector<16x128xf32> to vector<16x128xbf16>
    %cst_5 = arith.constant dense<0.000000e+00> : vector<16x128xf32>
    %5 = tpu.matmul %0, %4, %cst_5 {dimension_numbers = #tpu.dot_dimension_numbers<[1], [0], [0], [1], [0, 0, 1, 1], [], []>} : vector<16x16xbf16>, vector<16x128xbf16>, vector<16x128xf32> -> vector<16x128xf32>
    %c0_6 = arith.constant 0 : index
    %c0_7 = arith.constant 0 : index
    %6 = vector.load %arg3[%c0_6, %c0_7] : memref<1x128xf32, #tpu.memory_space<vmem>>, vector<1x128xf32>
    %7 = vector.broadcast %6 : vector<1x128xf32> to vector<16x128xf32>
    %8 = arith.addf %5, %7 : vector<16x128xf32>
    %cst_8 = arith.constant 0.000000e+00 : f32
    %9 = vector.broadcast %cst_8 : f32 to vector<16x128xf32>
    %10 = arith.maximumf %8, %9 : vector<16x128xf32>
    %11 = arith.truncf %10 : vector<16x128xf32> to vector<16x128xbf16>
    %c0_9 = arith.constant 0 : index
    %c0_10 = arith.constant 0 : index
    %12 = vector.load %arg4[%c0_9, %c0_10] : memref<128x128xbf16, #tpu.memory_space<vmem>>, vector<128x128xbf16>
    %cst_11 = arith.constant dense<0.000000e+00> : vector<16x128xf32>
    %13 = tpu.matmul %11, %12, %cst_11 {dimension_numbers = #tpu.dot_dimension_numbers<[1], [0], [0], [1], [0, 0, 1, 1], [], []>} : vector<16x128xbf16>, vector<128x128xbf16>, vector<16x128xf32> -> vector<16x128xf32>
    %14 = arith.truncf %13 : vector<16x128xf32> to vector<16x128xbf16>
    %cst_12 = arith.constant dense<0.000000e+00> : vector<16x128xf32>
    %15 = tpu.matmul %0, %14, %cst_12 {dimension_numbers = #tpu.dot_dimension_numbers<[1], [0], [0], [1], [0, 0, 1, 1], [], []>} : vector<16x16xbf16>, vector<16x128xbf16>, vector<16x128xf32> -> vector<16x128xf32>
    %c0_13 = arith.constant 0 : index
    %c0_14 = arith.constant 0 : index
    %16 = vector.load %arg5[%c0_13, %c0_14] : memref<1x128xf32, #tpu.memory_space<vmem>>, vector<1x128xf32>
    %17 = vector.broadcast %16 : vector<1x128xf32> to vector<16x128xf32>
    %18 = arith.addf %15, %17 : vector<16x128xf32>
    %cst_15 = arith.constant 0.000000e+00 : f32
    %19 = vector.broadcast %cst_15 : f32 to vector<16x128xf32>
    %20 = arith.maximumf %18, %19 : vector<16x128xf32>
    %21 = arith.truncf %20 : vector<16x128xf32> to vector<16x128xbf16>
    %c0_16 = arith.constant 0 : index
    %c0_17 = arith.constant 0 : index
    %22 = vector.load %arg6[%c0_16, %c0_17] : memref<128x128xbf16, #tpu.memory_space<vmem>>, vector<128x128xbf16>
    %cst_18 = arith.constant dense<0.000000e+00> : vector<16x128xf32>
    %23 = tpu.matmul %21, %22, %cst_18 {dimension_numbers = #tpu.dot_dimension_numbers<[1], [0], [0], [1], [0, 0, 1, 1], [], []>} : vector<16x128xbf16>, vector<128x128xbf16>, vector<16x128xf32> -> vector<16x128xf32>
    %24 = arith.truncf %23 : vector<16x128xf32> to vector<16x128xbf16>
    %cst_19 = arith.constant dense<0.000000e+00> : vector<16x128xf32>
    %25 = tpu.matmul %0, %24, %cst_19 {dimension_numbers = #tpu.dot_dimension_numbers<[1], [0], [0], [1], [0, 0, 1, 1], [], []>} : vector<16x16xbf16>, vector<16x128xbf16>, vector<16x128xf32> -> vector<16x128xf32>
    %c0_20 = arith.constant 0 : index
    %c0_21 = arith.constant 0 : index
    %26 = vector.load %arg7[%c0_20, %c0_21] : memref<1x128xf32, #tpu.memory_space<vmem>>, vector<1x128xf32>
    %27 = vector.broadcast %26 : vector<1x128xf32> to vector<16x128xf32>
    %28 = arith.addf %25, %27 : vector<16x128xf32>
    %cst_22 = arith.constant 0.000000e+00 : f32
    %29 = vector.broadcast %cst_22 : f32 to vector<16x128xf32>
    %30 = arith.maximumf %28, %29 : vector<16x128xf32>
    %31 = arith.truncf %30 : vector<16x128xf32> to vector<16x128xbf16>
    %c0_23 = arith.constant 0 : index
    %c0_24 = arith.constant 0 : index
    %32 = vector.load %arg8[%c0_23, %c0_24] : memref<128x1xbf16, #tpu.memory_space<vmem>>, vector<128x1xbf16>
    %cst_25 = arith.constant dense<0.000000e+00> : vector<16x1xf32>
    %33 = tpu.matmul %11, %32, %cst_25 {dimension_numbers = #tpu.dot_dimension_numbers<[1], [0], [0], [1], [0, 0, 1, 1], [], []>} : vector<16x128xbf16>, vector<128x1xbf16>, vector<16x1xf32> -> vector<16x1xf32>
    %c0_26 = arith.constant 0 : index
    %c0_27 = arith.constant 0 : index
    %34 = vector.load %arg9[%c0_26, %c0_27] : memref<128x1xbf16, #tpu.memory_space<vmem>>, vector<128x1xbf16>
    %cst_28 = arith.constant dense<0.000000e+00> : vector<16x1xf32>
    %35 = tpu.matmul %21, %34, %cst_28 {dimension_numbers = #tpu.dot_dimension_numbers<[1], [0], [0], [1], [0, 0, 1, 1], [], []>} : vector<16x128xbf16>, vector<128x1xbf16>, vector<16x1xf32> -> vector<16x1xf32>
    %36 = arith.addf %33, %35 : vector<16x1xf32>
    %c0_29 = arith.constant 0 : index
    %c0_30 = arith.constant 0 : index
    %37 = vector.load %arg10[%c0_29, %c0_30] : memref<128x1xbf16, #tpu.memory_space<vmem>>, vector<128x1xbf16>
    %cst_31 = arith.constant dense<0.000000e+00> : vector<16x1xf32>
    %38 = tpu.matmul %31, %37, %cst_31 {dimension_numbers = #tpu.dot_dimension_numbers<[1], [0], [0], [1], [0, 0, 1, 1], [], []>} : vector<16x128xbf16>, vector<128x1xbf16>, vector<16x1xf32> -> vector<16x1xf32>
    %39 = arith.addf %36, %38 : vector<16x1xf32>
    %40 = arith.truncf %39 : vector<16x1xf32> to vector<16x1xbf16>
    %cst_32 = arith.constant dense<0.000000e+00> : vector<16x1xf32>
    %41 = tpu.matmul %0, %40, %cst_32 {dimension_numbers = #tpu.dot_dimension_numbers<[1], [0], [0], [1], [0, 0, 1, 1], [], []>} : vector<16x16xbf16>, vector<16x1xbf16>, vector<16x1xf32> -> vector<16x1xf32>
    %c0_33 = arith.constant 0 : index
    %c0_34 = arith.constant 0 : index
    %42 = vector.load %arg11[%c0_33, %c0_34] : memref<1x1xf32, #tpu.memory_space<vmem>>, vector<1x1xf32>
    %43 = vector.broadcast %42 : vector<1x1xf32> to vector<16x1xf32>
    %44 = arith.addf %41, %43 : vector<16x1xf32>
    %45 = math.tanh %44 : vector<16x1xf32>
    %c0_35 = arith.constant 0 : index
    %c0_36 = arith.constant 0 : index
    %46 = vector.load %arg12[%c0_35, %c0_36] : memref<16x1xf32, #tpu.memory_space<vmem>>, vector<16x1xf32>
    %c0_37 = arith.constant 0 : index
    %c0_38 = arith.constant 0 : index
    %47 = vector.load %arg13[%c0_37, %c0_38] : memref<2x16xf32, #tpu.memory_space<vmem>>, vector<2x16xf32>
    %48 = vector.broadcast %45 : vector<16x1xf32> to vector<16x128xf32>
    %49 = arith.mulf %10, %48 : vector<16x128xf32>
    %50 = vector.broadcast %46 : vector<16x1xf32> to vector<16x128xf32>
    %51 = arith.addf %49, %50 : vector<16x128xf32>
    %52 = vector.shape_cast %51 : vector<16x128xf32> to vector<2x8x128xf32>
    %cst_39 = arith.constant dense<0xFF800000> : vector<2x128xf32>
    %53 = vector.multi_reduction <maximumf>, %52, %cst_39 [1] : vector<2x8x128xf32> to vector<2x128xf32>
    %cst_40 = arith.constant dense<0.000000e+00> : vector<2x128xf32>
    %54 = tpu.matmul %47, %49, %cst_40 {dimension_numbers = #tpu.dot_dimension_numbers<[1], [0], [0], [1], [0, 0, 1, 1], [], []>} : vector<2x16xf32>, vector<16x128xf32>, vector<2x128xf32> -> vector<2x128xf32>
    %55 = arith.truncf %53 : vector<2x128xf32> to vector<2x128xbf16>
    %56 = arith.truncf %54 : vector<2x128xf32> to vector<2x128xbf16>
    %57 = vector.broadcast %45 : vector<16x1xf32> to vector<16x128xf32>
    %58 = arith.mulf %20, %57 : vector<16x128xf32>
    %59 = vector.broadcast %46 : vector<16x1xf32> to vector<16x128xf32>
    %60 = arith.addf %58, %59 : vector<16x128xf32>
    %61 = vector.shape_cast %60 : vector<16x128xf32> to vector<2x8x128xf32>
    %cst_41 = arith.constant dense<0xFF800000> : vector<2x128xf32>
    %62 = vector.multi_reduction <maximumf>, %61, %cst_41 [1] : vector<2x8x128xf32> to vector<2x128xf32>
    %cst_42 = arith.constant dense<0.000000e+00> : vector<2x128xf32>
    %63 = tpu.matmul %47, %58, %cst_42 {dimension_numbers = #tpu.dot_dimension_numbers<[1], [0], [0], [1], [0, 0, 1, 1], [], []>} : vector<2x16xf32>, vector<16x128xf32>, vector<2x128xf32> -> vector<2x128xf32>
    %64 = arith.truncf %62 : vector<2x128xf32> to vector<2x128xbf16>
    %65 = arith.truncf %63 : vector<2x128xf32> to vector<2x128xbf16>
    %66 = vector.broadcast %45 : vector<16x1xf32> to vector<16x128xf32>
    %67 = arith.mulf %30, %66 : vector<16x128xf32>
    %68 = vector.broadcast %46 : vector<16x1xf32> to vector<16x128xf32>
    %69 = arith.addf %67, %68 : vector<16x128xf32>
    %70 = vector.shape_cast %69 : vector<16x128xf32> to vector<2x8x128xf32>
    %cst_43 = arith.constant dense<0xFF800000> : vector<2x128xf32>
    %71 = vector.multi_reduction <maximumf>, %70, %cst_43 [1] : vector<2x8x128xf32> to vector<2x128xf32>
    %cst_44 = arith.constant dense<0.000000e+00> : vector<2x128xf32>
    %72 = tpu.matmul %47, %67, %cst_44 {dimension_numbers = #tpu.dot_dimension_numbers<[1], [0], [0], [1], [0, 0, 1, 1], [], []>} : vector<2x16xf32>, vector<16x128xf32>, vector<2x128xf32> -> vector<2x128xf32>
    %73 = arith.truncf %71 : vector<2x128xf32> to vector<2x128xbf16>
    %74 = arith.truncf %72 : vector<2x128xf32> to vector<2x128xbf16>
    %c0_45 = arith.constant 0 : index
    %c0_46 = arith.constant 0 : index
    %75 = vector.load %arg14[%c0_45, %c0_46] : memref<128x128xbf16, #tpu.memory_space<vmem>>, vector<128x128xbf16>
    %cst_47 = arith.constant dense<0.000000e+00> : vector<2x128xf32>
    %76 = tpu.matmul %55, %75, %cst_47 {dimension_numbers = #tpu.dot_dimension_numbers<[1], [0], [0], [1], [0, 0, 1, 1], [], []>} : vector<2x128xbf16>, vector<128x128xbf16>, vector<2x128xf32> -> vector<2x128xf32>
    %c0_48 = arith.constant 0 : index
    %c0_49 = arith.constant 0 : index
    %77 = vector.load %arg15[%c0_48, %c0_49] : memref<128x128xbf16, #tpu.memory_space<vmem>>, vector<128x128xbf16>
    %cst_50 = arith.constant dense<0.000000e+00> : vector<2x128xf32>
    %78 = tpu.matmul %64, %77, %cst_50 {dimension_numbers = #tpu.dot_dimension_numbers<[1], [0], [0], [1], [0, 0, 1, 1], [], []>} : vector<2x128xbf16>, vector<128x128xbf16>, vector<2x128xf32> -> vector<2x128xf32>
    %79 = arith.addf %76, %78 : vector<2x128xf32>
    %c0_51 = arith.constant 0 : index
    %c0_52 = arith.constant 0 : index
    %80 = vector.load %arg16[%c0_51, %c0_52] : memref<128x128xbf16, #tpu.memory_space<vmem>>, vector<128x128xbf16>
    %cst_53 = arith.constant dense<0.000000e+00> : vector<2x128xf32>
    %81 = tpu.matmul %73, %80, %cst_53 {dimension_numbers = #tpu.dot_dimension_numbers<[1], [0], [0], [1], [0, 0, 1, 1], [], []>} : vector<2x128xbf16>, vector<128x128xbf16>, vector<2x128xf32> -> vector<2x128xf32>
    %82 = arith.addf %79, %81 : vector<2x128xf32>
    %c0_54 = arith.constant 0 : index
    %c0_55 = arith.constant 0 : index
    %83 = vector.load %arg17[%c0_54, %c0_55] : memref<128x128xbf16, #tpu.memory_space<vmem>>, vector<128x128xbf16>
    %cst_56 = arith.constant dense<0.000000e+00> : vector<2x128xf32>
    %84 = tpu.matmul %56, %83, %cst_56 {dimension_numbers = #tpu.dot_dimension_numbers<[1], [0], [0], [1], [0, 0, 1, 1], [], []>} : vector<2x128xbf16>, vector<128x128xbf16>, vector<2x128xf32> -> vector<2x128xf32>
    %85 = arith.addf %82, %84 : vector<2x128xf32>
    %c0_57 = arith.constant 0 : index
    %c0_58 = arith.constant 0 : index
    %86 = vector.load %arg18[%c0_57, %c0_58] : memref<128x128xbf16, #tpu.memory_space<vmem>>, vector<128x128xbf16>
    %cst_59 = arith.constant dense<0.000000e+00> : vector<2x128xf32>
    %87 = tpu.matmul %65, %86, %cst_59 {dimension_numbers = #tpu.dot_dimension_numbers<[1], [0], [0], [1], [0, 0, 1, 1], [], []>} : vector<2x128xbf16>, vector<128x128xbf16>, vector<2x128xf32> -> vector<2x128xf32>
    %88 = arith.addf %85, %87 : vector<2x128xf32>
    %c0_60 = arith.constant 0 : index
    %c0_61 = arith.constant 0 : index
    %89 = vector.load %arg19[%c0_60, %c0_61] : memref<128x128xbf16, #tpu.memory_space<vmem>>, vector<128x128xbf16>
    %cst_62 = arith.constant dense<0.000000e+00> : vector<2x128xf32>
    %90 = tpu.matmul %74, %89, %cst_62 {dimension_numbers = #tpu.dot_dimension_numbers<[1], [0], [0], [1], [0, 0, 1, 1], [], []>} : vector<2x128xbf16>, vector<128x128xbf16>, vector<2x128xf32> -> vector<2x128xf32>
    %91 = arith.addf %88, %90 : vector<2x128xf32>
    %c0_63 = arith.constant 0 : index
    %c0_64 = arith.constant 0 : index
    %92 = vector.load %arg20[%c0_63, %c0_64] : memref<1x128xf32, #tpu.memory_space<vmem>>, vector<1x128xf32>
    %93 = vector.broadcast %92 : vector<1x128xf32> to vector<2x128xf32>
    %94 = arith.addf %91, %93 : vector<2x128xf32>
    %cst_65 = arith.constant 0.000000e+00 : f32
    %95 = vector.broadcast %cst_65 : f32 to vector<2x128xf32>
    %96 = arith.maximumf %94, %95 : vector<2x128xf32>
    %97 = arith.truncf %96 : vector<2x128xf32> to vector<2x128xbf16>
    %c0_66 = arith.constant 0 : index
    %c0_67 = arith.constant 0 : index
    %98 = vector.load %arg21[%c0_66, %c0_67] : memref<2x128xbf16, #tpu.memory_space<vmem>>, vector<2x128xbf16>
    tpu.vector_store %arg21[%c0_66, %c0_67], %97 {strides = array<i32>} : memref<2x128xbf16, #tpu.memory_space<vmem>>, vector<2x128xbf16>,
    return
  }
}

</mosaic_0001>

<llo_original>
// kernel: sagnet_forward.3
$region0: #{sagnet_forward.3}
  #allocation0 [shape = 'u32[]', space=smem, size = 0x4, offset = 0x4, fixed_abs, tag = 'smem constant byte address 0x4 - core index']
  #allocation1 [shape = 'u32[144,128]{1,0:T(1,128)}', space=vmem, size = 0x12000, scoped, tag = 'internal scratch']
  #allocation2 [shape = 'f32[1,1]{1,0:T(1,128)S(1)}', space=vmem, size = 0x200, scoped, tag = 'scoped memory for sagnet_forward.3']
  %s0 = inlined_call_operand.hbm [shape: bf16[16,16], index: 0, kind: input, shape index: {}]
  %s1 = inlined_call_operand.hbm [shape: bf16[16,128], index: 1, kind: input, shape index: {}]
  %s2 = inlined_call_operand.hbm [shape: bf16[128,128], index: 2, kind: input, shape index: {}]
  %s3 = inlined_call_operand.hbm [shape: f32[1,128], index: 3, kind: input, shape index: {}]
  %s4 = inlined_call_operand.hbm [shape: bf16[128,128], index: 4, kind: input, shape index: {}]
  %s5 = inlined_call_operand.hbm [shape: f32[1,128], index: 5, kind: input, shape index: {}]
  %s6 = inlined_call_operand.hbm [shape: bf16[128,128], index: 6, kind: input, shape index: {}]
  %s7 = inlined_call_operand.hbm [shape: f32[1,128], index: 7, kind: input, shape index: {}]
  %s8 = inlined_call_operand.hbm [shape: bf16[128,1], index: 8, kind: input, shape index: {}]
  %s9 = inlined_call_operand.hbm [shape: bf16[128,1], index: 9, kind: input, shape index: {}]
  %s10 = inlined_call_operand.hbm [shape: bf16[128,1], index: 10, kind: input, shape index: {}]
  %s11 = inlined_call_operand.<no memory space> [shape: f32[1,1], index: 11, kind: input, shape index: {}]
  %s12 = inlined_call_operand.hbm [shape: f32[16,1], index: 12, kind: input, shape index: {}]
  %s13 = inlined_call_operand.hbm [shape: f32[2,16], index: 13, kind: input, shape index: {}]
  %s14 = inlined_call_operand.hbm [shape: bf16[128,128], index: 14, kind: input, shape index: {}]
  %s15 = inlined_call_operand.hbm [shape: bf16[128,128], index: 15, kind: input, shape index: {}]
  %s16 = inlined_call_operand.hbm [shape: bf16[128,128], index: 16, kind: input, shape index: {}]
  %s17 = inlined_call_operand.hbm [shape: bf16[128,128], index: 17, kind: input, shape index: {}]
  %s18 = inlined_call_operand.hbm [shape: bf16[128,128], index: 18, kind: input, shape index: {}]
  %s19 = inlined_call_operand.hbm [shape: bf16[128,128], index: 19, kind: input, shape index: {}]
  %s20 = inlined_call_operand.hbm [shape: f32[1,128], index: 20, kind: input, shape index: {}]
  %s21 = inlined_call_operand.hbm [shape: bf16[2,128], index: 21, kind: output, shape index: {}]
  %s22 = sld [smem:[#allocation0]]
  $region174: #{sagnet_forward.3} parent=0
    _
  %s24 = ssub.s32 1, %s22
  %s25 = scalar_select 0, %s24, %s22
  %v26 = vstv %s11
  %27 = vst [vmem:[#allocation2] sm:$0x1] %v26
  $region1: #{sagnet_forward.3} parent=0
    #allocation3 [shape = 'u8[4096]{0}', space=vmem, size = 0x1000, scoped, tag = 'input window, operand 0, single buffered']
    #allocation4 [shape = 's32[1]{0}', space=sflag, size = 0x4, scoped, tag = 'scoped memory for sagnet_forward.3']
    #allocation5 [shape = 's32[1]{0}', space=sflag, size = 0x4, scoped, tag = 'scoped memory for sagnet_forward.3']
    #allocation6 [shape = 'u8[4096]{0}', space=vmem, size = 0x1000, scoped, tag = 'input window, operand 1, single buffered']
    #allocation7 [shape = 's32[1]{0}', space=sflag, size = 0x4, scoped, tag = 'scoped memory for sagnet_forward.3']
    #allocation8 [shape = 'u8[32768]{0}', space=vmem, size = 0x8000, scoped, tag = 'input window, operand 2, single buffered']
    #allocation9 [shape = 'u8[512]{0}', space=vmem, size = 0x400, scoped, tag = 'input window, operand 3, single buffered']
    #allocation10 [shape = 's32[1]{0}', space=sflag, size = 0x4, scoped, tag = 'scoped memory for sagnet_forward.3']
    #allocation11 [shape = 'u8[32768]{0}', space=vmem, size = 0x8000, scoped, tag = 'input window, operand 4, single buffered']
    #allocation12 [shape = 'u8[512]{0}', space=vmem, size = 0x400, scoped, tag = 'input window, operand 5, single buffered']
    #allocation13 [shape = 's32[1]{0}', space=sflag, size = 0x4, scoped, tag = 'scoped memory for sagnet_forward.3']
    #allocation14 [shape = 'u8[32768]{0}', space=vmem, size = 0x8000, scoped, tag = 'input window, operand 6, single buffered']
    #allocation15 [shape = 'u8[512]{0}', space=vmem, size = 0x400, scoped, tag = 'input window, operand 7, single buffered']
    #allocation16 [shape = 's32[1]{0}', space=sflag, size = 0x4, scoped, tag = 'scoped memory for sagnet_forward.3']
    #allocation17 [shape = 'u8[32768]{0}', space=vmem, size = 0x8000, scoped, tag = 'input window, operand 8, single buffered']
    #allocation18 [shape = 'u8[32768]{0}', space=vmem, size = 0x8000, scoped, tag = 'input window, operand 9, single buffered']
    #allocation19 [shape = 's32[1]{0}', space=sflag, size = 0x4, scoped, tag = 'scoped memory for sagnet_forward.3']
    #allocation20 [shape = 'u8[32768]{0}', space=vmem, size = 0x8000, scoped, tag = 'input window, operand 10, single buffered']
    #allocation21 [shape = 'u8[8192]{0}', space=vmem, size = 0x2000, scoped, tag = 'input window, operand 12, single buffered']
    #allocation22 [shape = 's32[1]{0}', space=sflag, size = 0x4, scoped, tag = 'scoped memory for sagnet_forward.3']
    #allocation23 [shape = 'u8[1024]{0}', space=vmem, size = 0x400, scoped, tag = 'input window, operand 13, single buffered']
    #allocation24 [shape = 'u8[32768]{0}', space=vmem, size = 0x8000, scoped, tag = 'input window, operand 14, single buffered']
    #allocation25 [shape = 's32[1]{0}', space=sflag, size = 0x4, scoped, tag = 'scoped memory for sagnet_forward.3']
    #allocation26 [shape = 'u8[32768]{0}', space=vmem, size = 0x8000, scoped, tag = 'input window, operand 15, single buffered']
    #allocation27 [shape = 'u8[32768]{0}', space=vmem, size = 0x8000, scoped, tag = 'input window, operand 16, single buffered']
    #allocation28 [shape = 's32[1]{0}', space=sflag, size = 0x4, scoped, tag = 'scoped memory for sagnet_forward.3']
    #allocation29 [shape = 'u8[32768]{0}', space=vmem, size = 0x8000, scoped, tag = 'input window, operand 17, single buffered']
    #allocation30 [shape = 'u8[32768]{0}', space=vmem, size = 0x8000, scoped, tag = 'input window, operand 18, single buffered']
    #allocation31 [shape = 's32[1]{0}', space=sflag, size = 0x4, scoped, tag = 'scoped memory for sagnet_forward.3']
    #allocation32 [shape = 'u8[32768]{0}', space=vmem, size = 0x8000, scoped, tag = 'input window, operand 19, single buffered']
    #allocation33 [shape = 'u8[512]{0}', space=vmem, size = 0x400, scoped, tag = 'input window, operand 20, single buffered']
    #allocation34 [shape = 's32[1]{0}', space=sflag, size = 0x4, scoped, tag = 'scoped memory for sagnet_forward.3']
    #allocation35 [shape = 'u8[512]{0}', space=vmem, size = 0x400, scoped, tag = 'output window, operand 0, single buffered']
    %28 = vsyncpa [#allocation4], 0
    %29 = vsyncpa [#allocation7], 0
    %30 = vsyncpa [#allocation10], 0
    %31 = vsyncpa [#allocation13], 0
    %32 = vsyncpa [#allocation16], 0
    %33 = vsyncpa [#allocation19], 0
    %34 = vsyncpa [#allocation22], 0
    %35 = vsyncpa [#allocation25], 0
    %36 = vsyncpa [#allocation28], 0
    %37 = vsyncpa [#allocation31], 0
    %38 = vsyncpa [#allocation34], 0
    %39 = vsyncpa [#allocation5], 0
    // Predicated region
    $region2: #{sagnet_forward.3} parent=1 // pred_check
      _
    $region3: #{sagnet_forward.3} parent=1 // pred_check_branch
      %41 = sbr.rel (0) target = $region5
    $region4: #{sagnet_forward.3} parent=1 // pred_region
      %s43 = ssub.s32 128, 128
      %44 = vsyncadd [#allocation4], %s43
      %s45 = sshll.u32 [#allocation3], 4
      %s46 = int_to_ptr.vmem [resolvable:$true] %s45
      %51 = dma.hbm_to_vmem [thread:$0]  %s0, 128, %s46, [#allocation4], 64, 64, 4
    $region5: #{sagnet_forward.3} parent=1 // pred_fallthru
      _
    // Predicated region
    $region6: #{sagnet_forward.3} parent=1 // pred_check
      _
    $region7: #{sagnet_forward.3} parent=1 // pred_check_branch
      %53 = sbr.rel (0) target = $region9
    $region8: #{sagnet_forward.3} parent=1 // pred_region
      %s55 = ssub.s32 128, 128
      %56 = vsyncadd [#allocation7], %s55
      %s57 = sshll.u32 [#allocation6], 4
      %s58 = int_to_ptr.vmem [resolvable:$true] %s57
      %63 = dma.hbm_to_vmem [thread:$0]  %s1, 128, %s58, [#allocation7], 64, 64, 4
    $region9: #{sagnet_forward.3} parent=1 // pred_fallthru
      _
    // Predicated region
    $region10: #{sagnet_forward.3} parent=1 // pred_check
      _
    $region11: #{sagnet_forward.3} parent=1 // pred_check_branch
      %65 = sbr.rel (0) target = $region13
    $region12: #{sagnet_forward.3} parent=1 // pred_region
      %s67 = ssub.s32 1024, 1024
      %68 = vsyncadd [#allocation7], %s67
      %s69 = sshll.u32 [#allocation8], 4
      %s70 = int_to_ptr.vmem [resolvable:$true] %s69
      %75 = dma.hbm_to_vmem [thread:$0]  %s2, 1024, %s70, [#allocation7], 64, 64, 4
    $region13: #{sagnet_forward.3} parent=1 // pred_fallthru
      _
    // Predicated region
    $region14: #{sagnet_forward.3} parent=1 // pred_check
      _
    $region15: #{sagnet_forward.3} parent=1 // pred_check_branch
      %77 = sbr.rel (0) target = $region17
    $region16: #{sagnet_forward.3} parent=1 // pred_region
      %s79 = ssub.s32 16, 16
      %80 = vsyncadd [#allocation10], %s79
      %s82 = sshll.u32 [#allocation9], 4
      %s83 = int_to_ptr.vmem [resolvable:$true] %s82
      %85 = dma.hbm_to_vmem [thread:$0]  %s3, 16, %s83, [#allocation10]
    $region17: #{sagnet_forward.3} parent=1 // pred_fallthru
      _
    // Predicated region
    $region18: #{sagnet_forward.3} parent=1 // pred_check
      _
    $region19: #{sagnet_forward.3} parent=1 // pred_check_branch
      %87 = sbr.rel (0) target = $region21
    $region20: #{sagnet_forward.3} parent=1 // pred_region
      %s89 = ssub.s32 1024, 1024
      %90 = vsyncadd [#allocation10], %s89
      %s91 = sshll.u32 [#allocation11], 4
      %s92 = int_to_ptr.vmem [resolvable:$true] %s91
      %97 = dma.hbm_to_vmem [thread:$0]  %s4, 1024, %s92, [#allocation10], 64, 64, 4
    $region21: #{sagnet_forward.3} parent=1 // pred_fallthru
      _
    // Predicated region
    $region22: #{sagnet_forward.3} parent=1 // pred_check
      _
    $region23: #{sagnet_forward.3} parent=1 // pred_check_branch
      %99 = sbr.rel (0) target = $region25
    $region24: #{sagnet_forward.3} parent=1 // pred_region
      %s101 = ssub.s32 16, 16
      %102 = vsyncadd [#allocation13], %s101
      %s104 = sshll.u32 [#allocation12], 4
      %s105 = int_to_ptr.vmem [resolvable:$true] %s104
      %107 = dma.hbm_to_vmem [thread:$0]  %s5, 16, %s105, [#allocation13]
    $region25: #{sagnet_forward.3} parent=1 // pred_fallthru
      _
    // Predicated region
    $region26: #{sagnet_forward.3} parent=1 // pred_check
      _
    $region27: #{sagnet_forward.3} parent=1 // pred_check_branch
      %109 = sbr.rel (0) target = $region29
    $region28: #{sagnet_forward.3} parent=1 // pred_region
      %s111 = ssub.s32 1024, 1024
      %112 = vsyncadd [#allocation13], %s111
      %s113 = sshll.u32 [#allocation14], 4
      %s114 = int_to_ptr.vmem [resolvable:$true] %s113
      %119 = dma.hbm_to_vmem [thread:$0]  %s6, 1024, %s114, [#allocation13], 64, 64, 4
    $region29: #{sagnet_forward.3} parent=1 // pred_fallthru
      _
    // Predicated region
    $region30: #{sagnet_forward.3} parent=1 // pred_check
      _
    $region31: #{sagnet_forward.3} parent=1 // pred_check_branch
      %121 = sbr.rel (0) target = $region33
    $region32: #{sagnet_forward.3} parent=1 // pred_region
      %s123 = ssub.s32 16, 16
      %124 = vsyncadd [#allocation16], %s123
      %s126 = sshll.u32 [#allocation15], 4
      %s127 = int_to_ptr.vmem [resolvable:$true] %s126
      %129 = dma.hbm_to_vmem [thread:$0]  %s7, 16, %s127, [#allocation16]
    $region33: #{sagnet_forward.3} parent=1 // pred_fallthru
      _
    // Predicated region
    $region34: #{sagnet_forward.3} parent=1 // pred_check
      _
    $region35: #{sagnet_forward.3} parent=1 // pred_check_branch
      %131 = sbr.rel (0) target = $region37
    $region36: #{sagnet_forward.3} parent=1 // pred_region
      %s133 = ssub.s32 1024, 1024
      %134 = vsyncadd [#allocation16], %s133
      %s135 = sshll.u32 [#allocation17], 4
      %s136 = int_to_ptr.vmem [resolvable:$true] %s135
      %141 = dma.hbm_to_vmem [thread:$0]  %s8, 1024, %s136, [#allocation16], 64, 64, 4
    $region37: #{sagnet_forward.3} parent=1 // pred_fallthru
      _
    // Predicated region
    $region38: #{sagnet_forward.3} parent=1 // pred_check
      _
    $region39: #{sagnet_forward.3} parent=1 // pred_check_branch
      %143 = sbr.rel (0) target = $region41
    $region40: #{sagnet_forward.3} parent=1 // pred_region
      %s145 = ssub.s32 1024, 1024
      %146 = vsyncadd [#allocation19], %s145
      %s147 = sshll.u32 [#allocation18], 4
      %s148 = int_to_ptr.vmem [resolvable:$true] %s147
      %153 = dma.hbm_to_vmem [thread:$0]  %s9, 1024, %s148, [#allocation19], 64, 64, 4
    $region41: #{sagnet_forward.3} parent=1 // pred_fallthru
      _
    // Predicated region
    $region42: #{sagnet_forward.3} parent=1 // pred_check
      _
    $region43: #{sagnet_forward.3} parent=1 // pred_check_branch
      %155 = sbr.rel (0) target = $region45
    $region44: #{sagnet_forward.3} parent=1 // pred_region
      %s157 = ssub.s32 1024, 1024
      %158 = vsyncadd [#allocation19], %s157
      %s159 = sshll.u32 [#allocation20], 4
      %s160 = int_to_ptr.vmem [resolvable:$true] %s159
      %165 = dma.hbm_to_vmem [thread:$0]  %s10, 1024, %s160, [#allocation19], 64, 64, 4
    $region45: #{sagnet_forward.3} parent=1 // pred_fallthru
      _
    // Predicated region
    $region46: #{sagnet_forward.3} parent=1 // pred_check
      _
    $region47: #{sagnet_forward.3} parent=1 // pred_check_branch
      %167 = sbr.rel (0) target = $region49
    $region48: #{sagnet_forward.3} parent=1 // pred_region
      _
    $region49: #{sagnet_forward.3} parent=1 // pred_fallthru
      _
    // Predicated region
    $region50: #{sagnet_forward.3} parent=1 // pred_check
      _
    $region51: #{sagnet_forward.3} parent=1 // pred_check_branch
      %169 = sbr.rel (0) target = $region53
    $region52: #{sagnet_forward.3} parent=1 // pred_region
      %s171 = ssub.s32 256, 256
      %172 = vsyncadd [#allocation22], %s171
      %s173 = sshll.u32 [#allocation21], 4
      %s174 = int_to_ptr.vmem [resolvable:$true] %s173
      %179 = dma.hbm_to_vmem [thread:$0]  %s12, 256, %s174, [#allocation22], 128, 128, 8
    $region53: #{sagnet_forward.3} parent=1 // pred_fallthru
      _
    // Predicated region
    $region54: #{sagnet_forward.3} parent=1 // pred_check
      _
    $region55: #{sagnet_forward.3} parent=1 // pred_check_branch
      %181 = sbr.rel (0) target = $region57
    $region56: #{sagnet_forward.3} parent=1 // pred_region
      %s183 = ssub.s32 32, 32
      %184 = vsyncadd [#allocation22], %s183
      %s186 = sshll.u32 [#allocation23], 4
      %s187 = int_to_ptr.vmem [resolvable:$true] %s186
      %189 = dma.hbm_to_vmem [thread:$0]  %s13, 32, %s187, [#allocation22]
    $region57: #{sagnet_forward.3} parent=1 // pred_fallthru
      _
    // Predicated region
    $region58: #{sagnet_forward.3} parent=1 // pred_check
      _
    $region59: #{sagnet_forward.3} parent=1 // pred_check_branch
      %191 = sbr.rel (0) target = $region61
    $region60: #{sagnet_forward.3} parent=1 // pred_region
      %s193 = ssub.s32 1024, 1024
      %194 = vsyncadd [#allocation25], %s193
      %s195 = sshll.u32 [#allocation24], 4
      %s196 = int_to_ptr.vmem [resolvable:$true] %s195
      %201 = dma.hbm_to_vmem [thread:$0]  %s14, 1024, %s196, [#allocation25], 64, 64, 4
    $region61: #{sagnet_forward.3} parent=1 // pred_fallthru
      _
    // Predicated region
    $region62: #{sagnet_forward.3} parent=1 // pred_check
      _
    $region63: #{sagnet_forward.3} parent=1 // pred_check_branch
      %203 = sbr.rel (0) target = $region65
    $region64: #{sagnet_forward.3} parent=1 // pred_region
      %s205 = ssub.s32 1024, 1024
      %206 = vsyncadd [#allocation25], %s205
      %s207 = sshll.u32 [#allocation26], 4
      %s208 = int_to_ptr.vmem [resolvable:$true] %s207
      %213 = dma.hbm_to_vmem [thread:$0]  %s15, 1024, %s208, [#allocation25], 64, 64, 4
    $region65: #{sagnet_forward.3} parent=1 // pred_fallthru
      _
    // Predicated region
    $region66: #{sagnet_forward.3} parent=1 // pred_check
      _
    $region67: #{sagnet_forward.3} parent=1 // pred_check_branch
      %215 = sbr.rel (0) target = $region69
    $region68: #{sagnet_forward.3} parent=1 // pred_region
      %s217 = ssub.s32 1024, 1024
      %218 = vsyncadd [#allocation28], %s217
      %s219 = sshll.u32 [#allocation27], 4
      %s220 = int_to_ptr.vmem [resolvable:$true] %s219
      %225 = dma.hbm_to_vmem [thread:$0]  %s16, 1024, %s220, [#allocation28], 64, 64, 4
    $region69: #{sagnet_forward.3} parent=1 // pred_fallthru
      _
    // Predicated region
    $region70: #{sagnet_forward.3} parent=1 // pred_check
      _
    $region71: #{sagnet_forward.3} parent=1 // pred_check_branch
      %227 = sbr.rel (0) target = $region73
    $region72: #{sagnet_forward.3} parent=1 // pred_region
      %s229 = ssub.s32 1024, 1024
      %230 = vsyncadd [#allocation28], %s229
      %s231 = sshll.u32 [#allocation29], 4
      %s232 = int_to_ptr.vmem [resolvable:$true] %s231
      %237 = dma.hbm_to_vmem [thread:$0]  %s17, 1024, %s232, [#allocation28], 64, 64, 4
    $region73: #{sagnet_forward.3} parent=1 // pred_fallthru
      _
    // Predicated region
    $region74: #{sagnet_forward.3} parent=1 // pred_check
      _
    $region75: #{sagnet_forward.3} parent=1 // pred_check_branch
      %239 = sbr.rel (0) target = $region77
    $region76: #{sagnet_forward.3} parent=1 // pred_region
      %s241 = ssub.s32 1024, 1024
      %242 = vsyncadd [#allocation31], %s241
      %s243 = sshll.u32 [#allocation30], 4
      %s244 = int_to_ptr.vmem [resolvable:$true] %s243
      %249 = dma.hbm_to_vmem [thread:$0]  %s18, 1024, %s244, [#allocation31], 64, 64, 4
    $region77: #{sagnet_forward.3} parent=1 // pred_fallthru
      _
    // Predicated region
    $region78: #{sagnet_forward.3} parent=1 // pred_check
      _
    $region79: #{sagnet_forward.3} parent=1 // pred_check_branch
      %251 = sbr.rel (0) target = $region81
    $region80: #{sagnet_forward.3} parent=1 // pred_region
      %s253 = ssub.s32 1024, 1024
      %254 = vsyncadd [#allocation31], %s253
      %s255 = sshll.u32 [#allocation32], 4
      %s256 = int_to_ptr.vmem [resolvable:$true] %s255
      %261 = dma.hbm_to_vmem [thread:$0]  %s19, 1024, %s256, [#allocation31], 64, 64, 4
    $region81: #{sagnet_forward.3} parent=1 // pred_fallthru
      _
    // Predicated region
    $region82: #{sagnet_forward.3} parent=1 // pred_check
      _
    $region83: #{sagnet_forward.3} parent=1 // pred_check_branch
      %263 = sbr.rel (0) target = $region85
    $region84: #{sagnet_forward.3} parent=1 // pred_region
      %s265 = ssub.s32 16, 16
      %266 = vsyncadd [#allocation34], %s265
      %s268 = sshll.u32 [#allocation33], 4
      %s269 = int_to_ptr.vmem [resolvable:$true] %s268
      %271 = dma.hbm_to_vmem [thread:$0]  %s20, 16, %s269, [#allocation34]
    $region85: #{sagnet_forward.3} parent=1 // pred_fallthru
      _
    // Predicated region
    $region86: #{sagnet_forward.3} parent=1 // pred_check
      _
    $region87: #{sagnet_forward.3} parent=1 // pred_check_branch
      %273 = sbr.rel (0) target = $region89
    $region88: #{sagnet_forward.3} parent=1 // pred_region
      %274 = dma.done [#allocation4], 128
    $region89: #{sagnet_forward.3} parent=1 // pred_fallthru
      _
    // Predicated region
    $region90: #{sagnet_forward.3} parent=1 // pred_check
      _
    $region91: #{sagnet_forward.3} parent=1 // pred_check_branch
      %276 = sbr.rel (0) target = $region93
    $region92: #{sagnet_forward.3} parent=1 // pred_region
      %277 = dma.done [#allocation7], 128
    $region93: #{sagnet_forward.3} parent=1 // pred_fallthru
      _
    // Predicated region
    $region94: #{sagnet_forward.3} parent=1 // pred_check
      _
    $region95: #{sagnet_forward.3} parent=1 // pred_check_branch
      %279 = sbr.rel (0) target = $region97
    $region96: #{sagnet_forward.3} parent=1 // pred_region
      %280 = dma.done [#allocation7], 1024
    $region97: #{sagnet_forward.3} parent=1 // pred_fallthru
      _
    // Predicated region
    $region98: #{sagnet_forward.3} parent=1 // pred_check
      _
    $region99: #{sagnet_forward.3} parent=1 // pred_check_branch
      %282 = sbr.rel (0) target = $region101
    $region100: #{sagnet_forward.3} parent=1 // pred_region
      %283 = dma.done [#allocation10], 16
    $region101: #{sagnet_forward.3} parent=1 // pred_fallthru
      _
    // Predicated region
    $region102: #{sagnet_forward.3} parent=1 // pred_check
      _
    $region103: #{sagnet_forward.3} parent=1 // pred_check_branch
      %285 = sbr.rel (0) target = $region105
    $region104: #{sagnet_forward.3} parent=1 // pred_region
      %286 = dma.done [#allocation10], 1024
    $region105: #{sagnet_forward.3} parent=1 // pred_fallthru
      _
    // Predicated region
    $region106: #{sagnet_forward.3} parent=1 // pred_check
      _
    $region107: #{sagnet_forward.3} parent=1 // pred_check_branch
      %288 = sbr.rel (0) target = $region109
    $region108: #{sagnet_forward.3} parent=1 // pred_region
      %289 = dma.done [#allocation13], 16
    $region109: #{sagnet_forward.3} parent=1 // pred_fallthru
      _
    // Predicated region
    $region110: #{sagnet_forward.3} parent=1 // pred_check
      _
    $region111: #{sagnet_forward.3} parent=1 // pred_check_branch
      %291 = sbr.rel (0) target = $region113
    $region112: #{sagnet_forward.3} parent=1 // pred_region
      %292 = dma.done [#allocation13], 1024
    $region113: #{sagnet_forward.3} parent=1 // pred_fallthru
      _
    // Predicated region
    $region114: #{sagnet_forward.3} parent=1 // pred_check
      _
    $region115: #{sagnet_forward.3} parent=1 // pred_check_branch
      %294 = sbr.rel (0) target = $region117
    $region116: #{sagnet_forward.3} parent=1 // pred_region
      %295 = dma.done [#allocation16], 16
    $region117: #{sagnet_forward.3} parent=1 // pred_fallthru
      _
    // Predicated region
    $region118: #{sagnet_forward.3} parent=1 // pred_check
      _
    $region119: #{sagnet_forward.3} parent=1 // pred_check_branch
      %297 = sbr.rel (0) target = $region121
    $region120: #{sagnet_forward.3} parent=1 // pred_region
      %298 = dma.done [#allocation16], 1024
    $region121: #{sagnet_forward.3} parent=1 // pred_fallthru
      _
    // Predicated region
    $region122: #{sagnet_forward.3} parent=1 // pred_check
      _
    $region123: #{sagnet_forward.3} parent=1 // pred_check_branch
      %300 = sbr.rel (0) target = $region125
    $region124: #{sagnet_forward.3} parent=1 // pred_region
      %301 = dma.done [#allocation19], 1024
    $region125: #{sagnet_forward.3} parent=1 // pred_fallthru
      _
    // Predicated region
    $region126: #{sagnet_forward.3} parent=1 // pred_check
      _
    $region127: #{sagnet_forward.3} parent=1 // pred_check_branch
      %303 = sbr.rel (0) target = $region129
    $region128: #{sagnet_forward.3} parent=1 // pred_region
      %304 = dma.done [#allocation19], 1024
    $region129: #{sagnet_forward.3} parent=1 // pred_fallthru
      _
    // Predicated region
    $region130: #{sagnet_forward.3} parent=1 // pred_check
      _
    $region131: #{sagnet_forward.3} parent=1 // pred_check_branch
      %306 = sbr.rel (0) target = $region133
    $region132: #{sagnet_forward.3} parent=1 // pred_region
      %307 = dma.done [#allocation22], 256
    $region133: #{sagnet_forward.3} parent=1 // pred_fallthru
      _
    // Predicated region
    $region134: #{sagnet_forward.3} parent=1 // pred_check
      _
    $region135: #{sagnet_forward.3} parent=1 // pred_check_branch
      %309 = sbr.rel (0) target = $region137
    $region136: #{sagnet_forward.3} parent=1 // pred_region
      %310 = dma.done [#allocation22], 32
    $region137: #{sagnet_forward.3} parent=1 // pred_fallthru
      _
    // Predicated region
    $region138: #{sagnet_forward.3} parent=1 // pred_check
      _
    $region139: #{sagnet_forward.3} parent=1 // pred_check_branch
      %312 = sbr.rel (0) target = $region141
    $region140: #{sagnet_forward.3} parent=1 // pred_region
      %313 = dma.done [#allocation25], 1024
    $region141: #{sagnet_forward.3} parent=1 // pred_fallthru
      _
    // Predicated region
    $region142: #{sagnet_forward.3} parent=1 // pred_check
      _
    $region143: #{sagnet_forward.3} parent=1 // pred_check_branch
      %315 = sbr.rel (0) target = $region145
    $region144: #{sagnet_forward.3} parent=1 // pred_region
      %316 = dma.done [#allocation25], 1024
    $region145: #{sagnet_forward.3} parent=1 // pred_fallthru
      _
    // Predicated region
    $region146: #{sagnet_forward.3} parent=1 // pred_check
      _
    $region147: #{sagnet_forward.3} parent=1 // pred_check_branch
      %318 = sbr.rel (0) target = $region149
    $region148: #{sagnet_forward.3} parent=1 // pred_region
      %319 = dma.done [#allocation28], 1024
    $region149: #{sagnet_forward.3} parent=1 // pred_fallthru
      _
    // Predicated region
    $region150: #{sagnet_forward.3} parent=1 // pred_check
      _
    $region151: #{sagnet_forward.3} parent=1 // pred_check_branch
      %321 = sbr.rel (0) target = $region153
    $region152: #{sagnet_forward.3} parent=1 // pred_region
      %322 = dma.done [#allocation28], 1024
    $region153: #{sagnet_forward.3} parent=1 // pred_fallthru
      _
    // Predicated region
    $region154: #{sagnet_forward.3} parent=1 // pred_check
      _
    $region155: #{sagnet_forward.3} parent=1 // pred_check_branch
      %324 = sbr.rel (0) target = $region157
    $region156: #{sagnet_forward.3} parent=1 // pred_region
      %325 = dma.done [#allocation31], 1024
    $region157: #{sagnet_forward.3} parent=1 // pred_fallthru
      _
    // Predicated region
    $region158: #{sagnet_forward.3} parent=1 // pred_check
      _
    $region159: #{sagnet_forward.3} parent=1 // pred_check_branch
      %327 = sbr.rel (0) target = $region161
    $region160: #{sagnet_forward.3} parent=1 // pred_region
      %328 = dma.done [#allocation31], 1024
    $region161: #{sagnet_forward.3} parent=1 // pred_fallthru
      _
    // Predicated region
    $region162: #{sagnet_forward.3} parent=1 // pred_check
      _
    $region163: #{sagnet_forward.3} parent=1 // pred_check_branch
      %330 = sbr.rel (0) target = $region165
    $region164: #{sagnet_forward.3} parent=1 // pred_region
      %331 = dma.done [#allocation34], 16
    $region165: #{sagnet_forward.3} parent=1 // pred_fallthru
      _
    %v333 = vld [vmem:[#allocation3] sm:$0xf]
    %v334 = vld [vmem:[#allocation3 + $0x4] sm:$0xf]
    %v335 = vld [vmem:[#allocation6] sm:$0xf]
    %v336 = vld [vmem:[#allocation6 + $0x4] sm:$0xf]
    %v337 = vld [vmem:[#allocation8] sm:$0xf]
    %v338 = vld [vmem:[#allocation8 + $0x4] sm:$0xf]
    %v339 = vld [vmem:[#allocation8 + $0x8] sm:$0xf]
    %v340 = vld [vmem:[#allocation8 + $0xc] sm:$0xf]
    %v341 = vld [vmem:[#allocation8 + $0x10] sm:$0xf]
    %v342 = vld [vmem:[#allocation8 + $0x14] sm:$0xf]
    %v343 = vld [vmem:[#allocation8 + $0x18] sm:$0xf]
    %v344 = vld [vmem:[#allocation8 + $0x1c] sm:$0xf]
    %v345 = vld [vmem:[#allocation8 + $0x20] sm:$0xf]
    %v346 = vld [vmem:[#allocation8 + $0x24] sm:$0xf]
    %v347 = vld [vmem:[#allocation8 + $0x28] sm:$0xf]
    %v348 = vld [vmem:[#allocation8 + $0x2c] sm:$0xf]
    %v349 = vld [vmem:[#allocation8 + $0x30] sm:$0xf]
    %v350 = vld [vmem:[#allocation8 + $0x34] sm:$0xf]
    %v351 = vld [vmem:[#allocation8 + $0x38] sm:$0xf]
    %v352 = vld [vmem:[#allocation8 + $0x3c] sm:$0xf]
    %v355 = vunpack.c.l.b16 %v335
    %v356 = vunpack.c.l.b16 %v336
    %v357 = vpack.c.b16 %v356, %v355
    %v375 = vunpack.c.l.b16 %v337
    %v376 = vunpack.c.l.b16 %v338
    %v377 = vunpack.c.l.b16 %v339
    %v378 = vunpack.c.l.b16 %v340
    %v379 = vunpack.c.l.b16 %v341
    %v380 = vunpack.c.l.b16 %v342
    %v381 = vunpack.c.l.b16 %v343
    %v382 = vunpack.c.l.b16 %v344
    %v383 = vunpack.c.l.b16 %v345
    %v384 = vunpack.c.l.b16 %v346
    %v385 = vunpack.c.l.b16 %v347
    %v386 = vunpack.c.l.b16 %v348
    %v387 = vunpack.c.l.b16 %v349
    %v388 = vunpack.c.l.b16 %v350
    %v389 = vunpack.c.l.b16 %v351
    %v390 = vunpack.c.l.b16 %v352
    %v391 = vpack.c.b16 %v376, %v375
    %v392 = vpack.c.b16 %v378, %v377
    %v393 = vpack.c.b16 %v380, %v379
    %v394 = vpack.c.b16 %v382, %v381
    %v395 = vpack.c.b16 %v384, %v383
    %v396 = vpack.c.b16 %v386, %v385
    %v397 = vpack.c.b16 %v388, %v387
    %v398 = vpack.c.b16 %v390, %v389
    %407 = vmatprep.subr.bf16.mxu0 0
    %408 = vmatpush1.bf16.msra.mxu0 %v391
    %409 = vmatprep.subr.bf16.mxu0 0
    %410 = vmatpush1.bf16.msra.mxu0 %v392
    %411 = vmatprep.subr.bf16.mxu0 0
    %412 = vmatpush1.bf16.msra.mxu0 %v393
    %413 = vmatprep.subr.bf16.mxu0 0
    %414 = vmatpush1.bf16.msra.mxu0 %v394
    %415 = vmatprep.subr.bf16.mxu0 0
    %416 = vmatpush1.bf16.msra.mxu0 %v395
    %417 = vmatprep.subr.bf16.mxu0 0
    %418 = vmatpush1.bf16.msra.mxu0 %v396
    %419 = vmatprep.subr.bf16.mxu0 0
    %420 = vmatpush1.bf16.msra.mxu0 %v397
    %421 = vmatprep.subr.bf16.mxu0 0
    %422 = vmatpush1.bf16.msra.mxu0 %v398
    %423 = vmatprep.subr.bf16.mxu0 0
    %424 = vmatpush1.bf16.msra.mxu0 0
    %425 = vmatprep.subr.bf16.mxu0 0
    %426 = vmatpush1.bf16.msra.mxu0 0
    %427 = vmatprep.subr.bf16.mxu0 0
    %428 = vmatpush1.bf16.msra.mxu0 0
    %429 = vmatprep.subr.bf16.mxu0 0
    %430 = vmatpush1.bf16.msra.mxu0 0
    %431 = vmatprep.subr.bf16.mxu0 0
    %432 = vmatpush1.bf16.msra.mxu0 0
    %433 = vmatprep.subr.bf16.mxu0 0
    %434 = vmatpush1.bf16.msra.mxu0 0
    %435 = vmatprep.subr.bf16.mxu0 0
    %436 = vmatpush1.bf16.msra.mxu0 0
    %437 = vmatprep.subr.bf16.mxu0 0
    %438 = vmatpush1.bf16.msra.mxu0 0
    %439 = vmatprep.mubr.bf16.mxu0 0
    %440 = vmatmul.mubr.bf16.gmra.mrb[0].mxu0 %v357
    %v441 = vpop.f32.mrb[0].mxu0
    %v442 = vadd.f32 0.0, %v441
    %v443 = vpop.f32.mrb[0].mxu0
    %v444 = vpop.f32.mrb[0].mxu0
    %v445 = vadd.f32 0.0, %v444
    %v446 = vpop.f32.mrb[0].mxu0
    %447 = vdwg.mxu0
    %v448 = vpack.c.bf16 %v445, %v442
    %v449 = vld [vmem:[#allocation9] sm:$0x1]
    %v451 = vlaneseq
    %v452 = vshrl.u32 %v451, 7
    %v453 = vsub.s32 0, %v452
    %v454 = vrot.slane %v449, %v453
    %v458 = vunpack.c.l.b16 %v333
    %v459 = vunpack.c.l.b16 %v334
    %v460 = vpack.c.b16 %v459, %v458
    %vm461 = vcmask 130048
    %v463 = vsel %vm461, %v460, 0
    %465 = vmatprep.subr.bf16.mxu0 0
    %466 = vmatpush1.bf16.msra.mxu0 %v448
    %467 = vmatprep.subr.bf16.mxu0 0
    %468 = vmatpush1.bf16.msra.mxu0 0
    %469 = vmatprep.subr.bf16.mxu0 0
    %470 = vmatpush1.bf16.msra.mxu0 0
    %471 = vmatprep.subr.bf16.mxu0 0
    %472 = vmatpush1.bf16.msra.mxu0 0
    %473 = vmatprep.subr.bf16.mxu0 0
    %474 = vmatpush1.bf16.msra.mxu0 0
    %475 = vmatprep.subr.bf16.mxu0 0
    %476 = vmatpush1.bf16.msra.mxu0 0
    %477 = vmatprep.subr.bf16.mxu0 0
    %478 = vmatpush1.bf16.msra.mxu0 0
    %479 = vmatprep.subr.bf16.mxu0 0
    %480 = vmatpush1.bf16.msra.mxu0 0
    %481 = vmatprep.subr.bf16.mxu0 0
    %482 = vmatpush1.bf16.msra.mxu0 0
    %483 = vmatprep.subr.bf16.mxu0 0
    %484 = vmatpush1.bf16.msra.mxu0 0
    %485 = vmatprep.subr.bf16.mxu0 0
    %486 = vmatpush1.bf16.msra.mxu0 0
    %487 = vmatprep.subr.bf16.mxu0 0
    %488 = vmatpush1.bf16.msra.mxu0 0
    %489 = vmatprep.subr.bf16.mxu0 0
    %490 = vmatpush1.bf16.msra.mxu0 0
    %491 = vmatprep.subr.bf16.mxu0 0
    %492 = vmatpush1.bf16.msra.mxu0 0
    %493 = vmatprep.subr.bf16.mxu0 0
    %494 = vmatpush1.bf16.msra.mxu0 0
    %495 = vmatprep.subr.bf16.mxu0 0
    %496 = vmatpush1.bf16.msra.mxu0 0
    %497 = vmatprep.mubr.bf16.mxu0 0
    %498 = vmatmul.mubr.bf16.gmra.mrb[0].mxu0 %v463
    %v499 = vpop.f32.mrb[0].mxu0
    %v500 = vadd.f32 %v454, %v499
    %v501 = vpop.f32.mrb[0].mxu0
    %v502 = vpop.f32.mrb[0].mxu0
    %v503 = vadd.f32 %v454, %v502
    %v504 = vpop.f32.mrb[0].mxu0
    %505 = vdwg.mxu0
    %v506 = vmax.f32 %v500, 0.0
    %v507 = vmax.f32 %v503, 0.0
    %v508 = vpack.c.bf16 %v507, %v506
    %v509 = vld [vmem:[#allocation11] sm:$0xf]
    %v510 = vld [vmem:[#allocation11 + $0x4] sm:$0xf]
    %v511 = vld [vmem:[#allocation11 + $0x8] sm:$0xf]
    %v512 = vld [vmem:[#allocation11 + $0xc] sm:$0xf]
    %v513 = vld [vmem:[#allocation11 + $0x10] sm:$0xf]
    %v514 = vld [vmem:[#allocation11 + $0x14] sm:$0xf]
    %v515 = vld [vmem:[#allocation11 + $0x18] sm:$0xf]
    %v516 = vld [vmem:[#allocation11 + $0x1c] sm:$0xf]
    %v517 = vld [vmem:[#allocation11 + $0x20] sm:$0xf]
    %v518 = vld [vmem:[#allocation11 + $0x24] sm:$0xf]
    %v519 = vld [vmem:[#allocation11 + $0x28] sm:$0xf]
    %v520 = vld [vmem:[#allocation11 + $0x2c] sm:$0xf]
    %v521 = vld [vmem:[#allocation11 + $0x30] sm:$0xf]
    %v522 = vld [vmem:[#allocation11 + $0x34] sm:$0xf]
    %v523 = vld [vmem:[#allocation11 + $0x38] sm:$0xf]
    %v524 = vld [vmem:[#allocation11 + $0x3c] sm:$0xf]
    %v541 = vunpack.c.l.b16 %v509
    %v542 = vunpack.c.l.b16 %v510
    %v543 = vunpack.c.l.b16 %v511
    %v544 = vunpack.c.l.b16 %v512
    %v545 = vunpack.c.l.b16 %v513
    %v546 = vunpack.c.l.b16 %v514
    %v547 = vunpack.c.l.b16 %v515
    %v548 = vunpack.c.l.b16 %v516
    %v549 = vunpack.c.l.b16 %v517
    %v550 = vunpack.c.l.b16 %v518
    %v551 = vunpack.c.l.b16 %v519
    %v552 = vunpack.c.l.b16 %v520
    %v553 = vunpack.c.l.b16 %v521
    %v554 = vunpack.c.l.b16 %v522
    %v555 = vunpack.c.l.b16 %v523
    %v556 = vunpack.c.l.b16 %v524
    %v557 = vpack.c.b16 %v542, %v541
    %v558 = vpack.c.b16 %v544, %v543
    %v559 = vpack.c.b16 %v546, %v545
    %v560 = vpack.c.b16 %v548, %v547
    %v561 = vpack.c.b16 %v550, %v549
    %v562 = vpack.c.b16 %v552, %v551
    %v563 = vpack.c.b16 %v554, %v553
    %v564 = vpack.c.b16 %v556, %v555
    %573 = vmatprep.subr.bf16.mxu0 0
    %574 = vmatpush1.bf16.msra.mxu0 %v557
    %575 = vmatprep.subr.bf16.mxu0 0
    %576 = vmatpush1.bf16.msra.mxu0 %v558
    %577 = vmatprep.subr.bf16.mxu0 0
    %578 = vmatpush1.bf16.msra.mxu0 %v559
    %579 = vmatprep.subr.bf16.mxu0 0
    %580 = vmatpush1.bf16.msra.mxu0 %v560
    %581 = vmatprep.subr.bf16.mxu0 0
    %582 = vmatpush1.bf16.msra.mxu0 %v561
    %583 = vmatprep.subr.bf16.mxu0 0
    %584 = vmatpush1.bf16.msra.mxu0 %v562
    %585 = vmatprep.subr.bf16.mxu0 0
    %586 = vmatpush1.bf16.msra.mxu0 %v563
    %587 = vmatprep.subr.bf16.mxu0 0
    %588 = vmatpush1.bf16.msra.mxu0 %v564
    %589 = vmatprep.subr.bf16.mxu0 0
    %590 = vmatpush1.bf16.msra.mxu0 0
    %591 = vmatprep.subr.bf16.mxu0 0
    %592 = vmatpush1.bf16.msra.mxu0 0
    %593 = vmatprep.subr.bf16.mxu0 0
    %594 = vmatpush1.bf16.msra.mxu0 0
    %595 = vmatprep.subr.bf16.mxu0 0
    %596 = vmatpush1.bf16.msra.mxu0 0
    %597 = vmatprep.subr.bf16.mxu0 0
    %598 = vmatpush1.bf16.msra.mxu0 0
    %599 = vmatprep.subr.bf16.mxu0 0
    %600 = vmatpush1.bf16.msra.mxu0 0
    %601 = vmatprep.subr.bf16.mxu0 0
    %602 = vmatpush1.bf16.msra.mxu0 0
    %603 = vmatprep.subr.bf16.mxu0 0
    %604 = vmatpush1.bf16.msra.mxu0 0
    %605 = vmatprep.mubr.bf16.mxu0 0
    %606 = vmatmul.mubr.bf16.gmra.mrb[0].mxu0 %v508
    %v607 = vpop.f32.mrb[0].mxu0
    %v608 = vadd.f32 0.0, %v607
    %v609 = vpop.f32.mrb[0].mxu0
    %v610 = vpop.f32.mrb[0].mxu0
    %v611 = vadd.f32 0.0, %v610
    %v612 = vpop.f32.mrb[0].mxu0
    %613 = vdwg.mxu0
    %v614 = vpack.c.bf16 %v611, %v608
    %v615 = vld [vmem:[#allocation12] sm:$0x1]
    %v617 = vlaneseq
    %v618 = vshrl.u32 %v617, 7
    %v619 = vsub.s32 0, %v618
    %v620 = vrot.slane %v615, %v619
    %622 = vmatprep.subr.bf16.mxu0 0
    %623 = vmatpush1.bf16.msra.mxu0 %v614
    %624 = vmatprep.subr.bf16.mxu0 0
    %625 = vmatpush1.bf16.msra.mxu0 0
    %626 = vmatprep.subr.bf16.mxu0 0
    %627 = vmatpush1.bf16.msra.mxu0 0
    %628 = vmatprep.subr.bf16.mxu0 0
    %629 = vmatpush1.bf16.msra.mxu0 0
    %630 = vmatprep.subr.bf16.mxu0 0
    %631 = vmatpush1.bf16.msra.mxu0 0
    %632 = vmatprep.subr.bf16.mxu0 0
    %633 = vmatpush1.bf16.msra.mxu0 0
    %634 = vmatprep.subr.bf16.mxu0 0
    %635 = vmatpush1.bf16.msra.mxu0 0
    %636 = vmatprep.subr.bf16.mxu0 0
    %637 = vmatpush1.bf16.msra.mxu0 0
    %638 = vmatprep.subr.bf16.mxu0 0
    %639 = vmatpush1.bf16.msra.mxu0 0
    %640 = vmatprep.subr.bf16.mxu0 0
    %641 = vmatpush1.bf16.msra.mxu0 0
    %642 = vmatprep.subr.bf16.mxu0 0
    %643 = vmatpush1.bf16.msra.mxu0 0
    %644 = vmatprep.subr.bf16.mxu0 0
    %645 = vmatpush1.bf16.msra.mxu0 0
    %646 = vmatprep.subr.bf16.mxu0 0
    %647 = vmatpush1.bf16.msra.mxu0 0
    %648 = vmatprep.subr.bf16.mxu0 0
    %649 = vmatpush1.bf16.msra.mxu0 0
    %650 = vmatprep.subr.bf16.mxu0 0
    %651 = vmatpush1.bf16.msra.mxu0 0
    %652 = vmatprep.subr.bf16.mxu0 0
    %653 = vmatpush1.bf16.msra.mxu0 0
    %654 = vmatprep.mubr.bf16.mxu0 0
    %655 = vmatmul.mubr.bf16.gmra.mrb[0].mxu0 %v463
    %v656 = vpop.f32.mrb[0].mxu0
    %v657 = vadd.f32 %v620, %v656
    %v658 = vpop.f32.mrb[0].mxu0
    %v659 = vpop.f32.mrb[0].mxu0
    %v660 = vadd.f32 %v620, %v659
    %v661 = vpop.f32.mrb[0].mxu0
    %662 = vdwg.mxu0
    %v663 = vmax.f32 %v657, 0.0
    %v664 = vmax.f32 %v660, 0.0
    %v665 = vpack.c.bf16 %v664, %v663
    %v666 = vld [vmem:[#allocation14] sm:$0xf]
    %v667 = vld [vmem:[#allocation14 + $0x4] sm:$0xf]
    %v668 = vld [vmem:[#allocation14 + $0x8] sm:$0xf]
    %v669 = vld [vmem:[#allocation14 + $0xc] sm:$0xf]
    %v670 = vld [vmem:[#allocation14 + $0x10] sm:$0xf]
    %v671 = vld [vmem:[#allocation14 + $0x14] sm:$0xf]
    %v672 = vld [vmem:[#allocation14 + $0x18] sm:$0xf]
    %v673 = vld [vmem:[#allocation14 + $0x1c] sm:$0xf]
    %v674 = vld [vmem:[#allocation14 + $0x20] sm:$0xf]
    %v675 = vld [vmem:[#allocation14 + $0x24] sm:$0xf]
    %v676 = vld [vmem:[#allocation14 + $0x28] sm:$0xf]
    %v677 = vld [vmem:[#allocation14 + $0x2c] sm:$0xf]
    %v678 = vld [vmem:[#allocation14 + $0x30] sm:$0xf]
    %v679 = vld [vmem:[#allocation14 + $0x34] sm:$0xf]
    %v680 = vld [vmem:[#allocation14 + $0x38] sm:$0xf]
    %v681 = vld [vmem:[#allocation14 + $0x3c] sm:$0xf]
    %v698 = vunpack.c.l.b16 %v666
    %v699 = vunpack.c.l.b16 %v667
    %v700 = vunpack.c.l.b16 %v668
    %v701 = vunpack.c.l.b16 %v669
    %v702 = vunpack.c.l.b16 %v670
    %v703 = vunpack.c.l.b16 %v671
    %v704 = vunpack.c.l.b16 %v672
    %v705 = vunpack.c.l.b16 %v673
    %v706 = vunpack.c.l.b16 %v674
    %v707 = vunpack.c.l.b16 %v675
    %v708 = vunpack.c.l.b16 %v676
    %v709 = vunpack.c.l.b16 %v677
    %v710 = vunpack.c.l.b16 %v678
    %v711 = vunpack.c.l.b16 %v679
    %v712 = vunpack.c.l.b16 %v680
    %v713 = vunpack.c.l.b16 %v681
    %v714 = vpack.c.b16 %v699, %v698
    %v715 = vpack.c.b16 %v701, %v700
    %v716 = vpack.c.b16 %v703, %v702
    %v717 = vpack.c.b16 %v705, %v704
    %v718 = vpack.c.b16 %v707, %v706
    %v719 = vpack.c.b16 %v709, %v708
    %v720 = vpack.c.b16 %v711, %v710
    %v721 = vpack.c.b16 %v713, %v712
    %730 = vmatprep.subr.bf16.mxu0 0
    %731 = vmatpush1.bf16.msra.mxu0 %v714
    %732 = vmatprep.subr.bf16.mxu0 0
    %733 = vmatpush1.bf16.msra.mxu0 %v715
    %734 = vmatprep.subr.bf16.mxu0 0
    %735 = vmatpush1.bf16.msra.mxu0 %v716
    %736 = vmatprep.subr.bf16.mxu0 0
    %737 = vmatpush1.bf16.msra.mxu0 %v717
    %738 = vmatprep.subr.bf16.mxu0 0
    %739 = vmatpush1.bf16.msra.mxu0 %v718
    %740 = vmatprep.subr.bf16.mxu0 0
    %741 = vmatpush1.bf16.msra.mxu0 %v719
    %742 = vmatprep.subr.bf16.mxu0 0
    %743 = vmatpush1.bf16.msra.mxu0 %v720
    %744 = vmatprep.subr.bf16.mxu0 0
    %745 = vmatpush1.bf16.msra.mxu0 %v721
    %746 = vmatprep.subr.bf16.mxu0 0
    %747 = vmatpush1.bf16.msra.mxu0 0
    %748 = vmatprep.subr.bf16.mxu0 0
    %749 = vmatpush1.bf16.msra.mxu0 0
    %750 = vmatprep.subr.bf16.mxu0 0
    %751 = vmatpush1.bf16.msra.mxu0 0
    %752 = vmatprep.subr.bf16.mxu0 0
    %753 = vmatpush1.bf16.msra.mxu0 0
    %754 = vmatprep.subr.bf16.mxu0 0
    %755 = vmatpush1.bf16.msra.mxu0 0
    %756 = vmatprep.subr.bf16.mxu0 0
    %757 = vmatpush1.bf16.msra.mxu0 0
    %758 = vmatprep.subr.bf16.mxu0 0
    %759 = vmatpush1.bf16.msra.mxu0 0
    %760 = vmatprep.subr.bf16.mxu0 0
    %761 = vmatpush1.bf16.msra.mxu0 0
    %762 = vmatprep.mubr.bf16.mxu0 0
    %763 = vmatmul.mubr.bf16.gmra.mrb[0].mxu0 %v665
    %v764 = vpop.f32.mrb[0].mxu0
    %v765 = vadd.f32 0.0, %v764
    %v766 = vpop.f32.mrb[0].mxu0
    %v767 = vpop.f32.mrb[0].mxu0
    %v768 = vadd.f32 0.0, %v767
    %v769 = vpop.f32.mrb[0].mxu0
    %770 = vdwg.mxu0
    %v771 = vpack.c.bf16 %v768, %v765
    %v772 = vld [vmem:[#allocation15] sm:$0x1]
    %v774 = vlaneseq
    %v775 = vshrl.u32 %v774, 7
    %v776 = vsub.s32 0, %v775
    %v777 = vrot.slane %v772, %v776
    %779 = vmatprep.subr.bf16.mxu0 0
    %780 = vmatpush1.bf16.msra.mxu0 %v771
    %781 = vmatprep.subr.bf16.mxu0 0
    %782 = vmatpush1.bf16.msra.mxu0 0
    %783 = vmatprep.subr.bf16.mxu0 0
    %784 = vmatpush1.bf16.msra.mxu0 0
    %785 = vmatprep.subr.bf16.mxu0 0
    %786 = vmatpush1.bf16.msra.mxu0 0
    %787 = vmatprep.subr.bf16.mxu0 0
    %788 = vmatpush1.bf16.msra.mxu0 0
    %789 = vmatprep.subr.bf16.mxu0 0
    %790 = vmatpush1.bf16.msra.mxu0 0
    %791 = vmatprep.subr.bf16.mxu0 0
    %792 = vmatpush1.bf16.msra.mxu0 0
    %793 = vmatprep.subr.bf16.mxu0 0
    %794 = vmatpush1.bf16.msra.mxu0 0
    %795 = vmatprep.subr.bf16.mxu0 0
    %796 = vmatpush1.bf16.msra.mxu0 0
    %797 = vmatprep.subr.bf16.mxu0 0
    %798 = vmatpush1.bf16.msra.mxu0 0
    %799 = vmatprep.subr.bf16.mxu0 0
    %800 = vmatpush1.bf16.msra.mxu0 0
    %801 = vmatprep.subr.bf16.mxu0 0
    %802 = vmatpush1.bf16.msra.mxu0 0
    %803 = vmatprep.subr.bf16.mxu0 0
    %804 = vmatpush1.bf16.msra.mxu0 0
    %805 = vmatprep.subr.bf16.mxu0 0
    %806 = vmatpush1.bf16.msra.mxu0 0
    %807 = vmatprep.subr.bf16.mxu0 0
    %808 = vmatpush1.bf16.msra.mxu0 0
    %809 = vmatprep.subr.bf16.mxu0 0
    %810 = vmatpush1.bf16.msra.mxu0 0
    %811 = vmatprep.mubr.bf16.mxu0 0
    %812 = vmatmul.mubr.bf16.gmra.mrb[0].mxu0 %v463
    %v813 = vpop.f32.mrb[0].mxu0
    %v814 = vadd.f32 %v777, %v813
    %v815 = vpop.f32.mrb[0].mxu0
    %v816 = vpop.f32.mrb[0].mxu0
    %v817 = vadd.f32 %v777, %v816
    %v818 = vpop.f32.mrb[0].mxu0
    %819 = vdwg.mxu0
    %v820 = vmax.f32 %v814, 0.0
    %v821 = vmax.f32 %v817, 0.0
    %v822 = vpack.c.bf16 %v821, %v820
    %v823 = vld [vmem:[#allocation17] sm:$0xf]
    %v824 = vld [vmem:[#allocation17 + $0x4] sm:$0xf]
    %v825 = vld [vmem:[#allocation17 + $0x8] sm:$0xf]
    %v826 = vld [vmem:[#allocation17 + $0xc] sm:$0xf]
    %v827 = vld [vmem:[#allocation17 + $0x10] sm:$0xf]
    %v828 = vld [vmem:[#allocation17 + $0x14] sm:$0xf]
    %v829 = vld [vmem:[#allocation17 + $0x18] sm:$0xf]
    %v830 = vld [vmem:[#allocation17 + $0x1c] sm:$0xf]
    %v831 = vld [vmem:[#allocation17 + $0x20] sm:$0xf]
    %v832 = vld [vmem:[#allocation17 + $0x24] sm:$0xf]
    %v833 = vld [vmem:[#allocation17 + $0x28] sm:$0xf]
    %v834 = vld [vmem:[#allocation17 + $0x2c] sm:$0xf]
    %v835 = vld [vmem:[#allocation17 + $0x30] sm:$0xf]
    %v836 = vld [vmem:[#allocation17 + $0x34] sm:$0xf]
    %v837 = vld [vmem:[#allocation17 + $0x38] sm:$0xf]
    %v838 = vld [vmem:[#allocation17 + $0x3c] sm:$0xf]
    %v839 = vld [vmem:[#allocation18] sm:$0xf]
    %v840 = vld [vmem:[#allocation18 + $0x4] sm:$0xf]
    %v841 = vld [vmem:[#allocation18 + $0x8] sm:$0xf]
    %v842 = vld [vmem:[#allocation18 + $0xc] sm:$0xf]
    %v843 = vld [vmem:[#allocation18 + $0x10] sm:$0xf]
    %v844 = vld [vmem:[#allocation18 + $0x14] sm:$0xf]
    %v845 = vld [vmem:[#allocation18 + $0x18] sm:$0xf]
    %v846 = vld [vmem:[#allocation18 + $0x1c] sm:$0xf]
    %v847 = vld [vmem:[#allocation18 + $0x20] sm:$0xf]
    %v848 = vld [vmem:[#allocation18 + $0x24] sm:$0xf]
    %v849 = vld [vmem:[#allocation18 + $0x28] sm:$0xf]
    %v850 = vld [vmem:[#allocation18 + $0x2c] sm:$0xf]
    %v851 = vld [vmem:[#allocation18 + $0x30] sm:$0xf]
    %v852 = vld [vmem:[#allocation18 + $0x34] sm:$0xf]
    %v853 = vld [vmem:[#allocation18 + $0x38] sm:$0xf]
    %v854 = vld [vmem:[#allocation18 + $0x3c] sm:$0xf]
    %v871 = vunpack.c.l.b16 %v839
    %v872 = vunpack.c.l.b16 %v840
    %v873 = vunpack.c.l.b16 %v841
    %v874 = vunpack.c.l.b16 %v842
    %v875 = vunpack.c.l.b16 %v843
    %v876 = vunpack.c.l.b16 %v844
    %v877 = vunpack.c.l.b16 %v845
    %v878 = vunpack.c.l.b16 %v846
    %v879 = vunpack.c.l.b16 %v847
    %v880 = vunpack.c.l.b16 %v848
    %v881 = vunpack.c.l.b16 %v849
    %v882 = vunpack.c.l.b16 %v850
    %v883 = vunpack.c.l.b16 %v851
    %v884 = vunpack.c.l.b16 %v852
    %v885 = vunpack.c.l.b16 %v853
    %v886 = vunpack.c.l.b16 %v854
    %v887 = vpack.c.b16 %v872, %v871
    %v888 = vpack.c.b16 %v874, %v873
    %v889 = vpack.c.b16 %v876, %v875
    %v890 = vpack.c.b16 %v878, %v877
    %v891 = vpack.c.b16 %v880, %v879
    %v892 = vpack.c.b16 %v882, %v881
    %v893 = vpack.c.b16 %v884, %v883
    %v894 = vpack.c.b16 %v886, %v885
    %903 = vmatprep.subr.bf16.mxu0 0
    %904 = vmatpush1.bf16.msra.mxu0 %v887
    %905 = vmatprep.subr.bf16.mxu0 0
    %906 = vmatpush1.bf16.msra.mxu0 %v888
    %907 = vmatprep.subr.bf16.mxu0 0
    %908 = vmatpush1.bf16.msra.mxu0 %v889
    %909 = vmatprep.subr.bf16.mxu0 0
    %910 = vmatpush1.bf16.msra.mxu0 %v890
    %911 = vmatprep.subr.bf16.mxu0 0
    %912 = vmatpush1.bf16.msra.mxu0 %v891
    %913 = vmatprep.subr.bf16.mxu0 0
    %914 = vmatpush1.bf16.msra.mxu0 %v892
    %915 = vmatprep.subr.bf16.mxu0 0
    %916 = vmatpush1.bf16.msra.mxu0 %v893
    %917 = vmatprep.subr.bf16.mxu0 0
    %918 = vmatpush1.bf16.msra.mxu0 %v894
    %919 = vmatprep.subr.bf16.mxu0 0
    %920 = vmatpush1.bf16.msra.mxu0 0
    %921 = vmatprep.subr.bf16.mxu0 0
    %922 = vmatpush1.bf16.msra.mxu0 0
    %923 = vmatprep.subr.bf16.mxu0 0
    %924 = vmatpush1.bf16.msra.mxu0 0
    %925 = vmatprep.subr.bf16.mxu0 0
    %926 = vmatpush1.bf16.msra.mxu0 0
    %927 = vmatprep.subr.bf16.mxu0 0
    %928 = vmatpush1.bf16.msra.mxu0 0
    %929 = vmatprep.subr.bf16.mxu0 0
    %930 = vmatpush1.bf16.msra.mxu0 0
    %931 = vmatprep.subr.bf16.mxu0 0
    %932 = vmatpush1.bf16.msra.mxu0 0
    %933 = vmatprep.subr.bf16.mxu0 0
    %934 = vmatpush1.bf16.msra.mxu0 0
    %935 = vmatprep.mubr.bf16.mxu0 0
    %936 = vmatmul.mubr.bf16.gmra.mrb[0].mxu0 %v665
    %v937 = vpop.f32.mrb[0].mxu0
    %v938 = vadd.f32 0.0, %v937
    %v939 = vpop.f32.mrb[0].mxu0
    %v940 = vpop.f32.mrb[0].mxu0
    %v941 = vadd.f32 0.0, %v940
    %v942 = vpop.f32.mrb[0].mxu0
    %943 = vdwg.mxu0
    %v960 = vunpack.c.l.b16 %v823
    %v961 = vunpack.c.l.b16 %v824
    %v962 = vunpack.c.l.b16 %v825
    %v963 = vunpack.c.l.b16 %v826
    %v964 = vunpack.c.l.b16 %v827
    %v965 = vunpack.c.l.b16 %v828
    %v966 = vunpack.c.l.b16 %v829
    %v967 = vunpack.c.l.b16 %v830
    %v968 = vunpack.c.l.b16 %v831
    %v969 = vunpack.c.l.b16 %v832
    %v970 = vunpack.c.l.b16 %v833
    %v971 = vunpack.c.l.b16 %v834
    %v972 = vunpack.c.l.b16 %v835
    %v973 = vunpack.c.l.b16 %v836
    %v974 = vunpack.c.l.b16 %v837
    %v975 = vunpack.c.l.b16 %v838
    %v976 = vpack.c.b16 %v961, %v960
    %v977 = vpack.c.b16 %v963, %v962
    %v978 = vpack.c.b16 %v965, %v964
    %v979 = vpack.c.b16 %v967, %v966
    %v980 = vpack.c.b16 %v969, %v968
    %v981 = vpack.c.b16 %v971, %v970
    %v982 = vpack.c.b16 %v973, %v972
    %v983 = vpack.c.b16 %v975, %v974
    %992 = vmatprep.subr.bf16.mxu0 0
    %993 = vmatpush1.bf16.msra.mxu0 %v976
    %994 = vmatprep.subr.bf16.mxu0 0
    %995 = vmatpush1.bf16.msra.mxu0 %v977
    %996 = vmatprep.subr.bf16.mxu0 0
    %997 = vmatpush1.bf16.msra.mxu0 %v978
    %998 = vmatprep.subr.bf16.mxu0 0
    %999 = vmatpush1.bf16.msra.mxu0 %v979
    %1000 = vmatprep.subr.bf16.mxu0 0
    %1001 = vmatpush1.bf16.msra.mxu0 %v980
    %1002 = vmatprep.subr.bf16.mxu0 0
    %1003 = vmatpush1.bf16.msra.mxu0 %v981
    %1004 = vmatprep.subr.bf16.mxu0 0
    %1005 = vmatpush1.bf16.msra.mxu0 %v982
    %1006 = vmatprep.subr.bf16.mxu0 0
    %1007 = vmatpush1.bf16.msra.mxu0 %v983
    %1008 = vmatprep.subr.bf16.mxu0 0
    %1009 = vmatpush1.bf16.msra.mxu0 0
    %1010 = vmatprep.subr.bf16.mxu0 0
    %1011 = vmatpush1.bf16.msra.mxu0 0
    %1012 = vmatprep.subr.bf16.mxu0 0
    %1013 = vmatpush1.bf16.msra.mxu0 0
    %1014 = vmatprep.subr.bf16.mxu0 0
    %1015 = vmatpush1.bf16.msra.mxu0 0
    %1016 = vmatprep.subr.bf16.mxu0 0
    %1017 = vmatpush1.bf16.msra.mxu0 0
    %1018 = vmatprep.subr.bf16.mxu0 0
    %1019 = vmatpush1.bf16.msra.mxu0 0
    %1020 = vmatprep.subr.bf16.mxu0 0
    %1021 = vmatpush1.bf16.msra.mxu0 0
    %1022 = vmatprep.subr.bf16.mxu0 0
    %1023 = vmatpush1.bf16.msra.mxu0 0
    %1024 = vmatprep.mubr.bf16.mxu0 0
    %1025 = vmatmul.mubr.bf16.gmra.mrb[0].mxu0 %v508
    %v1026 = vpop.f32.mrb[0].mxu0
    %v1027 = vadd.f32 %v938, %v1026
    %v1028 = vpop.f32.mrb[0].mxu0
    %v1029 = vpop.f32.mrb[0].mxu0
    %v1030 = vadd.f32 %v941, %v1029
    %v1031 = vpop.f32.mrb[0].mxu0
    %1032 = vdwg.mxu0
    %v1033 = vld [vmem:[#allocation20] sm:$0xf]
    %v1034 = vld [vmem:[#allocation20 + $0x4] sm:$0xf]
    %v1035 = vld [vmem:[#allocation20 + $0x8] sm:$0xf]
    %v1036 = vld [vmem:[#allocation20 + $0xc] sm:$0xf]
    %v1037 = vld [vmem:[#allocation20 + $0x10] sm:$0xf]
    %v1038 = vld [vmem:[#allocation20 + $0x14] sm:$0xf]
    %v1039 = vld [vmem:[#allocation20 + $0x18] sm:$0xf]
    %v1040 = vld [vmem:[#allocation20 + $0x1c] sm:$0xf]
    %v1041 = vld [vmem:[#allocation20 + $0x20] sm:$0xf]
    %v1042 = vld [vmem:[#allocation20 + $0x24] sm:$0xf]
    %v1043 = vld [vmem:[#allocation20 + $0x28] sm:$0xf]
    %v1044 = vld [vmem:[#allocation20 + $0x2c] sm:$0xf]
    %v1045 = vld [vmem:[#allocation20 + $0x30] sm:$0xf]
    %v1046 = vld [vmem:[#allocation20 + $0x34] sm:$0xf]
    %v1047 = vld [vmem:[#allocation20 + $0x38] sm:$0xf]
    %v1048 = vld [vmem:[#allocation20 + $0x3c] sm:$0xf]
    %v1065 = vunpack.c.l.b16 %v1033
    %v1066 = vunpack.c.l.b16 %v1034
    %v1067 = vunpack.c.l.b16 %v1035
    %v1068 = vunpack.c.l.b16 %v1036
    %v1069 = vunpack.c.l.b16 %v1037
    %v1070 = vunpack.c.l.b16 %v1038
    %v1071 = vunpack.c.l.b16 %v1039
    %v1072 = vunpack.c.l.b16 %v1040
    %v1073 = vunpack.c.l.b16 %v1041
    %v1074 = vunpack.c.l.b16 %v1042
    %v1075 = vunpack.c.l.b16 %v1043
    %v1076 = vunpack.c.l.b16 %v1044
    %v1077 = vunpack.c.l.b16 %v1045
    %v1078 = vunpack.c.l.b16 %v1046
    %v1079 = vunpack.c.l.b16 %v1047
    %v1080 = vunpack.c.l.b16 %v1048
    %v1081 = vpack.c.b16 %v1066, %v1065
    %v1082 = vpack.c.b16 %v1068, %v1067
    %v1083 = vpack.c.b16 %v1070, %v1069
    %v1084 = vpack.c.b16 %v1072, %v1071
    %v1085 = vpack.c.b16 %v1074, %v1073
    %v1086 = vpack.c.b16 %v1076, %v1075
    %v1087 = vpack.c.b16 %v1078, %v1077
    %v1088 = vpack.c.b16 %v1080, %v1079
    %1097 = vmatprep.subr.bf16.mxu0 0
    %1098 = vmatpush1.bf16.msra.mxu0 %v1081
    %1099 = vmatprep.subr.bf16.mxu0 0
    %1100 = vmatpush1.bf16.msra.mxu0 %v1082
    %1101 = vmatprep.subr.bf16.mxu0 0
    %1102 = vmatpush1.bf16.msra.mxu0 %v1083
    %1103 = vmatprep.subr.bf16.mxu0 0
    %1104 = vmatpush1.bf16.msra.mxu0 %v1084
    %1105 = vmatprep.subr.bf16.mxu0 0
    %1106 = vmatpush1.bf16.msra.mxu0 %v1085
    %1107 = vmatprep.subr.bf16.mxu0 0
    %1108 = vmatpush1.bf16.msra.mxu0 %v1086
    %1109 = vmatprep.subr.bf16.mxu0 0
    %1110 = vmatpush1.bf16.msra.mxu0 %v1087
    %1111 = vmatprep.subr.bf16.mxu0 0
    %1112 = vmatpush1.bf16.msra.mxu0 %v1088
    %1113 = vmatprep.subr.bf16.mxu0 0
    %1114 = vmatpush1.bf16.msra.mxu0 0
    %1115 = vmatprep.subr.bf16.mxu0 0
    %1116 = vmatpush1.bf16.msra.mxu0 0
    %1117 = vmatprep.subr.bf16.mxu0 0
    %1118 = vmatpush1.bf16.msra.mxu0 0
    %1119 = vmatprep.subr.bf16.mxu0 0
    %1120 = vmatpush1.bf16.msra.mxu0 0
    %1121 = vmatprep.subr.bf16.mxu0 0
    %1122 = vmatpush1.bf16.msra.mxu0 0
    %1123 = vmatprep.subr.bf16.mxu0 0
    %1124 = vmatpush1.bf16.msra.mxu0 0
    %1125 = vmatprep.subr.bf16.mxu0 0
    %1126 = vmatpush1.bf16.msra.mxu0 0
    %1127 = vmatprep.subr.bf16.mxu0 0
    %1128 = vmatpush1.bf16.msra.mxu0 0
    %1129 = vmatprep.mubr.bf16.mxu0 0
    %1130 = vmatmul.mubr.bf16.gmra.mrb[0].mxu0 %v822
    %v1131 = vpop.f32.mrb[0].mxu0
    %v1132 = vadd.f32 0.0, %v1131
    %v1133 = vpop.f32.mrb[0].mxu0
    %v1134 = vpop.f32.mrb[0].mxu0
    %v1135 = vadd.f32 0.0, %v1134
    %v1136 = vpop.f32.mrb[0].mxu0
    %1137 = vdwg.mxu0
    %v1138 = vadd.f32 %v1027, %v1132
    %v1139 = vadd.f32 %v1030, %v1135
    %v1140 = vpack.c.bf16 %v1139, %v1138
    %v1141 = vld [vmem:[#allocation2] sm:$0x1]
    %v1143 = vlaneseq
    %v1144 = vshrl.u32 %v1143, 7
    %v1145 = vsub.s32 0, %v1144
    %v1146 = vrot.slane %v1141, %v1145
    %1148 = vmatprep.subr.bf16.mxu0 0
    %1149 = vmatpush1.bf16.msra.mxu0 %v1140
    %1150 = vmatprep.subr.bf16.mxu0 0
    %1151 = vmatpush1.bf16.msra.mxu0 0
    %1152 = vmatprep.subr.bf16.mxu0 0
    %1153 = vmatpush1.bf16.msra.mxu0 0
    %1154 = vmatprep.subr.bf16.mxu0 0
    %1155 = vmatpush1.bf16.msra.mxu0 0
    %1156 = vmatprep.subr.bf16.mxu0 0
    %1157 = vmatpush1.bf16.msra.mxu0 0
    %1158 = vmatprep.subr.bf16.mxu0 0
    %1159 = vmatpush1.bf16.msra.mxu0 0
    %1160 = vmatprep.subr.bf16.mxu0 0
    %1161 = vmatpush1.bf16.msra.mxu0 0
    %1162 = vmatprep.subr.bf16.mxu0 0
    %1163 = vmatpush1.bf16.msra.mxu0 0
    %1164 = vmatprep.subr.bf16.mxu0 0
    %1165 = vmatpush1.bf16.msra.mxu0 0
    %1166 = vmatprep.subr.bf16.mxu0 0
    %1167 = vmatpush1.bf16.msra.mxu0 0
    %1168 = vmatprep.subr.bf16.mxu0 0
    %1169 = vmatpush1.bf16.msra.mxu0 0
    %1170 = vmatprep.subr.bf16.mxu0 0
    %1171 = vmatpush1.bf16.msra.mxu0 0
    %1172 = vmatprep.subr.bf16.mxu0 0
    %1173 = vmatpush1.bf16.msra.mxu0 0
    %1174 = vmatprep.subr.bf16.mxu0 0
    %1175 = vmatpush1.bf16.msra.mxu0 0
    %1176 = vmatprep.subr.bf16.mxu0 0
    %1177 = vmatpush1.bf16.msra.mxu0 0
    %1178 = vmatprep.subr.bf16.mxu0 0
    %1179 = vmatpush1.bf16.msra.mxu0 0
    %1180 = vmatprep.mubr.bf16.mxu0 0
    %1181 = vmatmul.mubr.bf16.gmra.mrb[0].mxu0 %v463
    %v1182 = vpop.f32.mrb[0].mxu0
    %v1183 = vadd.f32 %v1146, %v1182
    %v1184 = vpop.f32.mrb[0].mxu0
    %v1185 = vpop.f32.mrb[0].mxu0
    %v1186 = vadd.f32 %v1146, %v1185
    %v1187 = vpop.f32.mrb[0].mxu0
    %1188 = vdwg.mxu0
    %v1189 = vtanh.pop %v1183
    %v1190 = vtanh.pop %v1186
    %v1191 = vld [vmem:[#allocation21] sm:$0xff]
    %v1192 = vld [vmem:[#allocation21 + $0x8] sm:$0xff]
    %v1193 = vld [vmem:[#allocation23] sm:$0x3]
    %1195 = vset.pattern.permute.xlu0 0
    %1196 = vperm.xlu0 %1195, %v1189
    %v1197 = vpop.permute.xlu0 %1196
    %1200 = vset.pattern.permute.xlu0 0
    %1201 = vperm.xlu0 %1200, %v1190
    %v1202 = vpop.permute.xlu0 %1201
    %v1204 = vmul.f32 %v506, %v1197
    %v1205 = vmul.f32 %v507, %v1202
    %1207 = vset.pattern.permute.xlu0 0
    %1208 = vperm.xlu0 %1207, %v1191
    %v1209 = vpop.permute.xlu0 %1208
    %1212 = vset.pattern.permute.xlu0 0
    %1213 = vperm.xlu0 %1212, %v1192
    %v1214 = vpop.permute.xlu0 %1213
    %v1216 = vadd.f32 %v1204, %v1209
    %v1217 = vadd.f32 %v1205, %v1214
    %v1218 = vrot.slane %v1216, 4
    %v1219 = vmax.f32 %v1216, %v1218
    %v1220 = vrot.slane %v1219, 2
    %v1221 = vmax.f32 %v1219, %v1220
    %v1222 = vrot.slane %v1221, 1
    %v1223 = vmax.f32 %v1221, %v1222
    %v1224 = vrot.slane %v1217, 4
    %v1225 = vmax.f32 %v1217, %v1224
    %v1226 = vrot.slane %v1225, 2
    %v1227 = vmax.f32 %v1225, %v1226
    %v1228 = vrot.slane %v1227, 1
    %v1229 = vmax.f32 %v1227, %v1228
    %v1231 = vsel %vm461, %v1193, 0
    %1233 = vmatprep.subr.mxu0 0.0
    %1234 = vmatpush1.msra.mxu0 %v1204
    %1235 = vmatprep.subr.mxu0 0.0
    %1236 = vmatpush1.msra.mxu0 %v1205
    %1237 = vmatprep.subr.mxu0 0.0
    %1238 = vmatpush1.msra.mxu0 0.0
    %1239 = vmatprep.subr.mxu0 0.0
    %1240 = vmatpush1.msra.mxu0 0.0
    %1241 = vmatprep.subr.mxu0 0.0
    %1242 = vmatpush1.msra.mxu0 0.0
    %1243 = vmatprep.subr.mxu0 0.0
    %1244 = vmatpush1.msra.mxu0 0.0
    %1245 = vmatprep.subr.mxu0 0.0
    %1246 = vmatpush1.msra.mxu0 0.0
    %1247 = vmatprep.subr.mxu0 0.0
    %1248 = vmatpush1.msra.mxu0 0.0
    %1249 = vmatprep.subr.mxu0 0.0
    %1250 = vmatpush1.msra.mxu0 0.0
    %1251 = vmatprep.subr.mxu0 0.0
    %1252 = vmatpush1.msra.mxu0 0.0
    %1253 = vmatprep.subr.mxu0 0.0
    %1254 = vmatpush1.msra.mxu0 0.0
    %1255 = vmatprep.subr.mxu0 0.0
    %1256 = vmatpush1.msra.mxu0 0.0
    %1257 = vmatprep.subr.mxu0 0.0
    %1258 = vmatpush1.msra.mxu0 0.0
    %1259 = vmatprep.subr.mxu0 0.0
    %1260 = vmatpush1.msra.mxu0 0.0
    %1261 = vmatprep.subr.mxu0 0.0
    %1262 = vmatpush1.msra.mxu0 0.0
    %1263 = vmatprep.subr.mxu0 0.0
    %1264 = vmatpush1.msra.mxu0 0.0
    %1265 = vmatprep.subr.mxu0 0.0
    %1266 = vmatpush1.msra.mxu0 0.0
    %1267 = vmatprep.subr.mxu0 0.0
    %1268 = vmatpush1.msra.mxu0 0.0
    %1269 = vmatprep.subr.mxu0 0.0
    %1270 = vmatpush1.msra.mxu0 0.0
    %1271 = vmatprep.subr.mxu0 0.0
    %1272 = vmatpush1.msra.mxu0 0.0
    %1273 = vmatprep.subr.mxu0 0.0
    %1274 = vmatpush1.msra.mxu0 0.0
    %1275 = vmatprep.subr.mxu0 0.0
    %1276 = vmatpush1.msra.mxu0 0.0
    %1277 = vmatprep.subr.mxu0 0.0
    %1278 = vmatpush1.msra.mxu0 0.0
    %1279 = vmatprep.subr.mxu0 0.0
    %1280 = vmatpush1.msra.mxu0 0.0
    %1281 = vmatprep.subr.mxu0 0.0
    %1282 = vmatpush1.msra.mxu0 0.0
    %1283 = vmatprep.subr.mxu0 0.0
    %1284 = vmatpush1.msra.mxu0 0.0
    %1285 = vmatprep.subr.mxu0 0.0
    %1286 = vmatpush1.msra.mxu0 0.0
    %1287 = vmatprep.subr.mxu0 0.0
    %1288 = vmatpush1.msra.mxu0 0.0
    %1289 = vmatprep.subr.mxu0 0.0
    %1290 = vmatpush1.msra.mxu0 0.0
    %1291 = vmatprep.subr.mxu0 0.0
    %1292 = vmatpush1.msra.mxu0 0.0
    %1293 = vmatprep.subr.mxu0 0.0
    %1294 = vmatpush1.msra.mxu0 0.0
    %1295 = vmatprep.subr.mxu0 0.0
    %1296 = vmatpush1.msra.mxu0 0.0
    %1297 = vmatprep.mubr.f32.mxu0 0.0
    %1298 = vmatmul.mubr.f32.gmra.mrb[0].mxu0 %v1231
    %v1299 = vpop.f32.mrb[0].mxu0
    %v1300 = vadd.f32 0.0, %v1299
    %v1301 = vpop.f32.mrb[0].mxu0
    %1302 = vdwg.mxu0
    %v1303 = vpack.c.bf16 %v1223, %v1223
    %v1304 = vpack.c.bf16 %v1229, %v1229
    %v1305 = vpack.c.bf16 %v1300, %v1300
    %v1306 = vmul.f32 %v663, %v1197
    %v1307 = vmul.f32 %v664, %v1202
    %v1308 = vadd.f32 %v1306, %v1209
    %v1309 = vadd.f32 %v1307, %v1214
    %v1310 = vrot.slane %v1308, 4
    %v1311 = vmax.f32 %v1308, %v1310
    %v1312 = vrot.slane %v1311, 2
    %v1313 = vmax.f32 %v1311, %v1312
    %v1314 = vrot.slane %v1313, 1
    %v1315 = vmax.f32 %v1313, %v1314
    %v1316 = vrot.slane %v1309, 4
    %v1317 = vmax.f32 %v1309, %v1316
    %v1318 = vrot.slane %v1317, 2
    %v1319 = vmax.f32 %v1317, %v1318
    %v1320 = vrot.slane %v1319, 1
    %v1321 = vmax.f32 %v1319, %v1320
    %1322 = vmatprep.subr.mxu0 0.0
    %1323 = vmatpush1.msra.mxu0 %v1306
    %1324 = vmatprep.subr.mxu0 0.0
    %1325 = vmatpush1.msra.mxu0 %v1307
    %1326 = vmatprep.subr.mxu0 0.0
    %1327 = vmatpush1.msra.mxu0 0.0
    %1328 = vmatprep.subr.mxu0 0.0
    %1329 = vmatpush1.msra.mxu0 0.0
    %1330 = vmatprep.subr.mxu0 0.0
    %1331 = vmatpush1.msra.mxu0 0.0
    %1332 = vmatprep.subr.mxu0 0.0
    %1333 = vmatpush1.msra.mxu0 0.0
    %1334 = vmatprep.subr.mxu0 0.0
    %1335 = vmatpush1.msra.mxu0 0.0
    %1336 = vmatprep.subr.mxu0 0.0
    %1337 = vmatpush1.msra.mxu0 0.0
    %1338 = vmatprep.subr.mxu0 0.0
    %1339 = vmatpush1.msra.mxu0 0.0
    %1340 = vmatprep.subr.mxu0 0.0
    %1341 = vmatpush1.msra.mxu0 0.0
    %1342 = vmatprep.subr.mxu0 0.0
    %1343 = vmatpush1.msra.mxu0 0.0
    %1344 = vmatprep.subr.mxu0 0.0
    %1345 = vmatpush1.msra.mxu0 0.0
    %1346 = vmatprep.subr.mxu0 0.0
    %1347 = vmatpush1.msra.mxu0 0.0
    %1348 = vmatprep.subr.mxu0 0.0
    %1349 = vmatpush1.msra.mxu0 0.0
    %1350 = vmatprep.subr.mxu0 0.0
    %1351 = vmatpush1.msra.mxu0 0.0
    %1352 = vmatprep.subr.mxu0 0.0
    %1353 = vmatpush1.msra.mxu0 0.0
    %1354 = vmatprep.subr.mxu0 0.0
    %1355 = vmatpush1.msra.mxu0 0.0
    %1356 = vmatprep.subr.mxu0 0.0
    %1357 = vmatpush1.msra.mxu0 0.0
    %1358 = vmatprep.subr.mxu0 0.0
    %1359 = vmatpush1.msra.mxu0 0.0
    %1360 = vmatprep.subr.mxu0 0.0
    %1361 = vmatpush1.msra.mxu0 0.0
    %1362 = vmatprep.subr.mxu0 0.0
    %1363 = vmatpush1.msra.mxu0 0.0
    %1364 = vmatprep.subr.mxu0 0.0
    %1365 = vmatpush1.msra.mxu0 0.0
    %1366 = vmatprep.subr.mxu0 0.0
    %1367 = vmatpush1.msra.mxu0 0.0
    %1368 = vmatprep.subr.mxu0 0.0
    %1369 = vmatpush1.msra.mxu0 0.0
    %1370 = vmatprep.subr.mxu0 0.0
    %1371 = vmatpush1.msra.mxu0 0.0
    %1372 = vmatprep.subr.mxu0 0.0
    %1373 = vmatpush1.msra.mxu0 0.0
    %1374 = vmatprep.subr.mxu0 0.0
    %1375 = vmatpush1.msra.mxu0 0.0
    %1376 = vmatprep.subr.mxu0 0.0
    %1377 = vmatpush1.msra.mxu0 0.0
    %1378 = vmatprep.subr.mxu0 0.0
    %1379 = vmatpush1.msra.mxu0 0.0
    %1380 = vmatprep.subr.mxu0 0.0
    %1381 = vmatpush1.msra.mxu0 0.0
    %1382 = vmatprep.subr.mxu0 0.0
    %1383 = vmatpush1.msra.mxu0 0.0
    %1384 = vmatprep.subr.mxu0 0.0
    %1385 = vmatpush1.msra.mxu0 0.0
    %1386 = vmatprep.mubr.f32.mxu0 0.0
    %1387 = vmatmul.mubr.f32.gmra.mrb[0].mxu0 %v1231
    %v1388 = vpop.f32.mrb[0].mxu0
    %v1389 = vadd.f32 0.0, %v1388
    %v1390 = vpop.f32.mrb[0].mxu0
    %1391 = vdwg.mxu0
    %v1392 = vpack.c.bf16 %v1315, %v1315
    %v1393 = vpack.c.bf16 %v1321, %v1321
    %v1394 = vpack.c.bf16 %v1389, %v1389
    %v1395 = vmul.f32 %v820, %v1197
    %v1396 = vmul.f32 %v821, %v1202
    %v1397 = vadd.f32 %v1395, %v1209
    %v1398 = vadd.f32 %v1396, %v1214
    %v1399 = vrot.slane %v1397, 4
    %v1400 = vmax.f32 %v1397, %v1399
    %v1401 = vrot.slane %v1400, 2
    %v1402 = vmax.f32 %v1400, %v1401
    %v1403 = vrot.slane %v1402, 1
    %v1404 = vmax.f32 %v1402, %v1403
    %v1405 = vrot.slane %v1398, 4
    %v1406 = vmax.f32 %v1398, %v1405
    %v1407 = vrot.slane %v1406, 2
    %v1408 = vmax.f32 %v1406, %v1407
    %v1409 = vrot.slane %v1408, 1
    %v1410 = vmax.f32 %v1408, %v1409
    %1411 = vmatprep.subr.mxu0 0.0
    %1412 = vmatpush1.msra.mxu0 %v1395
    %1413 = vmatprep.subr.mxu0 0.0
    %1414 = vmatpush1.msra.mxu0 %v1396
    %1415 = vmatprep.subr.mxu0 0.0
    %1416 = vmatpush1.msra.mxu0 0.0
    %1417 = vmatprep.subr.mxu0 0.0
    %1418 = vmatpush1.msra.mxu0 0.0
    %1419 = vmatprep.subr.mxu0 0.0
    %1420 = vmatpush1.msra.mxu0 0.0
    %1421 = vmatprep.subr.mxu0 0.0
    %1422 = vmatpush1.msra.mxu0 0.0
    %1423 = vmatprep.subr.mxu0 0.0
    %1424 = vmatpush1.msra.mxu0 0.0
    %1425 = vmatprep.subr.mxu0 0.0
    %1426 = vmatpush1.msra.mxu0 0.0
    %1427 = vmatprep.subr.mxu0 0.0
    %1428 = vmatpush1.msra.mxu0 0.0
    %1429 = vmatprep.subr.mxu0 0.0
    %1430 = vmatpush1.msra.mxu0 0.0
    %1431 = vmatprep.subr.mxu0 0.0
    %1432 = vmatpush1.msra.mxu0 0.0
    %1433 = vmatprep.subr.mxu0 0.0
    %1434 = vmatpush1.msra.mxu0 0.0
    %1435 = vmatprep.subr.mxu0 0.0
    %1436 = vmatpush1.msra.mxu0 0.0
    %1437 = vmatprep.subr.mxu0 0.0
    %1438 = vmatpush1.msra.mxu0 0.0
    %1439 = vmatprep.subr.mxu0 0.0
    %1440 = vmatpush1.msra.mxu0 0.0
    %1441 = vmatprep.subr.mxu0 0.0
    %1442 = vmatpush1.msra.mxu0 0.0
    %1443 = vmatprep.subr.mxu0 0.0
    %1444 = vmatpush1.msra.mxu0 0.0
    %1445 = vmatprep.subr.mxu0 0.0
    %1446 = vmatpush1.msra.mxu0 0.0
    %1447 = vmatprep.subr.mxu0 0.0
    %1448 = vmatpush1.msra.mxu0 0.0
    %1449 = vmatprep.subr.mxu0 0.0
    %1450 = vmatpush1.msra.mxu0 0.0
    %1451 = vmatprep.subr.mxu0 0.0
    %1452 = vmatpush1.msra.mxu0 0.0
    %1453 = vmatprep.subr.mxu0 0.0
    %1454 = vmatpush1.msra.mxu0 0.0
    %1455 = vmatprep.subr.mxu0 0.0
    %1456 = vmatpush1.msra.mxu0 0.0
    %1457 = vmatprep.subr.mxu0 0.0
    %1458 = vmatpush1.msra.mxu0 0.0
    %1459 = vmatprep.subr.mxu0 0.0
    %1460 = vmatpush1.msra.mxu0 0.0
    %1461 = vmatprep.subr.mxu0 0.0
    %1462 = vmatpush1.msra.mxu0 0.0
    %1463 = vmatprep.subr.mxu0 0.0
    %1464 = vmatpush1.msra.mxu0 0.0
    %1465 = vmatprep.subr.mxu0 0.0
    %1466 = vmatpush1.msra.mxu0 0.0
    %1467 = vmatprep.subr.mxu0 0.0
    %1468 = vmatpush1.msra.mxu0 0.0
    %1469 = vmatprep.subr.mxu0 0.0
    %1470 = vmatpush1.msra.mxu0 0.0
    %1471 = vmatprep.subr.mxu0 0.0
    %1472 = vmatpush1.msra.mxu0 0.0
    %1473 = vmatprep.subr.mxu0 0.0
    %1474 = vmatpush1.msra.mxu0 0.0
    %1475 = vmatprep.mubr.f32.mxu0 0.0
    %1476 = vmatmul.mubr.f32.gmra.mrb[0].mxu0 %v1231
    %v1477 = vpop.f32.mrb[0].mxu0
    %v1478 = vadd.f32 0.0, %v1477
    %v1479 = vpop.f32.mrb[0].mxu0
    %1480 = vdwg.mxu0
    %v1481 = vpack.c.bf16 %v1404, %v1404
    %v1482 = vpack.c.bf16 %v1410, %v1410
    %v1483 = vpack.c.bf16 %v1478, %v1478
    %v1484 = vld [vmem:[#allocation24] sm:$0xf]
    %v1485 = vld [vmem:[#allocation24 + $0x4] sm:$0xf]
    %v1486 = vld [vmem:[#allocation24 + $0x8] sm:$0xf]
    %v1487 = vld [vmem:[#allocation24 + $0xc] sm:$0xf]
    %v1488 = vld [vmem:[#allocation24 + $0x10] sm:$0xf]
    %v1489 = vld [vmem:[#allocation24 + $0x14] sm:$0xf]
    %v1490 = vld [vmem:[#allocation24 + $0x18] sm:$0xf]
    %v1491 = vld [vmem:[#allocation24 + $0x1c] sm:$0xf]
    %v1492 = vld [vmem:[#allocation24 + $0x20] sm:$0xf]
    %v1493 = vld [vmem:[#allocation24 + $0x24] sm:$0xf]
    %v1494 = vld [vmem:[#allocation24 + $0x28] sm:$0xf]
    %v1495 = vld [vmem:[#allocation24 + $0x2c] sm:$0xf]
    %v1496 = vld [vmem:[#allocation24 + $0x30] sm:$0xf]
    %v1497 = vld [vmem:[#allocation24 + $0x34] sm:$0xf]
    %v1498 = vld [vmem:[#allocation24 + $0x38] sm:$0xf]
    %v1499 = vld [vmem:[#allocation24 + $0x3c] sm:$0xf]
    %v1500 = vld [vmem:[#allocation26] sm:$0xf]
    %v1501 = vld [vmem:[#allocation26 + $0x4] sm:$0xf]
    %v1502 = vld [vmem:[#allocation26 + $0x8] sm:$0xf]
    %v1503 = vld [vmem:[#allocation26 + $0xc] sm:$0xf]
    %v1504 = vld [vmem:[#allocation26 + $0x10] sm:$0xf]
    %v1505 = vld [vmem:[#allocation26 + $0x14] sm:$0xf]
    %v1506 = vld [vmem:[#allocation26 + $0x18] sm:$0xf]
    %v1507 = vld [vmem:[#allocation26 + $0x1c] sm:$0xf]
    %v1508 = vld [vmem:[#allocation26 + $0x20] sm:$0xf]
    %v1509 = vld [vmem:[#allocation26 + $0x24] sm:$0xf]
    %v1510 = vld [vmem:[#allocation26 + $0x28] sm:$0xf]
    %v1511 = vld [vmem:[#allocation26 + $0x2c] sm:$0xf]
    %v1512 = vld [vmem:[#allocation26 + $0x30] sm:$0xf]
    %v1513 = vld [vmem:[#allocation26 + $0x34] sm:$0xf]
    %v1514 = vld [vmem:[#allocation26 + $0x38] sm:$0xf]
    %v1515 = vld [vmem:[#allocation26 + $0x3c] sm:$0xf]
    %v1518 = vunpack.c.l.b16 %v1392
    %v1519 = vunpack.c.l.b16 %v1393
    %vm1520 = vcmask 1041409
    %v1521 = vsel %vm1520, %v1519, %v1518
    %v1522 = vpack.c.b16 %v1521, %v1521
    %v1540 = vunpack.c.l.b16 %v1500
    %v1541 = vunpack.c.l.b16 %v1501
    %v1542 = vunpack.c.l.b16 %v1502
    %v1543 = vunpack.c.l.b16 %v1503
    %v1544 = vunpack.c.l.b16 %v1504
    %v1545 = vunpack.c.l.b16 %v1505
    %v1546 = vunpack.c.l.b16 %v1506
    %v1547 = vunpack.c.l.b16 %v1507
    %v1548 = vunpack.c.l.b16 %v1508
    %v1549 = vunpack.c.l.b16 %v1509
    %v1550 = vunpack.c.l.b16 %v1510
    %v1551 = vunpack.c.l.b16 %v1511
    %v1552 = vunpack.c.l.b16 %v1512
    %v1553 = vunpack.c.l.b16 %v1513
    %v1554 = vunpack.c.l.b16 %v1514
    %v1555 = vunpack.c.l.b16 %v1515
    %v1556 = vpack.c.b16 %v1541, %v1540
    %v1557 = vpack.c.b16 %v1543, %v1542
    %v1558 = vpack.c.b16 %v1545, %v1544
    %v1559 = vpack.c.b16 %v1547, %v1546
    %v1560 = vpack.c.b16 %v1549, %v1548
    %v1561 = vpack.c.b16 %v1551, %v1550
    %v1562 = vpack.c.b16 %v1553, %v1552
    %v1563 = vpack.c.b16 %v1555, %v1554
    %1572 = vmatprep.subr.bf16.mxu0 0
    %1573 = vmatpush1.bf16.msra.mxu0 %v1556
    %1574 = vmatprep.subr.bf16.mxu0 0
    %1575 = vmatpush1.bf16.msra.mxu0 %v1557
    %1576 = vmatprep.subr.bf16.mxu0 0
    %1577 = vmatpush1.bf16.msra.mxu0 %v1558
    %1578 = vmatprep.subr.bf16.mxu0 0
    %1579 = vmatpush1.bf16.msra.mxu0 %v1559
    %1580 = vmatprep.subr.bf16.mxu0 0
    %1581 = vmatpush1.bf16.msra.mxu0 %v1560
    %1582 = vmatprep.subr.bf16.mxu0 0
    %1583 = vmatpush1.bf16.msra.mxu0 %v1561
    %1584 = vmatprep.subr.bf16.mxu0 0
    %1585 = vmatpush1.bf16.msra.mxu0 %v1562
    %1586 = vmatprep.subr.bf16.mxu0 0
    %1587 = vmatpush1.bf16.msra.mxu0 %v1563
    %1588 = vmatprep.subr.bf16.mxu0 0
    %1589 = vmatpush1.bf16.msra.mxu0 0
    %1590 = vmatprep.subr.bf16.mxu0 0
    %1591 = vmatpush1.bf16.msra.mxu0 0
    %1592 = vmatprep.subr.bf16.mxu0 0
    %1593 = vmatpush1.bf16.msra.mxu0 0
    %1594 = vmatprep.subr.bf16.mxu0 0
    %1595 = vmatpush1.bf16.msra.mxu0 0
    %1596 = vmatprep.subr.bf16.mxu0 0
    %1597 = vmatpush1.bf16.msra.mxu0 0
    %1598 = vmatprep.subr.bf16.mxu0 0
    %1599 = vmatpush1.bf16.msra.mxu0 0
    %1600 = vmatprep.subr.bf16.mxu0 0
    %1601 = vmatpush1.bf16.msra.mxu0 0
    %1602 = vmatprep.subr.bf16.mxu0 0
    %1603 = vmatpush1.bf16.msra.mxu0 0
    %1604 = vmatprep.mubr.bf16.mxu0 0
    %1605 = vmatmul.mubr.bf16.gmra.mrb[0].mxu0 %v1522
    %v1606 = vpop.f32.mrb[0].mxu0
    %v1607 = vadd.f32 0.0, %v1606
    %v1608 = vpop.f32.mrb[0].mxu0
    %v1609 = vpop.f32.mrb[0].mxu0
    %v1610 = vpop.f32.mrb[0].mxu0
    %1611 = vdwg.mxu0
    %v1614 = vunpack.c.l.b16 %v1303
    %v1615 = vunpack.c.l.b16 %v1304
    %v1616 = vsel %vm1520, %v1615, %v1614
    %v1617 = vpack.c.b16 %v1616, %v1616
    %v1635 = vunpack.c.l.b16 %v1484
    %v1636 = vunpack.c.l.b16 %v1485
    %v1637 = vunpack.c.l.b16 %v1486
    %v1638 = vunpack.c.l.b16 %v1487
    %v1639 = vunpack.c.l.b16 %v1488
    %v1640 = vunpack.c.l.b16 %v1489
    %v1641 = vunpack.c.l.b16 %v1490
    %v1642 = vunpack.c.l.b16 %v1491
    %v1643 = vunpack.c.l.b16 %v1492
    %v1644 = vunpack.c.l.b16 %v1493
    %v1645 = vunpack.c.l.b16 %v1494
    %v1646 = vunpack.c.l.b16 %v1495
    %v1647 = vunpack.c.l.b16 %v1496
    %v1648 = vunpack.c.l.b16 %v1497
    %v1649 = vunpack.c.l.b16 %v1498
    %v1650 = vunpack.c.l.b16 %v1499
    %v1651 = vpack.c.b16 %v1636, %v1635
    %v1652 = vpack.c.b16 %v1638, %v1637
    %v1653 = vpack.c.b16 %v1640, %v1639
    %v1654 = vpack.c.b16 %v1642, %v1641
    %v1655 = vpack.c.b16 %v1644, %v1643
    %v1656 = vpack.c.b16 %v1646, %v1645
    %v1657 = vpack.c.b16 %v1648, %v1647
    %v1658 = vpack.c.b16 %v1650, %v1649
    %1667 = vmatprep.subr.bf16.mxu0 0
    %1668 = vmatpush1.bf16.msra.mxu0 %v1651
    %1669 = vmatprep.subr.bf16.mxu0 0
    %1670 = vmatpush1.bf16.msra.mxu0 %v1652
    %1671 = vmatprep.subr.bf16.mxu0 0
    %1672 = vmatpush1.bf16.msra.mxu0 %v1653
    %1673 = vmatprep.subr.bf16.mxu0 0
    %1674 = vmatpush1.bf16.msra.mxu0 %v1654
    %1675 = vmatprep.subr.bf16.mxu0 0
    %1676 = vmatpush1.bf16.msra.mxu0 %v1655
    %1677 = vmatprep.subr.bf16.mxu0 0
    %1678 = vmatpush1.bf16.msra.mxu0 %v1656
    %1679 = vmatprep.subr.bf16.mxu0 0
    %1680 = vmatpush1.bf16.msra.mxu0 %v1657
    %1681 = vmatprep.subr.bf16.mxu0 0
    %1682 = vmatpush1.bf16.msra.mxu0 %v1658
    %1683 = vmatprep.subr.bf16.mxu0 0
    %1684 = vmatpush1.bf16.msra.mxu0 0
    %1685 = vmatprep.subr.bf16.mxu0 0
    %1686 = vmatpush1.bf16.msra.mxu0 0
    %1687 = vmatprep.subr.bf16.mxu0 0
    %1688 = vmatpush1.bf16.msra.mxu0 0
    %1689 = vmatprep.subr.bf16.mxu0 0
    %1690 = vmatpush1.bf16.msra.mxu0 0
    %1691 = vmatprep.subr.bf16.mxu0 0
    %1692 = vmatpush1.bf16.msra.mxu0 0
    %1693 = vmatprep.subr.bf16.mxu0 0
    %1694 = vmatpush1.bf16.msra.mxu0 0
    %1695 = vmatprep.subr.bf16.mxu0 0
    %1696 = vmatpush1.bf16.msra.mxu0 0
    %1697 = vmatprep.subr.bf16.mxu0 0
    %1698 = vmatpush1.bf16.msra.mxu0 0
    %1699 = vmatprep.mubr.bf16.mxu0 0
    %1700 = vmatmul.mubr.bf16.gmra.mrb[0].mxu0 %v1617
    %v1701 = vpop.f32.mrb[0].mxu0
    %v1702 = vadd.f32 %v1607, %v1701
    %v1703 = vpop.f32.mrb[0].mxu0
    %v1704 = vpop.f32.mrb[0].mxu0
    %v1705 = vpop.f32.mrb[0].mxu0
    %1706 = vdwg.mxu0
    %v1707 = vld [vmem:[#allocation27] sm:$0xf]
    %v1708 = vld [vmem:[#allocation27 + $0x4] sm:$0xf]
    %v1709 = vld [vmem:[#allocation27 + $0x8] sm:$0xf]
    %v1710 = vld [vmem:[#allocation27 + $0xc] sm:$0xf]
    %v1711 = vld [vmem:[#allocation27 + $0x10] sm:$0xf]
    %v1712 = vld [vmem:[#allocation27 + $0x14] sm:$0xf]
    %v1713 = vld [vmem:[#allocation27 + $0x18] sm:$0xf]
    %v1714 = vld [vmem:[#allocation27 + $0x1c] sm:$0xf]
    %v1715 = vld [vmem:[#allocation27 + $0x20] sm:$0xf]
    %v1716 = vld [vmem:[#allocation27 + $0x24] sm:$0xf]
    %v1717 = vld [vmem:[#allocation27 + $0x28] sm:$0xf]
    %v1718 = vld [vmem:[#allocation27 + $0x2c] sm:$0xf]
    %v1719 = vld [vmem:[#allocation27 + $0x30] sm:$0xf]
    %v1720 = vld [vmem:[#allocation27 + $0x34] sm:$0xf]
    %v1721 = vld [vmem:[#allocation27 + $0x38] sm:$0xf]
    %v1722 = vld [vmem:[#allocation27 + $0x3c] sm:$0xf]
    %v1725 = vunpack.c.l.b16 %v1481
    %v1726 = vunpack.c.l.b16 %v1482
    %v1727 = vsel %vm1520, %v1726, %v1725
    %v1728 = vpack.c.b16 %v1727, %v1727
    %v1746 = vunpack.c.l.b16 %v1707
    %v1747 = vunpack.c.l.b16 %v1708
    %v1748 = vunpack.c.l.b16 %v1709
    %v1749 = vunpack.c.l.b16 %v1710
    %v1750 = vunpack.c.l.b16 %v1711
    %v1751 = vunpack.c.l.b16 %v1712
    %v1752 = vunpack.c.l.b16 %v1713
    %v1753 = vunpack.c.l.b16 %v1714
    %v1754 = vunpack.c.l.b16 %v1715
    %v1755 = vunpack.c.l.b16 %v1716
    %v1756 = vunpack.c.l.b16 %v1717
    %v1757 = vunpack.c.l.b16 %v1718
    %v1758 = vunpack.c.l.b16 %v1719
    %v1759 = vunpack.c.l.b16 %v1720
    %v1760 = vunpack.c.l.b16 %v1721
    %v1761 = vunpack.c.l.b16 %v1722
    %v1762 = vpack.c.b16 %v1747, %v1746
    %v1763 = vpack.c.b16 %v1749, %v1748
    %v1764 = vpack.c.b16 %v1751, %v1750
    %v1765 = vpack.c.b16 %v1753, %v1752
    %v1766 = vpack.c.b16 %v1755, %v1754
    %v1767 = vpack.c.b16 %v1757, %v1756
    %v1768 = vpack.c.b16 %v1759, %v1758
    %v1769 = vpack.c.b16 %v1761, %v1760
    %1778 = vmatprep.subr.bf16.mxu0 0
    %1779 = vmatpush1.bf16.msra.mxu0 %v1762
    %1780 = vmatprep.subr.bf16.mxu0 0
    %1781 = vmatpush1.bf16.msra.mxu0 %v1763
    %1782 = vmatprep.subr.bf16.mxu0 0
    %1783 = vmatpush1.bf16.msra.mxu0 %v1764
    %1784 = vmatprep.subr.bf16.mxu0 0
    %1785 = vmatpush1.bf16.msra.mxu0 %v1765
    %1786 = vmatprep.subr.bf16.mxu0 0
    %1787 = vmatpush1.bf16.msra.mxu0 %v1766
    %1788 = vmatprep.subr.bf16.mxu0 0
    %1789 = vmatpush1.bf16.msra.mxu0 %v1767
    %1790 = vmatprep.subr.bf16.mxu0 0
    %1791 = vmatpush1.bf16.msra.mxu0 %v1768
    %1792 = vmatprep.subr.bf16.mxu0 0
    %1793 = vmatpush1.bf16.msra.mxu0 %v1769
    %1794 = vmatprep.subr.bf16.mxu0 0
    %1795 = vmatpush1.bf16.msra.mxu0 0
    %1796 = vmatprep.subr.bf16.mxu0 0
    %1797 = vmatpush1.bf16.msra.mxu0 0
    %1798 = vmatprep.subr.bf16.mxu0 0
    %1799 = vmatpush1.bf16.msra.mxu0 0
    %1800 = vmatprep.subr.bf16.mxu0 0
    %1801 = vmatpush1.bf16.msra.mxu0 0
    %1802 = vmatprep.subr.bf16.mxu0 0
    %1803 = vmatpush1.bf16.msra.mxu0 0
    %1804 = vmatprep.subr.bf16.mxu0 0
    %1805 = vmatpush1.bf16.msra.mxu0 0
    %1806 = vmatprep.subr.bf16.mxu0 0
    %1807 = vmatpush1.bf16.msra.mxu0 0
    %1808 = vmatprep.subr.bf16.mxu0 0
    %1809 = vmatpush1.bf16.msra.mxu0 0
    %1810 = vmatprep.mubr.bf16.mxu0 0
    %1811 = vmatmul.mubr.bf16.gmra.mrb[0].mxu0 %v1728
    %v1812 = vpop.f32.mrb[0].mxu0
    %v1813 = vadd.f32 0.0, %v1812
    %v1814 = vpop.f32.mrb[0].mxu0
    %v1815 = vpop.f32.mrb[0].mxu0
    %v1816 = vpop.f32.mrb[0].mxu0
    %1817 = vdwg.mxu0
    %v1818 = vadd.f32 %v1702, %v1813
    %v1819 = vld [vmem:[#allocation29] sm:$0xf]
    %v1820 = vld [vmem:[#allocation29 + $0x4] sm:$0xf]
    %v1821 = vld [vmem:[#allocation29 + $0x8] sm:$0xf]
    %v1822 = vld [vmem:[#allocation29 + $0xc] sm:$0xf]
    %v1823 = vld [vmem:[#allocation29 + $0x10] sm:$0xf]
    %v1824 = vld [vmem:[#allocation29 + $0x14] sm:$0xf]
    %v1825 = vld [vmem:[#allocation29 + $0x18] sm:$0xf]
    %v1826 = vld [vmem:[#allocation29 + $0x1c] sm:$0xf]
    %v1827 = vld [vmem:[#allocation29 + $0x20] sm:$0xf]
    %v1828 = vld [vmem:[#allocation29 + $0x24] sm:$0xf]
    %v1829 = vld [vmem:[#allocation29 + $0x28] sm:$0xf]
    %v1830 = vld [vmem:[#allocation29 + $0x2c] sm:$0xf]
    %v1831 = vld [vmem:[#allocation29 + $0x30] sm:$0xf]
    %v1832 = vld [vmem:[#allocation29 + $0x34] sm:$0xf]
    %v1833 = vld [vmem:[#allocation29 + $0x38] sm:$0xf]
    %v1834 = vld [vmem:[#allocation29 + $0x3c] sm:$0xf]
    %v1851 = vunpack.c.l.b16 %v1819
    %v1852 = vunpack.c.l.b16 %v1820
    %v1853 = vunpack.c.l.b16 %v1821
    %v1854 = vunpack.c.l.b16 %v1822
    %v1855 = vunpack.c.l.b16 %v1823
    %v1856 = vunpack.c.l.b16 %v1824
    %v1857 = vunpack.c.l.b16 %v1825
    %v1858 = vunpack.c.l.b16 %v1826
    %v1859 = vunpack.c.l.b16 %v1827
    %v1860 = vunpack.c.l.b16 %v1828
    %v1861 = vunpack.c.l.b16 %v1829
    %v1862 = vunpack.c.l.b16 %v1830
    %v1863 = vunpack.c.l.b16 %v1831
    %v1864 = vunpack.c.l.b16 %v1832
    %v1865 = vunpack.c.l.b16 %v1833
    %v1866 = vunpack.c.l.b16 %v1834
    %v1867 = vpack.c.b16 %v1852, %v1851
    %v1868 = vpack.c.b16 %v1854, %v1853
    %v1869 = vpack.c.b16 %v1856, %v1855
    %v1870 = vpack.c.b16 %v1858, %v1857
    %v1871 = vpack.c.b16 %v1860, %v1859
    %v1872 = vpack.c.b16 %v1862, %v1861
    %v1873 = vpack.c.b16 %v1864, %v1863
    %v1874 = vpack.c.b16 %v1866, %v1865
    %1883 = vmatprep.subr.bf16.mxu0 0
    %1884 = vmatpush1.bf16.msra.mxu0 %v1867
    %1885 = vmatprep.subr.bf16.mxu0 0
    %1886 = vmatpush1.bf16.msra.mxu0 %v1868
    %1887 = vmatprep.subr.bf16.mxu0 0
    %1888 = vmatpush1.bf16.msra.mxu0 %v1869
    %1889 = vmatprep.subr.bf16.mxu0 0
    %1890 = vmatpush1.bf16.msra.mxu0 %v1870
    %1891 = vmatprep.subr.bf16.mxu0 0
    %1892 = vmatpush1.bf16.msra.mxu0 %v1871
    %1893 = vmatprep.subr.bf16.mxu0 0
    %1894 = vmatpush1.bf16.msra.mxu0 %v1872
    %1895 = vmatprep.subr.bf16.mxu0 0
    %1896 = vmatpush1.bf16.msra.mxu0 %v1873
    %1897 = vmatprep.subr.bf16.mxu0 0
    %1898 = vmatpush1.bf16.msra.mxu0 %v1874
    %1899 = vmatprep.subr.bf16.mxu0 0
    %1900 = vmatpush1.bf16.msra.mxu0 0
    %1901 = vmatprep.subr.bf16.mxu0 0
    %1902 = vmatpush1.bf16.msra.mxu0 0
    %1903 = vmatprep.subr.bf16.mxu0 0
    %1904 = vmatpush1.bf16.msra.mxu0 0
    %1905 = vmatprep.subr.bf16.mxu0 0
    %1906 = vmatpush1.bf16.msra.mxu0 0
    %1907 = vmatprep.subr.bf16.mxu0 0
    %1908 = vmatpush1.bf16.msra.mxu0 0
    %1909 = vmatprep.subr.bf16.mxu0 0
    %1910 = vmatpush1.bf16.msra.mxu0 0
    %1911 = vmatprep.subr.bf16.mxu0 0
    %1912 = vmatpush1.bf16.msra.mxu0 0
    %1913 = vmatprep.subr.bf16.mxu0 0
    %1914 = vmatpush1.bf16.msra.mxu0 0
    %1915 = vmatprep.mubr.bf16.mxu0 0
    %1916 = vmatmul.mubr.bf16.gmra.mrb[0].mxu0 %v1305
    %v1917 = vpop.f32.mrb[0].mxu0
    %v1918 = vadd.f32 0.0, %v1917
    %v1919 = vpop.f32.mrb[0].mxu0
    %v1920 = vpop.f32.mrb[0].mxu0
    %v1921 = vpop.f32.mrb[0].mxu0
    %1922 = vdwg.mxu0
    %v1923 = vadd.f32 %v1818, %v1918
    %v1924 = vld [vmem:[#allocation30] sm:$0xf]
    %v1925 = vld [vmem:[#allocation30 + $0x4] sm:$0xf]
    %v1926 = vld [vmem:[#allocation30 + $0x8] sm:$0xf]
    %v1927 = vld [vmem:[#allocation30 + $0xc] sm:$0xf]
    %v1928 = vld [vmem:[#allocation30 + $0x10] sm:$0xf]
    %v1929 = vld [vmem:[#allocation30 + $0x14] sm:$0xf]
    %v1930 = vld [vmem:[#allocation30 + $0x18] sm:$0xf]
    %v1931 = vld [vmem:[#allocation30 + $0x1c] sm:$0xf]
    %v1932 = vld [vmem:[#allocation30 + $0x20] sm:$0xf]
    %v1933 = vld [vmem:[#allocation30 + $0x24] sm:$0xf]
    %v1934 = vld [vmem:[#allocation30 + $0x28] sm:$0xf]
    %v1935 = vld [vmem:[#allocation30 + $0x2c] sm:$0xf]
    %v1936 = vld [vmem:[#allocation30 + $0x30] sm:$0xf]
    %v1937 = vld [vmem:[#allocation30 + $0x34] sm:$0xf]
    %v1938 = vld [vmem:[#allocation30 + $0x38] sm:$0xf]
    %v1939 = vld [vmem:[#allocation30 + $0x3c] sm:$0xf]
    %v1956 = vunpack.c.l.b16 %v1924
    %v1957 = vunpack.c.l.b16 %v1925
    %v1958 = vunpack.c.l.b16 %v1926
    %v1959 = vunpack.c.l.b16 %v1927
    %v1960 = vunpack.c.l.b16 %v1928
    %v1961 = vunpack.c.l.b16 %v1929
    %v1962 = vunpack.c.l.b16 %v1930
    %v1963 = vunpack.c.l.b16 %v1931
    %v1964 = vunpack.c.l.b16 %v1932
    %v1965 = vunpack.c.l.b16 %v1933
    %v1966 = vunpack.c.l.b16 %v1934
    %v1967 = vunpack.c.l.b16 %v1935
    %v1968 = vunpack.c.l.b16 %v1936
    %v1969 = vunpack.c.l.b16 %v1937
    %v1970 = vunpack.c.l.b16 %v1938
    %v1971 = vunpack.c.l.b16 %v1939
    %v1972 = vpack.c.b16 %v1957, %v1956
    %v1973 = vpack.c.b16 %v1959, %v1958
    %v1974 = vpack.c.b16 %v1961, %v1960
    %v1975 = vpack.c.b16 %v1963, %v1962
    %v1976 = vpack.c.b16 %v1965, %v1964
    %v1977 = vpack.c.b16 %v1967, %v1966
    %v1978 = vpack.c.b16 %v1969, %v1968
    %v1979 = vpack.c.b16 %v1971, %v1970
    %1988 = vmatprep.subr.bf16.mxu0 0
    %1989 = vmatpush1.bf16.msra.mxu0 %v1972
    %1990 = vmatprep.subr.bf16.mxu0 0
    %1991 = vmatpush1.bf16.msra.mxu0 %v1973
    %1992 = vmatprep.subr.bf16.mxu0 0
    %1993 = vmatpush1.bf16.msra.mxu0 %v1974
    %1994 = vmatprep.subr.bf16.mxu0 0
    %1995 = vmatpush1.bf16.msra.mxu0 %v1975
    %1996 = vmatprep.subr.bf16.mxu0 0
    %1997 = vmatpush1.bf16.msra.mxu0 %v1976
    %1998 = vmatprep.subr.bf16.mxu0 0
    %1999 = vmatpush1.bf16.msra.mxu0 %v1977
    %2000 = vmatprep.subr.bf16.mxu0 0
    %2001 = vmatpush1.bf16.msra.mxu0 %v1978
    %2002 = vmatprep.subr.bf16.mxu0 0
    %2003 = vmatpush1.bf16.msra.mxu0 %v1979
    %2004 = vmatprep.subr.bf16.mxu0 0
    %2005 = vmatpush1.bf16.msra.mxu0 0
    %2006 = vmatprep.subr.bf16.mxu0 0
    %2007 = vmatpush1.bf16.msra.mxu0 0
    %2008 = vmatprep.subr.bf16.mxu0 0
    %2009 = vmatpush1.bf16.msra.mxu0 0
    %2010 = vmatprep.subr.bf16.mxu0 0
    %2011 = vmatpush1.bf16.msra.mxu0 0
    %2012 = vmatprep.subr.bf16.mxu0 0
    %2013 = vmatpush1.bf16.msra.mxu0 0
    %2014 = vmatprep.subr.bf16.mxu0 0
    %2015 = vmatpush1.bf16.msra.mxu0 0
    %2016 = vmatprep.subr.bf16.mxu0 0
    %2017 = vmatpush1.bf16.msra.mxu0 0
    %2018 = vmatprep.subr.bf16.mxu0 0
    %2019 = vmatpush1.bf16.msra.mxu0 0
    %2020 = vmatprep.mubr.bf16.mxu0 0
    %2021 = vmatmul.mubr.bf16.gmra.mrb[0].mxu0 %v1394
    %v2022 = vpop.f32.mrb[0].mxu0
    %v2023 = vadd.f32 0.0, %v2022
    %v2024 = vpop.f32.mrb[0].mxu0
    %v2025 = vpop.f32.mrb[0].mxu0
    %v2026 = vpop.f32.mrb[0].mxu0
    %2027 = vdwg.mxu0
    %v2028 = vadd.f32 %v1923, %v2023
    %v2029 = vld [vmem:[#allocation32] sm:$0xf]
    %v2030 = vld [vmem:[#allocation32 + $0x4] sm:$0xf]
    %v2031 = vld [vmem:[#allocation32 + $0x8] sm:$0xf]
    %v2032 = vld [vmem:[#allocation32 + $0xc] sm:$0xf]
    %v2033 = vld [vmem:[#allocation32 + $0x10] sm:$0xf]
    %v2034 = vld [vmem:[#allocation32 + $0x14] sm:$0xf]
    %v2035 = vld [vmem:[#allocation32 + $0x18] sm:$0xf]
    %v2036 = vld [vmem:[#allocation32 + $0x1c] sm:$0xf]
    %v2037 = vld [vmem:[#allocation32 + $0x20] sm:$0xf]
    %v2038 = vld [vmem:[#allocation32 + $0x24] sm:$0xf]
    %v2039 = vld [vmem:[#allocation32 + $0x28] sm:$0xf]
    %v2040 = vld [vmem:[#allocation32 + $0x2c] sm:$0xf]
    %v2041 = vld [vmem:[#allocation32 + $0x30] sm:$0xf]
    %v2042 = vld [vmem:[#allocation32 + $0x34] sm:$0xf]
    %v2043 = vld [vmem:[#allocation32 + $0x38] sm:$0xf]
    %v2044 = vld [vmem:[#allocation32 + $0x3c] sm:$0xf]
    %v2061 = vunpack.c.l.b16 %v2029
    %v2062 = vunpack.c.l.b16 %v2030
    %v2063 = vunpack.c.l.b16 %v2031
    %v2064 = vunpack.c.l.b16 %v2032
    %v2065 = vunpack.c.l.b16 %v2033
    %v2066 = vunpack.c.l.b16 %v2034
    %v2067 = vunpack.c.l.b16 %v2035
    %v2068 = vunpack.c.l.b16 %v2036
    %v2069 = vunpack.c.l.b16 %v2037
    %v2070 = vunpack.c.l.b16 %v2038
    %v2071 = vunpack.c.l.b16 %v2039
    %v2072 = vunpack.c.l.b16 %v2040
    %v2073 = vunpack.c.l.b16 %v2041
    %v2074 = vunpack.c.l.b16 %v2042
    %v2075 = vunpack.c.l.b16 %v2043
    %v2076 = vunpack.c.l.b16 %v2044
    %v2077 = vpack.c.b16 %v2062, %v2061
    %v2078 = vpack.c.b16 %v2064, %v2063
    %v2079 = vpack.c.b16 %v2066, %v2065
    %v2080 = vpack.c.b16 %v2068, %v2067
    %v2081 = vpack.c.b16 %v2070, %v2069
    %v2082 = vpack.c.b16 %v2072, %v2071
    %v2083 = vpack.c.b16 %v2074, %v2073
    %v2084 = vpack.c.b16 %v2076, %v2075
    %2093 = vmatprep.subr.bf16.mxu0 0
    %2094 = vmatpush1.bf16.msra.mxu0 %v2077
    %2095 = vmatprep.subr.bf16.mxu0 0
    %2096 = vmatpush1.bf16.msra.mxu0 %v2078
    %2097 = vmatprep.subr.bf16.mxu0 0
    %2098 = vmatpush1.bf16.msra.mxu0 %v2079
    %2099 = vmatprep.subr.bf16.mxu0 0
    %2100 = vmatpush1.bf16.msra.mxu0 %v2080
    %2101 = vmatprep.subr.bf16.mxu0 0
    %2102 = vmatpush1.bf16.msra.mxu0 %v2081
    %2103 = vmatprep.subr.bf16.mxu0 0
    %2104 = vmatpush1.bf16.msra.mxu0 %v2082
    %2105 = vmatprep.subr.bf16.mxu0 0
    %2106 = vmatpush1.bf16.msra.mxu0 %v2083
    %2107 = vmatprep.subr.bf16.mxu0 0
    %2108 = vmatpush1.bf16.msra.mxu0 %v2084
    %2109 = vmatprep.subr.bf16.mxu0 0
    %2110 = vmatpush1.bf16.msra.mxu0 0
    %2111 = vmatprep.subr.bf16.mxu0 0
    %2112 = vmatpush1.bf16.msra.mxu0 0
    %2113 = vmatprep.subr.bf16.mxu0 0
    %2114 = vmatpush1.bf16.msra.mxu0 0
    %2115 = vmatprep.subr.bf16.mxu0 0
    %2116 = vmatpush1.bf16.msra.mxu0 0
    %2117 = vmatprep.subr.bf16.mxu0 0
    %2118 = vmatpush1.bf16.msra.mxu0 0
    %2119 = vmatprep.subr.bf16.mxu0 0
    %2120 = vmatpush1.bf16.msra.mxu0 0
    %2121 = vmatprep.subr.bf16.mxu0 0
    %2122 = vmatpush1.bf16.msra.mxu0 0
    %2123 = vmatprep.subr.bf16.mxu0 0
    %2124 = vmatpush1.bf16.msra.mxu0 0
    %2125 = vmatprep.mubr.bf16.mxu0 0
    %2126 = vmatmul.mubr.bf16.gmra.mrb[0].mxu0 %v1483
    %v2127 = vpop.f32.mrb[0].mxu0
    %v2128 = vadd.f32 0.0, %v2127
    %v2129 = vpop.f32.mrb[0].mxu0
    %v2130 = vpop.f32.mrb[0].mxu0
    %v2131 = vpop.f32.mrb[0].mxu0
    %2132 = vdwg.mxu0
    %v2133 = vadd.f32 %v2028, %v2128
    %v2134 = vld [vmem:[#allocation33] sm:$0x1]
    %v2136 = vlaneseq
    %v2137 = vshrl.u32 %v2136, 7
    %v2138 = vsub.s32 0, %v2137
    %v2139 = vrot.slane %v2134, %v2138
    %v2141 = vadd.f32 %v2133, %v2139
    %v2142 = vmax.f32 %v2141, 0.0
    %v2143 = vpack.c.bf16 %v2142, %v2142
    %2144 = vst [vmem:[#allocation35] sm:$0x1] %v2143
    // Predicated region
    $region166: #{sagnet_forward.3} parent=1 // pred_check
      _
    $region167: #{sagnet_forward.3} parent=1 // pred_check_branch
      %2146 = sbr.rel (0) target = $region169
    $region168: #{sagnet_forward.3} parent=1 // pred_region
      %s2148 = ssub.s32 16, 16
      %2149 = vsyncadd [#allocation5], %s2148
      %s2151 = sshll.u32 [#allocation35], 4
      %s2152 = int_to_ptr.vmem [resolvable:$true] %s2151
      %2154 = dma.vmem_to_hbm [thread:$0]  %s2152, 16, %s21, [#allocation5]
    $region169: #{sagnet_forward.3} parent=1 // pred_fallthru
      _
    // Predicated region
    $region170: #{sagnet_forward.3} parent=1 // pred_check
      _
    $region171: #{sagnet_forward.3} parent=1 // pred_check_branch
      %2156 = sbr.rel (0) target = $region173
    $region172: #{sagnet_forward.3} parent=1 // pred_region
      %2157 = dma.done [#allocation5], 16
    $region173: #{sagnet_forward.3} parent=1 // pred_fallthru
      _
    %2158 = vsyncpa [#allocation4], 1
    %2159 = vsyncpa [#allocation7], 1
    %2160 = vsyncpa [#allocation10], 1
    %2161 = vsyncpa [#allocation13], 1
    %2162 = vsyncpa [#allocation16], 1
    %2163 = vsyncpa [#allocation19], 1
    %2164 = vsyncpa [#allocation22], 1
    %2165 = vsyncpa [#allocation25], 1
    %2166 = vsyncpa [#allocation28], 1
    %2167 = vsyncpa [#allocation31], 1
    %2168 = vsyncpa [#allocation34], 1
    %2169 = vsyncpa [#allocation5], 1

// kernel: sagnet_forward.4
$region0: #{sagnet_forward.4}
  #allocation0 [shape = 'u32[]', space=smem, size = 0x4, offset = 0x4, fixed_abs, tag = 'smem constant byte address 0x4 - core index']
  #allocation1 [shape = 'u32[144,128]{1,0:T(1,128)}', space=vmem, size = 0x12000, scoped, tag = 'internal scratch']
  %s0 = inlined_call_operand.vmem [shape: bf16[2,1000,128], index: 0, kind: input, shape index: {}]
  %s1 = inlined_call_operand.vmem [shape: bf16[384,1000], index: 1, kind: input, shape index: {}]
  %s2 = inlined_call_operand.vmem [shape: f32[128,1], index: 2, kind: input, shape index: {}]
  %s3 = inlined_call_operand.vmem [shape: bf16[192,128], index: 3, kind: input, shape index: {}]
  %s4 = inlined_call_operand.vmem [shape: f32[64,1], index: 4, kind: input, shape index: {}]
  %s5 = inlined_call_operand.vmem [shape: bf16[96,64], index: 5, kind: input, shape index: {}]
  %s6 = inlined_call_operand.vmem [shape: f32[32,1], index: 6, kind: input, shape index: {}]
  %s7 = inlined_call_operand.vmem [shape: bf16[2,32,128], index: 7, kind: output, shape index: {}]
  %s8 = sld [smem:[#allocation0]]
  $region61: #{sagnet_forward.4} parent=0
    _
  %s10 = ssub.s32 1, %s8
  %s11 = scalar_select 0, %s10, %s8
  loop: start=0, step=1, limit=4
  $region2: #{sagnet_forward.4} parent=0 // loop_pre_header
    _
  $region3: #{sagnet_forward.4} parent=0 // loop_header
    %s13 = sphi 0, %s17
    %p14 = scmp.ge.s32.totalorder %s13, 4
    %s23 = sphi 0, %s25
    %s26 = sphi 0, %s23
    %s27 = sphi 0, %s26
    %s43 = sphi 0, %s27
    %s47 = sphi 0, %s47
    %s49 = sphi 0, %s47
    %s50 = sphi 0, %s49
    %s64 = sphi 0, %s50
    %s68 = sphi 0, %s68
    %s70 = sphi 0, %s68
    %s71 = sphi 0, %s70
    %s85 = sphi 0, %s71
    %s89 = sphi 0, %s89
    %s91 = sphi 0, %s89
    %s92 = sphi 0, %s91
    %s106 = sphi 0, %s92
    %s110 = sphi 0, %s110
    %s112 = sphi 0, %s110
    %s113 = sphi 0, %s112
    %s127 = sphi 0, %s113
    %s131 = sphi 0, %s131
    %s133 = sphi 0, %s131
    %s134 = sphi 0, %s133
    %s148 = sphi 0, %s134
    %s152 = sphi 0, %s152
    %s154 = sphi 0, %s152
    %s155 = sphi 0, %s154
    %s169 = sphi 0, %s155
    %s175 = sphi 0, %s177
    %s178 = sphi 0, %s175
    %s179 = sphi 0, %s178
    %s195 = sphi 0, %s179
  $region4: #{sagnet_forward.4} parent=0 // loop_header_branch
    %16 = sbr.rel (%p14) target = $region8
  $region5: #{sagnet_forward.4} parent=0 // loop_body
    %s18 = ssub.s32 %s13, 1
    %s19 = ssub.s32 %s13, 2
    %s20 = sadd.s32 %s13, 1
    %s21 = ssub.s32 %s13, %s20
    %p22 = scmp.eq.s32.totalorder %s21, 0
    %s24 = sadd.s32 %s23, 1
    %s25 = scalar_select %p22, %s23, %s24
    %p28 = pneg %p22
    %p29 = scmp.eq.s32.totalorder %s13, 1
    %p30 = por %p28, %p29
    %p31 = scmp.ne.s32.totalorder %s23, %s26
    %p32 = scmp.eq.s32.totalorder %s13, 0
    %p33 = por %p31, %p32
    %p34 = scmp.ne.s32.totalorder %s23, %s26
    %p35 = scmp.eq.s32.totalorder %s18, 1
    %p36 = por %p34, %p35
    %p37 = scmp.ne.s32.totalorder %s26, %s27
    %p38 = scmp.eq.s32.totalorder %s18, 0
    %p39 = por %p37, %p38
    %p40 = scmp.ne.s32.totalorder %s26, %s27
    %p41 = scmp.eq.s32.totalorder %s19, 1
    %p42 = por %p40, %p41
    %p44 = scmp.ne.s32.totalorder %s27, %s43
    %p45 = scmp.eq.s32.totalorder %s19, 0
    %p46 = por %p44, %p45
    %s48 = sadd.s32 %s47, 1
    %p51 = scmp.eq.s32.totalorder %s13, 1
    %p52 = scmp.ne.s32.totalorder %s47, %s49
    %p53 = scmp.eq.s32.totalorder %s13, 0
    %p54 = por %p52, %p53
    %p55 = scmp.ne.s32.totalorder %s47, %s49
    %p56 = scmp.eq.s32.totalorder %s18, 1
    %p57 = por %p55, %p56
    %p58 = scmp.ne.s32.totalorder %s49, %s50
    %p59 = scmp.eq.s32.totalorder %s18, 0
    %p60 = por %p58, %p59
    %p61 = scmp.ne.s32.totalorder %s49, %s50
    %p62 = scmp.eq.s32.totalorder %s19, 1
    %p63 = por %p61, %p62
    %p65 = scmp.ne.s32.totalorder %s50, %s64
    %p66 = scmp.eq.s32.totalorder %s19, 0
    %p67 = por %p65, %p66
    %s69 = sadd.s32 %s68, 1
    %p72 = scmp.eq.s32.totalorder %s13, 1
    %p73 = scmp.ne.s32.totalorder %s68, %s70
    %p74 = scmp.eq.s32.totalorder %s13, 0
    %p75 = por %p73, %p74
    %p76 = scmp.ne.s32.totalorder %s68, %s70
    %p77 = scmp.eq.s32.totalorder %s18, 1
    %p78 = por %p76, %p77
    %p79 = scmp.ne.s32.totalorder %s70, %s71
    %p80 = scmp.eq.s32.totalorder %s18, 0
    %p81 = por %p79, %p80
    %p82 = scmp.ne.s32.totalorder %s70, %s71
    %p83 = scmp.eq.s32.totalorder %s19, 1
    %p84 = por %p82, %p83
    %p86 = scmp.ne.s32.totalorder %s71, %s85
    %p87 = scmp.eq.s32.totalorder %s19, 0
    %p88 = por %p86, %p87
    %s90 = sadd.s32 %s89, 1
    %p93 = scmp.eq.s32.totalorder %s13, 1
    %p94 = scmp.ne.s32.totalorder %s89, %s91
    %p95 = scmp.eq.s32.totalorder %s13, 0
    %p96 = por %p94, %p95
    %p97 = scmp.ne.s32.totalorder %s89, %s91
    %p98 = scmp.eq.s32.totalorder %s18, 1
    %p99 = por %p97, %p98
    %p100 = scmp.ne.s32.totalorder %s91, %s92
    %p101 = scmp.eq.s32.totalorder %s18, 0
    %p102 = por %p100, %p101
    %p103 = scmp.ne.s32.totalorder %s91, %s92
    %p104 = scmp.eq.s32.totalorder %s19, 1
    %p105 = por %p103, %p104
    %p107 = scmp.ne.s32.totalorder %s92, %s106
    %p108 = scmp.eq.s32.totalorder %s19, 0
    %p109 = por %p107, %p108
    %s111 = sadd.s32 %s110, 1
    %p114 = scmp.eq.s32.totalorder %s13, 1
    %p115 = scmp.ne.s32.totalorder %s110, %s112
    %p116 = scmp.eq.s32.totalorder %s13, 0
    %p117 = por %p115, %p116
    %p118 = scmp.ne.s32.totalorder %s110, %s112
    %p119 = scmp.eq.s32.totalorder %s18, 1
    %p120 = por %p118, %p119
    %p121 = scmp.ne.s32.totalorder %s112, %s113
    %p122 = scmp.eq.s32.totalorder %s18, 0
    %p123 = por %p121, %p122
    %p124 = scmp.ne.s32.totalorder %s112, %s113
    %p125 = scmp.eq.s32.totalorder %s19, 1
    %p126 = por %p124, %p125
    %p128 = scmp.ne.s32.totalorder %s113, %s127
    %p129 = scmp.eq.s32.totalorder %s19, 0
    %p130 = por %p128, %p129
    %s132 = sadd.s32 %s131, 1
    %p135 = scmp.eq.s32.totalorder %s13, 1
    %p136 = scmp.ne.s32.totalorder %s131, %s133
    %p137 = scmp.eq.s32.totalorder %s13, 0
    %p138 = por %p136, %p137
    %p139 = scmp.ne.s32.totalorder %s131, %s133
    %p140 = scmp.eq.s32.totalorder %s18, 1
    %p141 = por %p139, %p140
    %p142 = scmp.ne.s32.totalorder %s133, %s134
    %p143 = scmp.eq.s32.totalorder %s18, 0
    %p144 = por %p142, %p143
    %p145 = scmp.ne.s32.totalorder %s133, %s134
    %p146 = scmp.eq.s32.totalorder %s19, 1
    %p147 = por %p145, %p146
    %p149 = scmp.ne.s32.totalorder %s134, %s148
    %p150 = scmp.eq.s32.totalorder %s19, 0
    %p151 = por %p149, %p150
    %s153 = sadd.s32 %s152, 1
    %p156 = scmp.eq.s32.totalorder %s13, 1
    %p157 = scmp.ne.s32.totalorder %s152, %s154
    %p158 = scmp.eq.s32.totalorder %s13, 0
    %p159 = por %p157, %p158
    %p160 = scmp.ne.s32.totalorder %s152, %s154
    %p161 = scmp.eq.s32.totalorder %s18, 1
    %p162 = por %p160, %p161
    %p163 = scmp.ne.s32.totalorder %s154, %s155
    %p164 = scmp.eq.s32.totalorder %s18, 0
    %p165 = por %p163, %p164
    %p166 = scmp.ne.s32.totalorder %s154, %s155
    %p167 = scmp.eq.s32.totalorder %s19, 1
    %p168 = por %p166, %p167
    %p170 = scmp.ne.s32.totalorder %s155, %s169
    %p171 = scmp.eq.s32.totalorder %s19, 0
    %p172 = por %p170, %p171
    %s173 = ssub.s32 %s13, %s20
    %p174 = scmp.eq.s32.totalorder %s173, 0
    %s176 = sadd.s32 %s175, 1
    %s177 = scalar_select %p174, %s175, %s176
    %p180 = pneg %p174
    %p181 = scmp.eq.s32.totalorder %s13, 1
    %p182 = por %p180, %p181
    %p183 = scmp.ne.s32.totalorder %s175, %s178
    %p184 = scmp.eq.s32.totalorder %s13, 0
    %p185 = por %p183, %p184
    %p186 = scmp.ne.s32.totalorder %s175, %s178
    %p187 = scmp.eq.s32.totalorder %s18, 1
    %p188 = por %p186, %p187
    %p189 = scmp.ne.s32.totalorder %s178, %s179
    %p190 = scmp.eq.s32.totalorder %s18, 0
    %p191 = por %p189, %p190
    %p192 = scmp.ne.s32.totalorder %s178, %s179
    %p193 = scmp.eq.s32.totalorder %s19, 1
    %p194 = por %p192, %p193
    %p196 = scmp.ne.s32.totalorder %s179, %s195
    %p197 = scmp.eq.s32.totalorder %s19, 0
    %p198 = por %p196, %p197
    %p199 = scmp.le.s32.totalorder 1, %s13
    %p200 = scmp.lt.s32.totalorder %s13, 3
    %p201 = pnand %p199, %p200
    %p202 = pneg %p201
    // Predicated region
    $region9: #{sagnet_forward.4} parent=5 // pred_check
      _
    $region10: #{sagnet_forward.4} parent=5 // pred_check_branch
      %204 = sbr.rel (%p201) target = $region12
    $region11: #{sagnet_forward.4} parent=5 // pred_region
      %s205 = ssub.s32 %s13, 1
      // Predicated region
      $region13: #{sagnet_forward.4} parent=11 // pred_check
        %p206 = pneg %p60
      $region14: #{sagnet_forward.4} parent=11 // pred_check_branch
        %208 = sbr.rel (%p206) target = $region16
      $region15: #{sagnet_forward.4} parent=11 // pred_region
        _
      $region16: #{sagnet_forward.4} parent=11 // pred_fallthru
        _
      // Predicated region
      $region17: #{sagnet_forward.4} parent=11 // pred_check
        %p209 = pneg %p81
      $region18: #{sagnet_forward.4} parent=11 // pred_check_branch
        %211 = sbr.rel (%p209) target = $region20
      $region19: #{sagnet_forward.4} parent=11 // pred_region
        _
      $region20: #{sagnet_forward.4} parent=11 // pred_fallthru
        _
      // Predicated region
      $region21: #{sagnet_forward.4} parent=11 // pred_check
        %p212 = pneg %p102
      $region22: #{sagnet_forward.4} parent=11 // pred_check_branch
        %214 = sbr.rel (%p212) target = $region24
      $region23: #{sagnet_forward.4} parent=11 // pred_region
        _
      $region24: #{sagnet_forward.4} parent=11 // pred_fallthru
        _
      // Predicated region
      $region25: #{sagnet_forward.4} parent=11 // pred_check
        %p215 = pneg %p123
      $region26: #{sagnet_forward.4} parent=11 // pred_check_branch
        %217 = sbr.rel (%p215) target = $region28
      $region27: #{sagnet_forward.4} parent=11 // pred_region
        _
      $region28: #{sagnet_forward.4} parent=11 // pred_fallthru
        _
      // Predicated region
      $region29: #{sagnet_forward.4} parent=11 // pred_check
        %p218 = pneg %p144
      $region30: #{sagnet_forward.4} parent=11 // pred_check_branch
        %220 = sbr.rel (%p218) target = $region32
      $region31: #{sagnet_forward.4} parent=11 // pred_region
        _
      $region32: #{sagnet_forward.4} parent=11 // pred_fallthru
        _
      // Predicated region
      $region33: #{sagnet_forward.4} parent=11 // pred_check
        %p221 = pneg %p165
      $region34: #{sagnet_forward.4} parent=11 // pred_check_branch
        %223 = sbr.rel (%p221) target = $region36
      $region35: #{sagnet_forward.4} parent=11 // pred_region
        _
      $region36: #{sagnet_forward.4} parent=11 // pred_fallthru
        _
    $region12: #{sagnet_forward.4} parent=5 // pred_fallthru
      _
    %p224 = scmp.lt.s32.totalorder %s13, 2
    // Predicated region
    $region37: #{sagnet_forward.4} parent=5 // pred_check
      %p225 = pneg %p224
    $region38: #{sagnet_forward.4} parent=5 // pred_check_branch
      %227 = sbr.rel (%p225) target = $region40
    $region39: #{sagnet_forward.4} parent=5 // pred_region
      // Predicated region
      $region41: #{sagnet_forward.4} parent=39 // pred_check
        %p228 = pneg %p33
      $region42: #{sagnet_forward.4} parent=39 // pred_check_branch
        %230 = sbr.rel (%p228) target = $region44
      $region43: #{sagnet_forward.4} parent=39 // pred_region
        %p231 = scmp.lt.s32.totalorder %s13, 1
        %s232 = scalar_select %p231, %s13, 1
        %s233 = smul.addr %s232, 125
        %s234 = smul.addr %s233, 4
        %s235 = scalar_lea.vmem %s0, %s234
      $region44: #{sagnet_forward.4} parent=39 // pred_fallthru
        _
    $region40: #{sagnet_forward.4} parent=5 // pred_fallthru
      _
    %p236 = scmp.le.s32.totalorder 1, %s13
    %p237 = scmp.lt.s32.totalorder %s13, 3
    %p238 = pnand %p236, %p237
    %p239 = pneg %p238
    // Predicated region
    $region45: #{sagnet_forward.4} parent=5 // pred_check
      _
    $region46: #{sagnet_forward.4} parent=5 // pred_check_branch
      %241 = sbr.rel (%p238) target = $region48
    $region47: #{sagnet_forward.4} parent=5 // pred_region
      %s242 = ssub.s32 %s13, 1
      %p243 = scmp.lt.s32.totalorder %s18, 1
      %s244 = scalar_select %p243, %s18, 1
      %s245 = smul.addr %s244, 125
      %s246 = smul.addr %s245, 4
      %s247 = scalar_lea.vmem %s0, %s246
      %p248 = pneg %p39
      %p249 = pneg %p36
      %p250 = pneg %p60
      %p251 = pneg %p57
      %p252 = pneg %p81
      %p253 = pneg %p78
      %p254 = pneg %p102
      %p255 = pneg %p99
      %p256 = pneg %p123
      %p257 = pneg %p120
      %p258 = pneg %p144
      %p259 = pneg %p141
      %p260 = pneg %p165
      %p261 = pneg %p162
      %p262 = pneg %p191
      %p263 = pneg %p188
      %p264 = scmp.lt.s32.totalorder %s18, 1
      %s265 = scalar_select %p264, %s18, 1
      %s266 = smul.addr %s265, 4
      %s267 = smul.addr %s266, 4
      %s268 = scalar_lea.vmem %s7, %s267
      %p269 = scmp.lt.s32.totalorder %s18, 1
      %s270 = scalar_select %p269, %s18, 1
      %s271 = smul.addr %s270, 125
      %s272 = smul.addr %s271, 4
      %s273 = scalar_lea.vmem %s0, %s272
      %p274 = scmp.lt.s32.totalorder %s18, 1
      %s275 = scalar_select %p274, %s18, 1
      %s276 = smul.addr %s275, 4
      %s277 = smul.addr %s276, 4
      %s278 = scalar_lea.vmem %s7, %s277
      %v280 = vld [vmem:[%s273] sm:$0xf]
      %v281 = vld [vmem:[%s273 + $0x4] sm:$0xf]
      %v282 = vld [vmem:[%s273 + $0x8] sm:$0xf]
      %v283 = vld [vmem:[%s273 + $0xc] sm:$0xf]
      %v284 = vld [vmem:[%s273 + $0x10] sm:$0xf]
      %v285 = vld [vmem:[%s273 + $0x14] sm:$0xf]
      %v286 = vld [vmem:[%s273 + $0x18] sm:$0xf]
      %v287 = vld [vmem:[%s273 + $0x1c] sm:$0xf]
      %v288 = vld [vmem:[%s273 + $0x20] sm:$0xf]
      %v289 = vld [vmem:[%s273 + $0x24] sm:$0xf]
      %v290 = vld [vmem:[%s273 + $0x28] sm:$0xf]
      %v291 = vld [vmem:[%s273 + $0x2c] sm:$0xf]
      %v292 = vld [vmem:[%s273 + $0x30] sm:$0xf]
      %v293 = vld [vmem:[%s273 + $0x34] sm:$0xf]
      %v294 = vld [vmem:[%s273 + $0x38] sm:$0xf]
      %v295 = vld [vmem:[%s273 + $0x3c] sm:$0xf]
      %v296 = vld [vmem:[%s273 + $0x40] sm:$0xf]
      %v297 = vld [vmem:[%s273 + $0x44] sm:$0xf]
      %v298 = vld [vmem:[%s273 + $0x48] sm:$0xf]
      %v299 = vld [vmem:[%s273 + $0x4c] sm:$0xf]
      %v300 = vld [vmem:[%s273 + $0x50] sm:$0xf]
      %v301 = vld [vmem:[%s273 + $0x54] sm:$0xf]
      %v302 = vld [vmem:[%s273 + $0x58] sm:$0xf]
      %v303 = vld [vmem:[%s273 + $0x5c] sm:$0xf]
      %v304 = vld [vmem:[%s273 + $0x60] sm:$0xf]
      %v305 = vld [vmem:[%s273 + $0x64] sm:$0xf]
      %v306 = vld [vmem:[%s273 + $0x68] sm:$0xf]
      %v307 = vld [vmem:[%s273 + $0x6c] sm:$0xf]
      %v308 = vld [vmem:[%s273 + $0x70] sm:$0xf]
      %v309 = vld [vmem:[%s273 + $0x74] sm:$0xf]
      %v310 = vld [vmem:[%s273 + $0x78] sm:$0xf]
      %v311 = vld [vmem:[%s273 + $0x7c] sm:$0xf]
      %v312 = vld [vmem:[%s273 + $0x80] sm:$0xf]
      %v313 = vld [vmem:[%s273 + $0x84] sm:$0xf]
      %v314 = vld [vmem:[%s273 + $0x88] sm:$0xf]
      %v315 = vld [vmem:[%s273 + $0x8c] sm:$0xf]
      %v316 = vld [vmem:[%s273 + $0x90] sm:$0xf]
      %v317 = vld [vmem:[%s273 + $0x94] sm:$0xf]
      %v318 = vld [vmem:[%s273 + $0x98] sm:$0xf]
      %v319 = vld [vmem:[%s273 + $0x9c] sm:$0xf]
      %v320 = vld [vmem:[%s273 + $0xa0] sm:$0xf]
      %v321 = vld [vmem:[%s273 + $0xa4] sm:$0xf]
      %v322 = vld [vmem:[%s273 + $0xa8] sm:$0xf]
      %v323 = vld [vmem:[%s273 + $0xac] sm:$0xf]
      %v324 = vld [vmem:[%s273 + $0xb0] sm:$0xf]
      %v325 = vld [vmem:[%s273 + $0xb4] sm:$0xf]
      %v326 = vld [vmem:[%s273 + $0xb8] sm:$0xf]
      %v327 = vld [vmem:[%s273 + $0xbc] sm:$0xf]
      %v328 = vld [vmem:[%s273 + $0xc0] sm:$0xf]
      %v329 = vld [vmem:[%s273 + $0xc4] sm:$0xf]
      %v330 = vld [vmem:[%s273 + $0xc8] sm:$0xf]
      %v331 = vld [vmem:[%s273 + $0xcc] sm:$0xf]
      %v332 = vld [vmem:[%s273 + $0xd0] sm:$0xf]
      %v333 = vld [vmem:[%s273 + $0xd4] sm:$0xf]
      %v334 = vld [vmem:[%s273 + $0xd8] sm:$0xf]
      %v335 = vld [vmem:[%s273 + $0xdc] sm:$0xf]
      %v336 = vld [vmem:[%s273 + $0xe0] sm:$0xf]
      %v337 = vld [vmem:[%s273 + $0xe4] sm:$0xf]
      %v338 = vld [vmem:[%s273 + $0xe8] sm:$0xf]
      %v339 = vld [vmem:[%s273 + $0xec] sm:$0xf]
      %v340 = vld [vmem:[%s273 + $0xf0] sm:$0xf]
      %v341 = vld [vmem:[%s273 + $0xf4] sm:$0xf]
      %v342 = vld [vmem:[%s273 + $0xf8] sm:$0xf]
      %v343 = vld [vmem:[%s273 + $0xfc] sm:$0xf]
      %v344 = vld [vmem:[%s273 + $0x100] sm:$0xf]
      %v345 = vld [vmem:[%s273 + $0x104] sm:$0xf]
      %v346 = vld [vmem:[%s273 + $0x108] sm:$0xf]
      %v347 = vld [vmem:[%s273 + $0x10c] sm:$0xf]
      %v348 = vld [vmem:[%s273 + $0x110] sm:$0xf]
      %v349 = vld [vmem:[%s273 + $0x114] sm:$0xf]
      %v350 = vld [vmem:[%s273 + $0x118] sm:$0xf]
      %v351 = vld [vmem:[%s273 + $0x11c] sm:$0xf]
      %v352 = vld [vmem:[%s273 + $0x120] sm:$0xf]
      %v353 = vld [vmem:[%s273 + $0x124] sm:$0xf]
      %v354 = vld [vmem:[%s273 + $0x128] sm:$0xf]
      %v355 = vld [vmem:[%s273 + $0x12c] sm:$0xf]
      %v356 = vld [vmem:[%s273 + $0x130] sm:$0xf]
      %v357 = vld [vmem:[%s273 + $0x134] sm:$0xf]
      %v358 = vld [vmem:[%s273 + $0x138] sm:$0xf]
      %v359 = vld [vmem:[%s273 + $0x13c] sm:$0xf]
      %v360 = vld [vmem:[%s273 + $0x140] sm:$0xf]
      %v361 = vld [vmem:[%s273 + $0x144] sm:$0xf]
      %v362 = vld [vmem:[%s273 + $0x148] sm:$0xf]
      %v363 = vld [vmem:[%s273 + $0x14c] sm:$0xf]
      %v364 = vld [vmem:[%s273 + $0x150] sm:$0xf]
      %v365 = vld [vmem:[%s273 + $0x154] sm:$0xf]
      %v366 = vld [vmem:[%s273 + $0x158] sm:$0xf]
      %v367 = vld [vmem:[%s273 + $0x15c] sm:$0xf]
      %v368 = vld [vmem:[%s273 + $0x160] sm:$0xf]
      %v369 = vld [vmem:[%s273 + $0x164] sm:$0xf]
      %v370 = vld [vmem:[%s273 + $0x168] sm:$0xf]
      %v371 = vld [vmem:[%s273 + $0x16c] sm:$0xf]
      %v372 = vld [vmem:[%s273 + $0x170] sm:$0xf]
      %v373 = vld [vmem:[%s273 + $0x174] sm:$0xf]
      %v374 = vld [vmem:[%s273 + $0x178] sm:$0xf]
      %v375 = vld [vmem:[%s273 + $0x17c] sm:$0xf]
      %v376 = vld [vmem:[%s273 + $0x180] sm:$0xf]
      %v377 = vld [vmem:[%s273 + $0x184] sm:$0xf]
      %v378 = vld [vmem:[%s273 + $0x188] sm:$0xf]
      %v379 = vld [vmem:[%s273 + $0x18c] sm:$0xf]
      %v380 = vld [vmem:[%s273 + $0x190] sm:$0xf]
      %v381 = vld [vmem:[%s273 + $0x194] sm:$0xf]
      %v382 = vld [vmem:[%s273 + $0x198] sm:$0xf]
      %v383 = vld [vmem:[%s273 + $0x19c] sm:$0xf]
      %v384 = vld [vmem:[%s273 + $0x1a0] sm:$0xf]
      %v385 = vld [vmem:[%s273 + $0x1a4] sm:$0xf]
      %v386 = vld [vmem:[%s273 + $0x1a8] sm:$0xf]
      %v387 = vld [vmem:[%s273 + $0x1ac] sm:$0xf]
      %v388 = vld [vmem:[%s273 + $0x1b0] sm:$0xf]
      %v389 = vld [vmem:[%s273 + $0x1b4] sm:$0xf]
      %v390 = vld [vmem:[%s273 + $0x1b8] sm:$0xf]
      %v391 = vld [vmem:[%s273 + $0x1bc] sm:$0xf]
      %v392 = vld [vmem:[%s273 + $0x1c0] sm:$0xf]
      %v393 = vld [vmem:[%s273 + $0x1c4] sm:$0xf]
      %v394 = vld [vmem:[%s273 + $0x1c8] sm:$0xf]
      %v395 = vld [vmem:[%s273 + $0x1cc] sm:$0xf]
      %v396 = vld [vmem:[%s273 + $0x1d0] sm:$0xf]
      %v397 = vld [vmem:[%s273 + $0x1d4] sm:$0xf]
      %v398 = vld [vmem:[%s273 + $0x1d8] sm:$0xf]
      %v399 = vld [vmem:[%s273 + $0x1dc] sm:$0xf]
      %v400 = vld [vmem:[%s273 + $0x1e0] sm:$0xf]
      %v401 = vld [vmem:[%s273 + $0x1e4] sm:$0xf]
      %v402 = vld [vmem:[%s273 + $0x1e8] sm:$0xf]
      %v403 = vld [vmem:[%s273 + $0x1ec] sm:$0xf]
      %v404 = vld [vmem:[%s273 + $0x1f0] sm:$0xf]
      %v405 = vld [vmem:[%s1] sm:$0xff]
      %v406 = vld [vmem:[%s1 + $0x8] sm:$0xff]
      %v407 = vld [vmem:[%s1 + $0x10] sm:$0xff]
      %v408 = vld [vmem:[%s1 + $0x18] sm:$0xff]
      %v409 = vld [vmem:[%s1 + $0x20] sm:$0xff]
      %v410 = vld [vmem:[%s1 + $0x28] sm:$0xff]
      %v411 = vld [vmem:[%s1 + $0x30] sm:$0xff]
      %v412 = vld [vmem:[%s1 + $0x38] sm:$0xff]
      %v413 = vld [vmem:[%s1 + $0x40] sm:$0xff]
      %v414 = vld [vmem:[%s1 + $0x48] sm:$0xff]
      %v415 = vld [vmem:[%s1 + $0x50] sm:$0xff]
      %v416 = vld [vmem:[%s1 + $0x58] sm:$0xff]
      %v417 = vld [vmem:[%s1 + $0x60] sm:$0xff]
      %v418 = vld [vmem:[%s1 + $0x68] sm:$0xff]
      %v419 = vld [vmem:[%s1 + $0x70] sm:$0xff]
      %v420 = vld [vmem:[%s1 + $0x78] sm:$0xff]
      %v421 = vld [vmem:[%s1 + $0x80] sm:$0xff]
      %v422 = vld [vmem:[%s1 + $0x88] sm:$0xff]
      %v423 = vld [vmem:[%s1 + $0x90] sm:$0xff]
      %v424 = vld [vmem:[%s1 + $0x98] sm:$0xff]
      %v425 = vld [vmem:[%s1 + $0xa0] sm:$0xff]
      %v426 = vld [vmem:[%s1 + $0xa8] sm:$0xff]
      %v427 = vld [vmem:[%s1 + $0xb0] sm:$0xff]
      %v428 = vld [vmem:[%s1 + $0xb8] sm:$0xff]
      %v429 = vld [vmem:[%s1 + $0xc0] sm:$0xff]
      %v430 = vld [vmem:[%s1 + $0xc8] sm:$0xff]
      %v431 = vld [vmem:[%s1 + $0xd0] sm:$0xff]
      %v432 = vld [vmem:[%s1 + $0xd8] sm:$0xff]
      %v433 = vld [vmem:[%s1 + $0xe0] sm:$0xff]
      %v434 = vld [vmem:[%s1 + $0xe8] sm:$0xff]
      %v435 = vld [vmem:[%s1 + $0xf0] sm:$0xff]
      %v436 = vld [vmem:[%s1 + $0xf8] sm:$0xff]
      %v437 = vld [vmem:[%s1 + $0x100] sm:$0xff]
      %v438 = vld [vmem:[%s1 + $0x108] sm:$0xff]
      %v439 = vld [vmem:[%s1 + $0x110] sm:$0xff]
      %v440 = vld [vmem:[%s1 + $0x118] sm:$0xff]
      %v441 = vld [vmem:[%s1 + $0x120] sm:$0xff]
      %v442 = vld [vmem:[%s1 + $0x128] sm:$0xff]
      %v443 = vld [vmem:[%s1 + $0x130] sm:$0xff]
      %v444 = vld [vmem:[%s1 + $0x138] sm:$0xff]
      %v445 = vld [vmem:[%s1 + $0x140] sm:$0xff]
      %v446 = vld [vmem:[%s1 + $0x148] sm:$0xff]
      %v447 = vld [vmem:[%s1 + $0x150] sm:$0xff]
      %v448 = vld [vmem:[%s1 + $0x158] sm:$0xff]
      %v449 = vld [vmem:[%s1 + $0x160] sm:$0xff]
      %v450 = vld [vmem:[%s1 + $0x168] sm:$0xff]
      %v451 = vld [vmem:[%s1 + $0x170] sm:$0xff]
      %v452 = vld [vmem:[%s1 + $0x178] sm:$0xff]
      %v453 = vld [vmem:[%s1 + $0x180] sm:$0xff]
      %v454 = vld [vmem:[%s1 + $0x188] sm:$0xff]
      %v455 = vld [vmem:[%s1 + $0x190] sm:$0xff]
      %v456 = vld [vmem:[%s1 + $0x198] sm:$0xff]
      %v457 = vld [vmem:[%s1 + $0x1a0] sm:$0xff]
      %v458 = vld [vmem:[%s1 + $0x1a8] sm:$0xff]
      %v459 = vld [vmem:[%s1 + $0x1b0] sm:$0xff]
      %v460 = vld [vmem:[%s1 + $0x1b8] sm:$0xff]
      %v461 = vld [vmem:[%s1 + $0x1c0] sm:$0xff]
      %v462 = vld [vmem:[%s1 + $0x1c8] sm:$0xff]
      %v463 = vld [vmem:[%s1 + $0x1d0] sm:$0xff]
      %v464 = vld [vmem:[%s1 + $0x1d8] sm:$0xff]
      %v465 = vld [vmem:[%s1 + $0x1e0] sm:$0xff]
      %v466 = vld [vmem:[%s1 + $0x1e8] sm:$0xff]
      %v467 = vld [vmem:[%s1 + $0x1f0] sm:$0xff]
      %v468 = vld [vmem:[%s1 + $0x1f8] sm:$0xff]
      %v469 = vld [vmem:[%s1 + $0x200] sm:$0xff]
      %v470 = vld [vmem:[%s1 + $0x208] sm:$0xff]
      %v471 = vld [vmem:[%s1 + $0x210] sm:$0xff]
      %v472 = vld [vmem:[%s1 + $0x218] sm:$0xff]
      %v473 = vld [vmem:[%s1 + $0x220] sm:$0xff]
      %v474 = vld [vmem:[%s1 + $0x228] sm:$0xff]
      %v475 = vld [vmem:[%s1 + $0x230] sm:$0xff]
      %v476 = vld [vmem:[%s1 + $0x238] sm:$0xff]
      %v477 = vld [vmem:[%s1 + $0x240] sm:$0xff]
      %v478 = vld [vmem:[%s1 + $0x248] sm:$0xff]
      %v479 = vld [vmem:[%s1 + $0x250] sm:$0xff]
      %v480 = vld [vmem:[%s1 + $0x258] sm:$0xff]
      %v481 = vld [vmem:[%s1 + $0x260] sm:$0xff]
      %v482 = vld [vmem:[%s1 + $0x268] sm:$0xff]
      %v483 = vld [vmem:[%s1 + $0x270] sm:$0xff]
      %v484 = vld [vmem:[%s1 + $0x278] sm:$0xff]
      %v485 = vld [vmem:[%s1 + $0x280] sm:$0xff]
      %v486 = vld [vmem:[%s1 + $0x288] sm:$0xff]
      %v487 = vld [vmem:[%s1 + $0x290] sm:$0xff]
      %v488 = vld [vmem:[%s1 + $0x298] sm:$0xff]
      %v489 = vld [vmem:[%s1 + $0x2a0] sm:$0xff]
      %v490 = vld [vmem:[%s1 + $0x2a8] sm:$0xff]
      %v491 = vld [vmem:[%s1 + $0x2b0] sm:$0xff]
      %v492 = vld [vmem:[%s1 + $0x2b8] sm:$0xff]
      %v493 = vld [vmem:[%s1 + $0x2c0] sm:$0xff]
      %v494 = vld [vmem:[%s1 + $0x2c8] sm:$0xff]
      %v495 = vld [vmem:[%s1 + $0x2d0] sm:$0xff]
      %v496 = vld [vmem:[%s1 + $0x2d8] sm:$0xff]
      %v497 = vld [vmem:[%s1 + $0x2e0] sm:$0xff]
      %v498 = vld [vmem:[%s1 + $0x2e8] sm:$0xff]
      %v499 = vld [vmem:[%s1 + $0x2f0] sm:$0xff]
      %v500 = vld [vmem:[%s1 + $0x2f8] sm:$0xff]
      %v501 = vld [vmem:[%s1 + $0x300] sm:$0xff]
      %v502 = vld [vmem:[%s1 + $0x308] sm:$0xff]
      %v503 = vld [vmem:[%s1 + $0x310] sm:$0xff]
      %v504 = vld [vmem:[%s1 + $0x318] sm:$0xff]
      %v505 = vld [vmem:[%s1 + $0x320] sm:$0xff]
      %v506 = vld [vmem:[%s1 + $0x328] sm:$0xff]
      %v507 = vld [vmem:[%s1 + $0x330] sm:$0xff]
      %v508 = vld [vmem:[%s1 + $0x338] sm:$0xff]
      %v509 = vld [vmem:[%s1 + $0x340] sm:$0xff]
      %v510 = vld [vmem:[%s1 + $0x348] sm:$0xff]
      %v511 = vld [vmem:[%s1 + $0x350] sm:$0xff]
      %v512 = vld [vmem:[%s1 + $0x358] sm:$0xff]
      %v513 = vld [vmem:[%s1 + $0x360] sm:$0xff]
      %v514 = vld [vmem:[%s1 + $0x368] sm:$0xff]
      %v515 = vld [vmem:[%s1 + $0x370] sm:$0xff]
      %v516 = vld [vmem:[%s1 + $0x378] sm:$0xff]
      %v517 = vld [vmem:[%s1 + $0x380] sm:$0xff]
      %v518 = vld [vmem:[%s1 + $0x388] sm:$0xff]
      %v519 = vld [vmem:[%s1 + $0x390] sm:$0xff]
      %v520 = vld [vmem:[%s1 + $0x398] sm:$0xff]
      %v521 = vld [vmem:[%s1 + $0x3a0] sm:$0xff]
      %v522 = vld [vmem:[%s1 + $0x3a8] sm:$0xff]
      %v523 = vld [vmem:[%s1 + $0x3b0] sm:$0xff]
      %v524 = vld [vmem:[%s1 + $0x3b8] sm:$0xff]
      %v525 = vld [vmem:[%s1 + $0x3c0] sm:$0xff]
      %v526 = vld [vmem:[%s1 + $0x3c8] sm:$0xff]
      %v527 = vld [vmem:[%s1 + $0x3d0] sm:$0xff]
      %v528 = vld [vmem:[%s1 + $0x3d8] sm:$0xff]
      %v529 = vld [vmem:[%s1 + $0x3e0] sm:$0xff]
      %v530 = vld [vmem:[%s1 + $0x3e8] sm:$0xff]
      %v531 = vld [vmem:[%s1 + $0x3f0] sm:$0xff]
      %v532 = vld [vmem:[%s1 + $0x3f8] sm:$0xff]
      %v533 = vld [vmem:[%s1 + $0x400] sm:$0xff]
      %v534 = vld [vmem:[%s1 + $0x408] sm:$0xff]
      %v535 = vld [vmem:[%s1 + $0x410] sm:$0xff]
      %v536 = vld [vmem:[%s1 + $0x418] sm:$0xff]
      %v537 = vld [vmem:[%s1 + $0x420] sm:$0xff]
      %v538 = vld [vmem:[%s1 + $0x428] sm:$0xff]
      %v539 = vld [vmem:[%s1 + $0x430] sm:$0xff]
      %v540 = vld [vmem:[%s1 + $0x438] sm:$0xff]
      %v541 = vld [vmem:[%s1 + $0x440] sm:$0xff]
      %v542 = vld [vmem:[%s1 + $0x448] sm:$0xff]
      %v543 = vld [vmem:[%s1 + $0x450] sm:$0xff]
      %v544 = vld [vmem:[%s1 + $0x458] sm:$0xff]
      %v545 = vld [vmem:[%s1 + $0x460] sm:$0xff]
      %v546 = vld [vmem:[%s1 + $0x468] sm:$0xff]
      %v547 = vld [vmem:[%s1 + $0x470] sm:$0xff]
      %v548 = vld [vmem:[%s1 + $0x478] sm:$0xff]
      %v549 = vld [vmem:[%s1 + $0x480] sm:$0xff]
      %v550 = vld [vmem:[%s1 + $0x488] sm:$0xff]
      %v551 = vld [vmem:[%s1 + $0x490] sm:$0xff]
      %v552 = vld [vmem:[%s1 + $0x498] sm:$0xff]
      %v553 = vld [vmem:[%s1 + $0x4a0] sm:$0xff]
      %v554 = vld [vmem:[%s1 + $0x4a8] sm:$0xff]
      %v555 = vld [vmem:[%s1 + $0x4b0] sm:$0xff]
      %v556 = vld [vmem:[%s1 + $0x4b8] sm:$0xff]
      %v557 = vld [vmem:[%s1 + $0x4c0] sm:$0xff]
      %v558 = vld [vmem:[%s1 + $0x4c8] sm:$0xff]
      %v559 = vld [vmem:[%s1 + $0x4d0] sm:$0xff]
      %v560 = vld [vmem:[%s1 + $0x4d8] sm:$0xff]
      %v561 = vld [vmem:[%s1 + $0x4e0] sm:$0xff]
      %v562 = vld [vmem:[%s1 + $0x4e8] sm:$0xff]
      %v563 = vld [vmem:[%s1 + $0x4f0] sm:$0xff]
      %v564 = vld [vmem:[%s1 + $0x4f8] sm:$0xff]
      %v565 = vld [vmem:[%s1 + $0x500] sm:$0xff]
      %v566 = vld [vmem:[%s1 + $0x508] sm:$0xff]
      %v567 = vld [vmem:[%s1 + $0x510] sm:$0xff]
      %v568 = vld [vmem:[%s1 + $0x518] sm:$0xff]
      %v569 = vld [vmem:[%s1 + $0x520] sm:$0xff]
      %v570 = vld [vmem:[%s1 + $0x528] sm:$0xff]
      %v571 = vld [vmem:[%s1 + $0x530] sm:$0xff]
      %v572 = vld [vmem:[%s1 + $0x538] sm:$0xff]
      %v573 = vld [vmem:[%s1 + $0x540] sm:$0xff]
      %v574 = vld [vmem:[%s1 + $0x548] sm:$0xff]
      %v575 = vld [vmem:[%s1 + $0x550] sm:$0xff]
      %v576 = vld [vmem:[%s1 + $0x558] sm:$0xff]
      %v577 = vld [vmem:[%s1 + $0x560] sm:$0xff]
      %v578 = vld [vmem:[%s1 + $0x568] sm:$0xff]
      %v579 = vld [vmem:[%s1 + $0x570] sm:$0xff]
      %v580 = vld [vmem:[%s1 + $0x578] sm:$0xff]
      %v581 = vld [vmem:[%s1 + $0x580] sm:$0xff]
      %v582 = vld [vmem:[%s1 + $0x588] sm:$0xff]
      %v583 = vld [vmem:[%s1 + $0x590] sm:$0xff]
      %v584 = vld [vmem:[%s1 + $0x598] sm:$0xff]
      %v585 = vld [vmem:[%s1 + $0x5a0] sm:$0xff]
      %v586 = vld [vmem:[%s1 + $0x5a8] sm:$0xff]
      %v587 = vld [vmem:[%s1 + $0x5b0] sm:$0xff]
      %v588 = vld [vmem:[%s1 + $0x5b8] sm:$0xff]
      %v589 = vld [vmem:[%s1 + $0x5c0] sm:$0xff]
      %v590 = vld [vmem:[%s1 + $0x5c8] sm:$0xff]
      %v591 = vld [vmem:[%s1 + $0x5d0] sm:$0xff]
      %v592 = vld [vmem:[%s1 + $0x5d8] sm:$0xff]
      %v593 = vld [vmem:[%s1 + $0x5e0] sm:$0xff]
      %v594 = vld [vmem:[%s1 + $0x5e8] sm:$0xff]
      %v595 = vld [vmem:[%s1 + $0x5f0] sm:$0xff]
      %v596 = vld [vmem:[%s1 + $0x5f8] sm:$0xff]
      %v789 = vunpack.c.l.b16 %v405
      %v790 = vunpack.c.h.b16 %v405
      %v791 = vunpack.c.l.b16 %v406
      %v792 = vunpack.c.h.b16 %v406
      %v793 = vunpack.c.l.b16 %v407
      %v794 = vunpack.c.h.b16 %v407
      %v795 = vunpack.c.l.b16 %v408
      %v796 = vunpack.c.h.b16 %v408
      %v797 = vunpack.c.l.b16 %v409
      %v798 = vunpack.c.h.b16 %v409
      %v799 = vunpack.c.l.b16 %v410
      %v800 = vunpack.c.h.b16 %v410
      %v801 = vunpack.c.l.b16 %v411
      %v802 = vunpack.c.h.b16 %v411
      %v803 = vunpack.c.l.b16 %v412
      %v804 = vunpack.c.h.b16 %v412
      %v805 = vunpack.c.l.b16 %v413
      %v806 = vunpack.c.h.b16 %v413
      %v807 = vunpack.c.l.b16 %v414
      %v808 = vunpack.c.h.b16 %v414
      %v809 = vunpack.c.l.b16 %v415
      %v810 = vunpack.c.h.b16 %v415
      %v811 = vunpack.c.l.b16 %v416
      %v812 = vunpack.c.h.b16 %v416
      %v813 = vunpack.c.l.b16 %v417
      %v814 = vunpack.c.h.b16 %v417
      %v815 = vunpack.c.l.b16 %v418
      %v816 = vunpack.c.h.b16 %v418
      %v817 = vunpack.c.l.b16 %v419
      %v818 = vunpack.c.h.b16 %v419
      %v819 = vunpack.c.l.b16 %v420
      %v820 = vunpack.c.h.b16 %v420
      %v821 = vunpack.c.l.b16 %v421
      %v822 = vunpack.c.h.b16 %v421
      %v823 = vunpack.c.l.b16 %v422
      %v824 = vunpack.c.h.b16 %v422
      %v825 = vunpack.c.l.b16 %v423
      %v826 = vunpack.c.h.b16 %v423
      %v827 = vunpack.c.l.b16 %v424
      %v828 = vunpack.c.h.b16 %v424
      %v829 = vunpack.c.l.b16 %v425
      %v830 = vunpack.c.h.b16 %v425
      %v831 = vunpack.c.l.b16 %v426
      %v832 = vunpack.c.h.b16 %v426
      %v833 = vunpack.c.l.b16 %v427
      %v834 = vunpack.c.h.b16 %v427
      %v835 = vunpack.c.l.b16 %v428
      %v836 = vunpack.c.h.b16 %v428
      %v837 = vunpack.c.l.b16 %v429
      %v838 = vunpack.c.h.b16 %v429
      %v839 = vunpack.c.l.b16 %v430
      %v840 = vunpack.c.h.b16 %v430
      %v841 = vunpack.c.l.b16 %v431
      %v842 = vunpack.c.h.b16 %v431
      %v843 = vunpack.c.l.b16 %v432
      %v844 = vunpack.c.h.b16 %v432
      %v845 = vunpack.c.l.b16 %v433
      %v846 = vunpack.c.h.b16 %v433
      %v847 = vunpack.c.l.b16 %v434
      %v848 = vunpack.c.h.b16 %v434
      %v849 = vunpack.c.l.b16 %v435
      %v850 = vunpack.c.h.b16 %v435
      %v851 = vunpack.c.l.b16 %v436
      %v852 = vunpack.c.h.b16 %v436
      %v853 = vunpack.c.l.b16 %v437
      %v854 = vunpack.c.h.b16 %v437
      %v855 = vunpack.c.l.b16 %v438
      %v856 = vunpack.c.h.b16 %v438
      %v857 = vunpack.c.l.b16 %v439
      %v858 = vunpack.c.h.b16 %v439
      %v859 = vunpack.c.l.b16 %v440
      %v860 = vunpack.c.h.b16 %v440
      %v861 = vunpack.c.l.b16 %v441
      %v862 = vunpack.c.h.b16 %v441
      %v863 = vunpack.c.l.b16 %v442
      %v864 = vunpack.c.h.b16 %v442
      %v865 = vunpack.c.l.b16 %v443
      %v866 = vunpack.c.h.b16 %v443
      %v867 = vunpack.c.l.b16 %v444
      %v868 = vunpack.c.h.b16 %v444
      %v869 = vunpack.c.l.b16 %v445
      %v870 = vunpack.c.h.b16 %v445
      %v871 = vunpack.c.l.b16 %v446
      %v872 = vunpack.c.h.b16 %v446
      %v873 = vunpack.c.l.b16 %v447
      %v874 = vunpack.c.h.b16 %v447
      %v875 = vunpack.c.l.b16 %v448
      %v876 = vunpack.c.h.b16 %v448
      %v877 = vunpack.c.l.b16 %v449
      %v878 = vunpack.c.h.b16 %v449
      %v879 = vunpack.c.l.b16 %v450
      %v880 = vunpack.c.h.b16 %v450
      %v881 = vunpack.c.l.b16 %v451
      %v882 = vunpack.c.h.b16 %v451
      %v883 = vunpack.c.l.b16 %v452
      %v884 = vunpack.c.h.b16 %v452
      %v885 = vunpack.c.l.b16 %v453
      %v886 = vunpack.c.h.b16 %v453
      %v887 = vunpack.c.l.b16 %v454
      %v888 = vunpack.c.h.b16 %v454
      %v889 = vunpack.c.l.b16 %v455
      %v890 = vunpack.c.h.b16 %v455
      %v891 = vunpack.c.l.b16 %v456
      %v892 = vunpack.c.h.b16 %v456
      %v893 = vunpack.c.l.b16 %v457
      %v894 = vunpack.c.h.b16 %v457
      %v895 = vunpack.c.l.b16 %v458
      %v896 = vunpack.c.h.b16 %v458
      %v897 = vunpack.c.l.b16 %v459
      %v898 = vunpack.c.h.b16 %v459
      %v899 = vunpack.c.l.b16 %v460
      %v900 = vunpack.c.h.b16 %v460
      %v901 = vunpack.c.l.b16 %v461
      %v902 = vunpack.c.h.b16 %v461
      %v903 = vunpack.c.l.b16 %v462
      %v904 = vunpack.c.h.b16 %v462
      %v905 = vunpack.c.l.b16 %v463
      %v906 = vunpack.c.h.b16 %v463
      %v907 = vunpack.c.l.b16 %v464
      %v908 = vunpack.c.h.b16 %v464
      %v909 = vunpack.c.l.b16 %v465
      %v910 = vunpack.c.h.b16 %v465
      %v911 = vunpack.c.l.b16 %v466
      %v912 = vunpack.c.h.b16 %v466
      %v913 = vunpack.c.l.b16 %v467
      %v914 = vunpack.c.h.b16 %v467
      %v915 = vunpack.c.l.b16 %v468
      %v916 = vunpack.c.h.b16 %v468
      %v917 = vunpack.c.l.b16 %v469
      %v918 = vunpack.c.h.b16 %v469
      %v919 = vunpack.c.l.b16 %v470
      %v920 = vunpack.c.h.b16 %v470
      %v921 = vunpack.c.l.b16 %v471
      %v922 = vunpack.c.h.b16 %v471
      %v923 = vunpack.c.l.b16 %v472
      %v924 = vunpack.c.h.b16 %v472
      %v925 = vunpack.c.l.b16 %v473
      %v926 = vunpack.c.h.b16 %v473
      %v927 = vunpack.c.l.b16 %v474
      %v928 = vunpack.c.h.b16 %v474
      %v929 = vunpack.c.l.b16 %v475
      %v930 = vunpack.c.h.b16 %v475
      %v931 = vunpack.c.l.b16 %v476
      %v932 = vunpack.c.h.b16 %v476
      %v933 = vunpack.c.l.b16 %v477
      %v934 = vunpack.c.h.b16 %v477
      %v935 = vunpack.c.l.b16 %v478
      %v936 = vunpack.c.h.b16 %v478
      %v937 = vunpack.c.l.b16 %v479
      %v938 = vunpack.c.h.b16 %v479
      %v939 = vunpack.c.l.b16 %v480
      %v940 = vunpack.c.h.b16 %v480
      %v941 = vunpack.c.l.b16 %v481
      %v942 = vunpack.c.h.b16 %v481
      %v943 = vunpack.c.l.b16 %v482
      %v944 = vunpack.c.h.b16 %v482
      %v945 = vunpack.c.l.b16 %v483
      %v946 = vunpack.c.h.b16 %v483
      %v947 = vunpack.c.l.b16 %v484
      %v948 = vunpack.c.h.b16 %v484
      %v949 = vunpack.c.l.b16 %v485
      %v950 = vunpack.c.h.b16 %v485
      %v951 = vunpack.c.l.b16 %v486
      %v952 = vunpack.c.h.b16 %v486
      %v953 = vunpack.c.l.b16 %v487
      %v954 = vunpack.c.h.b16 %v487
      %v955 = vunpack.c.l.b16 %v488
      %v956 = vunpack.c.h.b16 %v488
      %v957 = vunpack.c.l.b16 %v489
      %v958 = vunpack.c.h.b16 %v489
      %v959 = vunpack.c.l.b16 %v490
      %v960 = vunpack.c.h.b16 %v490
      %v961 = vunpack.c.l.b16 %v491
      %v962 = vunpack.c.h.b16 %v491
      %v963 = vunpack.c.l.b16 %v492
      %v964 = vunpack.c.h.b16 %v492
      %v965 = vunpack.c.l.b16 %v493
      %v966 = vunpack.c.h.b16 %v493
      %v967 = vunpack.c.l.b16 %v494
      %v968 = vunpack.c.h.b16 %v494
      %v969 = vunpack.c.l.b16 %v495
      %v970 = vunpack.c.h.b16 %v495
      %v971 = vunpack.c.l.b16 %v496
      %v972 = vunpack.c.h.b16 %v496
      %v973 = vunpack.c.l.b16 %v497
      %v974 = vunpack.c.h.b16 %v497
      %v975 = vunpack.c.l.b16 %v498
      %v976 = vunpack.c.h.b16 %v498
      %v977 = vunpack.c.l.b16 %v499
      %v978 = vunpack.c.h.b16 %v499
      %v979 = vunpack.c.l.b16 %v500
      %v980 = vunpack.c.h.b16 %v500
      %v981 = vunpack.c.l.b16 %v501
      %v982 = vunpack.c.h.b16 %v501
      %v983 = vunpack.c.l.b16 %v502
      %v984 = vunpack.c.h.b16 %v502
      %v985 = vunpack.c.l.b16 %v503
      %v986 = vunpack.c.h.b16 %v503
      %v987 = vunpack.c.l.b16 %v504
      %v988 = vunpack.c.h.b16 %v504
      %v989 = vunpack.c.l.b16 %v505
      %v990 = vunpack.c.h.b16 %v505
      %v991 = vunpack.c.l.b16 %v506
      %v992 = vunpack.c.h.b16 %v506
      %v993 = vunpack.c.l.b16 %v507
      %v994 = vunpack.c.h.b16 %v507
      %v995 = vunpack.c.l.b16 %v508
      %v996 = vunpack.c.h.b16 %v508
      %v997 = vunpack.c.l.b16 %v509
      %v998 = vunpack.c.h.b16 %v509
      %v999 = vunpack.c.l.b16 %v510
      %v1000 = vunpack.c.h.b16 %v510
      %v1001 = vunpack.c.l.b16 %v511
      %v1002 = vunpack.c.h.b16 %v511
      %v1003 = vunpack.c.l.b16 %v512
      %v1004 = vunpack.c.h.b16 %v512
      %v1005 = vunpack.c.l.b16 %v513
      %v1006 = vunpack.c.h.b16 %v513
      %v1007 = vunpack.c.l.b16 %v514
      %v1008 = vunpack.c.h.b16 %v514
      %v1009 = vunpack.c.l.b16 %v515
      %v1010 = vunpack.c.h.b16 %v515
      %v1011 = vunpack.c.l.b16 %v516
      %v1012 = vunpack.c.h.b16 %v516
      %v1013 = vunpack.c.l.b16 %v517
      %v1014 = vunpack.c.h.b16 %v517
      %v1015 = vunpack.c.l.b16 %v518
      %v1016 = vunpack.c.h.b16 %v518
      %v1017 = vunpack.c.l.b16 %v519
      %v1018 = vunpack.c.h.b16 %v519
      %v1019 = vunpack.c.l.b16 %v520
      %v1020 = vunpack.c.h.b16 %v520
      %v1021 = vunpack.c.l.b16 %v521
      %v1022 = vunpack.c.h.b16 %v521
      %v1023 = vunpack.c.l.b16 %v522
      %v1024 = vunpack.c.h.b16 %v522
      %v1025 = vunpack.c.l.b16 %v523
      %v1026 = vunpack.c.h.b16 %v523
      %v1027 = vunpack.c.l.b16 %v524
      %v1028 = vunpack.c.h.b16 %v524
      %v1029 = vunpack.c.l.b16 %v525
      %v1030 = vunpack.c.h.b16 %v525
      %v1031 = vunpack.c.l.b16 %v526
      %v1032 = vunpack.c.h.b16 %v526
      %v1033 = vunpack.c.l.b16 %v527
      %v1034 = vunpack.c.h.b16 %v527
      %v1035 = vunpack.c.l.b16 %v528
      %v1036 = vunpack.c.h.b16 %v528
      %v1037 = vunpack.c.l.b16 %v529
      %v1038 = vunpack.c.h.b16 %v529
      %v1039 = vunpack.c.l.b16 %v530
      %v1040 = vunpack.c.h.b16 %v530
      %v1041 = vunpack.c.l.b16 %v531
      %v1042 = vunpack.c.h.b16 %v531
      %v1043 = vunpack.c.l.b16 %v532
      %v1044 = vunpack.c.h.b16 %v532
      %v1045 = vunpack.c.l.b16 %v533
      %v1046 = vunpack.c.h.b16 %v533
      %v1047 = vunpack.c.l.b16 %v534
      %v1048 = vunpack.c.h.b16 %v534
      %v1049 = vunpack.c.l.b16 %v535
      %v1050 = vunpack.c.h.b16 %v535
      %v1051 = vunpack.c.l.b16 %v536
      %v1052 = vunpack.c.h.b16 %v536
      %v1053 = vunpack.c.l.b16 %v537
      %v1054 = vunpack.c.h.b16 %v537
      %v1055 = vunpack.c.l.b16 %v538
      %v1056 = vunpack.c.h.b16 %v538
      %v1057 = vunpack.c.l.b16 %v539
      %v1058 = vunpack.c.h.b16 %v539
      %v1059 = vunpack.c.l.b16 %v540
      %v1060 = vunpack.c.h.b16 %v540
      %v1061 = vunpack.c.l.b16 %v541
      %v1062 = vunpack.c.h.b16 %v541
      %v1063 = vunpack.c.l.b16 %v542
      %v1064 = vunpack.c.h.b16 %v542
      %v1065 = vunpack.c.l.b16 %v543
      %v1066 = vunpack.c.h.b16 %v543
      %v1067 = vunpack.c.l.b16 %v544
      %v1068 = vunpack.c.h.b16 %v544
      %v1069 = vunpack.c.l.b16 %v545
      %v1070 = vunpack.c.h.b16 %v545
      %v1071 = vunpack.c.l.b16 %v546
      %v1072 = vunpack.c.h.b16 %v546
      %v1073 = vunpack.c.l.b16 %v547
      %v1074 = vunpack.c.h.b16 %v547
      %v1075 = vunpack.c.l.b16 %v548
      %v1076 = vunpack.c.h.b16 %v548
      %v1077 = vunpack.c.l.b16 %v549
      %v1078 = vunpack.c.h.b16 %v549
      %v1079 = vunpack.c.l.b16 %v550
      %v1080 = vunpack.c.h.b16 %v550
      %v1081 = vunpack.c.l.b16 %v551
      %v1082 = vunpack.c.h.b16 %v551
      %v1083 = vunpack.c.l.b16 %v552
      %v1084 = vunpack.c.h.b16 %v552
      %v1085 = vunpack.c.l.b16 %v553
      %v1086 = vunpack.c.h.b16 %v553
      %v1087 = vunpack.c.l.b16 %v554
      %v1088 = vunpack.c.h.b16 %v554
      %v1089 = vunpack.c.l.b16 %v555
      %v1090 = vunpack.c.h.b16 %v555
      %v1091 = vunpack.c.l.b16 %v556
      %v1092 = vunpack.c.h.b16 %v556
      %v1093 = vunpack.c.l.b16 %v557
      %v1094 = vunpack.c.h.b16 %v557
      %v1095 = vunpack.c.l.b16 %v558
      %v1096 = vunpack.c.h.b16 %v558
      %v1097 = vunpack.c.l.b16 %v559
      %v1098 = vunpack.c.h.b16 %v559
      %v1099 = vunpack.c.l.b16 %v560
      %v1100 = vunpack.c.h.b16 %v560
      %v1101 = vunpack.c.l.b16 %v561
      %v1102 = vunpack.c.h.b16 %v561
      %v1103 = vunpack.c.l.b16 %v562
      %v1104 = vunpack.c.h.b16 %v562
      %v1105 = vunpack.c.l.b16 %v563
      %v1106 = vunpack.c.h.b16 %v563
      %v1107 = vunpack.c.l.b16 %v564
      %v1108 = vunpack.c.h.b16 %v564
      %v1109 = vunpack.c.l.b16 %v565
      %v1110 = vunpack.c.h.b16 %v565
      %v1111 = vunpack.c.l.b16 %v566
      %v1112 = vunpack.c.h.b16 %v566
      %v1113 = vunpack.c.l.b16 %v567
      %v1114 = vunpack.c.h.b16 %v567
      %v1115 = vunpack.c.l.b16 %v568
      %v1116 = vunpack.c.h.b16 %v568
      %v1117 = vunpack.c.l.b16 %v569
      %v1118 = vunpack.c.h.b16 %v569
      %v1119 = vunpack.c.l.b16 %v570
      %v1120 = vunpack.c.h.b16 %v570
      %v1121 = vunpack.c.l.b16 %v571
      %v1122 = vunpack.c.h.b16 %v571
      %v1123 = vunpack.c.l.b16 %v572
      %v1124 = vunpack.c.h.b16 %v572
      %v1125 = vunpack.c.l.b16 %v573
      %v1126 = vunpack.c.h.b16 %v573
      %v1127 = vunpack.c.l.b16 %v574
      %v1128 = vunpack.c.h.b16 %v574
      %v1129 = vunpack.c.l.b16 %v575
      %v1130 = vunpack.c.h.b16 %v575
      %v1131 = vunpack.c.l.b16 %v576
      %v1132 = vunpack.c.h.b16 %v576
      %v1133 = vunpack.c.l.b16 %v577
      %v1134 = vunpack.c.h.b16 %v577
      %v1135 = vunpack.c.l.b16 %v578
      %v1136 = vunpack.c.h.b16 %v578
      %v1137 = vunpack.c.l.b16 %v579
      %v1138 = vunpack.c.h.b16 %v579
      %v1139 = vunpack.c.l.b16 %v580
      %v1140 = vunpack.c.h.b16 %v580
      %v1141 = vunpack.c.l.b16 %v581
      %v1142 = vunpack.c.h.b16 %v581
      %v1143 = vunpack.c.l.b16 %v582
      %v1144 = vunpack.c.h.b16 %v582
      %v1145 = vunpack.c.l.b16 %v583
      %v1146 = vunpack.c.h.b16 %v583
      %v1147 = vunpack.c.l.b16 %v584
      %v1148 = vunpack.c.h.b16 %v584
      %v1149 = vunpack.c.l.b16 %v585
      %v1150 = vunpack.c.h.b16 %v585
      %v1151 = vunpack.c.l.b16 %v586
      %v1152 = vunpack.c.h.b16 %v586
      %v1153 = vunpack.c.l.b16 %v587
      %v1154 = vunpack.c.h.b16 %v587
      %v1155 = vunpack.c.l.b16 %v588
      %v1156 = vunpack.c.h.b16 %v588
      %v1157 = vunpack.c.l.b16 %v589
      %v1158 = vunpack.c.h.b16 %v589
      %v1159 = vunpack.c.l.b16 %v590
      %v1160 = vunpack.c.h.b16 %v590
      %v1161 = vunpack.c.l.b16 %v591
      %v1162 = vunpack.c.h.b16 %v591
      %v1163 = vunpack.c.l.b16 %v592
      %v1164 = vunpack.c.h.b16 %v592
      %v1165 = vunpack.c.l.b16 %v593
      %v1166 = vunpack.c.h.b16 %v593
      %v1167 = vunpack.c.l.b16 %v594
      %v1168 = vunpack.c.h.b16 %v594
      %v1169 = vunpack.c.l.b16 %v595
      %v1170 = vunpack.c.h.b16 %v595
      %v1171 = vunpack.c.l.b16 %v596
      %v1172 = vunpack.c.h.b16 %v596
      %v1173 = vpack.c.b16 %v797, %v789
      %v1174 = vpack.c.b16 %v798, %v790
      %v1175 = vpack.c.b16 %v799, %v791
      %v1176 = vpack.c.b16 %v800, %v792
      %v1177 = vpack.c.b16 %v801, %v793
      %v1178 = vpack.c.b16 %v802, %v794
      %v1179 = vpack.c.b16 %v803, %v795
      %v1180 = vpack.c.b16 %v804, %v796
      %v1181 = vpack.c.b16 %v813, %v805
      %v1182 = vpack.c.b16 %v814, %v806
      %v1183 = vpack.c.b16 %v815, %v807
      %v1184 = vpack.c.b16 %v816, %v808
      %v1185 = vpack.c.b16 %v817, %v809
      %v1186 = vpack.c.b16 %v818, %v810
      %v1187 = vpack.c.b16 %v819, %v811
      %v1188 = vpack.c.b16 %v820, %v812
      %v1189 = vpack.c.b16 %v829, %v821
      %v1190 = vpack.c.b16 %v830, %v822
      %v1191 = vpack.c.b16 %v831, %v823
      %v1192 = vpack.c.b16 %v832, %v824
      %v1193 = vpack.c.b16 %v833, %v825
      %v1194 = vpack.c.b16 %v834, %v826
      %v1195 = vpack.c.b16 %v835, %v827
      %v1196 = vpack.c.b16 %v836, %v828
      %v1197 = vpack.c.b16 %v845, %v837
      %v1198 = vpack.c.b16 %v846, %v838
      %v1199 = vpack.c.b16 %v847, %v839
      %v1200 = vpack.c.b16 %v848, %v840
      %v1201 = vpack.c.b16 %v849, %v841
      %v1202 = vpack.c.b16 %v850, %v842
      %v1203 = vpack.c.b16 %v851, %v843
      %v1204 = vpack.c.b16 %v852, %v844
      %v1205 = vpack.c.b16 %v861, %v853
      %v1206 = vpack.c.b16 %v862, %v854
      %v1207 = vpack.c.b16 %v863, %v855
      %v1208 = vpack.c.b16 %v864, %v856
      %v1209 = vpack.c.b16 %v865, %v857
      %v1210 = vpack.c.b16 %v866, %v858
      %v1211 = vpack.c.b16 %v867, %v859
      %v1212 = vpack.c.b16 %v868, %v860
      %v1213 = vpack.c.b16 %v877, %v869
      %v1214 = vpack.c.b16 %v878, %v870
      %v1215 = vpack.c.b16 %v879, %v871
      %v1216 = vpack.c.b16 %v880, %v872
      %v1217 = vpack.c.b16 %v881, %v873
      %v1218 = vpack.c.b16 %v882, %v874
      %v1219 = vpack.c.b16 %v883, %v875
      %v1220 = vpack.c.b16 %v884, %v876
      %v1221 = vpack.c.b16 %v893, %v885
      %v1222 = vpack.c.b16 %v894, %v886
      %v1223 = vpack.c.b16 %v895, %v887
      %v1224 = vpack.c.b16 %v896, %v888
      %v1225 = vpack.c.b16 %v897, %v889
      %v1226 = vpack.c.b16 %v898, %v890
      %v1227 = vpack.c.b16 %v899, %v891
      %v1228 = vpack.c.b16 %v900, %v892
      %v1229 = vpack.c.b16 %v909, %v901
      %v1230 = vpack.c.b16 %v910, %v902
      %v1231 = vpack.c.b16 %v911, %v903
      %v1232 = vpack.c.b16 %v912, %v904
      %v1233 = vpack.c.b16 %v913, %v905
      %v1234 = vpack.c.b16 %v914, %v906
      %v1235 = vpack.c.b16 %v915, %v907
      %v1236 = vpack.c.b16 %v916, %v908
      %v1237 = vpack.c.b16 %v925, %v917
      %v1238 = vpack.c.b16 %v926, %v918
      %v1239 = vpack.c.b16 %v927, %v919
      %v1240 = vpack.c.b16 %v928, %v920
      %v1241 = vpack.c.b16 %v929, %v921
      %v1242 = vpack.c.b16 %v930, %v922
      %v1243 = vpack.c.b16 %v931, %v923
      %v1244 = vpack.c.b16 %v932, %v924
      %v1245 = vpack.c.b16 %v941, %v933
      %v1246 = vpack.c.b16 %v942, %v934
      %v1247 = vpack.c.b16 %v943, %v935
      %v1248 = vpack.c.b16 %v944, %v936
      %v1249 = vpack.c.b16 %v945, %v937
      %v1250 = vpack.c.b16 %v946, %v938
      %v1251 = vpack.c.b16 %v947, %v939
      %v1252 = vpack.c.b16 %v948, %v940
      %v1253 = vpack.c.b16 %v957, %v949
      %v1254 = vpack.c.b16 %v958, %v950
      %v1255 = vpack.c.b16 %v959, %v951
      %v1256 = vpack.c.b16 %v960, %v952
      %v1257 = vpack.c.b16 %v961, %v953
      %v1258 = vpack.c.b16 %v962, %v954
      %v1259 = vpack.c.b16 %v963, %v955
      %v1260 = vpack.c.b16 %v964, %v956
      %v1261 = vpack.c.b16 %v973, %v965
      %v1262 = vpack.c.b16 %v974, %v966
      %v1263 = vpack.c.b16 %v975, %v967
      %v1264 = vpack.c.b16 %v976, %v968
      %v1265 = vpack.c.b16 %v977, %v969
      %v1266 = vpack.c.b16 %v978, %v970
      %v1267 = vpack.c.b16 %v979, %v971
      %v1268 = vpack.c.b16 %v980, %v972
      %v1269 = vpack.c.b16 %v989, %v981
      %v1270 = vpack.c.b16 %v990, %v982
      %v1271 = vpack.c.b16 %v991, %v983
      %v1272 = vpack.c.b16 %v992, %v984
      %v1273 = vpack.c.b16 %v993, %v985
      %v1274 = vpack.c.b16 %v994, %v986
      %v1275 = vpack.c.b16 %v995, %v987
      %v1276 = vpack.c.b16 %v996, %v988
      %v1277 = vpack.c.b16 %v1005, %v997
      %v1278 = vpack.c.b16 %v1006, %v998
      %v1279 = vpack.c.b16 %v1007, %v999
      %v1280 = vpack.c.b16 %v1008, %v1000
      %v1281 = vpack.c.b16 %v1009, %v1001
      %v1282 = vpack.c.b16 %v1010, %v1002
      %v1283 = vpack.c.b16 %v1011, %v1003
      %v1284 = vpack.c.b16 %v1012, %v1004
      %v1285 = vpack.c.b16 %v1021, %v1013
      %v1286 = vpack.c.b16 %v1022, %v1014
      %v1287 = vpack.c.b16 %v1023, %v1015
      %v1288 = vpack.c.b16 %v1024, %v1016
      %v1289 = vpack.c.b16 %v1025, %v1017
      %v1290 = vpack.c.b16 %v1026, %v1018
      %v1291 = vpack.c.b16 %v1027, %v1019
      %v1292 = vpack.c.b16 %v1028, %v1020
      %v1293 = vpack.c.b16 %v1037, %v1029
      %v1294 = vpack.c.b16 %v1038, %v1030
      %v1295 = vpack.c.b16 %v1039, %v1031
      %v1296 = vpack.c.b16 %v1040, %v1032
      %v1297 = vpack.c.b16 %v1041, %v1033
      %v1298 = vpack.c.b16 %v1042, %v1034
      %v1299 = vpack.c.b16 %v1043, %v1035
      %v1300 = vpack.c.b16 %v1044, %v1036
      %v1301 = vpack.c.b16 %v1053, %v1045
      %v1302 = vpack.c.b16 %v1054, %v1046
      %v1303 = vpack.c.b16 %v1055, %v1047
      %v1304 = vpack.c.b16 %v1056, %v1048
      %v1305 = vpack.c.b16 %v1057, %v1049
      %v1306 = vpack.c.b16 %v1058, %v1050
      %v1307 = vpack.c.b16 %v1059, %v1051
      %v1308 = vpack.c.b16 %v1060, %v1052
      %v1309 = vpack.c.b16 %v1069, %v1061
      %v1310 = vpack.c.b16 %v1070, %v1062
      %v1311 = vpack.c.b16 %v1071, %v1063
      %v1312 = vpack.c.b16 %v1072, %v1064
      %v1313 = vpack.c.b16 %v1073, %v1065
      %v1314 = vpack.c.b16 %v1074, %v1066
      %v1315 = vpack.c.b16 %v1075, %v1067
      %v1316 = vpack.c.b16 %v1076, %v1068
      %v1317 = vpack.c.b16 %v1085, %v1077
      %v1318 = vpack.c.b16 %v1086, %v1078
      %v1319 = vpack.c.b16 %v1087, %v1079
      %v1320 = vpack.c.b16 %v1088, %v1080
      %v1321 = vpack.c.b16 %v1089, %v1081
      %v1322 = vpack.c.b16 %v1090, %v1082
      %v1323 = vpack.c.b16 %v1091, %v1083
      %v1324 = vpack.c.b16 %v1092, %v1084
      %v1325 = vpack.c.b16 %v1101, %v1093
      %v1326 = vpack.c.b16 %v1102, %v1094
      %v1327 = vpack.c.b16 %v1103, %v1095
      %v1328 = vpack.c.b16 %v1104, %v1096
      %v1329 = vpack.c.b16 %v1105, %v1097
      %v1330 = vpack.c.b16 %v1106, %v1098
      %v1331 = vpack.c.b16 %v1107, %v1099
      %v1332 = vpack.c.b16 %v1108, %v1100
      %v1333 = vpack.c.b16 %v1117, %v1109
      %v1334 = vpack.c.b16 %v1118, %v1110
      %v1335 = vpack.c.b16 %v1119, %v1111
      %v1336 = vpack.c.b16 %v1120, %v1112
      %v1337 = vpack.c.b16 %v1121, %v1113
      %v1338 = vpack.c.b16 %v1122, %v1114
      %v1339 = vpack.c.b16 %v1123, %v1115
      %v1340 = vpack.c.b16 %v1124, %v1116
      %v1341 = vpack.c.b16 %v1133, %v1125
      %v1342 = vpack.c.b16 %v1134, %v1126
      %v1343 = vpack.c.b16 %v1135, %v1127
      %v1344 = vpack.c.b16 %v1136, %v1128
      %v1345 = vpack.c.b16 %v1137, %v1129
      %v1346 = vpack.c.b16 %v1138, %v1130
      %v1347 = vpack.c.b16 %v1139, %v1131
      %v1348 = vpack.c.b16 %v1140, %v1132
      %v1349 = vpack.c.b16 %v1149, %v1141
      %v1350 = vpack.c.b16 %v1150, %v1142
      %v1351 = vpack.c.b16 %v1151, %v1143
      %v1352 = vpack.c.b16 %v1152, %v1144
      %v1353 = vpack.c.b16 %v1153, %v1145
      %v1354 = vpack.c.b16 %v1154, %v1146
      %v1355 = vpack.c.b16 %v1155, %v1147
      %v1356 = vpack.c.b16 %v1156, %v1148
      %v1357 = vpack.c.b16 %v1165, %v1157
      %v1358 = vpack.c.b16 %v1166, %v1158
      %v1359 = vpack.c.b16 %v1167, %v1159
      %v1360 = vpack.c.b16 %v1168, %v1160
      %v1361 = vpack.c.b16 %v1169, %v1161
      %v1362 = vpack.c.b16 %v1170, %v1162
      %v1363 = vpack.c.b16 %v1171, %v1163
      %v1364 = vpack.c.b16 %v1172, %v1164
      %v1658 = vunpack.c.l.b16 %v280
      %v1659 = vunpack.c.l.b16 %v281
      %v1660 = vunpack.c.l.b16 %v282
      %v1661 = vunpack.c.l.b16 %v283
      %v1662 = vunpack.c.l.b16 %v284
      %v1663 = vunpack.c.l.b16 %v285
      %v1664 = vunpack.c.l.b16 %v286
      %v1665 = vunpack.c.l.b16 %v287
      %v1666 = vunpack.c.l.b16 %v288
      %v1667 = vunpack.c.l.b16 %v289
      %v1668 = vunpack.c.l.b16 %v290
      %v1669 = vunpack.c.l.b16 %v291
      %v1670 = vunpack.c.l.b16 %v292
      %v1671 = vunpack.c.l.b16 %v293
      %v1672 = vunpack.c.l.b16 %v294
      %v1673 = vunpack.c.l.b16 %v295
      %v1674 = vunpack.c.l.b16 %v296
      %v1675 = vunpack.c.l.b16 %v297
      %v1676 = vunpack.c.l.b16 %v298
      %v1677 = vunpack.c.l.b16 %v299
      %v1678 = vunpack.c.l.b16 %v300
      %v1679 = vunpack.c.l.b16 %v301
      %v1680 = vunpack.c.l.b16 %v302
      %v1681 = vunpack.c.l.b16 %v303
      %v1682 = vunpack.c.l.b16 %v304
      %v1683 = vunpack.c.l.b16 %v305
      %v1684 = vunpack.c.l.b16 %v306
      %v1685 = vunpack.c.l.b16 %v307
      %v1686 = vunpack.c.l.b16 %v308
      %v1687 = vunpack.c.l.b16 %v309
      %v1688 = vunpack.c.l.b16 %v310
      %v1689 = vunpack.c.l.b16 %v311
      %v1690 = vunpack.c.l.b16 %v312
      %v1691 = vunpack.c.l.b16 %v313
      %v1692 = vunpack.c.l.b16 %v314
      %v1693 = vunpack.c.l.b16 %v315
      %v1694 = vunpack.c.l.b16 %v316
      %v1695 = vunpack.c.l.b16 %v317
      %v1696 = vunpack.c.l.b16 %v318
      %v1697 = vunpack.c.l.b16 %v319
      %v1698 = vunpack.c.l.b16 %v320
      %v1699 = vunpack.c.l.b16 %v321
      %v1700 = vunpack.c.l.b16 %v322
      %v1701 = vunpack.c.l.b16 %v323
      %v1702 = vunpack.c.l.b16 %v324
      %v1703 = vunpack.c.l.b16 %v325
      %v1704 = vunpack.c.l.b16 %v326
      %v1705 = vunpack.c.l.b16 %v327
      %v1706 = vunpack.c.l.b16 %v328
      %v1707 = vunpack.c.l.b16 %v329
      %v1708 = vunpack.c.l.b16 %v330
      %v1709 = vunpack.c.l.b16 %v331
      %v1710 = vunpack.c.l.b16 %v332
      %v1711 = vunpack.c.l.b16 %v333
      %v1712 = vunpack.c.l.b16 %v334
      %v1713 = vunpack.c.l.b16 %v335
      %v1714 = vunpack.c.l.b16 %v336
      %v1715 = vunpack.c.l.b16 %v337
      %v1716 = vunpack.c.l.b16 %v338
      %v1717 = vunpack.c.l.b16 %v339
      %v1718 = vunpack.c.l.b16 %v340
      %v1719 = vunpack.c.l.b16 %v341
      %v1720 = vunpack.c.l.b16 %v342
      %v1721 = vunpack.c.l.b16 %v343
      %v1722 = vunpack.c.l.b16 %v344
      %v1723 = vunpack.c.l.b16 %v345
      %v1724 = vunpack.c.l.b16 %v346
      %v1725 = vunpack.c.l.b16 %v347
      %v1726 = vunpack.c.l.b16 %v348
      %v1727 = vunpack.c.l.b16 %v349
      %v1728 = vunpack.c.l.b16 %v350
      %v1729 = vunpack.c.l.b16 %v351
      %v1730 = vunpack.c.l.b16 %v352
      %v1731 = vunpack.c.l.b16 %v353
      %v1732 = vunpack.c.l.b16 %v354
      %v1733 = vunpack.c.l.b16 %v355
      %v1734 = vunpack.c.l.b16 %v356
      %v1735 = vunpack.c.l.b16 %v357
      %v1736 = vunpack.c.l.b16 %v358
      %v1737 = vunpack.c.l.b16 %v359
      %v1738 = vunpack.c.l.b16 %v360
      %v1739 = vunpack.c.l.b16 %v361
      %v1740 = vunpack.c.l.b16 %v362
      %v1741 = vunpack.c.l.b16 %v363
      %v1742 = vunpack.c.l.b16 %v364
      %v1743 = vunpack.c.l.b16 %v365
      %v1744 = vunpack.c.l.b16 %v366
      %v1745 = vunpack.c.l.b16 %v367
      %v1746 = vunpack.c.l.b16 %v368
      %v1747 = vunpack.c.l.b16 %v369
      %v1748 = vunpack.c.l.b16 %v370
      %v1749 = vunpack.c.l.b16 %v371
      %v1750 = vunpack.c.l.b16 %v372
      %v1751 = vunpack.c.l.b16 %v373
      %v1752 = vunpack.c.l.b16 %v374
      %v1753 = vunpack.c.l.b16 %v375
      %v1754 = vunpack.c.l.b16 %v376
      %v1755 = vunpack.c.l.b16 %v377
      %v1756 = vunpack.c.l.b16 %v378
      %v1757 = vunpack.c.l.b16 %v379
      %v1758 = vunpack.c.l.b16 %v380
      %v1759 = vunpack.c.l.b16 %v381
      %v1760 = vunpack.c.l.b16 %v382
      %v1761 = vunpack.c.l.b16 %v383
      %v1762 = vunpack.c.l.b16 %v384
      %v1763 = vunpack.c.l.b16 %v385
      %v1764 = vunpack.c.l.b16 %v386
      %v1765 = vunpack.c.l.b16 %v387
      %v1766 = vunpack.c.l.b16 %v388
      %v1767 = vunpack.c.l.b16 %v389
      %v1768 = vunpack.c.l.b16 %v390
      %v1769 = vunpack.c.l.b16 %v391
      %v1770 = vunpack.c.l.b16 %v392
      %v1771 = vunpack.c.l.b16 %v393
      %v1772 = vunpack.c.l.b16 %v394
      %v1773 = vunpack.c.l.b16 %v395
      %v1774 = vunpack.c.l.b16 %v396
      %v1775 = vunpack.c.l.b16 %v397
      %v1776 = vunpack.c.l.b16 %v398
      %v1777 = vunpack.c.l.b16 %v399
      %v1778 = vunpack.c.l.b16 %v400
      %v1779 = vunpack.c.l.b16 %v401
      %v1780 = vunpack.c.l.b16 %v402
      %v1781 = vunpack.c.l.b16 %v403
      %v1782 = vunpack.c.l.b16 %v404
      %v1783 = vpack.c.b16 %v1659, %v1658
      %v1784 = vpack.c.b16 %v1661, %v1660
      %v1785 = vpack.c.b16 %v1663, %v1662
      %v1786 = vpack.c.b16 %v1665, %v1664
      %v1787 = vpack.c.b16 %v1667, %v1666
      %v1788 = vpack.c.b16 %v1669, %v1668
      %v1789 = vpack.c.b16 %v1671, %v1670
      %v1790 = vpack.c.b16 %v1673, %v1672
      %v1791 = vpack.c.b16 %v1675, %v1674
      %v1792 = vpack.c.b16 %v1677, %v1676
      %v1793 = vpack.c.b16 %v1679, %v1678
      %v1794 = vpack.c.b16 %v1681, %v1680
      %v1795 = vpack.c.b16 %v1683, %v1682
      %v1796 = vpack.c.b16 %v1685, %v1684
      %v1797 = vpack.c.b16 %v1687, %v1686
      %v1798 = vpack.c.b16 %v1689, %v1688
      %v1799 = vpack.c.b16 %v1691, %v1690
      %v1800 = vpack.c.b16 %v1693, %v1692
      %v1801 = vpack.c.b16 %v1695, %v1694
      %v1802 = vpack.c.b16 %v1697, %v1696
      %v1803 = vpack.c.b16 %v1699, %v1698
      %v1804 = vpack.c.b16 %v1701, %v1700
      %v1805 = vpack.c.b16 %v1703, %v1702
      %v1806 = vpack.c.b16 %v1705, %v1704
      %v1807 = vpack.c.b16 %v1707, %v1706
      %v1808 = vpack.c.b16 %v1709, %v1708
      %v1809 = vpack.c.b16 %v1711, %v1710
      %v1810 = vpack.c.b16 %v1713, %v1712
      %v1811 = vpack.c.b16 %v1715, %v1714
      %v1812 = vpack.c.b16 %v1717, %v1716
      %v1813 = vpack.c.b16 %v1719, %v1718
      %v1814 = vpack.c.b16 %v1721, %v1720
      %v1815 = vpack.c.b16 %v1723, %v1722
      %v1816 = vpack.c.b16 %v1725, %v1724
      %v1817 = vpack.c.b16 %v1727, %v1726
      %v1818 = vpack.c.b16 %v1729, %v1728
      %v1819 = vpack.c.b16 %v1731, %v1730
      %v1820 = vpack.c.b16 %v1733, %v1732
      %v1821 = vpack.c.b16 %v1735, %v1734
      %v1822 = vpack.c.b16 %v1737, %v1736
      %v1823 = vpack.c.b16 %v1739, %v1738
      %v1824 = vpack.c.b16 %v1741, %v1740
      %v1825 = vpack.c.b16 %v1743, %v1742
      %v1826 = vpack.c.b16 %v1745, %v1744
      %v1827 = vpack.c.b16 %v1747, %v1746
      %v1828 = vpack.c.b16 %v1749, %v1748
      %v1829 = vpack.c.b16 %v1751, %v1750
      %v1830 = vpack.c.b16 %v1753, %v1752
      %v1831 = vpack.c.b16 %v1755, %v1754
      %v1832 = vpack.c.b16 %v1757, %v1756
      %v1833 = vpack.c.b16 %v1759, %v1758
      %v1834 = vpack.c.b16 %v1761, %v1760
      %v1835 = vpack.c.b16 %v1763, %v1762
      %v1836 = vpack.c.b16 %v1765, %v1764
      %v1837 = vpack.c.b16 %v1767, %v1766
      %v1838 = vpack.c.b16 %v1769, %v1768
      %v1839 = vpack.c.b16 %v1771, %v1770
      %v1840 = vpack.c.b16 %v1773, %v1772
      %v1841 = vpack.c.b16 %v1775, %v1774
      %v1842 = vpack.c.b16 %v1777, %v1776
      %v1843 = vpack.c.b16 %v1779, %v1778
      %v1844 = vpack.c.b16 %v1781, %v1780
      %v1845 = vpack.c.b16 %v1782, %v1782
      %vm1908 = vcmask 850944
      %v1910 = vsel %vm1908, %v1180, 0
      %v1913 = vsel %vm1908, %v1188, 0
      %v1916 = vsel %vm1908, %v1196, 0
      %v1919 = vsel %vm1908, %v1204, 0
      %v1922 = vsel %vm1908, %v1212, 0
      %v1925 = vsel %vm1908, %v1220, 0
      %v1928 = vsel %vm1908, %v1228, 0
      %v1931 = vsel %vm1908, %v1236, 0
      %v1934 = vsel %vm1908, %v1244, 0
      %v1937 = vsel %vm1908, %v1252, 0
      %v1940 = vsel %vm1908, %v1260, 0
      %v1943 = vsel %vm1908, %v1268, 0
      %v1946 = vsel %vm1908, %v1276, 0
      %v1949 = vsel %vm1908, %v1284, 0
      %v1952 = vsel %vm1908, %v1292, 0
      %v1955 = vsel %vm1908, %v1300, 0
      %v1958 = vsel %vm1908, %v1308, 0
      %v1961 = vsel %vm1908, %v1316, 0
      %v1964 = vsel %vm1908, %v1324, 0
      %v1967 = vsel %vm1908, %v1332, 0
      %v1970 = vsel %vm1908, %v1340, 0
      %v1973 = vsel %vm1908, %v1348, 0
      %v1976 = vsel %vm1908, %v1356, 0
      %v1979 = vsel %vm1908, %v1364, 0
      %vm1981 = vcmask 1043456
      %v1983 = vsel %vm1981, %v1845, 0
      %1985 = vmatprep.subr.bf16.mxu0 0
      %1986 = vmatpush1.bf16.msra.mxu0 %v1783
      %1987 = vmatprep.subr.bf16.mxu0 0
      %1988 = vmatpush1.bf16.msra.mxu0 %v1784
      %1989 = vmatprep.subr.bf16.mxu0 0
      %1990 = vmatpush1.bf16.msra.mxu0 %v1785
      %1991 = vmatprep.subr.bf16.mxu0 0
      %1992 = vmatpush1.bf16.msra.mxu0 %v1786
      %1993 = vmatprep.subr.bf16.mxu0 0
      %1994 = vmatpush1.bf16.msra.mxu0 %v1787
      %1995 = vmatprep.subr.bf16.mxu0 0
      %1996 = vmatpush1.bf16.msra.mxu0 %v1788
      %1997 = vmatprep.subr.bf16.mxu0 0
      %1998 = vmatpush1.bf16.msra.mxu0 %v1789
      %1999 = vmatprep.subr.bf16.mxu0 0
      %2000 = vmatpush1.bf16.msra.mxu0 %v1790
      %2001 = vmatprep.subr.bf16.mxu0 0
      %2002 = vmatpush1.bf16.msra.mxu0 %v1791
      %2003 = vmatprep.subr.bf16.mxu0 0
      %2004 = vmatpush1.bf16.msra.mxu0 %v1792
      %2005 = vmatprep.subr.bf16.mxu0 0
      %2006 = vmatpush1.bf16.msra.mxu0 %v1793
      %2007 = vmatprep.subr.bf16.mxu0 0
      %2008 = vmatpush1.bf16.msra.mxu0 %v1794
      %2009 = vmatprep.subr.bf16.mxu0 0
      %2010 = vmatpush1.bf16.msra.mxu0 %v1795
      %2011 = vmatprep.subr.bf16.mxu0 0
      %2012 = vmatpush1.bf16.msra.mxu0 %v1796
      %2013 = vmatprep.subr.bf16.mxu0 0
      %2014 = vmatpush1.bf16.msra.mxu0 %v1797
      %2015 = vmatprep.subr.bf16.mxu0 0
      %2016 = vmatpush1.bf16.msra.mxu0 %v1798
      %2017 = vmatprep.mubr.bf16.mxu0 %v1174
      %2018 = vmatmul.mubr.bf16.gmra.mrb[0].mxu0 %v1173
      %v2019 = vpop.f32.mrb[0].mxu0
      %v2020 = vadd.f32 0.0, %v2019
      %v2021 = vpop.f32.mrb[0].mxu0
      %v2022 = vpop.f32.mrb[0].mxu0
      %v2023 = vadd.f32 0.0, %v2022
      %v2024 = vpop.f32.mrb[0].mxu0
      %2025 = vmatprep.mubr.bf16.mxu0 %v1182
      %2026 = vmatmul.mubr.bf16.gmra.mrb[0].mxu0 %v1181
      %v2027 = vpop.f32.mrb[0].mxu0
      %v2028 = vadd.f32 0.0, %v2027
      %v2029 = vpop.f32.mrb[0].mxu0
      %v2030 = vpop.f32.mrb[0].mxu0
      %v2031 = vadd.f32 0.0, %v2030
      %v2032 = vpop.f32.mrb[0].mxu0
      %2033 = vmatprep.mubr.bf16.mxu0 %v1190
      %2034 = vmatmul.mubr.bf16.gmra.mrb[0].mxu0 %v1189
      %v2035 = vpop.f32.mrb[0].mxu0
      %v2036 = vadd.f32 0.0, %v2035
      %v2037 = vpop.f32.mrb[0].mxu0
      %v2038 = vpop.f32.mrb[0].mxu0
      %v2039 = vadd.f32 0.0, %v2038
      %v2040 = vpop.f32.mrb[0].mxu0
      %2041 = vmatprep.mubr.bf16.mxu0 %v1198
      %2042 = vmatmul.mubr.bf16.gmra.mrb[0].mxu0 %v1197
      %v2043 = vpop.f32.mrb[0].mxu0
      %v2044 = vadd.f32 0.0, %v2043
      %v2045 = vpop.f32.mrb[0].mxu0
      %v2046 = vpop.f32.mrb[0].mxu0
      %v2047 = vadd.f32 0.0, %v2046
      %v2048 = vpop.f32.mrb[0].mxu0
      %2049 = vmatprep.mubr.bf16.mxu0 %v1206
      %2050 = vmatmul.mubr.bf16.gmra.mrb[0].mxu0 %v1205
      %v2051 = vpop.f32.mrb[0].mxu0
      %v2052 = vadd.f32 0.0, %v2051
      %v2053 = vpop.f32.mrb[0].mxu0
      %v2054 = vpop.f32.mrb[0].mxu0
      %v2055 = vadd.f32 0.0, %v2054
      %v2056 = vpop.f32.mrb[0].mxu0
      %2057 = vmatprep.mubr.bf16.mxu0 %v1214
      %2058 = vmatmul.mubr.bf16.gmra.mrb[0].mxu0 %v1213
      %v2059 = vpop.f32.mrb[0].mxu0
      %v2060 = vadd.f32 0.0, %v2059
      %v2061 = vpop.f32.mrb[0].mxu0
      %v2062 = vpop.f32.mrb[0].mxu0
      %v2063 = vadd.f32 0.0, %v2062
      %v2064 = vpop.f32.mrb[0].mxu0
      %2065 = vmatprep.mubr.bf16.mxu0 %v1222
      %2066 = vmatmul.mubr.bf16.gmra.mrb[0].mxu0 %v1221
      %v2067 = vpop.f32.mrb[0].mxu0
      %v2068 = vadd.f32 0.0, %v2067
      %v2069 = vpop.f32.mrb[0].mxu0
      %v2070 = vpop.f32.mrb[0].mxu0
      %v2071 = vadd.f32 0.0, %v2070
      %v2072 = vpop.f32.mrb[0].mxu0
      %2073 = vmatprep.mubr.bf16.mxu0 %v1230
      %2074 = vmatmul.mubr.bf16.gmra.mrb[0].mxu0 %v1229
      %v2075 = vpop.f32.mrb[0].mxu0
      %v2076 = vadd.f32 0.0, %v2075
      %v2077 = vpop.f32.mrb[0].mxu0
      %v2078 = vpop.f32.mrb[0].mxu0
      %v2079 = vadd.f32 0.0, %v2078
      %v2080 = vpop.f32.mrb[0].mxu0
      %2081 = vmatprep.mubr.bf16.mxu0 %v1238
      %2082 = vmatmul.mubr.bf16.gmra.mrb[0].mxu0 %v1237
      %v2083 = vpop.f32.mrb[0].mxu0
      %v2084 = vadd.f32 0.0, %v2083
      %v2085 = vpop.f32.mrb[0].mxu0
      %v2086 = vpop.f32.mrb[0].mxu0
      %v2087 = vadd.f32 0.0, %v2086
      %v2088 = vpop.f32.mrb[0].mxu0
      %2089 = vmatprep.mubr.bf16.mxu0 %v1246
      %2090 = vmatmul.mubr.bf16.gmra.mrb[0].mxu0 %v1245
      %v2091 = vpop.f32.mrb[0].mxu0
      %v2092 = vadd.f32 0.0, %v2091
      %v2093 = vpop.f32.mrb[0].mxu0
      %v2094 = vpop.f32.mrb[0].mxu0
      %v2095 = vadd.f32 0.0, %v2094
      %v2096 = vpop.f32.mrb[0].mxu0
      %2097 = vmatprep.mubr.bf16.mxu0 %v1254
      %2098 = vmatmul.mubr.bf16.gmra.mrb[0].mxu0 %v1253
      %v2099 = vpop.f32.mrb[0].mxu0
      %v2100 = vadd.f32 0.0, %v2099
      %v2101 = vpop.f32.mrb[0].mxu0
      %v2102 = vpop.f32.mrb[0].mxu0
      %v2103 = vadd.f32 0.0, %v2102
      %v2104 = vpop.f32.mrb[0].mxu0
      %2105 = vmatprep.mubr.bf16.mxu0 %v1262
      %2106 = vmatmul.mubr.bf16.gmra.mrb[0].mxu0 %v1261
      %v2107 = vpop.f32.mrb[0].mxu0
      %v2108 = vadd.f32 0.0, %v2107
      %v2109 = vpop.f32.mrb[0].mxu0
      %v2110 = vpop.f32.mrb[0].mxu0
      %v2111 = vadd.f32 0.0, %v2110
      %v2112 = vpop.f32.mrb[0].mxu0
      %2113 = vmatprep.mubr.bf16.mxu0 %v1270
      %2114 = vmatmul.mubr.bf16.gmra.mrb[0].mxu0 %v1269
      %v2115 = vpop.f32.mrb[0].mxu0
      %v2116 = vadd.f32 0.0, %v2115
      %v2117 = vpop.f32.mrb[0].mxu0
      %v2118 = vpop.f32.mrb[0].mxu0
      %v2119 = vadd.f32 0.0, %v2118
      %v2120 = vpop.f32.mrb[0].mxu0
      %2121 = vmatprep.mubr.bf16.mxu0 %v1278
      %2122 = vmatmul.mubr.bf16.gmra.mrb[0].mxu0 %v1277
      %v2123 = vpop.f32.mrb[0].mxu0
      %v2124 = vadd.f32 0.0, %v2123
      %v2125 = vpop.f32.mrb[0].mxu0
      %v2126 = vpop.f32.mrb[0].mxu0
      %v2127 = vadd.f32 0.0, %v2126
      %v2128 = vpop.f32.mrb[0].mxu0
      %2129 = vmatprep.mubr.bf16.mxu0 %v1286
      %2130 = vmatmul.mubr.bf16.gmra.mrb[0].mxu0 %v1285
      %v2131 = vpop.f32.mrb[0].mxu0
      %v2132 = vadd.f32 0.0, %v2131
      %v2133 = vpop.f32.mrb[0].mxu0
      %v2134 = vpop.f32.mrb[0].mxu0
      %v2135 = vadd.f32 0.0, %v2134
      %v2136 = vpop.f32.mrb[0].mxu0
      %2137 = vmatprep.mubr.bf16.mxu0 %v1294
      %2138 = vmatmul.mubr.bf16.gmra.mrb[0].mxu0 %v1293
      %v2139 = vpop.f32.mrb[0].mxu0
      %v2140 = vadd.f32 0.0, %v2139
      %v2141 = vpop.f32.mrb[0].mxu0
      %v2142 = vpop.f32.mrb[0].mxu0
      %v2143 = vadd.f32 0.0, %v2142
      %v2144 = vpop.f32.mrb[0].mxu0
      %2145 = vmatprep.mubr.bf16.mxu0 %v1302
      %2146 = vmatmul.mubr.bf16.gmra.mrb[0].mxu0 %v1301
      %v2147 = vpop.f32.mrb[0].mxu0
      %v2148 = vadd.f32 0.0, %v2147
      %v2149 = vpop.f32.mrb[0].mxu0
      %v2150 = vpop.f32.mrb[0].mxu0
      %v2151 = vadd.f32 0.0, %v2150
      %v2152 = vpop.f32.mrb[0].mxu0
      %2153 = vmatprep.mubr.bf16.mxu0 %v1310
      %2154 = vmatmul.mubr.bf16.gmra.mrb[0].mxu0 %v1309
      %v2155 = vpop.f32.mrb[0].mxu0
      %v2156 = vadd.f32 0.0, %v2155
      %v2157 = vpop.f32.mrb[0].mxu0
      %v2158 = vpop.f32.mrb[0].mxu0
      %v2159 = vadd.f32 0.0, %v2158
      %v2160 = vpop.f32.mrb[0].mxu0
      %2161 = vmatprep.mubr.bf16.mxu0 %v1318
      %2162 = vmatmul.mubr.bf16.gmra.mrb[0].mxu0 %v1317
      %v2163 = vpop.f32.mrb[0].mxu0
      %v2164 = vadd.f32 0.0, %v2163
      %v2165 = vpop.f32.mrb[0].mxu0
      %v2166 = vpop.f32.mrb[0].mxu0
      %v2167 = vadd.f32 0.0, %v2166
      %v2168 = vpop.f32.mrb[0].mxu0
      %2169 = vmatprep.mubr.bf16.mxu0 %v1326
      %2170 = vmatmul.mubr.bf16.gmra.mrb[0].mxu0 %v1325
      %v2171 = vpop.f32.mrb[0].mxu0
      %v2172 = vadd.f32 0.0, %v2171
      %v2173 = vpop.f32.mrb[0].mxu0
      %v2174 = vpop.f32.mrb[0].mxu0
      %v2175 = vadd.f32 0.0, %v2174
      %v2176 = vpop.f32.mrb[0].mxu0
      %2177 = vmatprep.mubr.bf16.mxu0 %v1334
      %2178 = vmatmul.mubr.bf16.gmra.mrb[0].mxu0 %v1333
      %v2179 = vpop.f32.mrb[0].mxu0
      %v2180 = vadd.f32 0.0, %v2179
      %v2181 = vpop.f32.mrb[0].mxu0
      %v2182 = vpop.f32.mrb[0].mxu0
      %v2183 = vadd.f32 0.0, %v2182
      %v2184 = vpop.f32.mrb[0].mxu0
      %2185 = vmatprep.mubr.bf16.mxu0 %v1342
      %2186 = vmatmul.mubr.bf16.gmra.mrb[0].mxu0 %v1341
      %v2187 = vpop.f32.mrb[0].mxu0
      %v2188 = vadd.f32 0.0, %v2187
      %v2189 = vpop.f32.mrb[0].mxu0
      %v2190 = vpop.f32.mrb[0].mxu0
      %v2191 = vadd.f32 0.0, %v2190
      %v2192 = vpop.f32.mrb[0].mxu0
      %2193 = vmatprep.mubr.bf16.mxu0 %v1350
      %2194 = vmatmul.mubr.bf16.gmra.mrb[0].mxu0 %v1349
      %v2195 = vpop.f32.mrb[0].mxu0
      %v2196 = vadd.f32 0.0, %v2195
      %v2197 = vpop.f32.mrb[0].mxu0
      %v2198 = vpop.f32.mrb[0].mxu0
      %v2199 = vadd.f32 0.0, %v2198
      %v2200 = vpop.f32.mrb[0].mxu0
      %2201 = vmatprep.mubr.bf16.mxu0 %v1358
      %2202 = vmatmul.mubr.bf16.gmra.mrb[0].mxu0 %v1357
      %v2203 = vpop.f32.mrb[0].mxu0
      %v2204 = vadd.f32 0.0, %v2203
      %v2205 = vpop.f32.mrb[0].mxu0
      %v2206 = vpop.f32.mrb[0].mxu0
      %v2207 = vadd.f32 0.0, %v2206
      %v2208 = vpop.f32.mrb[0].mxu0
      %2209 = vdwg.mxu0
      %2210 = vmatprep.subr.bf16.mxu0 0
      %2211 = vmatpush1.bf16.msra.mxu0 %v1799
      %2212 = vmatprep.subr.bf16.mxu0 0
      %2213 = vmatpush1.bf16.msra.mxu0 %v1800
      %2214 = vmatprep.subr.bf16.mxu0 0
      %2215 = vmatpush1.bf16.msra.mxu0 %v1801
      %2216 = vmatprep.subr.bf16.mxu0 0
      %2217 = vmatpush1.bf16.msra.mxu0 %v1802
      %2218 = vmatprep.subr.bf16.mxu0 0
      %2219 = vmatpush1.bf16.msra.mxu0 %v1803
      %2220 = vmatprep.subr.bf16.mxu0 0
      %2221 = vmatpush1.bf16.msra.mxu0 %v1804
      %2222 = vmatprep.subr.bf16.mxu0 0
      %2223 = vmatpush1.bf16.msra.mxu0 %v1805
      %2224 = vmatprep.subr.bf16.mxu0 0
      %2225 = vmatpush1.bf16.msra.mxu0 %v1806
      %2226 = vmatprep.subr.bf16.mxu0 0
      %2227 = vmatpush1.bf16.msra.mxu0 %v1807
      %2228 = vmatprep.subr.bf16.mxu0 0
      %2229 = vmatpush1.bf16.msra.mxu0 %v1808
      %2230 = vmatprep.subr.bf16.mxu0 0
      %2231 = vmatpush1.bf16.msra.mxu0 %v1809
      %2232 = vmatprep.subr.bf16.mxu0 0
      %2233 = vmatpush1.bf16.msra.mxu0 %v1810
      %2234 = vmatprep.subr.bf16.mxu0 0
      %2235 = vmatpush1.bf16.msra.mxu0 %v1811
      %2236 = vmatprep.subr.bf16.mxu0 0
      %2237 = vmatpush1.bf16.msra.mxu0 %v1812
      %2238 = vmatprep.subr.bf16.mxu0 0
      %2239 = vmatpush1.bf16.msra.mxu0 %v1813
      %2240 = vmatprep.subr.bf16.mxu0 0
      %2241 = vmatpush1.bf16.msra.mxu0 %v1814
      %2242 = vmatprep.mubr.bf16.mxu0 %v1176
      %2243 = vmatmul.mubr.bf16.gmra.mrb[0].mxu0 %v1175
      %v2244 = vpop.f32.mrb[0].mxu0
      %v2245 = vadd.f32 %v2020, %v2244
      %v2246 = vpop.f32.mrb[0].mxu0
      %v2247 = vpop.f32.mrb[0].mxu0
      %v2248 = vadd.f32 %v2023, %v2247
      %v2249 = vpop.f32.mrb[0].mxu0
      %2250 = vmatprep.mubr.bf16.mxu0 %v1184
      %2251 = vmatmul.mubr.bf16.gmra.mrb[0].mxu0 %v1183
      %v2252 = vpop.f32.mrb[0].mxu0
      %v2253 = vadd.f32 %v2028, %v2252
      %v2254 = vpop.f32.mrb[0].mxu0
      %v2255 = vpop.f32.mrb[0].mxu0
      %v2256 = vadd.f32 %v2031, %v2255
      %v2257 = vpop.f32.mrb[0].mxu0
      %2258 = vmatprep.mubr.bf16.mxu0 %v1192
      %2259 = vmatmul.mubr.bf16.gmra.mrb[0].mxu0 %v1191
      %v2260 = vpop.f32.mrb[0].mxu0
      %v2261 = vadd.f32 %v2036, %v2260
      %v2262 = vpop.f32.mrb[0].mxu0
      %v2263 = vpop.f32.mrb[0].mxu0
      %v2264 = vadd.f32 %v2039, %v2263
      %v2265 = vpop.f32.mrb[0].mxu0
      %2266 = vmatprep.mubr.bf16.mxu0 %v1200
      %2267 = vmatmul.mubr.bf16.gmra.mrb[0].mxu0 %v1199
      %v2268 = vpop.f32.mrb[0].mxu0
      %v2269 = vadd.f32 %v2044, %v2268
      %v2270 = vpop.f32.mrb[0].mxu0
      %v2271 = vpop.f32.mrb[0].mxu0
      %v2272 = vadd.f32 %v2047, %v2271
      %v2273 = vpop.f32.mrb[0].mxu0
      %2274 = vmatprep.mubr.bf16.mxu0 %v1208
      %2275 = vmatmul.mubr.bf16.gmra.mrb[0].mxu0 %v1207
      %v2276 = vpop.f32.mrb[0].mxu0
      %v2277 = vadd.f32 %v2052, %v2276
      %v2278 = vpop.f32.mrb[0].mxu0
      %v2279 = vpop.f32.mrb[0].mxu0
      %v2280 = vadd.f32 %v2055, %v2279
      %v2281 = vpop.f32.mrb[0].mxu0
      %2282 = vmatprep.mubr.bf16.mxu0 %v1216
      %2283 = vmatmul.mubr.bf16.gmra.mrb[0].mxu0 %v1215
      %v2284 = vpop.f32.mrb[0].mxu0
      %v2285 = vadd.f32 %v2060, %v2284
      %v2286 = vpop.f32.mrb[0].mxu0
      %v2287 = vpop.f32.mrb[0].mxu0
      %v2288 = vadd.f32 %v2063, %v2287
      %v2289 = vpop.f32.mrb[0].mxu0
      %2290 = vmatprep.mubr.bf16.mxu0 %v1224
      %2291 = vmatmul.mubr.bf16.gmra.mrb[0].mxu0 %v1223
      %v2292 = vpop.f32.mrb[0].mxu0
      %v2293 = vadd.f32 %v2068, %v2292
      %v2294 = vpop.f32.mrb[0].mxu0
      %v2295 = vpop.f32.mrb[0].mxu0
      %v2296 = vadd.f32 %v2071, %v2295
      %v2297 = vpop.f32.mrb[0].mxu0
      %2298 = vmatprep.mubr.bf16.mxu0 %v1232
      %2299 = vmatmul.mubr.bf16.gmra.mrb[0].mxu0 %v1231
      %v2300 = vpop.f32.mrb[0].mxu0
      %v2301 = vadd.f32 %v2076, %v2300
      %v2302 = vpop.f32.mrb[0].mxu0
      %v2303 = vpop.f32.mrb[0].mxu0
      %v2304 = vadd.f32 %v2079, %v2303
      %v2305 = vpop.f32.mrb[0].mxu0
      %2306 = vmatprep.mubr.bf16.mxu0 %v1240
      %2307 = vmatmul.mubr.bf16.gmra.mrb[0].mxu0 %v1239
      %v2308 = vpop.f32.mrb[0].mxu0
      %v2309 = vadd.f32 %v2084, %v2308
      %v2310 = vpop.f32.mrb[0].mxu0
      %v2311 = vpop.f32.mrb[0].mxu0
      %v2312 = vadd.f32 %v2087, %v2311
      %v2313 = vpop.f32.mrb[0].mxu0
      %2314 = vmatprep.mubr.bf16.mxu0 %v1248
      %2315 = vmatmul.mubr.bf16.gmra.mrb[0].mxu0 %v1247
      %v2316 = vpop.f32.mrb[0].mxu0
      %v2317 = vadd.f32 %v2092, %v2316
      %v2318 = vpop.f32.mrb[0].mxu0
      %v2319 = vpop.f32.mrb[0].mxu0
      %v2320 = vadd.f32 %v2095, %v2319
      %v2321 = vpop.f32.mrb[0].mxu0
      %2322 = vmatprep.mubr.bf16.mxu0 %v1256
      %2323 = vmatmul.mubr.bf16.gmra.mrb[0].mxu0 %v1255
      %v2324 = vpop.f32.mrb[0].mxu0
      %v2325 = vadd.f32 %v2100, %v2324
      %v2326 = vpop.f32.mrb[0].mxu0
      %v2327 = vpop.f32.mrb[0].mxu0
      %v2328 = vadd.f32 %v2103, %v2327
      %v2329 = vpop.f32.mrb[0].mxu0
      %2330 = vmatprep.mubr.bf16.mxu0 %v1264
      %2331 = vmatmul.mubr.bf16.gmra.mrb[0].mxu0 %v1263
      %v2332 = vpop.f32.mrb[0].mxu0
      %v2333 = vadd.f32 %v2108, %v2332
      %v2334 = vpop.f32.mrb[0].mxu0
      %v2335 = vpop.f32.mrb[0].mxu0
      %v2336 = vadd.f32 %v2111, %v2335
      %v2337 = vpop.f32.mrb[0].mxu0
      %2338 = vmatprep.mubr.bf16.mxu0 %v1272
      %2339 = vmatmul.mubr.bf16.gmra.mrb[0].mxu0 %v1271
      %v2340 = vpop.f32.mrb[0].mxu0
      %v2341 = vadd.f32 %v2116, %v2340
      %v2342 = vpop.f32.mrb[0].mxu0
      %v2343 = vpop.f32.mrb[0].mxu0
      %v2344 = vadd.f32 %v2119, %v2343
      %v2345 = vpop.f32.mrb[0].mxu0
      %2346 = vmatprep.mubr.bf16.mxu0 %v1280
      %2347 = vmatmul.mubr.bf16.gmra.mrb[0].mxu0 %v1279
      %v2348 = vpop.f32.mrb[0].mxu0
      %v2349 = vadd.f32 %v2124, %v2348
      %v2350 = vpop.f32.mrb[0].mxu0
      %v2351 = vpop.f32.mrb[0].mxu0
      %v2352 = vadd.f32 %v2127, %v2351
      %v2353 = vpop.f32.mrb[0].mxu0
      %2354 = vmatprep.mubr.bf16.mxu0 %v1288
      %2355 = vmatmul.mubr.bf16.gmra.mrb[0].mxu0 %v1287
      %v2356 = vpop.f32.mrb[0].mxu0
      %v2357 = vadd.f32 %v2132, %v2356
      %v2358 = vpop.f32.mrb[0].mxu0
      %v2359 = vpop.f32.mrb[0].mxu0
      %v2360 = vadd.f32 %v2135, %v2359
      %v2361 = vpop.f32.mrb[0].mxu0
      %2362 = vmatprep.mubr.bf16.mxu0 %v1296
      %2363 = vmatmul.mubr.bf16.gmra.mrb[0].mxu0 %v1295
      %v2364 = vpop.f32.mrb[0].mxu0
      %v2365 = vadd.f32 %v2140, %v2364
      %v2366 = vpop.f32.mrb[0].mxu0
      %v2367 = vpop.f32.mrb[0].mxu0
      %v2368 = vadd.f32 %v2143, %v2367
      %v2369 = vpop.f32.mrb[0].mxu0
      %2370 = vmatprep.mubr.bf16.mxu0 %v1304
      %2371 = vmatmul.mubr.bf16.gmra.mrb[0].mxu0 %v1303
      %v2372 = vpop.f32.mrb[0].mxu0
      %v2373 = vadd.f32 %v2148, %v2372
      %v2374 = vpop.f32.mrb[0].mxu0
      %v2375 = vpop.f32.mrb[0].mxu0
      %v2376 = vadd.f32 %v2151, %v2375
      %v2377 = vpop.f32.mrb[0].mxu0
      %2378 = vmatprep.mubr.bf16.mxu0 %v1312
      %2379 = vmatmul.mubr.bf16.gmra.mrb[0].mxu0 %v1311
      %v2380 = vpop.f32.mrb[0].mxu0
      %v2381 = vadd.f32 %v2156, %v2380
      %v2382 = vpop.f32.mrb[0].mxu0
      %v2383 = vpop.f32.mrb[0].mxu0
      %v2384 = vadd.f32 %v2159, %v2383
      %v2385 = vpop.f32.mrb[0].mxu0
      %2386 = vmatprep.mubr.bf16.mxu0 %v1320
      %2387 = vmatmul.mubr.bf16.gmra.mrb[0].mxu0 %v1319
      %v2388 = vpop.f32.mrb[0].mxu0
      %v2389 = vadd.f32 %v2164, %v2388
      %v2390 = vpop.f32.mrb[0].mxu0
      %v2391 = vpop.f32.mrb[0].mxu0
      %v2392 = vadd.f32 %v2167, %v2391
      %v2393 = vpop.f32.mrb[0].mxu0
      %2394 = vmatprep.mubr.bf16.mxu0 %v1328
      %2395 = vmatmul.mubr.bf16.gmra.mrb[0].mxu0 %v1327
      %v2396 = vpop.f32.mrb[0].mxu0
      %v2397 = vadd.f32 %v2172, %v2396
      %v2398 = vpop.f32.mrb[0].mxu0
      %v2399 = vpop.f32.mrb[0].mxu0
      %v2400 = vadd.f32 %v2175, %v2399
      %v2401 = vpop.f32.mrb[0].mxu0
      %2402 = vmatprep.mubr.bf16.mxu0 %v1336
      %2403 = vmatmul.mubr.bf16.gmra.mrb[0].mxu0 %v1335
      %v2404 = vpop.f32.mrb[0].mxu0
      %v2405 = vadd.f32 %v2180, %v2404
      %v2406 = vpop.f32.mrb[0].mxu0
      %v2407 = vpop.f32.mrb[0].mxu0
      %v2408 = vadd.f32 %v2183, %v2407
      %v2409 = vpop.f32.mrb[0].mxu0
      %2410 = vmatprep.mubr.bf16.mxu0 %v1344
      %2411 = vmatmul.mubr.bf16.gmra.mrb[0].mxu0 %v1343
      %v2412 = vpop.f32.mrb[0].mxu0
      %v2413 = vadd.f32 %v2188, %v2412
      %v2414 = vpop.f32.mrb[0].mxu0
      %v2415 = vpop.f32.mrb[0].mxu0
      %v2416 = vadd.f32 %v2191, %v2415
      %v2417 = vpop.f32.mrb[0].mxu0
      %2418 = vmatprep.mubr.bf16.mxu0 %v1352
      %2419 = vmatmul.mubr.bf16.gmra.mrb[0].mxu0 %v1351
      %v2420 = vpop.f32.mrb[0].mxu0
      %v2421 = vadd.f32 %v2196, %v2420
      %v2422 = vpop.f32.mrb[0].mxu0
      %v2423 = vpop.f32.mrb[0].mxu0
      %v2424 = vadd.f32 %v2199, %v2423
      %v2425 = vpop.f32.mrb[0].mxu0
      %2426 = vmatprep.mubr.bf16.mxu0 %v1360
      %2427 = vmatmul.mubr.bf16.gmra.mrb[0].mxu0 %v1359
      %v2428 = vpop.f32.mrb[0].mxu0
      %v2429 = vadd.f32 %v2204, %v2428
      %v2430 = vpop.f32.mrb[0].mxu0
      %v2431 = vpop.f32.mrb[0].mxu0
      %v2432 = vadd.f32 %v2207, %v2431
      %v2433 = vpop.f32.mrb[0].mxu0
      %2434 = vdwg.mxu0
      %2435 = vmatprep.subr.bf16.mxu0 0
      %2436 = vmatpush1.bf16.msra.mxu0 %v1815
      %2437 = vmatprep.subr.bf16.mxu0 0
      %2438 = vmatpush1.bf16.msra.mxu0 %v1816
      %2439 = vmatprep.subr.bf16.mxu0 0
      %2440 = vmatpush1.bf16.msra.mxu0 %v1817
      %2441 = vmatprep.subr.bf16.mxu0 0
      %2442 = vmatpush1.bf16.msra.mxu0 %v1818
      %2443 = vmatprep.subr.bf16.mxu0 0
      %2444 = vmatpush1.bf16.msra.mxu0 %v1819
      %2445 = vmatprep.subr.bf16.mxu0 0
      %2446 = vmatpush1.bf16.msra.mxu0 %v1820
      %2447 = vmatprep.subr.bf16.mxu0 0
      %2448 = vmatpush1.bf16.msra.mxu0 %v1821
      %2449 = vmatprep.subr.bf16.mxu0 0
      %2450 = vmatpush1.bf16.msra.mxu0 %v1822
      %2451 = vmatprep.subr.bf16.mxu0 0
      %2452 = vmatpush1.bf16.msra.mxu0 %v1823
      %2453 = vmatprep.subr.bf16.mxu0 0
      %2454 = vmatpush1.bf16.msra.mxu0 %v1824
      %2455 = vmatprep.subr.bf16.mxu0 0
      %2456 = vmatpush1.bf16.msra.mxu0 %v1825
      %2457 = vmatprep.subr.bf16.mxu0 0
      %2458 = vmatpush1.bf16.msra.mxu0 %v1826
      %2459 = vmatprep.subr.bf16.mxu0 0
      %2460 = vmatpush1.bf16.msra.mxu0 %v1827
      %2461 = vmatprep.subr.bf16.mxu0 0
      %2462 = vmatpush1.bf16.msra.mxu0 %v1828
      %2463 = vmatprep.subr.bf16.mxu0 0
      %2464 = vmatpush1.bf16.msra.mxu0 %v1829
      %2465 = vmatprep.subr.bf16.mxu0 0
      %2466 = vmatpush1.bf16.msra.mxu0 %v1830
      %2467 = vmatprep.mubr.bf16.mxu0 %v1178
      %2468 = vmatmul.mubr.bf16.gmra.mrb[0].mxu0 %v1177
      %v2469 = vpop.f32.mrb[0].mxu0
      %v2470 = vadd.f32 %v2245, %v2469
      %v2471 = vpop.f32.mrb[0].mxu0
      %v2472 = vpop.f32.mrb[0].mxu0
      %v2473 = vadd.f32 %v2248, %v2472
      %v2474 = vpop.f32.mrb[0].mxu0
      %2475 = vmatprep.mubr.bf16.mxu0 %v1186
      %2476 = vmatmul.mubr.bf16.gmra.mrb[0].mxu0 %v1185
      %v2477 = vpop.f32.mrb[0].mxu0
      %v2478 = vadd.f32 %v2253, %v2477
      %v2479 = vpop.f32.mrb[0].mxu0
      %v2480 = vpop.f32.mrb[0].mxu0
      %v2481 = vadd.f32 %v2256, %v2480
      %v2482 = vpop.f32.mrb[0].mxu0
      %2483 = vmatprep.mubr.bf16.mxu0 %v1194
      %2484 = vmatmul.mubr.bf16.gmra.mrb[0].mxu0 %v1193
      %v2485 = vpop.f32.mrb[0].mxu0
      %v2486 = vadd.f32 %v2261, %v2485
      %v2487 = vpop.f32.mrb[0].mxu0
      %v2488 = vpop.f32.mrb[0].mxu0
      %v2489 = vadd.f32 %v2264, %v2488
      %v2490 = vpop.f32.mrb[0].mxu0
      %2491 = vmatprep.mubr.bf16.mxu0 %v1202
      %2492 = vmatmul.mubr.bf16.gmra.mrb[0].mxu0 %v1201
      %v2493 = vpop.f32.mrb[0].mxu0
      %v2494 = vadd.f32 %v2269, %v2493
      %v2495 = vpop.f32.mrb[0].mxu0
      %v2496 = vpop.f32.mrb[0].mxu0
      %v2497 = vadd.f32 %v2272, %v2496
      %v2498 = vpop.f32.mrb[0].mxu0
      %2499 = vmatprep.mubr.bf16.mxu0 %v1210
      %2500 = vmatmul.mubr.bf16.gmra.mrb[0].mxu0 %v1209
      %v2501 = vpop.f32.mrb[0].mxu0
      %v2502 = vadd.f32 %v2277, %v2501
      %v2503 = vpop.f32.mrb[0].mxu0
      %v2504 = vpop.f32.mrb[0].mxu0
      %v2505 = vadd.f32 %v2280, %v2504
      %v2506 = vpop.f32.mrb[0].mxu0
      %2507 = vmatprep.mubr.bf16.mxu0 %v1218
      %2508 = vmatmul.mubr.bf16.gmra.mrb[0].mxu0 %v1217
      %v2509 = vpop.f32.mrb[0].mxu0
      %v2510 = vadd.f32 %v2285, %v2509
      %v2511 = vpop.f32.mrb[0].mxu0
      %v2512 = vpop.f32.mrb[0].mxu0
      %v2513 = vadd.f32 %v2288, %v2512
      %v2514 = vpop.f32.mrb[0].mxu0
      %2515 = vmatprep.mubr.bf16.mxu0 %v1226
      %2516 = vmatmul.mubr.bf16.gmra.mrb[0].mxu0 %v1225
      %v2517 = vpop.f32.mrb[0].mxu0
      %v2518 = vadd.f32 %v2293, %v2517
      %v2519 = vpop.f32.mrb[0].mxu0
      %v2520 = vpop.f32.mrb[0].mxu0
      %v2521 = vadd.f32 %v2296, %v2520
      %v2522 = vpop.f32.mrb[0].mxu0
      %2523 = vmatprep.mubr.bf16.mxu0 %v1234
      %2524 = vmatmul.mubr.bf16.gmra.mrb[0].mxu0 %v1233
      %v2525 = vpop.f32.mrb[0].mxu0
      %v2526 = vadd.f32 %v2301, %v2525
      %v2527 = vpop.f32.mrb[0].mxu0
      %v2528 = vpop.f32.mrb[0].mxu0
      %v2529 = vadd.f32 %v2304, %v2528
      %v2530 = vpop.f32.mrb[0].mxu0
      %2531 = vmatprep.mubr.bf16.mxu0 %v1242
      %2532 = vmatmul.mubr.bf16.gmra.mrb[0].mxu0 %v1241
      %v2533 = vpop.f32.mrb[0].mxu0
      %v2534 = vadd.f32 %v2309, %v2533
      %v2535 = vpop.f32.mrb[0].mxu0
      %v2536 = vpop.f32.mrb[0].mxu0
      %v2537 = vadd.f32 %v2312, %v2536
      %v2538 = vpop.f32.mrb[0].mxu0
      %2539 = vmatprep.mubr.bf16.mxu0 %v1250
      %2540 = vmatmul.mubr.bf16.gmra.mrb[0].mxu0 %v1249
      %v2541 = vpop.f32.mrb[0].mxu0
      %v2542 = vadd.f32 %v2317, %v2541
      %v2543 = vpop.f32.mrb[0].mxu0
      %v2544 = vpop.f32.mrb[0].mxu0
      %v2545 = vadd.f32 %v2320, %v2544
      %v2546 = vpop.f32.mrb[0].mxu0
      %2547 = vmatprep.mubr.bf16.mxu0 %v1258
      %2548 = vmatmul.mubr.bf16.gmra.mrb[0].mxu0 %v1257
      %v2549 = vpop.f32.mrb[0].mxu0
      %v2550 = vadd.f32 %v2325, %v2549
      %v2551 = vpop.f32.mrb[0].mxu0
      %v2552 = vpop.f32.mrb[0].mxu0
      %v2553 = vadd.f32 %v2328, %v2552
      %v2554 = vpop.f32.mrb[0].mxu0
      %2555 = vmatprep.mubr.bf16.mxu0 %v1266
      %2556 = vmatmul.mubr.bf16.gmra.mrb[0].mxu0 %v1265
      %v2557 = vpop.f32.mrb[0].mxu0
      %v2558 = vadd.f32 %v2333, %v2557
      %v2559 = vpop.f32.mrb[0].mxu0
      %v2560 = vpop.f32.mrb[0].mxu0
      %v2561 = vadd.f32 %v2336, %v2560
      %v2562 = vpop.f32.mrb[0].mxu0
      %2563 = vmatprep.mubr.bf16.mxu0 %v1274
      %2564 = vmatmul.mubr.bf16.gmra.mrb[0].mxu0 %v1273
      %v2565 = vpop.f32.mrb[0].mxu0
      %v2566 = vadd.f32 %v2341, %v2565
      %v2567 = vpop.f32.mrb[0].mxu0
      %v2568 = vpop.f32.mrb[0].mxu0
      %v2569 = vadd.f32 %v2344, %v2568
      %v2570 = vpop.f32.mrb[0].mxu0
      %2571 = vmatprep.mubr.bf16.mxu0 %v1282
      %2572 = vmatmul.mubr.bf16.gmra.mrb[0].mxu0 %v1281
      %v2573 = vpop.f32.mrb[0].mxu0
      %v2574 = vadd.f32 %v2349, %v2573
      %v2575 = vpop.f32.mrb[0].mxu0
      %v2576 = vpop.f32.mrb[0].mxu0
      %v2577 = vadd.f32 %v2352, %v2576
      %v2578 = vpop.f32.mrb[0].mxu0
      %2579 = vmatprep.mubr.bf16.mxu0 %v1290
      %2580 = vmatmul.mubr.bf16.gmra.mrb[0].mxu0 %v1289
      %v2581 = vpop.f32.mrb[0].mxu0
      %v2582 = vadd.f32 %v2357, %v2581
      %v2583 = vpop.f32.mrb[0].mxu0
      %v2584 = vpop.f32.mrb[0].mxu0
      %v2585 = vadd.f32 %v2360, %v2584
      %v2586 = vpop.f32.mrb[0].mxu0
      %2587 = vmatprep.mubr.bf16.mxu0 %v1298
      %2588 = vmatmul.mubr.bf16.gmra.mrb[0].mxu0 %v1297
      %v2589 = vpop.f32.mrb[0].mxu0
      %v2590 = vadd.f32 %v2365, %v2589
      %v2591 = vpop.f32.mrb[0].mxu0
      %v2592 = vpop.f32.mrb[0].mxu0
      %v2593 = vadd.f32 %v2368, %v2592
      %v2594 = vpop.f32.mrb[0].mxu0
      %2595 = vmatprep.mubr.bf16.mxu0 %v1306
      %2596 = vmatmul.mubr.bf16.gmra.mrb[0].mxu0 %v1305
      %v2597 = vpop.f32.mrb[0].mxu0
      %v2598 = vadd.f32 %v2373, %v2597
      %v2599 = vpop.f32.mrb[0].mxu0
      %v2600 = vpop.f32.mrb[0].mxu0
      %v2601 = vadd.f32 %v2376, %v2600
      %v2602 = vpop.f32.mrb[0].mxu0
      %2603 = vmatprep.mubr.bf16.mxu0 %v1314
      %2604 = vmatmul.mubr.bf16.gmra.mrb[0].mxu0 %v1313
      %v2605 = vpop.f32.mrb[0].mxu0
      %v2606 = vadd.f32 %v2381, %v2605
      %v2607 = vpop.f32.mrb[0].mxu0
      %v2608 = vpop.f32.mrb[0].mxu0
      %v2609 = vadd.f32 %v2384, %v2608
      %v2610 = vpop.f32.mrb[0].mxu0
      %2611 = vmatprep.mubr.bf16.mxu0 %v1322
      %2612 = vmatmul.mubr.bf16.gmra.mrb[0].mxu0 %v1321
      %v2613 = vpop.f32.mrb[0].mxu0
      %v2614 = vadd.f32 %v2389, %v2613
      %v2615 = vpop.f32.mrb[0].mxu0
      %v2616 = vpop.f32.mrb[0].mxu0
      %v2617 = vadd.f32 %v2392, %v2616
      %v2618 = vpop.f32.mrb[0].mxu0
      %2619 = vmatprep.mubr.bf16.mxu0 %v1330
      %2620 = vmatmul.mubr.bf16.gmra.mrb[0].mxu0 %v1329
      %v2621 = vpop.f32.mrb[0].mxu0
      %v2622 = vadd.f32 %v2397, %v2621
      %v2623 = vpop.f32.mrb[0].mxu0
      %v2624 = vpop.f32.mrb[0].mxu0
      %v2625 = vadd.f32 %v2400, %v2624
      %v2626 = vpop.f32.mrb[0].mxu0
      %2627 = vmatprep.mubr.bf16.mxu0 %v1338
      %2628 = vmatmul.mubr.bf16.gmra.mrb[0].mxu0 %v1337
      %v2629 = vpop.f32.mrb[0].mxu0
      %v2630 = vadd.f32 %v2405, %v2629
      %v2631 = vpop.f32.mrb[0].mxu0
      %v2632 = vpop.f32.mrb[0].mxu0
      %v2633 = vadd.f32 %v2408, %v2632
      %v2634 = vpop.f32.mrb[0].mxu0
      %2635 = vmatprep.mubr.bf16.mxu0 %v1346
      %2636 = vmatmul.mubr.bf16.gmra.mrb[0].mxu0 %v1345
      %v2637 = vpop.f32.mrb[0].mxu0
      %v2638 = vadd.f32 %v2413, %v2637
      %v2639 = vpop.f32.mrb[0].mxu0
      %v2640 = vpop.f32.mrb[0].mxu0
      %v2641 = vadd.f32 %v2416, %v2640
      %v2642 = vpop.f32.mrb[0].mxu0
      %2643 = vmatprep.mubr.bf16.mxu0 %v1354
      %2644 = vmatmul.mubr.bf16.gmra.mrb[0].mxu0 %v1353
      %v2645 = vpop.f32.mrb[0].mxu0
      %v2646 = vadd.f32 %v2421, %v2645
      %v2647 = vpop.f32.mrb[0].mxu0
      %v2648 = vpop.f32.mrb[0].mxu0
      %v2649 = vadd.f32 %v2424, %v2648
      %v2650 = vpop.f32.mrb[0].mxu0
      %2651 = vmatprep.mubr.bf16.mxu0 %v1362
      %2652 = vmatmul.mubr.bf16.gmra.mrb[0].mxu0 %v1361
      %v2653 = vpop.f32.mrb[0].mxu0
      %v2654 = vadd.f32 %v2429, %v2653
      %v2655 = vpop.f32.mrb[0].mxu0
      %v2656 = vpop.f32.mrb[0].mxu0
      %v2657 = vadd.f32 %v2432, %v2656
      %v2658 = vpop.f32.mrb[0].mxu0
      %2659 = vdwg.mxu0
      %2660 = vmatprep.subr.bf16.mxu0 0
      %2661 = vmatpush1.bf16.msra.mxu0 %v1831
      %2662 = vmatprep.subr.bf16.mxu0 0
      %2663 = vmatpush1.bf16.msra.mxu0 %v1832
      %2664 = vmatprep.subr.bf16.mxu0 0
      %2665 = vmatpush1.bf16.msra.mxu0 %v1833
      %2666 = vmatprep.subr.bf16.mxu0 0
      %2667 = vmatpush1.bf16.msra.mxu0 %v1834
      %2668 = vmatprep.subr.bf16.mxu0 0
      %2669 = vmatpush1.bf16.msra.mxu0 %v1835
      %2670 = vmatprep.subr.bf16.mxu0 0
      %2671 = vmatpush1.bf16.msra.mxu0 %v1836
      %2672 = vmatprep.subr.bf16.mxu0 0
      %2673 = vmatpush1.bf16.msra.mxu0 %v1837
      %2674 = vmatprep.subr.bf16.mxu0 0
      %2675 = vmatpush1.bf16.msra.mxu0 %v1838
      %2676 = vmatprep.subr.bf16.mxu0 0
      %2677 = vmatpush1.bf16.msra.mxu0 %v1839
      %2678 = vmatprep.subr.bf16.mxu0 0
      %2679 = vmatpush1.bf16.msra.mxu0 %v1840
      %2680 = vmatprep.subr.bf16.mxu0 0
      %2681 = vmatpush1.bf16.msra.mxu0 %v1841
      %2682 = vmatprep.subr.bf16.mxu0 0
      %2683 = vmatpush1.bf16.msra.mxu0 %v1842
      %2684 = vmatprep.subr.bf16.mxu0 0
      %2685 = vmatpush1.bf16.msra.mxu0 %v1843
      %2686 = vmatprep.subr.bf16.mxu0 0
      %2687 = vmatpush1.bf16.msra.mxu0 %v1844
      %2688 = vmatprep.subr.bf16.mxu0 0
      %2689 = vmatpush1.bf16.msra.mxu0 %v1983
      %2690 = vmatprep.subr.bf16.mxu0 0
      %2691 = vmatpush1.bf16.msra.mxu0 0
      %2692 = vmatprep.mubr.bf16.mxu0 %v1910
      %2693 = vmatmul.mubr.bf16.gmra.mrb[0].mxu0 %v1179
      %v2694 = vpop.f32.mrb[0].mxu0
      %v2695 = vadd.f32 %v2470, %v2694
      %v2696 = vpop.f32.mrb[0].mxu0
      %v2697 = vpop.f32.mrb[0].mxu0
      %v2698 = vadd.f32 %v2473, %v2697
      %v2699 = vpop.f32.mrb[0].mxu0
      %2700 = vmatprep.mubr.bf16.mxu0 %v1913
      %2701 = vmatmul.mubr.bf16.gmra.mrb[0].mxu0 %v1187
      %v2702 = vpop.f32.mrb[0].mxu0
      %v2703 = vadd.f32 %v2478, %v2702
      %v2704 = vpop.f32.mrb[0].mxu0
      %v2705 = vpop.f32.mrb[0].mxu0
      %v2706 = vadd.f32 %v2481, %v2705
      %v2707 = vpop.f32.mrb[0].mxu0
      %2708 = vmatprep.mubr.bf16.mxu0 %v1916
      %2709 = vmatmul.mubr.bf16.gmra.mrb[0].mxu0 %v1195
      %v2710 = vpop.f32.mrb[0].mxu0
      %v2711 = vadd.f32 %v2486, %v2710
      %v2712 = vpop.f32.mrb[0].mxu0
      %v2713 = vpop.f32.mrb[0].mxu0
      %v2714 = vadd.f32 %v2489, %v2713
      %v2715 = vpop.f32.mrb[0].mxu0
      %2716 = vmatprep.mubr.bf16.mxu0 %v1919
      %2717 = vmatmul.mubr.bf16.gmra.mrb[0].mxu0 %v1203
      %v2718 = vpop.f32.mrb[0].mxu0
      %v2719 = vadd.f32 %v2494, %v2718
      %v2720 = vpop.f32.mrb[0].mxu0
      %v2721 = vpop.f32.mrb[0].mxu0
      %v2722 = vadd.f32 %v2497, %v2721
      %v2723 = vpop.f32.mrb[0].mxu0
      %2724 = vmatprep.mubr.bf16.mxu0 %v1922
      %2725 = vmatmul.mubr.bf16.gmra.mrb[0].mxu0 %v1211
      %v2726 = vpop.f32.mrb[0].mxu0
      %v2727 = vadd.f32 %v2502, %v2726
      %v2728 = vpop.f32.mrb[0].mxu0
      %v2729 = vpop.f32.mrb[0].mxu0
      %v2730 = vadd.f32 %v2505, %v2729
      %v2731 = vpop.f32.mrb[0].mxu0
      %2732 = vmatprep.mubr.bf16.mxu0 %v1925
      %2733 = vmatmul.mubr.bf16.gmra.mrb[0].mxu0 %v1219
      %v2734 = vpop.f32.mrb[0].mxu0
      %v2735 = vadd.f32 %v2510, %v2734
      %v2736 = vpop.f32.mrb[0].mxu0
      %v2737 = vpop.f32.mrb[0].mxu0
      %v2738 = vadd.f32 %v2513, %v2737
      %v2739 = vpop.f32.mrb[0].mxu0
      %2740 = vmatprep.mubr.bf16.mxu0 %v1928
      %2741 = vmatmul.mubr.bf16.gmra.mrb[0].mxu0 %v1227
      %v2742 = vpop.f32.mrb[0].mxu0
      %v2743 = vadd.f32 %v2518, %v2742
      %v2744 = vpop.f32.mrb[0].mxu0
      %v2745 = vpop.f32.mrb[0].mxu0
      %v2746 = vadd.f32 %v2521, %v2745
      %v2747 = vpop.f32.mrb[0].mxu0
      %2748 = vmatprep.mubr.bf16.mxu0 %v1931
      %2749 = vmatmul.mubr.bf16.gmra.mrb[0].mxu0 %v1235
      %v2750 = vpop.f32.mrb[0].mxu0
      %v2751 = vadd.f32 %v2526, %v2750
      %v2752 = vpop.f32.mrb[0].mxu0
      %v2753 = vpop.f32.mrb[0].mxu0
      %v2754 = vadd.f32 %v2529, %v2753
      %v2755 = vpop.f32.mrb[0].mxu0
      %2756 = vmatprep.mubr.bf16.mxu0 %v1934
      %2757 = vmatmul.mubr.bf16.gmra.mrb[0].mxu0 %v1243
      %v2758 = vpop.f32.mrb[0].mxu0
      %v2759 = vadd.f32 %v2534, %v2758
      %v2760 = vpop.f32.mrb[0].mxu0
      %v2761 = vpop.f32.mrb[0].mxu0
      %v2762 = vadd.f32 %v2537, %v2761
      %v2763 = vpop.f32.mrb[0].mxu0
      %2764 = vmatprep.mubr.bf16.mxu0 %v1937
      %2765 = vmatmul.mubr.bf16.gmra.mrb[0].mxu0 %v1251
      %v2766 = vpop.f32.mrb[0].mxu0
      %v2767 = vadd.f32 %v2542, %v2766
      %v2768 = vpop.f32.mrb[0].mxu0
      %v2769 = vpop.f32.mrb[0].mxu0
      %v2770 = vadd.f32 %v2545, %v2769
      %v2771 = vpop.f32.mrb[0].mxu0
      %2772 = vmatprep.mubr.bf16.mxu0 %v1940
      %2773 = vmatmul.mubr.bf16.gmra.mrb[0].mxu0 %v1259
      %v2774 = vpop.f32.mrb[0].mxu0
      %v2775 = vadd.f32 %v2550, %v2774
      %v2776 = vpop.f32.mrb[0].mxu0
      %v2777 = vpop.f32.mrb[0].mxu0
      %v2778 = vadd.f32 %v2553, %v2777
      %v2779 = vpop.f32.mrb[0].mxu0
      %2780 = vmatprep.mubr.bf16.mxu0 %v1943
      %2781 = vmatmul.mubr.bf16.gmra.mrb[0].mxu0 %v1267
      %v2782 = vpop.f32.mrb[0].mxu0
      %v2783 = vadd.f32 %v2558, %v2782
      %v2784 = vpop.f32.mrb[0].mxu0
      %v2785 = vpop.f32.mrb[0].mxu0
      %v2786 = vadd.f32 %v2561, %v2785
      %v2787 = vpop.f32.mrb[0].mxu0
      %2788 = vmatprep.mubr.bf16.mxu0 %v1946
      %2789 = vmatmul.mubr.bf16.gmra.mrb[0].mxu0 %v1275
      %v2790 = vpop.f32.mrb[0].mxu0
      %v2791 = vadd.f32 %v2566, %v2790
      %v2792 = vpop.f32.mrb[0].mxu0
      %v2793 = vpop.f32.mrb[0].mxu0
      %v2794 = vadd.f32 %v2569, %v2793
      %v2795 = vpop.f32.mrb[0].mxu0
      %2796 = vmatprep.mubr.bf16.mxu0 %v1949
      %2797 = vmatmul.mubr.bf16.gmra.mrb[0].mxu0 %v1283
      %v2798 = vpop.f32.mrb[0].mxu0
      %v2799 = vadd.f32 %v2574, %v2798
      %v2800 = vpop.f32.mrb[0].mxu0
      %v2801 = vpop.f32.mrb[0].mxu0
      %v2802 = vadd.f32 %v2577, %v2801
      %v2803 = vpop.f32.mrb[0].mxu0
      %2804 = vmatprep.mubr.bf16.mxu0 %v1952
      %2805 = vmatmul.mubr.bf16.gmra.mrb[0].mxu0 %v1291
      %v2806 = vpop.f32.mrb[0].mxu0
      %v2807 = vadd.f32 %v2582, %v2806
      %v2808 = vpop.f32.mrb[0].mxu0
      %v2809 = vpop.f32.mrb[0].mxu0
      %v2810 = vadd.f32 %v2585, %v2809
      %v2811 = vpop.f32.mrb[0].mxu0
      %2812 = vmatprep.mubr.bf16.mxu0 %v1955
      %2813 = vmatmul.mubr.bf16.gmra.mrb[0].mxu0 %v1299
      %v2814 = vpop.f32.mrb[0].mxu0
      %v2815 = vadd.f32 %v2590, %v2814
      %v2816 = vpop.f32.mrb[0].mxu0
      %v2817 = vpop.f32.mrb[0].mxu0
      %v2818 = vadd.f32 %v2593, %v2817
      %v2819 = vpop.f32.mrb[0].mxu0
      %2820 = vmatprep.mubr.bf16.mxu0 %v1958
      %2821 = vmatmul.mubr.bf16.gmra.mrb[0].mxu0 %v1307
      %v2822 = vpop.f32.mrb[0].mxu0
      %v2823 = vadd.f32 %v2598, %v2822
      %v2824 = vpop.f32.mrb[0].mxu0
      %v2825 = vpop.f32.mrb[0].mxu0
      %v2826 = vadd.f32 %v2601, %v2825
      %v2827 = vpop.f32.mrb[0].mxu0
      %2828 = vmatprep.mubr.bf16.mxu0 %v1961
      %2829 = vmatmul.mubr.bf16.gmra.mrb[0].mxu0 %v1315
      %v2830 = vpop.f32.mrb[0].mxu0
      %v2831 = vadd.f32 %v2606, %v2830
      %v2832 = vpop.f32.mrb[0].mxu0
      %v2833 = vpop.f32.mrb[0].mxu0
      %v2834 = vadd.f32 %v2609, %v2833
      %v2835 = vpop.f32.mrb[0].mxu0
      %2836 = vmatprep.mubr.bf16.mxu0 %v1964
      %2837 = vmatmul.mubr.bf16.gmra.mrb[0].mxu0 %v1323
      %v2838 = vpop.f32.mrb[0].mxu0
      %v2839 = vadd.f32 %v2614, %v2838
      %v2840 = vpop.f32.mrb[0].mxu0
      %v2841 = vpop.f32.mrb[0].mxu0
      %v2842 = vadd.f32 %v2617, %v2841
      %v2843 = vpop.f32.mrb[0].mxu0
      %2844 = vmatprep.mubr.bf16.mxu0 %v1967
      %2845 = vmatmul.mubr.bf16.gmra.mrb[0].mxu0 %v1331
      %v2846 = vpop.f32.mrb[0].mxu0
      %v2847 = vadd.f32 %v2622, %v2846
      %v2848 = vpop.f32.mrb[0].mxu0
      %v2849 = vpop.f32.mrb[0].mxu0
      %v2850 = vadd.f32 %v2625, %v2849
      %v2851 = vpop.f32.mrb[0].mxu0
      %2852 = vmatprep.mubr.bf16.mxu0 %v1970
      %2853 = vmatmul.mubr.bf16.gmra.mrb[0].mxu0 %v1339
      %v2854 = vpop.f32.mrb[0].mxu0
      %v2855 = vadd.f32 %v2630, %v2854
      %v2856 = vpop.f32.mrb[0].mxu0
      %v2857 = vpop.f32.mrb[0].mxu0
      %v2858 = vadd.f32 %v2633, %v2857
      %v2859 = vpop.f32.mrb[0].mxu0
      %2860 = vmatprep.mubr.bf16.mxu0 %v1973
      %2861 = vmatmul.mubr.bf16.gmra.mrb[0].mxu0 %v1347
      %v2862 = vpop.f32.mrb[0].mxu0
      %v2863 = vadd.f32 %v2638, %v2862
      %v2864 = vpop.f32.mrb[0].mxu0
      %v2865 = vpop.f32.mrb[0].mxu0
      %v2866 = vadd.f32 %v2641, %v2865
      %v2867 = vpop.f32.mrb[0].mxu0
      %2868 = vmatprep.mubr.bf16.mxu0 %v1976
      %2869 = vmatmul.mubr.bf16.gmra.mrb[0].mxu0 %v1355
      %v2870 = vpop.f32.mrb[0].mxu0
      %v2871 = vadd.f32 %v2646, %v2870
      %v2872 = vpop.f32.mrb[0].mxu0
      %v2873 = vpop.f32.mrb[0].mxu0
      %v2874 = vadd.f32 %v2649, %v2873
      %v2875 = vpop.f32.mrb[0].mxu0
      %2876 = vmatprep.mubr.bf16.mxu0 %v1979
      %2877 = vmatmul.mubr.bf16.gmra.mrb[0].mxu0 %v1363
      %v2878 = vpop.f32.mrb[0].mxu0
      %v2879 = vadd.f32 %v2654, %v2878
      %v2880 = vpop.f32.mrb[0].mxu0
      %v2881 = vpop.f32.mrb[0].mxu0
      %v2882 = vadd.f32 %v2657, %v2881
      %v2883 = vpop.f32.mrb[0].mxu0
      %2884 = vdwg.mxu0
      %v2885 = vlaneseq
      %v2886 = vand.u32 %v2885, 127
      %vm2887 = vcmp.eq.s32.totalorder %v2886, 0
      %2888 = vrot.lane.b32.xlu0 %v2695, 1
      %v2889 = vpop.permute.xlu0 %2888
      %2890 = vrot.lane.b32.xlu0 %v2698, 1
      %v2891 = vpop.permute.xlu0 %2890
      %2892 = vrot.lane.b32.xlu0 %v2703, 1
      %v2893 = vpop.permute.xlu0 %2892
      %2894 = vrot.lane.b32.xlu0 %v2706, 1
      %v2895 = vpop.permute.xlu0 %2894
      %2896 = vrot.lane.b32.xlu0 %v2711, 1
      %v2897 = vpop.permute.xlu0 %2896
      %2898 = vrot.lane.b32.xlu0 %v2714, 1
      %v2899 = vpop.permute.xlu0 %2898
      %2900 = vrot.lane.b32.xlu0 %v2719, 1
      %v2901 = vpop.permute.xlu0 %2900
      %2902 = vrot.lane.b32.xlu0 %v2722, 1
      %v2903 = vpop.permute.xlu0 %2902
      %2904 = vrot.lane.b32.xlu0 %v2727, 1
      %v2905 = vpop.permute.xlu0 %2904
      %2906 = vrot.lane.b32.xlu0 %v2730, 1
      %v2907 = vpop.permute.xlu0 %2906
      %2908 = vrot.lane.b32.xlu0 %v2735, 1
      %v2909 = vpop.permute.xlu0 %2908
      %2910 = vrot.lane.b32.xlu0 %v2738, 1
      %v2911 = vpop.permute.xlu0 %2910
      %2912 = vrot.lane.b32.xlu0 %v2743, 1
      %v2913 = vpop.permute.xlu0 %2912
      %2914 = vrot.lane.b32.xlu0 %v2746, 1
      %v2915 = vpop.permute.xlu0 %2914
      %2916 = vrot.lane.b32.xlu0 %v2751, 1
      %v2917 = vpop.permute.xlu0 %2916
      %2918 = vrot.lane.b32.xlu0 %v2754, 1
      %v2919 = vpop.permute.xlu0 %2918
      %v2920 = vsel %vm2887, 0.0, %v2889
      %v2921 = vsel %vm2887, 0.0, %v2891
      %v2922 = vsel %vm2887, 0.0, %v2893
      %v2923 = vsel %vm2887, 0.0, %v2895
      %v2924 = vsel %vm2887, 0.0, %v2897
      %v2925 = vsel %vm2887, 0.0, %v2899
      %v2926 = vsel %vm2887, 0.0, %v2901
      %v2927 = vsel %vm2887, 0.0, %v2903
      %v2928 = vsel %vm2887, 0.0, %v2905
      %v2929 = vsel %vm2887, 0.0, %v2907
      %v2930 = vsel %vm2887, 0.0, %v2909
      %v2931 = vsel %vm2887, 0.0, %v2911
      %v2932 = vsel %vm2887, 0.0, %v2913
      %v2933 = vsel %vm2887, 0.0, %v2915
      %v2934 = vsel %vm2887, 0.0, %v2917
      %v2935 = vsel %vm2887, 0.0, %v2919
      %vm2936 = vcmp.eq.s32.totalorder %v2886, 127
      %2937 = vrot.lane.b32.xlu0 %v2823, 127
      %v2938 = vpop.permute.xlu0 %2937
      %2939 = vrot.lane.b32.xlu0 %v2826, 127
      %v2940 = vpop.permute.xlu0 %2939
      %2941 = vrot.lane.b32.xlu0 %v2831, 127
      %v2942 = vpop.permute.xlu0 %2941
      %2943 = vrot.lane.b32.xlu0 %v2834, 127
      %v2944 = vpop.permute.xlu0 %2943
      %2945 = vrot.lane.b32.xlu0 %v2839, 127
      %v2946 = vpop.permute.xlu0 %2945
      %2947 = vrot.lane.b32.xlu0 %v2842, 127
      %v2948 = vpop.permute.xlu0 %2947
      %2949 = vrot.lane.b32.xlu0 %v2847, 127
      %v2950 = vpop.permute.xlu0 %2949
      %2951 = vrot.lane.b32.xlu0 %v2850, 127
      %v2952 = vpop.permute.xlu0 %2951
      %2953 = vrot.lane.b32.xlu0 %v2855, 127
      %v2954 = vpop.permute.xlu0 %2953
      %2955 = vrot.lane.b32.xlu0 %v2858, 127
      %v2956 = vpop.permute.xlu0 %2955
      %2957 = vrot.lane.b32.xlu0 %v2863, 127
      %v2958 = vpop.permute.xlu0 %2957
      %2959 = vrot.lane.b32.xlu0 %v2866, 127
      %v2960 = vpop.permute.xlu0 %2959
      %2961 = vrot.lane.b32.xlu0 %v2871, 127
      %v2962 = vpop.permute.xlu0 %2961
      %2963 = vrot.lane.b32.xlu0 %v2874, 127
      %v2964 = vpop.permute.xlu0 %2963
      %2965 = vrot.lane.b32.xlu0 %v2879, 127
      %v2966 = vpop.permute.xlu0 %2965
      %2967 = vrot.lane.b32.xlu0 %v2882, 127
      %v2968 = vpop.permute.xlu0 %2967
      %v2969 = vsel %vm2936, 0.0, %v2938
      %v2970 = vsel %vm2936, 0.0, %v2940
      %v2971 = vsel %vm2936, 0.0, %v2942
      %v2972 = vsel %vm2936, 0.0, %v2944
      %v2973 = vsel %vm2936, 0.0, %v2946
      %v2974 = vsel %vm2936, 0.0, %v2948
      %v2975 = vsel %vm2936, 0.0, %v2950
      %v2976 = vsel %vm2936, 0.0, %v2952
      %v2977 = vsel %vm2936, 0.0, %v2954
      %v2978 = vsel %vm2936, 0.0, %v2956
      %v2979 = vsel %vm2936, 0.0, %v2958
      %v2980 = vsel %vm2936, 0.0, %v2960
      %v2981 = vsel %vm2936, 0.0, %v2962
      %v2982 = vsel %vm2936, 0.0, %v2964
      %v2983 = vsel %vm2936, 0.0, %v2966
      %v2984 = vsel %vm2936, 0.0, %v2968
      %v2985 = vadd.f32 %v2920, %v2759
      %v2986 = vadd.f32 %v2921, %v2762
      %v2987 = vadd.f32 %v2922, %v2767
      %v2988 = vadd.f32 %v2923, %v2770
      %v2989 = vadd.f32 %v2924, %v2775
      %v2990 = vadd.f32 %v2925, %v2778
      %v2991 = vadd.f32 %v2926, %v2783
      %v2992 = vadd.f32 %v2927, %v2786
      %v2993 = vadd.f32 %v2928, %v2791
      %v2994 = vadd.f32 %v2929, %v2794
      %v2995 = vadd.f32 %v2930, %v2799
      %v2996 = vadd.f32 %v2931, %v2802
      %v2997 = vadd.f32 %v2932, %v2807
      %v2998 = vadd.f32 %v2933, %v2810
      %v2999 = vadd.f32 %v2934, %v2815
      %v3000 = vadd.f32 %v2935, %v2818
      %v3001 = vadd.f32 %v2985, %v2969
      %v3002 = vadd.f32 %v2986, %v2970
      %v3003 = vadd.f32 %v2987, %v2971
      %v3004 = vadd.f32 %v2988, %v2972
      %v3005 = vadd.f32 %v2989, %v2973
      %v3006 = vadd.f32 %v2990, %v2974
      %v3007 = vadd.f32 %v2991, %v2975
      %v3008 = vadd.f32 %v2992, %v2976
      %v3009 = vadd.f32 %v2993, %v2977
      %v3010 = vadd.f32 %v2994, %v2978
      %v3011 = vadd.f32 %v2995, %v2979
      %v3012 = vadd.f32 %v2996, %v2980
      %v3013 = vadd.f32 %v2997, %v2981
      %v3014 = vadd.f32 %v2998, %v2982
      %v3015 = vadd.f32 %v2999, %v2983
      %v3016 = vadd.f32 %v3000, %v2984
      %v3017 = vld [vmem:[%s2] sm:$0xff]
      %v3018 = vld [vmem:[%s2 + $0x8] sm:$0xff]
      %v3019 = vld [vmem:[%s2 + $0x10] sm:$0xff]
      %v3020 = vld [vmem:[%s2 + $0x18] sm:$0xff]
      %v3021 = vld [vmem:[%s2 + $0x20] sm:$0xff]
      %v3022 = vld [vmem:[%s2 + $0x28] sm:$0xff]
      %v3023 = vld [vmem:[%s2 + $0x30] sm:$0xff]
      %v3024 = vld [vmem:[%s2 + $0x38] sm:$0xff]
      %v3025 = vld [vmem:[%s2 + $0x40] sm:$0xff]
      %v3026 = vld [vmem:[%s2 + $0x48] sm:$0xff]
      %v3027 = vld [vmem:[%s2 + $0x50] sm:$0xff]
      %v3028 = vld [vmem:[%s2 + $0x58] sm:$0xff]
      %v3029 = vld [vmem:[%s2 + $0x60] sm:$0xff]
      %v3030 = vld [vmem:[%s2 + $0x68] sm:$0xff]
      %v3031 = vld [vmem:[%s2 + $0x70] sm:$0xff]
      %v3032 = vld [vmem:[%s2 + $0x78] sm:$0xff]
      %3034 = vset.pattern.permute.xlu0 0
      %3035 = vperm.xlu0 %3034, %v3017
      %v3036 = vpop.permute.xlu0 %3035
      %3039 = vset.pattern.permute.xlu0 0
      %3040 = vperm.xlu0 %3039, %v3018
      %v3041 = vpop.permute.xlu0 %3040
      %3044 = vset.pattern.permute.xlu0 0
      %3045 = vperm.xlu0 %3044, %v3019
      %v3046 = vpop.permute.xlu0 %3045
      %3049 = vset.pattern.permute.xlu0 0
      %3050 = vperm.xlu0 %3049, %v3020
      %v3051 = vpop.permute.xlu0 %3050
      %3054 = vset.pattern.permute.xlu0 0
      %3055 = vperm.xlu0 %3054, %v3021
      %v3056 = vpop.permute.xlu0 %3055
      %3059 = vset.pattern.permute.xlu0 0
      %3060 = vperm.xlu0 %3059, %v3022
      %v3061 = vpop.permute.xlu0 %3060
      %3064 = vset.pattern.permute.xlu0 0
      %3065 = vperm.xlu0 %3064, %v3023
      %v3066 = vpop.permute.xlu0 %3065
      %3069 = vset.pattern.permute.xlu0 0
      %3070 = vperm.xlu0 %3069, %v3024
      %v3071 = vpop.permute.xlu0 %3070
      %3074 = vset.pattern.permute.xlu0 0
      %3075 = vperm.xlu0 %3074, %v3025
      %v3076 = vpop.permute.xlu0 %3075
      %3079 = vset.pattern.permute.xlu0 0
      %3080 = vperm.xlu0 %3079, %v3026
      %v3081 = vpop.permute.xlu0 %3080
      %3084 = vset.pattern.permute.xlu0 0
      %3085 = vperm.xlu0 %3084, %v3027
      %v3086 = vpop.permute.xlu0 %3085
      %3089 = vset.pattern.permute.xlu0 0
      %3090 = vperm.xlu0 %3089, %v3028
      %v3091 = vpop.permute.xlu0 %3090
      %3094 = vset.pattern.permute.xlu0 0
      %3095 = vperm.xlu0 %3094, %v3029
      %v3096 = vpop.permute.xlu0 %3095
      %3099 = vset.pattern.permute.xlu0 0
      %3100 = vperm.xlu0 %3099, %v3030
      %v3101 = vpop.permute.xlu0 %3100
      %3104 = vset.pattern.permute.xlu0 0
      %3105 = vperm.xlu0 %3104, %v3031
      %v3106 = vpop.permute.xlu0 %3105
      %3109 = vset.pattern.permute.xlu0 0
      %3110 = vperm.xlu0 %3109, %v3032
      %v3111 = vpop.permute.xlu0 %3110
      %v3113 = vadd.f32 %v3001, %v3036
      %v3114 = vadd.f32 %v3002, %v3041
      %v3115 = vadd.f32 %v3003, %v3046
      %v3116 = vadd.f32 %v3004, %v3051
      %v3117 = vadd.f32 %v3005, %v3056
      %v3118 = vadd.f32 %v3006, %v3061
      %v3119 = vadd.f32 %v3007, %v3066
      %v3120 = vadd.f32 %v3008, %v3071
      %v3121 = vadd.f32 %v3009, %v3076
      %v3122 = vadd.f32 %v3010, %v3081
      %v3123 = vadd.f32 %v3011, %v3086
      %v3124 = vadd.f32 %v3012, %v3091
      %v3125 = vadd.f32 %v3013, %v3096
      %v3126 = vadd.f32 %v3014, %v3101
      %v3127 = vadd.f32 %v3015, %v3106
      %v3128 = vadd.f32 %v3016, %v3111
      %v3129 = vmax.f32 %v3113, 0.0
      %v3130 = vmax.f32 %v3114, 0.0
      %v3131 = vmax.f32 %v3115, 0.0
      %v3132 = vmax.f32 %v3116, 0.0
      %v3133 = vmax.f32 %v3117, 0.0
      %v3134 = vmax.f32 %v3118, 0.0
      %v3135 = vmax.f32 %v3119, 0.0
      %v3136 = vmax.f32 %v3120, 0.0
      %v3137 = vmax.f32 %v3121, 0.0
      %v3138 = vmax.f32 %v3122, 0.0
      %v3139 = vmax.f32 %v3123, 0.0
      %v3140 = vmax.f32 %v3124, 0.0
      %v3141 = vmax.f32 %v3125, 0.0
      %v3142 = vmax.f32 %v3126, 0.0
      %v3143 = vmax.f32 %v3127, 0.0
      %v3144 = vmax.f32 %v3128, 0.0
      %v3145 = vpack.c.bf16 %v3130, %v3129
      %v3146 = vpack.c.bf16 %v3132, %v3131
      %v3147 = vpack.c.bf16 %v3134, %v3133
      %v3148 = vpack.c.bf16 %v3136, %v3135
      %v3149 = vpack.c.bf16 %v3138, %v3137
      %v3150 = vpack.c.bf16 %v3140, %v3139
      %v3151 = vpack.c.bf16 %v3142, %v3141
      %v3152 = vpack.c.bf16 %v3144, %v3143
      %v3153 = vld [vmem:[%s3] sm:$0xf]
      %v3154 = vld [vmem:[%s3 + $0x4] sm:$0xf]
      %v3155 = vld [vmem:[%s3 + $0x8] sm:$0xf]
      %v3156 = vld [vmem:[%s3 + $0xc] sm:$0xf]
      %v3157 = vld [vmem:[%s3 + $0x10] sm:$0xf]
      %v3158 = vld [vmem:[%s3 + $0x14] sm:$0xf]
      %v3159 = vld [vmem:[%s3 + $0x18] sm:$0xf]
      %v3160 = vld [vmem:[%s3 + $0x1c] sm:$0xf]
      %v3161 = vld [vmem:[%s3 + $0x20] sm:$0xf]
      %v3162 = vld [vmem:[%s3 + $0x24] sm:$0xf]
      %v3163 = vld [vmem:[%s3 + $0x28] sm:$0xf]
      %v3164 = vld [vmem:[%s3 + $0x2c] sm:$0xf]
      %v3165 = vld [vmem:[%s3 + $0x30] sm:$0xf]
      %v3166 = vld [vmem:[%s3 + $0x34] sm:$0xf]
      %v3167 = vld [vmem:[%s3 + $0x38] sm:$0xf]
      %v3168 = vld [vmem:[%s3 + $0x3c] sm:$0xf]
      %v3169 = vld [vmem:[%s3 + $0x40] sm:$0xf]
      %v3170 = vld [vmem:[%s3 + $0x44] sm:$0xf]
      %v3171 = vld [vmem:[%s3 + $0x48] sm:$0xf]
      %v3172 = vld [vmem:[%s3 + $0x4c] sm:$0xf]
      %v3173 = vld [vmem:[%s3 + $0x50] sm:$0xf]
      %v3174 = vld [vmem:[%s3 + $0x54] sm:$0xf]
      %v3175 = vld [vmem:[%s3 + $0x58] sm:$0xf]
      %v3176 = vld [vmem:[%s3 + $0x5c] sm:$0xf]
      %v3201 = vunpack.c.l.b16 %v3153
      %v3202 = vunpack.c.l.b16 %v3154
      %v3203 = vunpack.c.l.b16 %v3155
      %v3204 = vunpack.c.l.b16 %v3156
      %v3205 = vunpack.c.l.b16 %v3157
      %v3206 = vunpack.c.l.b16 %v3158
      %v3207 = vunpack.c.l.b16 %v3159
      %v3208 = vunpack.c.l.b16 %v3160
      %v3209 = vunpack.c.l.b16 %v3161
      %v3210 = vunpack.c.l.b16 %v3162
      %v3211 = vunpack.c.l.b16 %v3163
      %v3212 = vunpack.c.l.b16 %v3164
      %v3213 = vunpack.c.l.b16 %v3165
      %v3214 = vunpack.c.l.b16 %v3166
      %v3215 = vunpack.c.l.b16 %v3167
      %v3216 = vunpack.c.l.b16 %v3168
      %v3217 = vunpack.c.l.b16 %v3169
      %v3218 = vunpack.c.l.b16 %v3170
      %v3219 = vunpack.c.l.b16 %v3171
      %v3220 = vunpack.c.l.b16 %v3172
      %v3221 = vunpack.c.l.b16 %v3173
      %v3222 = vunpack.c.l.b16 %v3174
      %v3223 = vunpack.c.l.b16 %v3175
      %v3224 = vunpack.c.l.b16 %v3176
      %v3225 = vpack.c.b16 %v3202, %v3201
      %v3226 = vpack.c.b16 %v3204, %v3203
      %v3227 = vpack.c.b16 %v3206, %v3205
      %v3228 = vpack.c.b16 %v3208, %v3207
      %v3229 = vpack.c.b16 %v3210, %v3209
      %v3230 = vpack.c.b16 %v3212, %v3211
      %v3231 = vpack.c.b16 %v3214, %v3213
      %v3232 = vpack.c.b16 %v3216, %v3215
      %v3233 = vpack.c.b16 %v3218, %v3217
      %v3234 = vpack.c.b16 %v3220, %v3219
      %v3235 = vpack.c.b16 %v3222, %v3221
      %v3236 = vpack.c.b16 %v3224, %v3223
      %3249 = vmatprep.subr.bf16.mxu0 0
      %3250 = vmatpush1.bf16.msra.mxu0 %v3145
      %3251 = vmatprep.subr.bf16.mxu0 0
      %3252 = vmatpush1.bf16.msra.mxu0 %v3146
      %3253 = vmatprep.subr.bf16.mxu0 0
      %3254 = vmatpush1.bf16.msra.mxu0 %v3147
      %3255 = vmatprep.subr.bf16.mxu0 0
      %3256 = vmatpush1.bf16.msra.mxu0 %v3148
      %3257 = vmatprep.subr.bf16.mxu0 0
      %3258 = vmatpush1.bf16.msra.mxu0 %v3149
      %3259 = vmatprep.subr.bf16.mxu0 0
      %3260 = vmatpush1.bf16.msra.mxu0 %v3150
      %3261 = vmatprep.subr.bf16.mxu0 0
      %3262 = vmatpush1.bf16.msra.mxu0 %v3151
      %3263 = vmatprep.subr.bf16.mxu0 0
      %3264 = vmatpush1.bf16.msra.mxu0 %v3152
      %3265 = vmatprep.subr.bf16.mxu0 0
      %3266 = vmatpush1.bf16.msra.mxu0 0
      %3267 = vmatprep.subr.bf16.mxu0 0
      %3268 = vmatpush1.bf16.msra.mxu0 0
      %3269 = vmatprep.subr.bf16.mxu0 0
      %3270 = vmatpush1.bf16.msra.mxu0 0
      %3271 = vmatprep.subr.bf16.mxu0 0
      %3272 = vmatpush1.bf16.msra.mxu0 0
      %3273 = vmatprep.subr.bf16.mxu0 0
      %3274 = vmatpush1.bf16.msra.mxu0 0
      %3275 = vmatprep.subr.bf16.mxu0 0
      %3276 = vmatpush1.bf16.msra.mxu0 0
      %3277 = vmatprep.subr.bf16.mxu0 0
      %3278 = vmatpush1.bf16.msra.mxu0 0
      %3279 = vmatprep.subr.bf16.mxu0 0
      %3280 = vmatpush1.bf16.msra.mxu0 0
      %3281 = vmatprep.mubr.bf16.mxu0 0
      %3282 = vmatmul.mubr.bf16.gmra.mrb[0].mxu0 %v3225
      %v3283 = vpop.f32.mrb[0].mxu0
      %v3284 = vadd.f32 0.0, %v3283
      %v3285 = vpop.f32.mrb[0].mxu0
      %v3286 = vpop.f32.mrb[0].mxu0
      %v3287 = vadd.f32 0.0, %v3286
      %v3288 = vpop.f32.mrb[0].mxu0
      %3289 = vmatprep.mubr.bf16.mxu0 0
      %3290 = vmatmul.mubr.bf16.gmra.mrb[0].mxu0 %v3226
      %v3291 = vpop.f32.mrb[0].mxu0
      %v3292 = vadd.f32 0.0, %v3291
      %v3293 = vpop.f32.mrb[0].mxu0
      %v3294 = vpop.f32.mrb[0].mxu0
      %v3295 = vadd.f32 0.0, %v3294
      %v3296 = vpop.f32.mrb[0].mxu0
      %3297 = vmatprep.mubr.bf16.mxu0 0
      %3298 = vmatmul.mubr.bf16.gmra.mrb[0].mxu0 %v3227
      %v3299 = vpop.f32.mrb[0].mxu0
      %v3300 = vadd.f32 0.0, %v3299
      %v3301 = vpop.f32.mrb[0].mxu0
      %v3302 = vpop.f32.mrb[0].mxu0
      %v3303 = vadd.f32 0.0, %v3302
      %v3304 = vpop.f32.mrb[0].mxu0
      %3305 = vmatprep.mubr.bf16.mxu0 0
      %3306 = vmatmul.mubr.bf16.gmra.mrb[0].mxu0 %v3228
      %v3307 = vpop.f32.mrb[0].mxu0
      %v3308 = vadd.f32 0.0, %v3307
      %v3309 = vpop.f32.mrb[0].mxu0
      %v3310 = vpop.f32.mrb[0].mxu0
      %v3311 = vadd.f32 0.0, %v3310
      %v3312 = vpop.f32.mrb[0].mxu0
      %3313 = vmatprep.mubr.bf16.mxu0 0
      %3314 = vmatmul.mubr.bf16.gmra.mrb[0].mxu0 %v3229
      %v3315 = vpop.f32.mrb[0].mxu0
      %v3316 = vadd.f32 0.0, %v3315
      %v3317 = vpop.f32.mrb[0].mxu0
      %v3318 = vpop.f32.mrb[0].mxu0
      %v3319 = vadd.f32 0.0, %v3318
      %v3320 = vpop.f32.mrb[0].mxu0
      %3321 = vmatprep.mubr.bf16.mxu0 0
      %3322 = vmatmul.mubr.bf16.gmra.mrb[0].mxu0 %v3230
      %v3323 = vpop.f32.mrb[0].mxu0
      %v3324 = vadd.f32 0.0, %v3323
      %v3325 = vpop.f32.mrb[0].mxu0
      %v3326 = vpop.f32.mrb[0].mxu0
      %v3327 = vadd.f32 0.0, %v3326
      %v3328 = vpop.f32.mrb[0].mxu0
      %3329 = vmatprep.mubr.bf16.mxu0 0
      %3330 = vmatmul.mubr.bf16.gmra.mrb[0].mxu0 %v3231
      %v3331 = vpop.f32.mrb[0].mxu0
      %v3332 = vadd.f32 0.0, %v3331
      %v3333 = vpop.f32.mrb[0].mxu0
      %v3334 = vpop.f32.mrb[0].mxu0
      %v3335 = vadd.f32 0.0, %v3334
      %v3336 = vpop.f32.mrb[0].mxu0
      %3337 = vmatprep.mubr.bf16.mxu0 0
      %3338 = vmatmul.mubr.bf16.gmra.mrb[0].mxu0 %v3232
      %v3339 = vpop.f32.mrb[0].mxu0
      %v3340 = vadd.f32 0.0, %v3339
      %v3341 = vpop.f32.mrb[0].mxu0
      %v3342 = vpop.f32.mrb[0].mxu0
      %v3343 = vadd.f32 0.0, %v3342
      %v3344 = vpop.f32.mrb[0].mxu0
      %3345 = vmatprep.mubr.bf16.mxu0 0
      %3346 = vmatmul.mubr.bf16.gmra.mrb[0].mxu0 %v3233
      %v3347 = vpop.f32.mrb[0].mxu0
      %v3348 = vadd.f32 0.0, %v3347
      %v3349 = vpop.f32.mrb[0].mxu0
      %v3350 = vpop.f32.mrb[0].mxu0
      %v3351 = vadd.f32 0.0, %v3350
      %v3352 = vpop.f32.mrb[0].mxu0
      %3353 = vmatprep.mubr.bf16.mxu0 0
      %3354 = vmatmul.mubr.bf16.gmra.mrb[0].mxu0 %v3234
      %v3355 = vpop.f32.mrb[0].mxu0
      %v3356 = vadd.f32 0.0, %v3355
      %v3357 = vpop.f32.mrb[0].mxu0
      %v3358 = vpop.f32.mrb[0].mxu0
      %v3359 = vadd.f32 0.0, %v3358
      %v3360 = vpop.f32.mrb[0].mxu0
      %3361 = vmatprep.mubr.bf16.mxu0 0
      %3362 = vmatmul.mubr.bf16.gmra.mrb[0].mxu0 %v3235
      %v3363 = vpop.f32.mrb[0].mxu0
      %v3364 = vadd.f32 0.0, %v3363
      %v3365 = vpop.f32.mrb[0].mxu0
      %v3366 = vpop.f32.mrb[0].mxu0
      %v3367 = vadd.f32 0.0, %v3366
      %v3368 = vpop.f32.mrb[0].mxu0
      %3369 = vmatprep.mubr.bf16.mxu0 0
      %3370 = vmatmul.mubr.bf16.gmra.mrb[0].mxu0 %v3236
      %v3371 = vpop.f32.mrb[0].mxu0
      %v3372 = vadd.f32 0.0, %v3371
      %v3373 = vpop.f32.mrb[0].mxu0
      %v3374 = vpop.f32.mrb[0].mxu0
      %v3375 = vadd.f32 0.0, %v3374
      %v3376 = vpop.f32.mrb[0].mxu0
      %3377 = vdwg.mxu0
      %3378 = vrot.lane.b32.xlu0 %v3284, 1
      %v3379 = vpop.permute.xlu0 %3378
      %3380 = vrot.lane.b32.xlu0 %v3287, 1
      %v3381 = vpop.permute.xlu0 %3380
      %3382 = vrot.lane.b32.xlu0 %v3292, 1
      %v3383 = vpop.permute.xlu0 %3382
      %3384 = vrot.lane.b32.xlu0 %v3295, 1
      %v3385 = vpop.permute.xlu0 %3384
      %3386 = vrot.lane.b32.xlu0 %v3300, 1
      %v3387 = vpop.permute.xlu0 %3386
      %3388 = vrot.lane.b32.xlu0 %v3303, 1
      %v3389 = vpop.permute.xlu0 %3388
      %3390 = vrot.lane.b32.xlu0 %v3308, 1
      %v3391 = vpop.permute.xlu0 %3390
      %3392 = vrot.lane.b32.xlu0 %v3311, 1
      %v3393 = vpop.permute.xlu0 %3392
      %v3394 = vsel %vm2887, 0.0, %v3379
      %v3395 = vsel %vm2887, 0.0, %v3381
      %v3396 = vsel %vm2887, 0.0, %v3383
      %v3397 = vsel %vm2887, 0.0, %v3385
      %v3398 = vsel %vm2887, 0.0, %v3387
      %v3399 = vsel %vm2887, 0.0, %v3389
      %v3400 = vsel %vm2887, 0.0, %v3391
      %v3401 = vsel %vm2887, 0.0, %v3393
      %3402 = vrot.lane.b32.xlu0 %v3348, 127
      %v3403 = vpop.permute.xlu0 %3402
      %3404 = vrot.lane.b32.xlu0 %v3351, 127
      %v3405 = vpop.permute.xlu0 %3404
      %3406 = vrot.lane.b32.xlu0 %v3356, 127
      %v3407 = vpop.permute.xlu0 %3406
      %3408 = vrot.lane.b32.xlu0 %v3359, 127
      %v3409 = vpop.permute.xlu0 %3408
      %3410 = vrot.lane.b32.xlu0 %v3364, 127
      %v3411 = vpop.permute.xlu0 %3410
      %3412 = vrot.lane.b32.xlu0 %v3367, 127
      %v3413 = vpop.permute.xlu0 %3412
      %3414 = vrot.lane.b32.xlu0 %v3372, 127
      %v3415 = vpop.permute.xlu0 %3414
      %3416 = vrot.lane.b32.xlu0 %v3375, 127
      %v3417 = vpop.permute.xlu0 %3416
      %v3418 = vsel %vm2936, 0.0, %v3403
      %v3419 = vsel %vm2936, 0.0, %v3405
      %v3420 = vsel %vm2936, 0.0, %v3407
      %v3421 = vsel %vm2936, 0.0, %v3409
      %v3422 = vsel %vm2936, 0.0, %v3411
      %v3423 = vsel %vm2936, 0.0, %v3413
      %v3424 = vsel %vm2936, 0.0, %v3415
      %v3425 = vsel %vm2936, 0.0, %v3417
      %v3426 = vadd.f32 %v3394, %v3316
      %v3427 = vadd.f32 %v3395, %v3319
      %v3428 = vadd.f32 %v3396, %v3324
      %v3429 = vadd.f32 %v3397, %v3327
      %v3430 = vadd.f32 %v3398, %v3332
      %v3431 = vadd.f32 %v3399, %v3335
      %v3432 = vadd.f32 %v3400, %v3340
      %v3433 = vadd.f32 %v3401, %v3343
      %v3434 = vadd.f32 %v3426, %v3418
      %v3435 = vadd.f32 %v3427, %v3419
      %v3436 = vadd.f32 %v3428, %v3420
      %v3437 = vadd.f32 %v3429, %v3421
      %v3438 = vadd.f32 %v3430, %v3422
      %v3439 = vadd.f32 %v3431, %v3423
      %v3440 = vadd.f32 %v3432, %v3424
      %v3441 = vadd.f32 %v3433, %v3425
      %v3442 = vld [vmem:[%s4] sm:$0xff]
      %v3443 = vld [vmem:[%s4 + $0x8] sm:$0xff]
      %v3444 = vld [vmem:[%s4 + $0x10] sm:$0xff]
      %v3445 = vld [vmem:[%s4 + $0x18] sm:$0xff]
      %v3446 = vld [vmem:[%s4 + $0x20] sm:$0xff]
      %v3447 = vld [vmem:[%s4 + $0x28] sm:$0xff]
      %v3448 = vld [vmem:[%s4 + $0x30] sm:$0xff]
      %v3449 = vld [vmem:[%s4 + $0x38] sm:$0xff]
      %3451 = vset.pattern.permute.xlu0 0
      %3452 = vperm.xlu0 %3451, %v3442
      %v3453 = vpop.permute.xlu0 %3452
      %3456 = vset.pattern.permute.xlu0 0
      %3457 = vperm.xlu0 %3456, %v3443
      %v3458 = vpop.permute.xlu0 %3457
      %3461 = vset.pattern.permute.xlu0 0
      %3462 = vperm.xlu0 %3461, %v3444
      %v3463 = vpop.permute.xlu0 %3462
      %3466 = vset.pattern.permute.xlu0 0
      %3467 = vperm.xlu0 %3466, %v3445
      %v3468 = vpop.permute.xlu0 %3467
      %3471 = vset.pattern.permute.xlu0 0
      %3472 = vperm.xlu0 %3471, %v3446
      %v3473 = vpop.permute.xlu0 %3472
      %3476 = vset.pattern.permute.xlu0 0
      %3477 = vperm.xlu0 %3476, %v3447
      %v3478 = vpop.permute.xlu0 %3477
      %3481 = vset.pattern.permute.xlu0 0
      %3482 = vperm.xlu0 %3481, %v3448
      %v3483 = vpop.permute.xlu0 %3482
      %3486 = vset.pattern.permute.xlu0 0
      %3487 = vperm.xlu0 %3486, %v3449
      %v3488 = vpop.permute.xlu0 %3487
      %v3490 = vadd.f32 %v3434, %v3453
      %v3491 = vadd.f32 %v3435, %v3458
      %v3492 = vadd.f32 %v3436, %v3463
      %v3493 = vadd.f32 %v3437, %v3468
      %v3494 = vadd.f32 %v3438, %v3473
      %v3495 = vadd.f32 %v3439, %v3478
      %v3496 = vadd.f32 %v3440, %v3483
      %v3497 = vadd.f32 %v3441, %v3488
      %v3498 = vmax.f32 %v3490, 0.0
      %v3499 = vmax.f32 %v3491, 0.0
      %v3500 = vmax.f32 %v3492, 0.0
      %v3501 = vmax.f32 %v3493, 0.0
      %v3502 = vmax.f32 %v3494, 0.0
      %v3503 = vmax.f32 %v3495, 0.0
      %v3504 = vmax.f32 %v3496, 0.0
      %v3505 = vmax.f32 %v3497, 0.0
      %v3506 = vpack.c.bf16 %v3499, %v3498
      %v3507 = vpack.c.bf16 %v3501, %v3500
      %v3508 = vpack.c.bf16 %v3503, %v3502
      %v3509 = vpack.c.bf16 %v3505, %v3504
      %v3510 = vld [vmem:[%s5] sm:$0xf]
      %v3511 = vld [vmem:[%s5 + $0x4] sm:$0xf]
      %v3512 = vld [vmem:[%s5 + $0x8] sm:$0xf]
      %v3513 = vld [vmem:[%s5 + $0xc] sm:$0xf]
      %v3514 = vld [vmem:[%s5 + $0x10] sm:$0xf]
      %v3515 = vld [vmem:[%s5 + $0x14] sm:$0xf]
      %v3516 = vld [vmem:[%s5 + $0x18] sm:$0xf]
      %v3517 = vld [vmem:[%s5 + $0x1c] sm:$0xf]
      %v3518 = vld [vmem:[%s5 + $0x20] sm:$0xf]
      %v3519 = vld [vmem:[%s5 + $0x24] sm:$0xf]
      %v3520 = vld [vmem:[%s5 + $0x28] sm:$0xf]
      %v3521 = vld [vmem:[%s5 + $0x2c] sm:$0xf]
      %v3534 = vunpack.c.l.b16 %v3510
      %v3535 = vunpack.c.l.b16 %v3511
      %v3536 = vunpack.c.l.b16 %v3512
      %v3537 = vunpack.c.l.b16 %v3513
      %v3538 = vunpack.c.l.b16 %v3514
      %v3539 = vunpack.c.l.b16 %v3515
      %v3540 = vunpack.c.l.b16 %v3516
      %v3541 = vunpack.c.l.b16 %v3517
      %v3542 = vunpack.c.l.b16 %v3518
      %v3543 = vunpack.c.l.b16 %v3519
      %v3544 = vunpack.c.l.b16 %v3520
      %v3545 = vunpack.c.l.b16 %v3521
      %v3546 = vpack.c.b16 %v3535, %v3534
      %v3547 = vpack.c.b16 %v3537, %v3536
      %v3548 = vpack.c.b16 %v3539, %v3538
      %v3549 = vpack.c.b16 %v3541, %v3540
      %v3550 = vpack.c.b16 %v3543, %v3542
      %v3551 = vpack.c.b16 %v3545, %v3544
      %vm3552 = vcmask 523264
      %v3554 = vsel %vm3552, %v3546, 0
      %v3557 = vsel %vm3552, %v3547, 0
      %v3560 = vsel %vm3552, %v3548, 0
      %v3563 = vsel %vm3552, %v3549, 0
      %v3566 = vsel %vm3552, %v3550, 0
      %v3569 = vsel %vm3552, %v3551, 0
      %3571 = vmatprep.subr.bf16.mxu0 0
      %3572 = vmatpush1.bf16.msra.mxu0 %v3506
      %3573 = vmatprep.subr.bf16.mxu0 0
      %3574 = vmatpush1.bf16.msra.mxu0 %v3507
      %3575 = vmatprep.subr.bf16.mxu0 0
      %3576 = vmatpush1.bf16.msra.mxu0 %v3508
      %3577 = vmatprep.subr.bf16.mxu0 0
      %3578 = vmatpush1.bf16.msra.mxu0 %v3509
      %3579 = vmatprep.subr.bf16.mxu0 0
      %3580 = vmatpush1.bf16.msra.mxu0 0
      %3581 = vmatprep.subr.bf16.mxu0 0
      %3582 = vmatpush1.bf16.msra.mxu0 0
      %3583 = vmatprep.subr.bf16.mxu0 0
      %3584 = vmatpush1.bf16.msra.mxu0 0
      %3585 = vmatprep.subr.bf16.mxu0 0
      %3586 = vmatpush1.bf16.msra.mxu0 0
      %3587 = vmatprep.subr.bf16.mxu0 0
      %3588 = vmatpush1.bf16.msra.mxu0 0
      %3589 = vmatprep.subr.bf16.mxu0 0
      %3590 = vmatpush1.bf16.msra.mxu0 0
      %3591 = vmatprep.subr.bf16.mxu0 0
      %3592 = vmatpush1.bf16.msra.mxu0 0
      %3593 = vmatprep.subr.bf16.mxu0 0
      %3594 = vmatpush1.bf16.msra.mxu0 0
      %3595 = vmatprep.subr.bf16.mxu0 0
      %3596 = vmatpush1.bf16.msra.mxu0 0
      %3597 = vmatprep.subr.bf16.mxu0 0
      %3598 = vmatpush1.bf16.msra.mxu0 0
      %3599 = vmatprep.subr.bf16.mxu0 0
      %3600 = vmatpush1.bf16.msra.mxu0 0
      %3601 = vmatprep.subr.bf16.mxu0 0
      %3602 = vmatpush1.bf16.msra.mxu0 0
      %3603 = vmatprep.mubr.bf16.mxu0 0
      %3604 = vmatmul.mubr.bf16.gmra.mrb[0].mxu0 %v3554
      %v3605 = vpop.f32.mrb[0].mxu0
      %v3606 = vadd.f32 0.0, %v3605
      %v3607 = vpop.f32.mrb[0].mxu0
      %v3608 = vpop.f32.mrb[0].mxu0
      %v3609 = vadd.f32 0.0, %v3608
      %v3610 = vpop.f32.mrb[0].mxu0
      %3611 = vmatprep.mubr.bf16.mxu0 0
      %3612 = vmatmul.mubr.bf16.gmra.mrb[0].mxu0 %v3557
      %v3613 = vpop.f32.mrb[0].mxu0
      %v3614 = vadd.f32 0.0, %v3613
      %v3615 = vpop.f32.mrb[0].mxu0
      %v3616 = vpop.f32.mrb[0].mxu0
      %v3617 = vadd.f32 0.0, %v3616
      %v3618 = vpop.f32.mrb[0].mxu0
      %3619 = vmatprep.mubr.bf16.mxu0 0
      %3620 = vmatmul.mubr.bf16.gmra.mrb[0].mxu0 %v3560
      %v3621 = vpop.f32.mrb[0].mxu0
      %v3622 = vadd.f32 0.0, %v3621
      %v3623 = vpop.f32.mrb[0].mxu0
      %v3624 = vpop.f32.mrb[0].mxu0
      %v3625 = vadd.f32 0.0, %v3624
      %v3626 = vpop.f32.mrb[0].mxu0
      %3627 = vmatprep.mubr.bf16.mxu0 0
      %3628 = vmatmul.mubr.bf16.gmra.mrb[0].mxu0 %v3563
      %v3629 = vpop.f32.mrb[0].mxu0
      %v3630 = vadd.f32 0.0, %v3629
      %v3631 = vpop.f32.mrb[0].mxu0
      %v3632 = vpop.f32.mrb[0].mxu0
      %v3633 = vadd.f32 0.0, %v3632
      %v3634 = vpop.f32.mrb[0].mxu0
      %3635 = vmatprep.mubr.bf16.mxu0 0
      %3636 = vmatmul.mubr.bf16.gmra.mrb[0].mxu0 %v3566
      %v3637 = vpop.f32.mrb[0].mxu0
      %v3638 = vadd.f32 0.0, %v3637
      %v3639 = vpop.f32.mrb[0].mxu0
      %v3640 = vpop.f32.mrb[0].mxu0
      %v3641 = vadd.f32 0.0, %v3640
      %v3642 = vpop.f32.mrb[0].mxu0
      %3643 = vmatprep.mubr.bf16.mxu0 0
      %3644 = vmatmul.mubr.bf16.gmra.mrb[0].mxu0 %v3569
      %v3645 = vpop.f32.mrb[0].mxu0
      %v3646 = vadd.f32 0.0, %v3645
      %v3647 = vpop.f32.mrb[0].mxu0
      %v3648 = vpop.f32.mrb[0].mxu0
      %v3649 = vadd.f32 0.0, %v3648
      %v3650 = vpop.f32.mrb[0].mxu0
      %3651 = vdwg.mxu0
      %3652 = vrot.lane.b32.xlu0 %v3606, 1
      %v3653 = vpop.permute.xlu0 %3652
      %3654 = vrot.lane.b32.xlu0 %v3609, 1
      %v3655 = vpop.permute.xlu0 %3654
      %3656 = vrot.lane.b32.xlu0 %v3614, 1
      %v3657 = vpop.permute.xlu0 %3656
      %3658 = vrot.lane.b32.xlu0 %v3617, 1
      %v3659 = vpop.permute.xlu0 %3658
      %v3660 = vsel %vm2887, 0.0, %v3653
      %v3661 = vsel %vm2887, 0.0, %v3655
      %v3662 = vsel %vm2887, 0.0, %v3657
      %v3663 = vsel %vm2887, 0.0, %v3659
      %3664 = vrot.lane.b32.xlu0 %v3638, 127
      %v3665 = vpop.permute.xlu0 %3664
      %3666 = vrot.lane.b32.xlu0 %v3641, 127
      %v3667 = vpop.permute.xlu0 %3666
      %3668 = vrot.lane.b32.xlu0 %v3646, 127
      %v3669 = vpop.permute.xlu0 %3668
      %3670 = vrot.lane.b32.xlu0 %v3649, 127
      %v3671 = vpop.permute.xlu0 %3670
      %v3672 = vsel %vm2936, 0.0, %v3665
      %v3673 = vsel %vm2936, 0.0, %v3667
      %v3674 = vsel %vm2936, 0.0, %v3669
      %v3675 = vsel %vm2936, 0.0, %v3671
      %v3676 = vadd.f32 %v3660, %v3622
      %v3677 = vadd.f32 %v3661, %v3625
      %v3678 = vadd.f32 %v3662, %v3630
      %v3679 = vadd.f32 %v3663, %v3633
      %v3680 = vadd.f32 %v3676, %v3672
      %v3681 = vadd.f32 %v3677, %v3673
      %v3682 = vadd.f32 %v3678, %v3674
      %v3683 = vadd.f32 %v3679, %v3675
      %v3684 = vld [vmem:[%s6] sm:$0xff]
      %v3685 = vld [vmem:[%s6 + $0x8] sm:$0xff]
      %v3686 = vld [vmem:[%s6 + $0x10] sm:$0xff]
      %v3687 = vld [vmem:[%s6 + $0x18] sm:$0xff]
      %3689 = vset.pattern.permute.xlu0 0
      %3690 = vperm.xlu0 %3689, %v3684
      %v3691 = vpop.permute.xlu0 %3690
      %3694 = vset.pattern.permute.xlu0 0
      %3695 = vperm.xlu0 %3694, %v3685
      %v3696 = vpop.permute.xlu0 %3695
      %3699 = vset.pattern.permute.xlu0 0
      %3700 = vperm.xlu0 %3699, %v3686
      %v3701 = vpop.permute.xlu0 %3700
      %3704 = vset.pattern.permute.xlu0 0
      %3705 = vperm.xlu0 %3704, %v3687
      %v3706 = vpop.permute.xlu0 %3705
      %v3708 = vadd.f32 %v3680, %v3691
      %v3709 = vadd.f32 %v3681, %v3696
      %v3710 = vadd.f32 %v3682, %v3701
      %v3711 = vadd.f32 %v3683, %v3706
      %v3712 = vmax.f32 %v3708, 0.0
      %v3713 = vmax.f32 %v3709, 0.0
      %v3714 = vmax.f32 %v3710, 0.0
      %v3715 = vmax.f32 %v3711, 0.0
      %v3716 = vpack.c.bf16 %v3713, %v3712
      %v3717 = vpack.c.bf16 %v3715, %v3714
      %v3720 = vunpack.c.l.b16 %v3716
      %v3721 = vunpack.c.h.b16 %v3716
      %v3722 = vunpack.c.l.b16 %v3717
      %v3723 = vunpack.c.h.b16 %v3717
      %v3724 = vpack.c.b16 %v3720, %v3720
      %v3725 = vpack.c.b16 %v3721, %v3721
      %v3726 = vpack.c.b16 %v3722, %v3722
      %v3727 = vpack.c.b16 %v3723, %v3723
      %3732 = vst [vmem:[%s278] sm:$0xf] %v3724
      %3733 = vst [vmem:[%s278 + $0x4] sm:$0xf] %v3725
      %3734 = vst [vmem:[%s278 + $0x8] sm:$0xf] %v3726
      %3735 = vst [vmem:[%s278 + $0xc] sm:$0xf] %v3727
      %p3736 = scmp.lt.s32.totalorder %s18, 1
      %s3737 = scalar_select %p3736, %s18, 1
      %s3738 = smul.addr %s3737, 4
      %s3739 = smul.addr %s3738, 4
      %s3740 = scalar_lea.vmem %s7, %s3739
      // Predicated region
      $region49: #{sagnet_forward.4} parent=47 // pred_check
        %p3741 = pneg %p188
      $region50: #{sagnet_forward.4} parent=47 // pred_check_branch
        %3743 = sbr.rel (%p3741) target = $region52
      $region51: #{sagnet_forward.4} parent=47 // pred_region
        _
      $region52: #{sagnet_forward.4} parent=47 // pred_fallthru
        _
    $region48: #{sagnet_forward.4} parent=5 // pred_fallthru
      _
    %p3744 = scmp.le.s32.totalorder 2, %s13
    // Predicated region
    $region53: #{sagnet_forward.4} parent=5 // pred_check
      %p3745 = pneg %p3744
    $region54: #{sagnet_forward.4} parent=5 // pred_check_branch
      %3747 = sbr.rel (%p3745) target = $region56
    $region55: #{sagnet_forward.4} parent=5 // pred_region
      %s3748 = ssub.s32 %s13, 2
      // Predicated region
      $region57: #{sagnet_forward.4} parent=55 // pred_check
        %p3749 = pneg %p194
      $region58: #{sagnet_forward.4} parent=55 // pred_check_branch
        %3751 = sbr.rel (%p3749) target = $region60
      $region59: #{sagnet_forward.4} parent=55 // pred_region
        %p3752 = scmp.lt.s32.totalorder %s19, 1
        %s3753 = scalar_select %p3752, %s19, 1
        %s3754 = smul.addr %s3753, 4
        %s3755 = smul.addr %s3754, 4
        %s3756 = scalar_lea.vmem %s7, %s3755
      $region60: #{sagnet_forward.4} parent=55 // pred_fallthru
        _
    $region56: #{sagnet_forward.4} parent=5 // pred_fallthru
      _
  $region6: #{sagnet_forward.4} parent=0 // loop_footer
    %s17 = sadd.s32 1, %s13
  $region7: #{sagnet_forward.4} parent=0 // loop_footer_branch
    %12 = sbr.rel target = $region3
  $region8: #{sagnet_forward.4} parent=0 // loop_exit
    _

// kernel: sagnet_forward.5
$region0: #{sagnet_forward.5}
  #allocation0 [shape = 'u32[]', space=smem, size = 0x4, offset = 0x4, fixed_abs, tag = 'smem constant byte address 0x4 - core index']
  #allocation1 [shape = 'u32[144,128]{1,0:T(1,128)}', space=vmem, size = 0x12000, scoped, tag = 'internal scratch']
  #allocation2 [shape = 'f32[1,1]{1,0:T(1,128)S(1)}', space=vmem, size = 0x200, scoped, tag = 'scoped memory for sagnet_forward.5']
  %s0 = inlined_call_operand.vmem [shape: bf16[2,128], index: 0, kind: input, shape index: {}]
  %s1 = inlined_call_operand.hbm [shape: bf16[2,4096], index: 1, kind: input, shape index: {}]
  %s2 = inlined_call_operand.hbm [shape: bf16[4096,128], index: 2, kind: input, shape index: {}]
  %s3 = inlined_call_operand.vmem [shape: f32[1,128], index: 3, kind: input, shape index: {}]
  %s4 = inlined_call_operand.hbm [shape: bf16[128,1024], index: 4, kind: input, shape index: {}]
  %s5 = inlined_call_operand.hbm [shape: bf16[128,1024], index: 5, kind: input, shape index: {}]
  %s6 = inlined_call_operand.hbm [shape: f32[1,1024], index: 6, kind: input, shape index: {}]
  %s7 = inlined_call_operand.hbm [shape: bf16[1024,512], index: 7, kind: input, shape index: {}]
  %s8 = inlined_call_operand.hbm [shape: f32[1,512], index: 8, kind: input, shape index: {}]
  %s9 = inlined_call_operand.hbm [shape: bf16[512,1], index: 9, kind: input, shape index: {}]
  %s10 = inlined_call_operand.<no memory space> [shape: f32[1,1], index: 10, kind: input, shape index: {}]
  %s11 = inlined_call_operand.vmem [shape: f32[2,1], index: 11, kind: output, shape index: {}]
  %s12 = sld [smem:[#allocation0]]
  $region86: #{sagnet_forward.5} parent=0
    _
  %s14 = ssub.s32 1, %s12
  %s15 = scalar_select 0, %s14, %s12
  %v16 = vstv %s10
  %17 = vst [vmem:[#allocation2] sm:$0x1] %v16
  $region1: #{sagnet_forward.5} parent=0
    #allocation3 [shape = 'u8[16384]{0}', space=vmem, size = 0x4000, scoped, tag = 'input window, operand 1, single buffered']
    #allocation4 [shape = 's32[1]{0}', space=sflag, size = 0x4, scoped, tag = 'scoped memory for sagnet_forward.5']
    #allocation5 [shape = 'u8[1048576]{0}', space=vmem, size = 0x100000, scoped, tag = 'input window, operand 2, single buffered']
    #allocation6 [shape = 's32[1]{0}', space=sflag, size = 0x4, scoped, tag = 'scoped memory for sagnet_forward.5']
    #allocation7 [shape = 'u8[262144]{0}', space=vmem, size = 0x40000, scoped, tag = 'input window, operand 4, single buffered']
    #allocation8 [shape = 'u8[262144]{0}', space=vmem, size = 0x40000, scoped, tag = 'input window, operand 5, single buffered']
    #allocation9 [shape = 's32[1]{0}', space=sflag, size = 0x4, scoped, tag = 'scoped memory for sagnet_forward.5']
    #allocation10 [shape = 'u8[4096]{0}', space=vmem, size = 0x1000, scoped, tag = 'input window, operand 6, single buffered']
    #allocation11 [shape = 'u8[1048576]{0}', space=vmem, size = 0x100000, scoped, tag = 'input window, operand 7, single buffered']
    #allocation12 [shape = 's32[1]{0}', space=sflag, size = 0x4, scoped, tag = 'scoped memory for sagnet_forward.5']
    #allocation13 [shape = 'u8[2048]{0}', space=vmem, size = 0x800, scoped, tag = 'input window, operand 8, single buffered']
    #allocation14 [shape = 'u8[131072]{0}', space=vmem, size = 0x20000, scoped, tag = 'input window, operand 9, single buffered']
    #allocation15 [shape = 's32[1]{0}', space=sflag, size = 0x4, scoped, tag = 'scoped memory for sagnet_forward.5']
    %18 = vsyncpa [#allocation4], 0
    %19 = vsyncpa [#allocation6], 0
    %20 = vsyncpa [#allocation9], 0
    %21 = vsyncpa [#allocation12], 0
    %22 = vsyncpa [#allocation15], 0
    // Predicated region
    $region2: #{sagnet_forward.5} parent=1 // pred_check
      _
    $region3: #{sagnet_forward.5} parent=1 // pred_check_branch
      %24 = sbr.rel (0) target = $region5
    $region4: #{sagnet_forward.5} parent=1 // pred_region
      _
    $region5: #{sagnet_forward.5} parent=1 // pred_fallthru
      _
    // Predicated region
    $region6: #{sagnet_forward.5} parent=1 // pred_check
      _
    $region7: #{sagnet_forward.5} parent=1 // pred_check_branch
      %26 = sbr.rel (0) target = $region9
    $region8: #{sagnet_forward.5} parent=1 // pred_region
      %s28 = ssub.s32 512, 512
      %29 = vsyncadd [#allocation4], %s28
      %s31 = sshll.u32 [#allocation3], 4
      %s32 = int_to_ptr.vmem [resolvable:$true] %s31
      %34 = dma.hbm_to_vmem [thread:$0]  %s1, 512, %s32, [#allocation4]
    $region9: #{sagnet_forward.5} parent=1 // pred_fallthru
      _
    // Predicated region
    $region10: #{sagnet_forward.5} parent=1 // pred_check
      _
    $region11: #{sagnet_forward.5} parent=1 // pred_check_branch
      %36 = sbr.rel (0) target = $region13
    $region12: #{sagnet_forward.5} parent=1 // pred_region
      %s38 = ssub.s32 32768, 32768
      %39 = vsyncadd [#allocation6], %s38
      %s40 = sshll.u32 [#allocation5], 4
      %s41 = int_to_ptr.vmem [resolvable:$true] %s40
      %46 = dma.hbm_to_vmem [thread:$0]  %s2, 32768, %s41, [#allocation6], 64, 64, 4
    $region13: #{sagnet_forward.5} parent=1 // pred_fallthru
      _
    // Predicated region
    $region14: #{sagnet_forward.5} parent=1 // pred_check
      _
    $region15: #{sagnet_forward.5} parent=1 // pred_check_branch
      %48 = sbr.rel (0) target = $region17
    $region16: #{sagnet_forward.5} parent=1 // pred_region
      _
    $region17: #{sagnet_forward.5} parent=1 // pred_fallthru
      _
    // Predicated region
    $region18: #{sagnet_forward.5} parent=1 // pred_check
      _
    $region19: #{sagnet_forward.5} parent=1 // pred_check_branch
      %50 = sbr.rel (0) target = $region21
    $region20: #{sagnet_forward.5} parent=1 // pred_region
      %s52 = ssub.s32 8192, 8192
      %53 = vsyncadd [#allocation6], %s52
      %s54 = sshll.u32 [#allocation7], 4
      %s55 = int_to_ptr.vmem [resolvable:$true] %s54
      %60 = dma.hbm_to_vmem [thread:$0]  %s4, 8192, %s55, [#allocation6], 512, 512, 32
    $region21: #{sagnet_forward.5} parent=1 // pred_fallthru
      _
    // Predicated region
    $region22: #{sagnet_forward.5} parent=1 // pred_check
      _
    $region23: #{sagnet_forward.5} parent=1 // pred_check_branch
      %62 = sbr.rel (0) target = $region25
    $region24: #{sagnet_forward.5} parent=1 // pred_region
      %s64 = ssub.s32 8192, 8192
      %65 = vsyncadd [#allocation9], %s64
      %s66 = sshll.u32 [#allocation8], 4
      %s67 = int_to_ptr.vmem [resolvable:$true] %s66
      %72 = dma.hbm_to_vmem [thread:$0]  %s5, 8192, %s67, [#allocation9], 512, 512, 32
    $region25: #{sagnet_forward.5} parent=1 // pred_fallthru
      _
    // Predicated region
    $region26: #{sagnet_forward.5} parent=1 // pred_check
      _
    $region27: #{sagnet_forward.5} parent=1 // pred_check_branch
      %74 = sbr.rel (0) target = $region29
    $region28: #{sagnet_forward.5} parent=1 // pred_region
      %s76 = ssub.s32 128, 128
      %77 = vsyncadd [#allocation9], %s76
      %s79 = sshll.u32 [#allocation10], 4
      %s80 = int_to_ptr.vmem [resolvable:$true] %s79
      %82 = dma.hbm_to_vmem [thread:$0]  %s6, 128, %s80, [#allocation9]
    $region29: #{sagnet_forward.5} parent=1 // pred_fallthru
      _
    // Predicated region
    $region30: #{sagnet_forward.5} parent=1 // pred_check
      _
    $region31: #{sagnet_forward.5} parent=1 // pred_check_branch
      %84 = sbr.rel (0) target = $region33
    $region32: #{sagnet_forward.5} parent=1 // pred_region
      %s86 = ssub.s32 32768, 32768
      %87 = vsyncadd [#allocation12], %s86
      %s88 = sshll.u32 [#allocation11], 4
      %s89 = int_to_ptr.vmem [resolvable:$true] %s88
      %94 = dma.hbm_to_vmem [thread:$0]  %s7, 32768, %s89, [#allocation12], 256, 256, 16
    $region33: #{sagnet_forward.5} parent=1 // pred_fallthru
      _
    // Predicated region
    $region34: #{sagnet_forward.5} parent=1 // pred_check
      _
    $region35: #{sagnet_forward.5} parent=1 // pred_check_branch
      %96 = sbr.rel (0) target = $region37
    $region36: #{sagnet_forward.5} parent=1 // pred_region
      %s98 = ssub.s32 64, 64
      %99 = vsyncadd [#allocation12], %s98
      %s101 = sshll.u32 [#allocation13], 4
      %s102 = int_to_ptr.vmem [resolvable:$true] %s101
      %104 = dma.hbm_to_vmem [thread:$0]  %s8, 64, %s102, [#allocation12]
    $region37: #{sagnet_forward.5} parent=1 // pred_fallthru
      _
    // Predicated region
    $region38: #{sagnet_forward.5} parent=1 // pred_check
      _
    $region39: #{sagnet_forward.5} parent=1 // pred_check_branch
      %106 = sbr.rel (0) target = $region41
    $region40: #{sagnet_forward.5} parent=1 // pred_region
      %s108 = ssub.s32 4096, 4096
      %109 = vsyncadd [#allocation15], %s108
      %s110 = sshll.u32 [#allocation14], 4
      %s111 = int_to_ptr.vmem [resolvable:$true] %s110
      %116 = dma.hbm_to_vmem [thread:$0]  %s9, 4096, %s111, [#allocation15], 64, 64, 4
    $region41: #{sagnet_forward.5} parent=1 // pred_fallthru
      _
    // Predicated region
    $region42: #{sagnet_forward.5} parent=1 // pred_check
      _
    $region43: #{sagnet_forward.5} parent=1 // pred_check_branch
      %118 = sbr.rel (0) target = $region45
    $region44: #{sagnet_forward.5} parent=1 // pred_region
      _
    $region45: #{sagnet_forward.5} parent=1 // pred_fallthru
      _
    // Predicated region
    $region46: #{sagnet_forward.5} parent=1 // pred_check
      _
    $region47: #{sagnet_forward.5} parent=1 // pred_check_branch
      %120 = sbr.rel (0) target = $region49
    $region48: #{sagnet_forward.5} parent=1 // pred_region
      %121 = dma.done [#allocation4], 512
    $region49: #{sagnet_forward.5} parent=1 // pred_fallthru
      _
    // Predicated region
    $region50: #{sagnet_forward.5} parent=1 // pred_check
      _
    $region51: #{sagnet_forward.5} parent=1 // pred_check_branch
      %123 = sbr.rel (0) target = $region53
    $region52: #{sagnet_forward.5} parent=1 // pred_region
      %124 = dma.done [#allocation6], 32768
    $region53: #{sagnet_forward.5} parent=1 // pred_fallthru
      _
    // Predicated region
    $region54: #{sagnet_forward.5} parent=1 // pred_check
      _
    $region55: #{sagnet_forward.5} parent=1 // pred_check_branch
      %126 = sbr.rel (0) target = $region57
    $region56: #{sagnet_forward.5} parent=1 // pred_region
      %127 = dma.done [#allocation6], 8192
    $region57: #{sagnet_forward.5} parent=1 // pred_fallthru
      _
    // Predicated region
    $region58: #{sagnet_forward.5} parent=1 // pred_check
      _
    $region59: #{sagnet_forward.5} parent=1 // pred_check_branch
      %129 = sbr.rel (0) target = $region61
    $region60: #{sagnet_forward.5} parent=1 // pred_region
      %130 = dma.done [#allocation9], 8192
    $region61: #{sagnet_forward.5} parent=1 // pred_fallthru
      _
    // Predicated region
    $region62: #{sagnet_forward.5} parent=1 // pred_check
      _
    $region63: #{sagnet_forward.5} parent=1 // pred_check_branch
      %132 = sbr.rel (0) target = $region65
    $region64: #{sagnet_forward.5} parent=1 // pred_region
      %133 = dma.done [#allocation9], 128
    $region65: #{sagnet_forward.5} parent=1 // pred_fallthru
      _
    // Predicated region
    $region66: #{sagnet_forward.5} parent=1 // pred_check
      _
    $region67: #{sagnet_forward.5} parent=1 // pred_check_branch
      %135 = sbr.rel (0) target = $region69
    $region68: #{sagnet_forward.5} parent=1 // pred_region
      %136 = dma.done [#allocation12], 32768
    $region69: #{sagnet_forward.5} parent=1 // pred_fallthru
      _
    // Predicated region
    $region70: #{sagnet_forward.5} parent=1 // pred_check
      _
    $region71: #{sagnet_forward.5} parent=1 // pred_check_branch
      %138 = sbr.rel (0) target = $region73
    $region72: #{sagnet_forward.5} parent=1 // pred_region
      %139 = dma.done [#allocation12], 64
    $region73: #{sagnet_forward.5} parent=1 // pred_fallthru
      _
    // Predicated region
    $region74: #{sagnet_forward.5} parent=1 // pred_check
      _
    $region75: #{sagnet_forward.5} parent=1 // pred_check_branch
      %141 = sbr.rel (0) target = $region77
    $region76: #{sagnet_forward.5} parent=1 // pred_region
      %142 = dma.done [#allocation15], 4096
    $region77: #{sagnet_forward.5} parent=1 // pred_fallthru
      _
    %v144 = vld [vmem:[#allocation3] sm:$0xff]
    %v145 = vld [vmem:[#allocation3 + $0x8] sm:$0xff]
    %v146 = vld [vmem:[#allocation3 + $0x10] sm:$0xff]
    %v147 = vld [vmem:[#allocation3 + $0x18] sm:$0xff]
    %v148 = vld [vmem:[#allocation5] sm:$0xf]
    %v149 = vld [vmem:[#allocation5 + $0x4] sm:$0xf]
    %v150 = vld [vmem:[#allocation5 + $0x8] sm:$0xf]
    %v151 = vld [vmem:[#allocation5 + $0xc] sm:$0xf]
    %v152 = vld [vmem:[#allocation5 + $0x10] sm:$0xf]
    %v153 = vld [vmem:[#allocation5 + $0x14] sm:$0xf]
    %v154 = vld [vmem:[#allocation5 + $0x18] sm:$0xf]
    %v155 = vld [vmem:[#allocation5 + $0x1c] sm:$0xf]
    %v156 = vld [vmem:[#allocation5 + $0x20] sm:$0xf]
    %v157 = vld [vmem:[#allocation5 + $0x24] sm:$0xf]
    %v158 = vld [vmem:[#allocation5 + $0x28] sm:$0xf]
    %v159 = vld [vmem:[#allocation5 + $0x2c] sm:$0xf]
    %v160 = vld [vmem:[#allocation5 + $0x30] sm:$0xf]
    %v161 = vld [vmem:[#allocation5 + $0x34] sm:$0xf]
    %v162 = vld [vmem:[#allocation5 + $0x38] sm:$0xf]
    %v163 = vld [vmem:[#allocation5 + $0x3c] sm:$0xf]
    %v164 = vld [vmem:[#allocation5 + $0x40] sm:$0xf]
    %v165 = vld [vmem:[#allocation5 + $0x44] sm:$0xf]
    %v166 = vld [vmem:[#allocation5 + $0x48] sm:$0xf]
    %v167 = vld [vmem:[#allocation5 + $0x4c] sm:$0xf]
    %v168 = vld [vmem:[#allocation5 + $0x50] sm:$0xf]
    %v169 = vld [vmem:[#allocation5 + $0x54] sm:$0xf]
    %v170 = vld [vmem:[#allocation5 + $0x58] sm:$0xf]
    %v171 = vld [vmem:[#allocation5 + $0x5c] sm:$0xf]
    %v172 = vld [vmem:[#allocation5 + $0x60] sm:$0xf]
    %v173 = vld [vmem:[#allocation5 + $0x64] sm:$0xf]
    %v174 = vld [vmem:[#allocation5 + $0x68] sm:$0xf]
    %v175 = vld [vmem:[#allocation5 + $0x6c] sm:$0xf]
    %v176 = vld [vmem:[#allocation5 + $0x70] sm:$0xf]
    %v177 = vld [vmem:[#allocation5 + $0x74] sm:$0xf]
    %v178 = vld [vmem:[#allocation5 + $0x78] sm:$0xf]
    %v179 = vld [vmem:[#allocation5 + $0x7c] sm:$0xf]
    %v180 = vld [vmem:[#allocation5 + $0x80] sm:$0xf]
    %v181 = vld [vmem:[#allocation5 + $0x84] sm:$0xf]
    %v182 = vld [vmem:[#allocation5 + $0x88] sm:$0xf]
    %v183 = vld [vmem:[#allocation5 + $0x8c] sm:$0xf]
    %v184 = vld [vmem:[#allocation5 + $0x90] sm:$0xf]
    %v185 = vld [vmem:[#allocation5 + $0x94] sm:$0xf]
    %v186 = vld [vmem:[#allocation5 + $0x98] sm:$0xf]
    %v187 = vld [vmem:[#allocation5 + $0x9c] sm:$0xf]
    %v188 = vld [vmem:[#allocation5 + $0xa0] sm:$0xf]
    %v189 = vld [vmem:[#allocation5 + $0xa4] sm:$0xf]
    %v190 = vld [vmem:[#allocation5 + $0xa8] sm:$0xf]
    %v191 = vld [vmem:[#allocation5 + $0xac] sm:$0xf]
    %v192 = vld [vmem:[#allocation5 + $0xb0] sm:$0xf]
    %v193 = vld [vmem:[#allocation5 + $0xb4] sm:$0xf]
    %v194 = vld [vmem:[#allocation5 + $0xb8] sm:$0xf]
    %v195 = vld [vmem:[#allocation5 + $0xbc] sm:$0xf]
    %v196 = vld [vmem:[#allocation5 + $0xc0] sm:$0xf]
    %v197 = vld [vmem:[#allocation5 + $0xc4] sm:$0xf]
    %v198 = vld [vmem:[#allocation5 + $0xc8] sm:$0xf]
    %v199 = vld [vmem:[#allocation5 + $0xcc] sm:$0xf]
    %v200 = vld [vmem:[#allocation5 + $0xd0] sm:$0xf]
    %v201 = vld [vmem:[#allocation5 + $0xd4] sm:$0xf]
    %v202 = vld [vmem:[#allocation5 + $0xd8] sm:$0xf]
    %v203 = vld [vmem:[#allocation5 + $0xdc] sm:$0xf]
    %v204 = vld [vmem:[#allocation5 + $0xe0] sm:$0xf]
    %v205 = vld [vmem:[#allocation5 + $0xe4] sm:$0xf]
    %v206 = vld [vmem:[#allocation5 + $0xe8] sm:$0xf]
    %v207 = vld [vmem:[#allocation5 + $0xec] sm:$0xf]
    %v208 = vld [vmem:[#allocation5 + $0xf0] sm:$0xf]
    %v209 = vld [vmem:[#allocation5 + $0xf4] sm:$0xf]
    %v210 = vld [vmem:[#allocation5 + $0xf8] sm:$0xf]
    %v211 = vld [vmem:[#allocation5 + $0xfc] sm:$0xf]
    %v212 = vld [vmem:[#allocation5 + $0x100] sm:$0xf]
    %v213 = vld [vmem:[#allocation5 + $0x104] sm:$0xf]
    %v214 = vld [vmem:[#allocation5 + $0x108] sm:$0xf]
    %v215 = vld [vmem:[#allocation5 + $0x10c] sm:$0xf]
    %v216 = vld [vmem:[#allocation5 + $0x110] sm:$0xf]
    %v217 = vld [vmem:[#allocation5 + $0x114] sm:$0xf]
    %v218 = vld [vmem:[#allocation5 + $0x118] sm:$0xf]
    %v219 = vld [vmem:[#allocation5 + $0x11c] sm:$0xf]
    %v220 = vld [vmem:[#allocation5 + $0x120] sm:$0xf]
    %v221 = vld [vmem:[#allocation5 + $0x124] sm:$0xf]
    %v222 = vld [vmem:[#allocation5 + $0x128] sm:$0xf]
    %v223 = vld [vmem:[#allocation5 + $0x12c] sm:$0xf]
    %v224 = vld [vmem:[#allocation5 + $0x130] sm:$0xf]
    %v225 = vld [vmem:[#allocation5 + $0x134] sm:$0xf]
    %v226 = vld [vmem:[#allocation5 + $0x138] sm:$0xf]
    %v227 = vld [vmem:[#allocation5 + $0x13c] sm:$0xf]
    %v228 = vld [vmem:[#allocation5 + $0x140] sm:$0xf]
    %v229 = vld [vmem:[#allocation5 + $0x144] sm:$0xf]
    %v230 = vld [vmem:[#allocation5 + $0x148] sm:$0xf]
    %v231 = vld [vmem:[#allocation5 + $0x14c] sm:$0xf]
    %v232 = vld [vmem:[#allocation5 + $0x150] sm:$0xf]
    %v233 = vld [vmem:[#allocation5 + $0x154] sm:$0xf]
    %v234 = vld [vmem:[#allocation5 + $0x158] sm:$0xf]
    %v235 = vld [vmem:[#allocation5 + $0x15c] sm:$0xf]
    %v236 = vld [vmem:[#allocation5 + $0x160] sm:$0xf]
    %v237 = vld [vmem:[#allocation5 + $0x164] sm:$0xf]
    %v238 = vld [vmem:[#allocation5 + $0x168] sm:$0xf]
    %v239 = vld [vmem:[#allocation5 + $0x16c] sm:$0xf]
    %v240 = vld [vmem:[#allocation5 + $0x170] sm:$0xf]
    %v241 = vld [vmem:[#allocation5 + $0x174] sm:$0xf]
    %v242 = vld [vmem:[#allocation5 + $0x178] sm:$0xf]
    %v243 = vld [vmem:[#allocation5 + $0x17c] sm:$0xf]
    %v244 = vld [vmem:[#allocation5 + $0x180] sm:$0xf]
    %v245 = vld [vmem:[#allocation5 + $0x184] sm:$0xf]
    %v246 = vld [vmem:[#allocation5 + $0x188] sm:$0xf]
    %v247 = vld [vmem:[#allocation5 + $0x18c] sm:$0xf]
    %v248 = vld [vmem:[#allocation5 + $0x190] sm:$0xf]
    %v249 = vld [vmem:[#allocation5 + $0x194] sm:$0xf]
    %v250 = vld [vmem:[#allocation5 + $0x198] sm:$0xf]
    %v251 = vld [vmem:[#allocation5 + $0x19c] sm:$0xf]
    %v252 = vld [vmem:[#allocation5 + $0x1a0] sm:$0xf]
    %v253 = vld [vmem:[#allocation5 + $0x1a4] sm:$0xf]
    %v254 = vld [vmem:[#allocation5 + $0x1a8] sm:$0xf]
    %v255 = vld [vmem:[#allocation5 + $0x1ac] sm:$0xf]
    %v256 = vld [vmem:[#allocation5 + $0x1b0] sm:$0xf]
    %v257 = vld [vmem:[#allocation5 + $0x1b4] sm:$0xf]
    %v258 = vld [vmem:[#allocation5 + $0x1b8] sm:$0xf]
    %v259 = vld [vmem:[#allocation5 + $0x1bc] sm:$0xf]
    %v260 = vld [vmem:[#allocation5 + $0x1c0] sm:$0xf]
    %v261 = vld [vmem:[#allocation5 + $0x1c4] sm:$0xf]
    %v262 = vld [vmem:[#allocation5 + $0x1c8] sm:$0xf]
    %v263 = vld [vmem:[#allocation5 + $0x1cc] sm:$0xf]
    %v264 = vld [vmem:[#allocation5 + $0x1d0] sm:$0xf]
    %v265 = vld [vmem:[#allocation5 + $0x1d4] sm:$0xf]
    %v266 = vld [vmem:[#allocation5 + $0x1d8] sm:$0xf]
    %v267 = vld [vmem:[#allocation5 + $0x1dc] sm:$0xf]
    %v268 = vld [vmem:[#allocation5 + $0x1e0] sm:$0xf]
    %v269 = vld [vmem:[#allocation5 + $0x1e4] sm:$0xf]
    %v270 = vld [vmem:[#allocation5 + $0x1e8] sm:$0xf]
    %v271 = vld [vmem:[#allocation5 + $0x1ec] sm:$0xf]
    %v272 = vld [vmem:[#allocation5 + $0x1f0] sm:$0xf]
    %v273 = vld [vmem:[#allocation5 + $0x1f4] sm:$0xf]
    %v274 = vld [vmem:[#allocation5 + $0x1f8] sm:$0xf]
    %v275 = vld [vmem:[#allocation5 + $0x1fc] sm:$0xf]
    %v276 = vld [vmem:[#allocation5 + $0x200] sm:$0xf]
    %v277 = vld [vmem:[#allocation5 + $0x204] sm:$0xf]
    %v278 = vld [vmem:[#allocation5 + $0x208] sm:$0xf]
    %v279 = vld [vmem:[#allocation5 + $0x20c] sm:$0xf]
    %v280 = vld [vmem:[#allocation5 + $0x210] sm:$0xf]
    %v281 = vld [vmem:[#allocation5 + $0x214] sm:$0xf]
    %v282 = vld [vmem:[#allocation5 + $0x218] sm:$0xf]
    %v283 = vld [vmem:[#allocation5 + $0x21c] sm:$0xf]
    %v284 = vld [vmem:[#allocation5 + $0x220] sm:$0xf]
    %v285 = vld [vmem:[#allocation5 + $0x224] sm:$0xf]
    %v286 = vld [vmem:[#allocation5 + $0x228] sm:$0xf]
    %v287 = vld [vmem:[#allocation5 + $0x22c] sm:$0xf]
    %v288 = vld [vmem:[#allocation5 + $0x230] sm:$0xf]
    %v289 = vld [vmem:[#allocation5 + $0x234] sm:$0xf]
    %v290 = vld [vmem:[#allocation5 + $0x238] sm:$0xf]
    %v291 = vld [vmem:[#allocation5 + $0x23c] sm:$0xf]
    %v292 = vld [vmem:[#allocation5 + $0x240] sm:$0xf]
    %v293 = vld [vmem:[#allocation5 + $0x244] sm:$0xf]
    %v294 = vld [vmem:[#allocation5 + $0x248] sm:$0xf]
    %v295 = vld [vmem:[#allocation5 + $0x24c] sm:$0xf]
    %v296 = vld [vmem:[#allocation5 + $0x250] sm:$0xf]
    %v297 = vld [vmem:[#allocation5 + $0x254] sm:$0xf]
    %v298 = vld [vmem:[#allocation5 + $0x258] sm:$0xf]
    %v299 = vld [vmem:[#allocation5 + $0x25c] sm:$0xf]
    %v300 = vld [vmem:[#allocation5 + $0x260] sm:$0xf]
    %v301 = vld [vmem:[#allocation5 + $0x264] sm:$0xf]
    %v302 = vld [vmem:[#allocation5 + $0x268] sm:$0xf]
    %v303 = vld [vmem:[#allocation5 + $0x26c] sm:$0xf]
    %v304 = vld [vmem:[#allocation5 + $0x270] sm:$0xf]
    %v305 = vld [vmem:[#allocation5 + $0x274] sm:$0xf]
    %v306 = vld [vmem:[#allocation5 + $0x278] sm:$0xf]
    %v307 = vld [vmem:[#allocation5 + $0x27c] sm:$0xf]
    %v308 = vld [vmem:[#allocation5 + $0x280] sm:$0xf]
    %v309 = vld [vmem:[#allocation5 + $0x284] sm:$0xf]
    %v310 = vld [vmem:[#allocation5 + $0x288] sm:$0xf]
    %v311 = vld [vmem:[#allocation5 + $0x28c] sm:$0xf]
    %v312 = vld [vmem:[#allocation5 + $0x290] sm:$0xf]
    %v313 = vld [vmem:[#allocation5 + $0x294] sm:$0xf]
    %v314 = vld [vmem:[#allocation5 + $0x298] sm:$0xf]
    %v315 = vld [vmem:[#allocation5 + $0x29c] sm:$0xf]
    %v316 = vld [vmem:[#allocation5 + $0x2a0] sm:$0xf]
    %v317 = vld [vmem:[#allocation5 + $0x2a4] sm:$0xf]
    %v318 = vld [vmem:[#allocation5 + $0x2a8] sm:$0xf]
    %v319 = vld [vmem:[#allocation5 + $0x2ac] sm:$0xf]
    %v320 = vld [vmem:[#allocation5 + $0x2b0] sm:$0xf]
    %v321 = vld [vmem:[#allocation5 + $0x2b4] sm:$0xf]
    %v322 = vld [vmem:[#allocation5 + $0x2b8] sm:$0xf]
    %v323 = vld [vmem:[#allocation5 + $0x2bc] sm:$0xf]
    %v324 = vld [vmem:[#allocation5 + $0x2c0] sm:$0xf]
    %v325 = vld [vmem:[#allocation5 + $0x2c4] sm:$0xf]
    %v326 = vld [vmem:[#allocation5 + $0x2c8] sm:$0xf]
    %v327 = vld [vmem:[#allocation5 + $0x2cc] sm:$0xf]
    %v328 = vld [vmem:[#allocation5 + $0x2d0] sm:$0xf]
    %v329 = vld [vmem:[#allocation5 + $0x2d4] sm:$0xf]
    %v330 = vld [vmem:[#allocation5 + $0x2d8] sm:$0xf]
    %v331 = vld [vmem:[#allocation5 + $0x2dc] sm:$0xf]
    %v332 = vld [vmem:[#allocation5 + $0x2e0] sm:$0xf]
    %v333 = vld [vmem:[#allocation5 + $0x2e4] sm:$0xf]
    %v334 = vld [vmem:[#allocation5 + $0x2e8] sm:$0xf]
    %v335 = vld [vmem:[#allocation5 + $0x2ec] sm:$0xf]
    %v336 = vld [vmem:[#allocation5 + $0x2f0] sm:$0xf]
    %v337 = vld [vmem:[#allocation5 + $0x2f4] sm:$0xf]
    %v338 = vld [vmem:[#allocation5 + $0x2f8] sm:$0xf]
    %v339 = vld [vmem:[#allocation5 + $0x2fc] sm:$0xf]
    %v340 = vld [vmem:[#allocation5 + $0x300] sm:$0xf]
    %v341 = vld [vmem:[#allocation5 + $0x304] sm:$0xf]
    %v342 = vld [vmem:[#allocation5 + $0x308] sm:$0xf]
    %v343 = vld [vmem:[#allocation5 + $0x30c] sm:$0xf]
    %v344 = vld [vmem:[#allocation5 + $0x310] sm:$0xf]
    %v345 = vld [vmem:[#allocation5 + $0x314] sm:$0xf]
    %v346 = vld [vmem:[#allocation5 + $0x318] sm:$0xf]
    %v347 = vld [vmem:[#allocation5 + $0x31c] sm:$0xf]
    %v348 = vld [vmem:[#allocation5 + $0x320] sm:$0xf]
    %v349 = vld [vmem:[#allocation5 + $0x324] sm:$0xf]
    %v350 = vld [vmem:[#allocation5 + $0x328] sm:$0xf]
    %v351 = vld [vmem:[#allocation5 + $0x32c] sm:$0xf]
    %v352 = vld [vmem:[#allocation5 + $0x330] sm:$0xf]
    %v353 = vld [vmem:[#allocation5 + $0x334] sm:$0xf]
    %v354 = vld [vmem:[#allocation5 + $0x338] sm:$0xf]
    %v355 = vld [vmem:[#allocation5 + $0x33c] sm:$0xf]
    %v356 = vld [vmem:[#allocation5 + $0x340] sm:$0xf]
    %v357 = vld [vmem:[#allocation5 + $0x344] sm:$0xf]
    %v358 = vld [vmem:[#allocation5 + $0x348] sm:$0xf]
    %v359 = vld [vmem:[#allocation5 + $0x34c] sm:$0xf]
    %v360 = vld [vmem:[#allocation5 + $0x350] sm:$0xf]
    %v361 = vld [vmem:[#allocation5 + $0x354] sm:$0xf]
    %v362 = vld [vmem:[#allocation5 + $0x358] sm:$0xf]
    %v363 = vld [vmem:[#allocation5 + $0x35c] sm:$0xf]
    %v364 = vld [vmem:[#allocation5 + $0x360] sm:$0xf]
    %v365 = vld [vmem:[#allocation5 + $0x364] sm:$0xf]
    %v366 = vld [vmem:[#allocation5 + $0x368] sm:$0xf]
    %v367 = vld [vmem:[#allocation5 + $0x36c] sm:$0xf]
    %v368 = vld [vmem:[#allocation5 + $0x370] sm:$0xf]
    %v369 = vld [vmem:[#allocation5 + $0x374] sm:$0xf]
    %v370 = vld [vmem:[#allocation5 + $0x378] sm:$0xf]
    %v371 = vld [vmem:[#allocation5 + $0x37c] sm:$0xf]
    %v372 = vld [vmem:[#allocation5 + $0x380] sm:$0xf]
    %v373 = vld [vmem:[#allocation5 + $0x384] sm:$0xf]
    %v374 = vld [vmem:[#allocation5 + $0x388] sm:$0xf]
    %v375 = vld [vmem:[#allocation5 + $0x38c] sm:$0xf]
    %v376 = vld [vmem:[#allocation5 + $0x390] sm:$0xf]
    %v377 = vld [vmem:[#allocation5 + $0x394] sm:$0xf]
    %v378 = vld [vmem:[#allocation5 + $0x398] sm:$0xf]
    %v379 = vld [vmem:[#allocation5 + $0x39c] sm:$0xf]
    %v380 = vld [vmem:[#allocation5 + $0x3a0] sm:$0xf]
    %v381 = vld [vmem:[#allocation5 + $0x3a4] sm:$0xf]
    %v382 = vld [vmem:[#allocation5 + $0x3a8] sm:$0xf]
    %v383 = vld [vmem:[#allocation5 + $0x3ac] sm:$0xf]
    %v384 = vld [vmem:[#allocation5 + $0x3b0] sm:$0xf]
    %v385 = vld [vmem:[#allocation5 + $0x3b4] sm:$0xf]
    %v386 = vld [vmem:[#allocation5 + $0x3b8] sm:$0xf]
    %v387 = vld [vmem:[#allocation5 + $0x3bc] sm:$0xf]
    %v388 = vld [vmem:[#allocation5 + $0x3c0] sm:$0xf]
    %v389 = vld [vmem:[#allocation5 + $0x3c4] sm:$0xf]
    %v390 = vld [vmem:[#allocation5 + $0x3c8] sm:$0xf]
    %v391 = vld [vmem:[#allocation5 + $0x3cc] sm:$0xf]
    %v392 = vld [vmem:[#allocation5 + $0x3d0] sm:$0xf]
    %v393 = vld [vmem:[#allocation5 + $0x3d4] sm:$0xf]
    %v394 = vld [vmem:[#allocation5 + $0x3d8] sm:$0xf]
    %v395 = vld [vmem:[#allocation5 + $0x3dc] sm:$0xf]
    %v396 = vld [vmem:[#allocation5 + $0x3e0] sm:$0xf]
    %v397 = vld [vmem:[#allocation5 + $0x3e4] sm:$0xf]
    %v398 = vld [vmem:[#allocation5 + $0x3e8] sm:$0xf]
    %v399 = vld [vmem:[#allocation5 + $0x3ec] sm:$0xf]
    %v400 = vld [vmem:[#allocation5 + $0x3f0] sm:$0xf]
    %v401 = vld [vmem:[#allocation5 + $0x3f4] sm:$0xf]
    %v402 = vld [vmem:[#allocation5 + $0x3f8] sm:$0xf]
    %v403 = vld [vmem:[#allocation5 + $0x3fc] sm:$0xf]
    %v404 = vld [vmem:[#allocation5 + $0x400] sm:$0xf]
    %v405 = vld [vmem:[#allocation5 + $0x404] sm:$0xf]
    %v406 = vld [vmem:[#allocation5 + $0x408] sm:$0xf]
    %v407 = vld [vmem:[#allocation5 + $0x40c] sm:$0xf]
    %v408 = vld [vmem:[#allocation5 + $0x410] sm:$0xf]
    %v409 = vld [vmem:[#allocation5 + $0x414] sm:$0xf]
    %v410 = vld [vmem:[#allocation5 + $0x418] sm:$0xf]
    %v411 = vld [vmem:[#allocation5 + $0x41c] sm:$0xf]
    %v412 = vld [vmem:[#allocation5 + $0x420] sm:$0xf]
    %v413 = vld [vmem:[#allocation5 + $0x424] sm:$0xf]
    %v414 = vld [vmem:[#allocation5 + $0x428] sm:$0xf]
    %v415 = vld [vmem:[#allocation5 + $0x42c] sm:$0xf]
    %v416 = vld [vmem:[#allocation5 + $0x430] sm:$0xf]
    %v417 = vld [vmem:[#allocation5 + $0x434] sm:$0xf]
    %v418 = vld [vmem:[#allocation5 + $0x438] sm:$0xf]
    %v419 = vld [vmem:[#allocation5 + $0x43c] sm:$0xf]
    %v420 = vld [vmem:[#allocation5 + $0x440] sm:$0xf]
    %v421 = vld [vmem:[#allocation5 + $0x444] sm:$0xf]
    %v422 = vld [vmem:[#allocation5 + $0x448] sm:$0xf]
    %v423 = vld [vmem:[#allocation5 + $0x44c] sm:$0xf]
    %v424 = vld [vmem:[#allocation5 + $0x450] sm:$0xf]
    %v425 = vld [vmem:[#allocation5 + $0x454] sm:$0xf]
    %v426 = vld [vmem:[#allocation5 + $0x458] sm:$0xf]
    %v427 = vld [vmem:[#allocation5 + $0x45c] sm:$0xf]
    %v428 = vld [vmem:[#allocation5 + $0x460] sm:$0xf]
    %v429 = vld [vmem:[#allocation5 + $0x464] sm:$0xf]
    %v430 = vld [vmem:[#allocation5 + $0x468] sm:$0xf]
    %v431 = vld [vmem:[#allocation5 + $0x46c] sm:$0xf]
    %v432 = vld [vmem:[#allocation5 + $0x470] sm:$0xf]
    %v433 = vld [vmem:[#allocation5 + $0x474] sm:$0xf]
    %v434 = vld [vmem:[#allocation5 + $0x478] sm:$0xf]
    %v435 = vld [vmem:[#allocation5 + $0x47c] sm:$0xf]
    %v436 = vld [vmem:[#allocation5 + $0x480] sm:$0xf]
    %v437 = vld [vmem:[#allocation5 + $0x484] sm:$0xf]
    %v438 = vld [vmem:[#allocation5 + $0x488] sm:$0xf]
    %v439 = vld [vmem:[#allocation5 + $0x48c] sm:$0xf]
    %v440 = vld [vmem:[#allocation5 + $0x490] sm:$0xf]
    %v441 = vld [vmem:[#allocation5 + $0x494] sm:$0xf]
    %v442 = vld [vmem:[#allocation5 + $0x498] sm:$0xf]
    %v443 = vld [vmem:[#allocation5 + $0x49c] sm:$0xf]
    %v444 = vld [vmem:[#allocation5 + $0x4a0] sm:$0xf]
    %v445 = vld [vmem:[#allocation5 + $0x4a4] sm:$0xf]
    %v446 = vld [vmem:[#allocation5 + $0x4a8] sm:$0xf]
    %v447 = vld [vmem:[#allocation5 + $0x4ac] sm:$0xf]
    %v448 = vld [vmem:[#allocation5 + $0x4b0] sm:$0xf]
    %v449 = vld [vmem:[#allocation5 + $0x4b4] sm:$0xf]
    %v450 = vld [vmem:[#allocation5 + $0x4b8] sm:$0xf]
    %v451 = vld [vmem:[#allocation5 + $0x4bc] sm:$0xf]
    %v452 = vld [vmem:[#allocation5 + $0x4c0] sm:$0xf]
    %v453 = vld [vmem:[#allocation5 + $0x4c4] sm:$0xf]
    %v454 = vld [vmem:[#allocation5 + $0x4c8] sm:$0xf]
    %v455 = vld [vmem:[#allocation5 + $0x4cc] sm:$0xf]
    %v456 = vld [vmem:[#allocation5 + $0x4d0] sm:$0xf]
    %v457 = vld [vmem:[#allocation5 + $0x4d4] sm:$0xf]
    %v458 = vld [vmem:[#allocation5 + $0x4d8] sm:$0xf]
    %v459 = vld [vmem:[#allocation5 + $0x4dc] sm:$0xf]
    %v460 = vld [vmem:[#allocation5 + $0x4e0] sm:$0xf]
    %v461 = vld [vmem:[#allocation5 + $0x4e4] sm:$0xf]
    %v462 = vld [vmem:[#allocation5 + $0x4e8] sm:$0xf]
    %v463 = vld [vmem:[#allocation5 + $0x4ec] sm:$0xf]
    %v464 = vld [vmem:[#allocation5 + $0x4f0] sm:$0xf]
    %v465 = vld [vmem:[#allocation5 + $0x4f4] sm:$0xf]
    %v466 = vld [vmem:[#allocation5 + $0x4f8] sm:$0xf]
    %v467 = vld [vmem:[#allocation5 + $0x4fc] sm:$0xf]
    %v468 = vld [vmem:[#allocation5 + $0x500] sm:$0xf]
    %v469 = vld [vmem:[#allocation5 + $0x504] sm:$0xf]
    %v470 = vld [vmem:[#allocation5 + $0x508] sm:$0xf]
    %v471 = vld [vmem:[#allocation5 + $0x50c] sm:$0xf]
    %v472 = vld [vmem:[#allocation5 + $0x510] sm:$0xf]
    %v473 = vld [vmem:[#allocation5 + $0x514] sm:$0xf]
    %v474 = vld [vmem:[#allocation5 + $0x518] sm:$0xf]
    %v475 = vld [vmem:[#allocation5 + $0x51c] sm:$0xf]
    %v476 = vld [vmem:[#allocation5 + $0x520] sm:$0xf]
    %v477 = vld [vmem:[#allocation5 + $0x524] sm:$0xf]
    %v478 = vld [vmem:[#allocation5 + $0x528] sm:$0xf]
    %v479 = vld [vmem:[#allocation5 + $0x52c] sm:$0xf]
    %v480 = vld [vmem:[#allocation5 + $0x530] sm:$0xf]
    %v481 = vld [vmem:[#allocation5 + $0x534] sm:$0xf]
    %v482 = vld [vmem:[#allocation5 + $0x538] sm:$0xf]
    %v483 = vld [vmem:[#allocation5 + $0x53c] sm:$0xf]
    %v484 = vld [vmem:[#allocation5 + $0x540] sm:$0xf]
    %v485 = vld [vmem:[#allocation5 + $0x544] sm:$0xf]
    %v486 = vld [vmem:[#allocation5 + $0x548] sm:$0xf]
    %v487 = vld [vmem:[#allocation5 + $0x54c] sm:$0xf]
    %v488 = vld [vmem:[#allocation5 + $0x550] sm:$0xf]
    %v489 = vld [vmem:[#allocation5 + $0x554] sm:$0xf]
    %v490 = vld [vmem:[#allocation5 + $0x558] sm:$0xf]
    %v491 = vld [vmem:[#allocation5 + $0x55c] sm:$0xf]
    %v492 = vld [vmem:[#allocation5 + $0x560] sm:$0xf]
    %v493 = vld [vmem:[#allocation5 + $0x564] sm:$0xf]
    %v494 = vld [vmem:[#allocation5 + $0x568] sm:$0xf]
    %v495 = vld [vmem:[#allocation5 + $0x56c] sm:$0xf]
    %v496 = vld [vmem:[#allocation5 + $0x570] sm:$0xf]
    %v497 = vld [vmem:[#allocation5 + $0x574] sm:$0xf]
    %v498 = vld [vmem:[#allocation5 + $0x578] sm:$0xf]
    %v499 = vld [vmem:[#allocation5 + $0x57c] sm:$0xf]
    %v500 = vld [vmem:[#allocation5 + $0x580] sm:$0xf]
    %v501 = vld [vmem:[#allocation5 + $0x584] sm:$0xf]
    %v502 = vld [vmem:[#allocation5 + $0x588] sm:$0xf]
    %v503 = vld [vmem:[#allocation5 + $0x58c] sm:$0xf]
    %v504 = vld [vmem:[#allocation5 + $0x590] sm:$0xf]
    %v505 = vld [vmem:[#allocation5 + $0x594] sm:$0xf]
    %v506 = vld [vmem:[#allocation5 + $0x598] sm:$0xf]
    %v507 = vld [vmem:[#allocation5 + $0x59c] sm:$0xf]
    %v508 = vld [vmem:[#allocation5 + $0x5a0] sm:$0xf]
    %v509 = vld [vmem:[#allocation5 + $0x5a4] sm:$0xf]
    %v510 = vld [vmem:[#allocation5 + $0x5a8] sm:$0xf]
    %v511 = vld [vmem:[#allocation5 + $0x5ac] sm:$0xf]
    %v512 = vld [vmem:[#allocation5 + $0x5b0] sm:$0xf]
    %v513 = vld [vmem:[#allocation5 + $0x5b4] sm:$0xf]
    %v514 = vld [vmem:[#allocation5 + $0x5b8] sm:$0xf]
    %v515 = vld [vmem:[#allocation5 + $0x5bc] sm:$0xf]
    %v516 = vld [vmem:[#allocation5 + $0x5c0] sm:$0xf]
    %v517 = vld [vmem:[#allocation5 + $0x5c4] sm:$0xf]
    %v518 = vld [vmem:[#allocation5 + $0x5c8] sm:$0xf]
    %v519 = vld [vmem:[#allocation5 + $0x5cc] sm:$0xf]
    %v520 = vld [vmem:[#allocation5 + $0x5d0] sm:$0xf]
    %v521 = vld [vmem:[#allocation5 + $0x5d4] sm:$0xf]
    %v522 = vld [vmem:[#allocation5 + $0x5d8] sm:$0xf]
    %v523 = vld [vmem:[#allocation5 + $0x5dc] sm:$0xf]
    %v524 = vld [vmem:[#allocation5 + $0x5e0] sm:$0xf]
    %v525 = vld [vmem:[#allocation5 + $0x5e4] sm:$0xf]
    %v526 = vld [vmem:[#allocation5 + $0x5e8] sm:$0xf]
    %v527 = vld [vmem:[#allocation5 + $0x5ec] sm:$0xf]
    %v528 = vld [vmem:[#allocation5 + $0x5f0] sm:$0xf]
    %v529 = vld [vmem:[#allocation5 + $0x5f4] sm:$0xf]
    %v530 = vld [vmem:[#allocation5 + $0x5f8] sm:$0xf]
    %v531 = vld [vmem:[#allocation5 + $0x5fc] sm:$0xf]
    %v532 = vld [vmem:[#allocation5 + $0x600] sm:$0xf]
    %v533 = vld [vmem:[#allocation5 + $0x604] sm:$0xf]
    %v534 = vld [vmem:[#allocation5 + $0x608] sm:$0xf]
    %v535 = vld [vmem:[#allocation5 + $0x60c] sm:$0xf]
    %v536 = vld [vmem:[#allocation5 + $0x610] sm:$0xf]
    %v537 = vld [vmem:[#allocation5 + $0x614] sm:$0xf]
    %v538 = vld [vmem:[#allocation5 + $0x618] sm:$0xf]
    %v539 = vld [vmem:[#allocation5 + $0x61c] sm:$0xf]
    %v540 = vld [vmem:[#allocation5 + $0x620] sm:$0xf]
    %v541 = vld [vmem:[#allocation5 + $0x624] sm:$0xf]
    %v542 = vld [vmem:[#allocation5 + $0x628] sm:$0xf]
    %v543 = vld [vmem:[#allocation5 + $0x62c] sm:$0xf]
    %v544 = vld [vmem:[#allocation5 + $0x630] sm:$0xf]
    %v545 = vld [vmem:[#allocation5 + $0x634] sm:$0xf]
    %v546 = vld [vmem:[#allocation5 + $0x638] sm:$0xf]
    %v547 = vld [vmem:[#allocation5 + $0x63c] sm:$0xf]
    %v548 = vld [vmem:[#allocation5 + $0x640] sm:$0xf]
    %v549 = vld [vmem:[#allocation5 + $0x644] sm:$0xf]
    %v550 = vld [vmem:[#allocation5 + $0x648] sm:$0xf]
    %v551 = vld [vmem:[#allocation5 + $0x64c] sm:$0xf]
    %v552 = vld [vmem:[#allocation5 + $0x650] sm:$0xf]
    %v553 = vld [vmem:[#allocation5 + $0x654] sm:$0xf]
    %v554 = vld [vmem:[#allocation5 + $0x658] sm:$0xf]
    %v555 = vld [vmem:[#allocation5 + $0x65c] sm:$0xf]
    %v556 = vld [vmem:[#allocation5 + $0x660] sm:$0xf]
    %v557 = vld [vmem:[#allocation5 + $0x664] sm:$0xf]
    %v558 = vld [vmem:[#allocation5 + $0x668] sm:$0xf]
    %v559 = vld [vmem:[#allocation5 + $0x66c] sm:$0xf]
    %v560 = vld [vmem:[#allocation5 + $0x670] sm:$0xf]
    %v561 = vld [vmem:[#allocation5 + $0x674] sm:$0xf]
    %v562 = vld [vmem:[#allocation5 + $0x678] sm:$0xf]
    %v563 = vld [vmem:[#allocation5 + $0x67c] sm:$0xf]
    %v564 = vld [vmem:[#allocation5 + $0x680] sm:$0xf]
    %v565 = vld [vmem:[#allocation5 + $0x684] sm:$0xf]
    %v566 = vld [vmem:[#allocation5 + $0x688] sm:$0xf]
    %v567 = vld [vmem:[#allocation5 + $0x68c] sm:$0xf]
    %v568 = vld [vmem:[#allocation5 + $0x690] sm:$0xf]
    %v569 = vld [vmem:[#allocation5 + $0x694] sm:$0xf]
    %v570 = vld [vmem:[#allocation5 + $0x698] sm:$0xf]
    %v571 = vld [vmem:[#allocation5 + $0x69c] sm:$0xf]
    %v572 = vld [vmem:[#allocation5 + $0x6a0] sm:$0xf]
    %v573 = vld [vmem:[#allocation5 + $0x6a4] sm:$0xf]
    %v574 = vld [vmem:[#allocation5 + $0x6a8] sm:$0xf]
    %v575 = vld [vmem:[#allocation5 + $0x6ac] sm:$0xf]
    %v576 = vld [vmem:[#allocation5 + $0x6b0] sm:$0xf]
    %v577 = vld [vmem:[#allocation5 + $0x6b4] sm:$0xf]
    %v578 = vld [vmem:[#allocation5 + $0x6b8] sm:$0xf]
    %v579 = vld [vmem:[#allocation5 + $0x6bc] sm:$0xf]
    %v580 = vld [vmem:[#allocation5 + $0x6c0] sm:$0xf]
    %v581 = vld [vmem:[#allocation5 + $0x6c4] sm:$0xf]
    %v582 = vld [vmem:[#allocation5 + $0x6c8] sm:$0xf]
    %v583 = vld [vmem:[#allocation5 + $0x6cc] sm:$0xf]
    %v584 = vld [vmem:[#allocation5 + $0x6d0] sm:$0xf]
    %v585 = vld [vmem:[#allocation5 + $0x6d4] sm:$0xf]
    %v586 = vld [vmem:[#allocation5 + $0x6d8] sm:$0xf]
    %v587 = vld [vmem:[#allocation5 + $0x6dc] sm:$0xf]
    %v588 = vld [vmem:[#allocation5 + $0x6e0] sm:$0xf]
    %v589 = vld [vmem:[#allocation5 + $0x6e4] sm:$0xf]
    %v590 = vld [vmem:[#allocation5 + $0x6e8] sm:$0xf]
    %v591 = vld [vmem:[#allocation5 + $0x6ec] sm:$0xf]
    %v592 = vld [vmem:[#allocation5 + $0x6f0] sm:$0xf]
    %v593 = vld [vmem:[#allocation5 + $0x6f4] sm:$0xf]
    %v594 = vld [vmem:[#allocation5 + $0x6f8] sm:$0xf]
    %v595 = vld [vmem:[#allocation5 + $0x6fc] sm:$0xf]
    %v596 = vld [vmem:[#allocation5 + $0x700] sm:$0xf]
    %v597 = vld [vmem:[#allocation5 + $0x704] sm:$0xf]
    %v598 = vld [vmem:[#allocation5 + $0x708] sm:$0xf]
    %v599 = vld [vmem:[#allocation5 + $0x70c] sm:$0xf]
    %v600 = vld [vmem:[#allocation5 + $0x710] sm:$0xf]
    %v601 = vld [vmem:[#allocation5 + $0x714] sm:$0xf]
    %v602 = vld [vmem:[#allocation5 + $0x718] sm:$0xf]
    %v603 = vld [vmem:[#allocation5 + $0x71c] sm:$0xf]
    %v604 = vld [vmem:[#allocation5 + $0x720] sm:$0xf]
    %v605 = vld [vmem:[#allocation5 + $0x724] sm:$0xf]
    %v606 = vld [vmem:[#allocation5 + $0x728] sm:$0xf]
    %v607 = vld [vmem:[#allocation5 + $0x72c] sm:$0xf]
    %v608 = vld [vmem:[#allocation5 + $0x730] sm:$0xf]
    %v609 = vld [vmem:[#allocation5 + $0x734] sm:$0xf]
    %v610 = vld [vmem:[#allocation5 + $0x738] sm:$0xf]
    %v611 = vld [vmem:[#allocation5 + $0x73c] sm:$0xf]
    %v612 = vld [vmem:[#allocation5 + $0x740] sm:$0xf]
    %v613 = vld [vmem:[#allocation5 + $0x744] sm:$0xf]
    %v614 = vld [vmem:[#allocation5 + $0x748] sm:$0xf]
    %v615 = vld [vmem:[#allocation5 + $0x74c] sm:$0xf]
    %v616 = vld [vmem:[#allocation5 + $0x750] sm:$0xf]
    %v617 = vld [vmem:[#allocation5 + $0x754] sm:$0xf]
    %v618 = vld [vmem:[#allocation5 + $0x758] sm:$0xf]
    %v619 = vld [vmem:[#allocation5 + $0x75c] sm:$0xf]
    %v620 = vld [vmem:[#allocation5 + $0x760] sm:$0xf]
    %v621 = vld [vmem:[#allocation5 + $0x764] sm:$0xf]
    %v622 = vld [vmem:[#allocation5 + $0x768] sm:$0xf]
    %v623 = vld [vmem:[#allocation5 + $0x76c] sm:$0xf]
    %v624 = vld [vmem:[#allocation5 + $0x770] sm:$0xf]
    %v625 = vld [vmem:[#allocation5 + $0x774] sm:$0xf]
    %v626 = vld [vmem:[#allocation5 + $0x778] sm:$0xf]
    %v627 = vld [vmem:[#allocation5 + $0x77c] sm:$0xf]
    %v628 = vld [vmem:[#allocation5 + $0x780] sm:$0xf]
    %v629 = vld [vmem:[#allocation5 + $0x784] sm:$0xf]
    %v630 = vld [vmem:[#allocation5 + $0x788] sm:$0xf]
    %v631 = vld [vmem:[#allocation5 + $0x78c] sm:$0xf]
    %v632 = vld [vmem:[#allocation5 + $0x790] sm:$0xf]
    %v633 = vld [vmem:[#allocation5 + $0x794] sm:$0xf]
    %v634 = vld [vmem:[#allocation5 + $0x798] sm:$0xf]
    %v635 = vld [vmem:[#allocation5 + $0x79c] sm:$0xf]
    %v636 = vld [vmem:[#allocation5 + $0x7a0] sm:$0xf]
    %v637 = vld [vmem:[#allocation5 + $0x7a4] sm:$0xf]
    %v638 = vld [vmem:[#allocation5 + $0x7a8] sm:$0xf]
    %v639 = vld [vmem:[#allocation5 + $0x7ac] sm:$0xf]
    %v640 = vld [vmem:[#allocation5 + $0x7b0] sm:$0xf]
    %v641 = vld [vmem:[#allocation5 + $0x7b4] sm:$0xf]
    %v642 = vld [vmem:[#allocation5 + $0x7b8] sm:$0xf]
    %v643 = vld [vmem:[#allocation5 + $0x7bc] sm:$0xf]
    %v644 = vld [vmem:[#allocation5 + $0x7c0] sm:$0xf]
    %v645 = vld [vmem:[#allocation5 + $0x7c4] sm:$0xf]
    %v646 = vld [vmem:[#allocation5 + $0x7c8] sm:$0xf]
    %v647 = vld [vmem:[#allocation5 + $0x7cc] sm:$0xf]
    %v648 = vld [vmem:[#allocation5 + $0x7d0] sm:$0xf]
    %v649 = vld [vmem:[#allocation5 + $0x7d4] sm:$0xf]
    %v650 = vld [vmem:[#allocation5 + $0x7d8] sm:$0xf]
    %v651 = vld [vmem:[#allocation5 + $0x7dc] sm:$0xf]
    %v652 = vld [vmem:[#allocation5 + $0x7e0] sm:$0xf]
    %v653 = vld [vmem:[#allocation5 + $0x7e4] sm:$0xf]
    %v654 = vld [vmem:[#allocation5 + $0x7e8] sm:$0xf]
    %v655 = vld [vmem:[#allocation5 + $0x7ec] sm:$0xf]
    %v656 = vld [vmem:[#allocation5 + $0x7f0] sm:$0xf]
    %v657 = vld [vmem:[#allocation5 + $0x7f4] sm:$0xf]
    %v658 = vld [vmem:[#allocation5 + $0x7f8] sm:$0xf]
    %v659 = vld [vmem:[#allocation5 + $0x7fc] sm:$0xf]
    %v660 = vld [vmem:[%s3] sm:$0x1]
    %v662 = vlaneseq
    %v663 = vshrl.u32 %v662, 7
    %v664 = vsub.s32 0, %v663
    %v665 = vrot.slane %v660, %v664
    %v671 = vcombine.high %v144, %v144
    %v673 = vunpack.c.l.s4 1966171168
    %v674 = vunpack.c.0.s8 %v673
    %v675 = vlaneseq
    %v676 = vshrl.u32 %v675, 7
    %v677 = vsub.s32 %v674, %v676
    %v678 = vrot.slane %v144, %v677
    %v680 = vunpack.c.l.s4 1966171168
    %v681 = vunpack.c.0.s8 %v680
    %v682 = vlaneseq
    %v683 = vshrl.u32 %v682, 7
    %v684 = vsub.s32 %v681, %v683
    %v685 = vrot.slane %v671, %v684
    %v686 = vcombine.high %v678, %v678
    %v687 = vcombine.high %v685, %v685
    %v689 = vunpack.c.l.s4 1966171168
    %v690 = vunpack.c.0.s8 %v689
    %v691 = vlaneseq
    %v692 = vshrl.u32 %v691, 7
    %v693 = vsub.s32 %v690, %v692
    %v694 = vrot.slane %v678, %v693
    %v696 = vunpack.c.l.s4 1966171168
    %v697 = vunpack.c.0.s8 %v696
    %v698 = vlaneseq
    %v699 = vshrl.u32 %v698, 7
    %v700 = vsub.s32 %v697, %v699
    %v701 = vrot.slane %v685, %v700
    %v703 = vunpack.c.l.s4 1966171168
    %v704 = vunpack.c.0.s8 %v703
    %v705 = vlaneseq
    %v706 = vshrl.u32 %v705, 7
    %v707 = vsub.s32 %v704, %v706
    %v708 = vrot.slane %v686, %v707
    %v710 = vunpack.c.l.s4 1966171168
    %v711 = vunpack.c.0.s8 %v710
    %v712 = vlaneseq
    %v713 = vshrl.u32 %v712, 7
    %v714 = vsub.s32 %v711, %v713
    %v715 = vrot.slane %v687, %v714
    %v716 = vcombine.high %v694, %v694
    %v717 = vcombine.high %v701, %v701
    %v718 = vcombine.high %v708, %v708
    %v719 = vcombine.high %v715, %v715
    %v720 = vcombine.high %v145, %v145
    %v722 = vunpack.c.l.s4 1966171168
    %v723 = vunpack.c.0.s8 %v722
    %v724 = vlaneseq
    %v725 = vshrl.u32 %v724, 7
    %v726 = vsub.s32 %v723, %v725
    %v727 = vrot.slane %v145, %v726
    %v729 = vunpack.c.l.s4 1966171168
    %v730 = vunpack.c.0.s8 %v729
    %v731 = vlaneseq
    %v732 = vshrl.u32 %v731, 7
    %v733 = vsub.s32 %v730, %v732
    %v734 = vrot.slane %v720, %v733
    %v735 = vcombine.high %v727, %v727
    %v736 = vcombine.high %v734, %v734
    %v738 = vunpack.c.l.s4 1966171168
    %v739 = vunpack.c.0.s8 %v738
    %v740 = vlaneseq
    %v741 = vshrl.u32 %v740, 7
    %v742 = vsub.s32 %v739, %v741
    %v743 = vrot.slane %v727, %v742
    %v745 = vunpack.c.l.s4 1966171168
    %v746 = vunpack.c.0.s8 %v745
    %v747 = vlaneseq
    %v748 = vshrl.u32 %v747, 7
    %v749 = vsub.s32 %v746, %v748
    %v750 = vrot.slane %v734, %v749
    %v752 = vunpack.c.l.s4 1966171168
    %v753 = vunpack.c.0.s8 %v752
    %v754 = vlaneseq
    %v755 = vshrl.u32 %v754, 7
    %v756 = vsub.s32 %v753, %v755
    %v757 = vrot.slane %v735, %v756
    %v759 = vunpack.c.l.s4 1966171168
    %v760 = vunpack.c.0.s8 %v759
    %v761 = vlaneseq
    %v762 = vshrl.u32 %v761, 7
    %v763 = vsub.s32 %v760, %v762
    %v764 = vrot.slane %v736, %v763
    %v765 = vcombine.high %v743, %v743
    %v766 = vcombine.high %v750, %v750
    %v767 = vcombine.high %v757, %v757
    %v768 = vcombine.high %v764, %v764
    %v769 = vcombine.high %v146, %v146
    %v771 = vunpack.c.l.s4 1966171168
    %v772 = vunpack.c.0.s8 %v771
    %v773 = vlaneseq
    %v774 = vshrl.u32 %v773, 7
    %v775 = vsub.s32 %v772, %v774
    %v776 = vrot.slane %v146, %v775
    %v778 = vunpack.c.l.s4 1966171168
    %v779 = vunpack.c.0.s8 %v778
    %v780 = vlaneseq
    %v781 = vshrl.u32 %v780, 7
    %v782 = vsub.s32 %v779, %v781
    %v783 = vrot.slane %v769, %v782
    %v784 = vcombine.high %v776, %v776
    %v785 = vcombine.high %v783, %v783
    %v787 = vunpack.c.l.s4 1966171168
    %v788 = vunpack.c.0.s8 %v787
    %v789 = vlaneseq
    %v790 = vshrl.u32 %v789, 7
    %v791 = vsub.s32 %v788, %v790
    %v792 = vrot.slane %v776, %v791
    %v794 = vunpack.c.l.s4 1966171168
    %v795 = vunpack.c.0.s8 %v794
    %v796 = vlaneseq
    %v797 = vshrl.u32 %v796, 7
    %v798 = vsub.s32 %v795, %v797
    %v799 = vrot.slane %v783, %v798
    %v801 = vunpack.c.l.s4 1966171168
    %v802 = vunpack.c.0.s8 %v801
    %v803 = vlaneseq
    %v804 = vshrl.u32 %v803, 7
    %v805 = vsub.s32 %v802, %v804
    %v806 = vrot.slane %v784, %v805
    %v808 = vunpack.c.l.s4 1966171168
    %v809 = vunpack.c.0.s8 %v808
    %v810 = vlaneseq
    %v811 = vshrl.u32 %v810, 7
    %v812 = vsub.s32 %v809, %v811
    %v813 = vrot.slane %v785, %v812
    %v814 = vcombine.high %v792, %v792
    %v815 = vcombine.high %v799, %v799
    %v816 = vcombine.high %v806, %v806
    %v817 = vcombine.high %v813, %v813
    %v818 = vcombine.high %v147, %v147
    %v820 = vunpack.c.l.s4 1966171168
    %v821 = vunpack.c.0.s8 %v820
    %v822 = vlaneseq
    %v823 = vshrl.u32 %v822, 7
    %v824 = vsub.s32 %v821, %v823
    %v825 = vrot.slane %v147, %v824
    %v827 = vunpack.c.l.s4 1966171168
    %v828 = vunpack.c.0.s8 %v827
    %v829 = vlaneseq
    %v830 = vshrl.u32 %v829, 7
    %v831 = vsub.s32 %v828, %v830
    %v832 = vrot.slane %v818, %v831
    %v833 = vcombine.high %v825, %v825
    %v834 = vcombine.high %v832, %v832
    %v836 = vunpack.c.l.s4 1966171168
    %v837 = vunpack.c.0.s8 %v836
    %v838 = vlaneseq
    %v839 = vshrl.u32 %v838, 7
    %v840 = vsub.s32 %v837, %v839
    %v841 = vrot.slane %v825, %v840
    %v843 = vunpack.c.l.s4 1966171168
    %v844 = vunpack.c.0.s8 %v843
    %v845 = vlaneseq
    %v846 = vshrl.u32 %v845, 7
    %v847 = vsub.s32 %v844, %v846
    %v848 = vrot.slane %v832, %v847
    %v850 = vunpack.c.l.s4 1966171168
    %v851 = vunpack.c.0.s8 %v850
    %v852 = vlaneseq
    %v853 = vshrl.u32 %v852, 7
    %v854 = vsub.s32 %v851, %v853
    %v855 = vrot.slane %v833, %v854
    %v857 = vunpack.c.l.s4 1966171168
    %v858 = vunpack.c.0.s8 %v857
    %v859 = vlaneseq
    %v860 = vshrl.u32 %v859, 7
    %v861 = vsub.s32 %v858, %v860
    %v862 = vrot.slane %v834, %v861
    %v863 = vcombine.high %v841, %v841
    %v864 = vcombine.high %v848, %v848
    %v865 = vcombine.high %v855, %v855
    %v866 = vcombine.high %v862, %v862
    %v1411 = vunpack.c.l.b16 %v148
    %v1412 = vunpack.c.l.b16 %v149
    %v1413 = vunpack.c.l.b16 %v150
    %v1414 = vunpack.c.l.b16 %v151
    %v1415 = vunpack.c.l.b16 %v152
    %v1416 = vunpack.c.l.b16 %v153
    %v1417 = vunpack.c.l.b16 %v154
    %v1418 = vunpack.c.l.b16 %v155
    %v1419 = vunpack.c.l.b16 %v156
    %v1420 = vunpack.c.l.b16 %v157
    %v1421 = vunpack.c.l.b16 %v158
    %v1422 = vunpack.c.l.b16 %v159
    %v1423 = vunpack.c.l.b16 %v160
    %v1424 = vunpack.c.l.b16 %v161
    %v1425 = vunpack.c.l.b16 %v162
    %v1426 = vunpack.c.l.b16 %v163
    %v1427 = vunpack.c.l.b16 %v164
    %v1428 = vunpack.c.l.b16 %v165
    %v1429 = vunpack.c.l.b16 %v166
    %v1430 = vunpack.c.l.b16 %v167
    %v1431 = vunpack.c.l.b16 %v168
    %v1432 = vunpack.c.l.b16 %v169
    %v1433 = vunpack.c.l.b16 %v170
    %v1434 = vunpack.c.l.b16 %v171
    %v1435 = vunpack.c.l.b16 %v172
    %v1436 = vunpack.c.l.b16 %v173
    %v1437 = vunpack.c.l.b16 %v174
    %v1438 = vunpack.c.l.b16 %v175
    %v1439 = vunpack.c.l.b16 %v176
    %v1440 = vunpack.c.l.b16 %v177
    %v1441 = vunpack.c.l.b16 %v178
    %v1442 = vunpack.c.l.b16 %v179
    %v1443 = vunpack.c.l.b16 %v180
    %v1444 = vunpack.c.l.b16 %v181
    %v1445 = vunpack.c.l.b16 %v182
    %v1446 = vunpack.c.l.b16 %v183
    %v1447 = vunpack.c.l.b16 %v184
    %v1448 = vunpack.c.l.b16 %v185
    %v1449 = vunpack.c.l.b16 %v186
    %v1450 = vunpack.c.l.b16 %v187
    %v1451 = vunpack.c.l.b16 %v188
    %v1452 = vunpack.c.l.b16 %v189
    %v1453 = vunpack.c.l.b16 %v190
    %v1454 = vunpack.c.l.b16 %v191
    %v1455 = vunpack.c.l.b16 %v192
    %v1456 = vunpack.c.l.b16 %v193
    %v1457 = vunpack.c.l.b16 %v194
    %v1458 = vunpack.c.l.b16 %v195
    %v1459 = vunpack.c.l.b16 %v196
    %v1460 = vunpack.c.l.b16 %v197
    %v1461 = vunpack.c.l.b16 %v198
    %v1462 = vunpack.c.l.b16 %v199
    %v1463 = vunpack.c.l.b16 %v200
    %v1464 = vunpack.c.l.b16 %v201
    %v1465 = vunpack.c.l.b16 %v202
    %v1466 = vunpack.c.l.b16 %v203
    %v1467 = vunpack.c.l.b16 %v204
    %v1468 = vunpack.c.l.b16 %v205
    %v1469 = vunpack.c.l.b16 %v206
    %v1470 = vunpack.c.l.b16 %v207
    %v1471 = vunpack.c.l.b16 %v208
    %v1472 = vunpack.c.l.b16 %v209
    %v1473 = vunpack.c.l.b16 %v210
    %v1474 = vunpack.c.l.b16 %v211
    %v1475 = vunpack.c.l.b16 %v212
    %v1476 = vunpack.c.l.b16 %v213
    %v1477 = vunpack.c.l.b16 %v214
    %v1478 = vunpack.c.l.b16 %v215
    %v1479 = vunpack.c.l.b16 %v216
    %v1480 = vunpack.c.l.b16 %v217
    %v1481 = vunpack.c.l.b16 %v218
    %v1482 = vunpack.c.l.b16 %v219
    %v1483 = vunpack.c.l.b16 %v220
    %v1484 = vunpack.c.l.b16 %v221
    %v1485 = vunpack.c.l.b16 %v222
    %v1486 = vunpack.c.l.b16 %v223
    %v1487 = vunpack.c.l.b16 %v224
    %v1488 = vunpack.c.l.b16 %v225
    %v1489 = vunpack.c.l.b16 %v226
    %v1490 = vunpack.c.l.b16 %v227
    %v1491 = vunpack.c.l.b16 %v228
    %v1492 = vunpack.c.l.b16 %v229
    %v1493 = vunpack.c.l.b16 %v230
    %v1494 = vunpack.c.l.b16 %v231
    %v1495 = vunpack.c.l.b16 %v232
    %v1496 = vunpack.c.l.b16 %v233
    %v1497 = vunpack.c.l.b16 %v234
    %v1498 = vunpack.c.l.b16 %v235
    %v1499 = vunpack.c.l.b16 %v236
    %v1500 = vunpack.c.l.b16 %v237
    %v1501 = vunpack.c.l.b16 %v238
    %v1502 = vunpack.c.l.b16 %v239
    %v1503 = vunpack.c.l.b16 %v240
    %v1504 = vunpack.c.l.b16 %v241
    %v1505 = vunpack.c.l.b16 %v242
    %v1506 = vunpack.c.l.b16 %v243
    %v1507 = vunpack.c.l.b16 %v244
    %v1508 = vunpack.c.l.b16 %v245
    %v1509 = vunpack.c.l.b16 %v246
    %v1510 = vunpack.c.l.b16 %v247
    %v1511 = vunpack.c.l.b16 %v248
    %v1512 = vunpack.c.l.b16 %v249
    %v1513 = vunpack.c.l.b16 %v250
    %v1514 = vunpack.c.l.b16 %v251
    %v1515 = vunpack.c.l.b16 %v252
    %v1516 = vunpack.c.l.b16 %v253
    %v1517 = vunpack.c.l.b16 %v254
    %v1518 = vunpack.c.l.b16 %v255
    %v1519 = vunpack.c.l.b16 %v256
    %v1520 = vunpack.c.l.b16 %v257
    %v1521 = vunpack.c.l.b16 %v258
    %v1522 = vunpack.c.l.b16 %v259
    %v1523 = vunpack.c.l.b16 %v260
    %v1524 = vunpack.c.l.b16 %v261
    %v1525 = vunpack.c.l.b16 %v262
    %v1526 = vunpack.c.l.b16 %v263
    %v1527 = vunpack.c.l.b16 %v264
    %v1528 = vunpack.c.l.b16 %v265
    %v1529 = vunpack.c.l.b16 %v266
    %v1530 = vunpack.c.l.b16 %v267
    %v1531 = vunpack.c.l.b16 %v268
    %v1532 = vunpack.c.l.b16 %v269
    %v1533 = vunpack.c.l.b16 %v270
    %v1534 = vunpack.c.l.b16 %v271
    %v1535 = vunpack.c.l.b16 %v272
    %v1536 = vunpack.c.l.b16 %v273
    %v1537 = vunpack.c.l.b16 %v274
    %v1538 = vunpack.c.l.b16 %v275
    %v1539 = vunpack.c.l.b16 %v276
    %v1540 = vunpack.c.l.b16 %v277
    %v1541 = vunpack.c.l.b16 %v278
    %v1542 = vunpack.c.l.b16 %v279
    %v1543 = vunpack.c.l.b16 %v280
    %v1544 = vunpack.c.l.b16 %v281
    %v1545 = vunpack.c.l.b16 %v282
    %v1546 = vunpack.c.l.b16 %v283
    %v1547 = vunpack.c.l.b16 %v284
    %v1548 = vunpack.c.l.b16 %v285
    %v1549 = vunpack.c.l.b16 %v286
    %v1550 = vunpack.c.l.b16 %v287
    %v1551 = vunpack.c.l.b16 %v288
    %v1552 = vunpack.c.l.b16 %v289
    %v1553 = vunpack.c.l.b16 %v290
    %v1554 = vunpack.c.l.b16 %v291
    %v1555 = vunpack.c.l.b16 %v292
    %v1556 = vunpack.c.l.b16 %v293
    %v1557 = vunpack.c.l.b16 %v294
    %v1558 = vunpack.c.l.b16 %v295
    %v1559 = vunpack.c.l.b16 %v296
    %v1560 = vunpack.c.l.b16 %v297
    %v1561 = vunpack.c.l.b16 %v298
    %v1562 = vunpack.c.l.b16 %v299
    %v1563 = vunpack.c.l.b16 %v300
    %v1564 = vunpack.c.l.b16 %v301
    %v1565 = vunpack.c.l.b16 %v302
    %v1566 = vunpack.c.l.b16 %v303
    %v1567 = vunpack.c.l.b16 %v304
    %v1568 = vunpack.c.l.b16 %v305
    %v1569 = vunpack.c.l.b16 %v306
    %v1570 = vunpack.c.l.b16 %v307
    %v1571 = vunpack.c.l.b16 %v308
    %v1572 = vunpack.c.l.b16 %v309
    %v1573 = vunpack.c.l.b16 %v310
    %v1574 = vunpack.c.l.b16 %v311
    %v1575 = vunpack.c.l.b16 %v312
    %v1576 = vunpack.c.l.b16 %v313
    %v1577 = vunpack.c.l.b16 %v314
    %v1578 = vunpack.c.l.b16 %v315
    %v1579 = vunpack.c.l.b16 %v316
    %v1580 = vunpack.c.l.b16 %v317
    %v1581 = vunpack.c.l.b16 %v318
    %v1582 = vunpack.c.l.b16 %v319
    %v1583 = vunpack.c.l.b16 %v320
    %v1584 = vunpack.c.l.b16 %v321
    %v1585 = vunpack.c.l.b16 %v322
    %v1586 = vunpack.c.l.b16 %v323
    %v1587 = vunpack.c.l.b16 %v324
    %v1588 = vunpack.c.l.b16 %v325
    %v1589 = vunpack.c.l.b16 %v326
    %v1590 = vunpack.c.l.b16 %v327
    %v1591 = vunpack.c.l.b16 %v328
    %v1592 = vunpack.c.l.b16 %v329
    %v1593 = vunpack.c.l.b16 %v330
    %v1594 = vunpack.c.l.b16 %v331
    %v1595 = vunpack.c.l.b16 %v332
    %v1596 = vunpack.c.l.b16 %v333
    %v1597 = vunpack.c.l.b16 %v334
    %v1598 = vunpack.c.l.b16 %v335
    %v1599 = vunpack.c.l.b16 %v336
    %v1600 = vunpack.c.l.b16 %v337
    %v1601 = vunpack.c.l.b16 %v338
    %v1602 = vunpack.c.l.b16 %v339
    %v1603 = vunpack.c.l.b16 %v340
    %v1604 = vunpack.c.l.b16 %v341
    %v1605 = vunpack.c.l.b16 %v342
    %v1606 = vunpack.c.l.b16 %v343
    %v1607 = vunpack.c.l.b16 %v344
    %v1608 = vunpack.c.l.b16 %v345
    %v1609 = vunpack.c.l.b16 %v346
    %v1610 = vunpack.c.l.b16 %v347
    %v1611 = vunpack.c.l.b16 %v348
    %v1612 = vunpack.c.l.b16 %v349
    %v1613 = vunpack.c.l.b16 %v350
    %v1614 = vunpack.c.l.b16 %v351
    %v1615 = vunpack.c.l.b16 %v352
    %v1616 = vunpack.c.l.b16 %v353
    %v1617 = vunpack.c.l.b16 %v354
    %v1618 = vunpack.c.l.b16 %v355
    %v1619 = vunpack.c.l.b16 %v356
    %v1620 = vunpack.c.l.b16 %v357
    %v1621 = vunpack.c.l.b16 %v358
    %v1622 = vunpack.c.l.b16 %v359
    %v1623 = vunpack.c.l.b16 %v360
    %v1624 = vunpack.c.l.b16 %v361
    %v1625 = vunpack.c.l.b16 %v362
    %v1626 = vunpack.c.l.b16 %v363
    %v1627 = vunpack.c.l.b16 %v364
    %v1628 = vunpack.c.l.b16 %v365
    %v1629 = vunpack.c.l.b16 %v366
    %v1630 = vunpack.c.l.b16 %v367
    %v1631 = vunpack.c.l.b16 %v368
    %v1632 = vunpack.c.l.b16 %v369
    %v1633 = vunpack.c.l.b16 %v370
    %v1634 = vunpack.c.l.b16 %v371
    %v1635 = vunpack.c.l.b16 %v372
    %v1636 = vunpack.c.l.b16 %v373
    %v1637 = vunpack.c.l.b16 %v374
    %v1638 = vunpack.c.l.b16 %v375
    %v1639 = vunpack.c.l.b16 %v376
    %v1640 = vunpack.c.l.b16 %v377
    %v1641 = vunpack.c.l.b16 %v378
    %v1642 = vunpack.c.l.b16 %v379
    %v1643 = vunpack.c.l.b16 %v380
    %v1644 = vunpack.c.l.b16 %v381
    %v1645 = vunpack.c.l.b16 %v382
    %v1646 = vunpack.c.l.b16 %v383
    %v1647 = vunpack.c.l.b16 %v384
    %v1648 = vunpack.c.l.b16 %v385
    %v1649 = vunpack.c.l.b16 %v386
    %v1650 = vunpack.c.l.b16 %v387
    %v1651 = vunpack.c.l.b16 %v388
    %v1652 = vunpack.c.l.b16 %v389
    %v1653 = vunpack.c.l.b16 %v390
    %v1654 = vunpack.c.l.b16 %v391
    %v1655 = vunpack.c.l.b16 %v392
    %v1656 = vunpack.c.l.b16 %v393
    %v1657 = vunpack.c.l.b16 %v394
    %v1658 = vunpack.c.l.b16 %v395
    %v1659 = vunpack.c.l.b16 %v396
    %v1660 = vunpack.c.l.b16 %v397
    %v1661 = vunpack.c.l.b16 %v398
    %v1662 = vunpack.c.l.b16 %v399
    %v1663 = vunpack.c.l.b16 %v400
    %v1664 = vunpack.c.l.b16 %v401
    %v1665 = vunpack.c.l.b16 %v402
    %v1666 = vunpack.c.l.b16 %v403
    %v1667 = vunpack.c.l.b16 %v404
    %v1668 = vunpack.c.l.b16 %v405
    %v1669 = vunpack.c.l.b16 %v406
    %v1670 = vunpack.c.l.b16 %v407
    %v1671 = vunpack.c.l.b16 %v408
    %v1672 = vunpack.c.l.b16 %v409
    %v1673 = vunpack.c.l.b16 %v410
    %v1674 = vunpack.c.l.b16 %v411
    %v1675 = vunpack.c.l.b16 %v412
    %v1676 = vunpack.c.l.b16 %v413
    %v1677 = vunpack.c.l.b16 %v414
    %v1678 = vunpack.c.l.b16 %v415
    %v1679 = vunpack.c.l.b16 %v416
    %v1680 = vunpack.c.l.b16 %v417
    %v1681 = vunpack.c.l.b16 %v418
    %v1682 = vunpack.c.l.b16 %v419
    %v1683 = vunpack.c.l.b16 %v420
    %v1684 = vunpack.c.l.b16 %v421
    %v1685 = vunpack.c.l.b16 %v422
    %v1686 = vunpack.c.l.b16 %v423
    %v1687 = vunpack.c.l.b16 %v424
    %v1688 = vunpack.c.l.b16 %v425
    %v1689 = vunpack.c.l.b16 %v426
    %v1690 = vunpack.c.l.b16 %v427
    %v1691 = vunpack.c.l.b16 %v428
    %v1692 = vunpack.c.l.b16 %v429
    %v1693 = vunpack.c.l.b16 %v430
    %v1694 = vunpack.c.l.b16 %v431
    %v1695 = vunpack.c.l.b16 %v432
    %v1696 = vunpack.c.l.b16 %v433
    %v1697 = vunpack.c.l.b16 %v434
    %v1698 = vunpack.c.l.b16 %v435
    %v1699 = vunpack.c.l.b16 %v436
    %v1700 = vunpack.c.l.b16 %v437
    %v1701 = vunpack.c.l.b16 %v438
    %v1702 = vunpack.c.l.b16 %v439
    %v1703 = vunpack.c.l.b16 %v440
    %v1704 = vunpack.c.l.b16 %v441
    %v1705 = vunpack.c.l.b16 %v442
    %v1706 = vunpack.c.l.b16 %v443
    %v1707 = vunpack.c.l.b16 %v444
    %v1708 = vunpack.c.l.b16 %v445
    %v1709 = vunpack.c.l.b16 %v446
    %v1710 = vunpack.c.l.b16 %v447
    %v1711 = vunpack.c.l.b16 %v448
    %v1712 = vunpack.c.l.b16 %v449
    %v1713 = vunpack.c.l.b16 %v450
    %v1714 = vunpack.c.l.b16 %v451
    %v1715 = vunpack.c.l.b16 %v452
    %v1716 = vunpack.c.l.b16 %v453
    %v1717 = vunpack.c.l.b16 %v454
    %v1718 = vunpack.c.l.b16 %v455
    %v1719 = vunpack.c.l.b16 %v456
    %v1720 = vunpack.c.l.b16 %v457
    %v1721 = vunpack.c.l.b16 %v458
    %v1722 = vunpack.c.l.b16 %v459
    %v1723 = vunpack.c.l.b16 %v460
    %v1724 = vunpack.c.l.b16 %v461
    %v1725 = vunpack.c.l.b16 %v462
    %v1726 = vunpack.c.l.b16 %v463
    %v1727 = vunpack.c.l.b16 %v464
    %v1728 = vunpack.c.l.b16 %v465
    %v1729 = vunpack.c.l.b16 %v466
    %v1730 = vunpack.c.l.b16 %v467
    %v1731 = vunpack.c.l.b16 %v468
    %v1732 = vunpack.c.l.b16 %v469
    %v1733 = vunpack.c.l.b16 %v470
    %v1734 = vunpack.c.l.b16 %v471
    %v1735 = vunpack.c.l.b16 %v472
    %v1736 = vunpack.c.l.b16 %v473
    %v1737 = vunpack.c.l.b16 %v474
    %v1738 = vunpack.c.l.b16 %v475
    %v1739 = vunpack.c.l.b16 %v476
    %v1740 = vunpack.c.l.b16 %v477
    %v1741 = vunpack.c.l.b16 %v478
    %v1742 = vunpack.c.l.b16 %v479
    %v1743 = vunpack.c.l.b16 %v480
    %v1744 = vunpack.c.l.b16 %v481
    %v1745 = vunpack.c.l.b16 %v482
    %v1746 = vunpack.c.l.b16 %v483
    %v1747 = vunpack.c.l.b16 %v484
    %v1748 = vunpack.c.l.b16 %v485
    %v1749 = vunpack.c.l.b16 %v486
    %v1750 = vunpack.c.l.b16 %v487
    %v1751 = vunpack.c.l.b16 %v488
    %v1752 = vunpack.c.l.b16 %v489
    %v1753 = vunpack.c.l.b16 %v490
    %v1754 = vunpack.c.l.b16 %v491
    %v1755 = vunpack.c.l.b16 %v492
    %v1756 = vunpack.c.l.b16 %v493
    %v1757 = vunpack.c.l.b16 %v494
    %v1758 = vunpack.c.l.b16 %v495
    %v1759 = vunpack.c.l.b16 %v496
    %v1760 = vunpack.c.l.b16 %v497
    %v1761 = vunpack.c.l.b16 %v498
    %v1762 = vunpack.c.l.b16 %v499
    %v1763 = vunpack.c.l.b16 %v500
    %v1764 = vunpack.c.l.b16 %v501
    %v1765 = vunpack.c.l.b16 %v502
    %v1766 = vunpack.c.l.b16 %v503
    %v1767 = vunpack.c.l.b16 %v504
    %v1768 = vunpack.c.l.b16 %v505
    %v1769 = vunpack.c.l.b16 %v506
    %v1770 = vunpack.c.l.b16 %v507
    %v1771 = vunpack.c.l.b16 %v508
    %v1772 = vunpack.c.l.b16 %v509
    %v1773 = vunpack.c.l.b16 %v510
    %v1774 = vunpack.c.l.b16 %v511
    %v1775 = vunpack.c.l.b16 %v512
    %v1776 = vunpack.c.l.b16 %v513
    %v1777 = vunpack.c.l.b16 %v514
    %v1778 = vunpack.c.l.b16 %v515
    %v1779 = vunpack.c.l.b16 %v516
    %v1780 = vunpack.c.l.b16 %v517
    %v1781 = vunpack.c.l.b16 %v518
    %v1782 = vunpack.c.l.b16 %v519
    %v1783 = vunpack.c.l.b16 %v520
    %v1784 = vunpack.c.l.b16 %v521
    %v1785 = vunpack.c.l.b16 %v522
    %v1786 = vunpack.c.l.b16 %v523
    %v1787 = vunpack.c.l.b16 %v524
    %v1788 = vunpack.c.l.b16 %v525
    %v1789 = vunpack.c.l.b16 %v526
    %v1790 = vunpack.c.l.b16 %v527
    %v1791 = vunpack.c.l.b16 %v528
    %v1792 = vunpack.c.l.b16 %v529
    %v1793 = vunpack.c.l.b16 %v530
    %v1794 = vunpack.c.l.b16 %v531
    %v1795 = vunpack.c.l.b16 %v532
    %v1796 = vunpack.c.l.b16 %v533
    %v1797 = vunpack.c.l.b16 %v534
    %v1798 = vunpack.c.l.b16 %v535
    %v1799 = vunpack.c.l.b16 %v536
    %v1800 = vunpack.c.l.b16 %v537
    %v1801 = vunpack.c.l.b16 %v538
    %v1802 = vunpack.c.l.b16 %v539
    %v1803 = vunpack.c.l.b16 %v540
    %v1804 = vunpack.c.l.b16 %v541
    %v1805 = vunpack.c.l.b16 %v542
    %v1806 = vunpack.c.l.b16 %v543
    %v1807 = vunpack.c.l.b16 %v544
    %v1808 = vunpack.c.l.b16 %v545
    %v1809 = vunpack.c.l.b16 %v546
    %v1810 = vunpack.c.l.b16 %v547
    %v1811 = vunpack.c.l.b16 %v548
    %v1812 = vunpack.c.l.b16 %v549
    %v1813 = vunpack.c.l.b16 %v550
    %v1814 = vunpack.c.l.b16 %v551
    %v1815 = vunpack.c.l.b16 %v552
    %v1816 = vunpack.c.l.b16 %v553
    %v1817 = vunpack.c.l.b16 %v554
    %v1818 = vunpack.c.l.b16 %v555
    %v1819 = vunpack.c.l.b16 %v556
    %v1820 = vunpack.c.l.b16 %v557
    %v1821 = vunpack.c.l.b16 %v558
    %v1822 = vunpack.c.l.b16 %v559
    %v1823 = vunpack.c.l.b16 %v560
    %v1824 = vunpack.c.l.b16 %v561
    %v1825 = vunpack.c.l.b16 %v562
    %v1826 = vunpack.c.l.b16 %v563
    %v1827 = vunpack.c.l.b16 %v564
    %v1828 = vunpack.c.l.b16 %v565
    %v1829 = vunpack.c.l.b16 %v566
    %v1830 = vunpack.c.l.b16 %v567
    %v1831 = vunpack.c.l.b16 %v568
    %v1832 = vunpack.c.l.b16 %v569
    %v1833 = vunpack.c.l.b16 %v570
    %v1834 = vunpack.c.l.b16 %v571
    %v1835 = vunpack.c.l.b16 %v572
    %v1836 = vunpack.c.l.b16 %v573
    %v1837 = vunpack.c.l.b16 %v574
    %v1838 = vunpack.c.l.b16 %v575
    %v1839 = vunpack.c.l.b16 %v576
    %v1840 = vunpack.c.l.b16 %v577
    %v1841 = vunpack.c.l.b16 %v578
    %v1842 = vunpack.c.l.b16 %v579
    %v1843 = vunpack.c.l.b16 %v580
    %v1844 = vunpack.c.l.b16 %v581
    %v1845 = vunpack.c.l.b16 %v582
    %v1846 = vunpack.c.l.b16 %v583
    %v1847 = vunpack.c.l.b16 %v584
    %v1848 = vunpack.c.l.b16 %v585
    %v1849 = vunpack.c.l.b16 %v586
    %v1850 = vunpack.c.l.b16 %v587
    %v1851 = vunpack.c.l.b16 %v588
    %v1852 = vunpack.c.l.b16 %v589
    %v1853 = vunpack.c.l.b16 %v590
    %v1854 = vunpack.c.l.b16 %v591
    %v1855 = vunpack.c.l.b16 %v592
    %v1856 = vunpack.c.l.b16 %v593
    %v1857 = vunpack.c.l.b16 %v594
    %v1858 = vunpack.c.l.b16 %v595
    %v1859 = vunpack.c.l.b16 %v596
    %v1860 = vunpack.c.l.b16 %v597
    %v1861 = vunpack.c.l.b16 %v598
    %v1862 = vunpack.c.l.b16 %v599
    %v1863 = vunpack.c.l.b16 %v600
    %v1864 = vunpack.c.l.b16 %v601
    %v1865 = vunpack.c.l.b16 %v602
    %v1866 = vunpack.c.l.b16 %v603
    %v1867 = vunpack.c.l.b16 %v604
    %v1868 = vunpack.c.l.b16 %v605
    %v1869 = vunpack.c.l.b16 %v606
    %v1870 = vunpack.c.l.b16 %v607
    %v1871 = vunpack.c.l.b16 %v608
    %v1872 = vunpack.c.l.b16 %v609
    %v1873 = vunpack.c.l.b16 %v610
    %v1874 = vunpack.c.l.b16 %v611
    %v1875 = vunpack.c.l.b16 %v612
    %v1876 = vunpack.c.l.b16 %v613
    %v1877 = vunpack.c.l.b16 %v614
    %v1878 = vunpack.c.l.b16 %v615
    %v1879 = vunpack.c.l.b16 %v616
    %v1880 = vunpack.c.l.b16 %v617
    %v1881 = vunpack.c.l.b16 %v618
    %v1882 = vunpack.c.l.b16 %v619
    %v1883 = vunpack.c.l.b16 %v620
    %v1884 = vunpack.c.l.b16 %v621
    %v1885 = vunpack.c.l.b16 %v622
    %v1886 = vunpack.c.l.b16 %v623
    %v1887 = vunpack.c.l.b16 %v624
    %v1888 = vunpack.c.l.b16 %v625
    %v1889 = vunpack.c.l.b16 %v626
    %v1890 = vunpack.c.l.b16 %v627
    %v1891 = vunpack.c.l.b16 %v628
    %v1892 = vunpack.c.l.b16 %v629
    %v1893 = vunpack.c.l.b16 %v630
    %v1894 = vunpack.c.l.b16 %v631
    %v1895 = vunpack.c.l.b16 %v632
    %v1896 = vunpack.c.l.b16 %v633
    %v1897 = vunpack.c.l.b16 %v634
    %v1898 = vunpack.c.l.b16 %v635
    %v1899 = vunpack.c.l.b16 %v636
    %v1900 = vunpack.c.l.b16 %v637
    %v1901 = vunpack.c.l.b16 %v638
    %v1902 = vunpack.c.l.b16 %v639
    %v1903 = vunpack.c.l.b16 %v640
    %v1904 = vunpack.c.l.b16 %v641
    %v1905 = vunpack.c.l.b16 %v642
    %v1906 = vunpack.c.l.b16 %v643
    %v1907 = vunpack.c.l.b16 %v644
    %v1908 = vunpack.c.l.b16 %v645
    %v1909 = vunpack.c.l.b16 %v646
    %v1910 = vunpack.c.l.b16 %v647
    %v1911 = vunpack.c.l.b16 %v648
    %v1912 = vunpack.c.l.b16 %v649
    %v1913 = vunpack.c.l.b16 %v650
    %v1914 = vunpack.c.l.b16 %v651
    %v1915 = vunpack.c.l.b16 %v652
    %v1916 = vunpack.c.l.b16 %v653
    %v1917 = vunpack.c.l.b16 %v654
    %v1918 = vunpack.c.l.b16 %v655
    %v1919 = vunpack.c.l.b16 %v656
    %v1920 = vunpack.c.l.b16 %v657
    %v1921 = vunpack.c.l.b16 %v658
    %v1922 = vunpack.c.l.b16 %v659
    %v1923 = vpack.c.b16 %v1412, %v1411
    %v1924 = vpack.c.b16 %v1414, %v1413
    %v1925 = vpack.c.b16 %v1416, %v1415
    %v1926 = vpack.c.b16 %v1418, %v1417
    %v1927 = vpack.c.b16 %v1420, %v1419
    %v1928 = vpack.c.b16 %v1422, %v1421
    %v1929 = vpack.c.b16 %v1424, %v1423
    %v1930 = vpack.c.b16 %v1426, %v1425
    %v1931 = vpack.c.b16 %v1428, %v1427
    %v1932 = vpack.c.b16 %v1430, %v1429
    %v1933 = vpack.c.b16 %v1432, %v1431
    %v1934 = vpack.c.b16 %v1434, %v1433
    %v1935 = vpack.c.b16 %v1436, %v1435
    %v1936 = vpack.c.b16 %v1438, %v1437
    %v1937 = vpack.c.b16 %v1440, %v1439
    %v1938 = vpack.c.b16 %v1442, %v1441
    %v1939 = vpack.c.b16 %v1444, %v1443
    %v1940 = vpack.c.b16 %v1446, %v1445
    %v1941 = vpack.c.b16 %v1448, %v1447
    %v1942 = vpack.c.b16 %v1450, %v1449
    %v1943 = vpack.c.b16 %v1452, %v1451
    %v1944 = vpack.c.b16 %v1454, %v1453
    %v1945 = vpack.c.b16 %v1456, %v1455
    %v1946 = vpack.c.b16 %v1458, %v1457
    %v1947 = vpack.c.b16 %v1460, %v1459
    %v1948 = vpack.c.b16 %v1462, %v1461
    %v1949 = vpack.c.b16 %v1464, %v1463
    %v1950 = vpack.c.b16 %v1466, %v1465
    %v1951 = vpack.c.b16 %v1468, %v1467
    %v1952 = vpack.c.b16 %v1470, %v1469
    %v1953 = vpack.c.b16 %v1472, %v1471
    %v1954 = vpack.c.b16 %v1474, %v1473
    %v1955 = vpack.c.b16 %v1476, %v1475
    %v1956 = vpack.c.b16 %v1478, %v1477
    %v1957 = vpack.c.b16 %v1480, %v1479
    %v1958 = vpack.c.b16 %v1482, %v1481
    %v1959 = vpack.c.b16 %v1484, %v1483
    %v1960 = vpack.c.b16 %v1486, %v1485
    %v1961 = vpack.c.b16 %v1488, %v1487
    %v1962 = vpack.c.b16 %v1490, %v1489
    %v1963 = vpack.c.b16 %v1492, %v1491
    %v1964 = vpack.c.b16 %v1494, %v1493
    %v1965 = vpack.c.b16 %v1496, %v1495
    %v1966 = vpack.c.b16 %v1498, %v1497
    %v1967 = vpack.c.b16 %v1500, %v1499
    %v1968 = vpack.c.b16 %v1502, %v1501
    %v1969 = vpack.c.b16 %v1504, %v1503
    %v1970 = vpack.c.b16 %v1506, %v1505
    %v1971 = vpack.c.b16 %v1508, %v1507
    %v1972 = vpack.c.b16 %v1510, %v1509
    %v1973 = vpack.c.b16 %v1512, %v1511
    %v1974 = vpack.c.b16 %v1514, %v1513
    %v1975 = vpack.c.b16 %v1516, %v1515
    %v1976 = vpack.c.b16 %v1518, %v1517
    %v1977 = vpack.c.b16 %v1520, %v1519
    %v1978 = vpack.c.b16 %v1522, %v1521
    %v1979 = vpack.c.b16 %v1524, %v1523
    %v1980 = vpack.c.b16 %v1526, %v1525
    %v1981 = vpack.c.b16 %v1528, %v1527
    %v1982 = vpack.c.b16 %v1530, %v1529
    %v1983 = vpack.c.b16 %v1532, %v1531
    %v1984 = vpack.c.b16 %v1534, %v1533
    %v1985 = vpack.c.b16 %v1536, %v1535
    %v1986 = vpack.c.b16 %v1538, %v1537
    %v1987 = vpack.c.b16 %v1540, %v1539
    %v1988 = vpack.c.b16 %v1542, %v1541
    %v1989 = vpack.c.b16 %v1544, %v1543
    %v1990 = vpack.c.b16 %v1546, %v1545
    %v1991 = vpack.c.b16 %v1548, %v1547
    %v1992 = vpack.c.b16 %v1550, %v1549
    %v1993 = vpack.c.b16 %v1552, %v1551
    %v1994 = vpack.c.b16 %v1554, %v1553
    %v1995 = vpack.c.b16 %v1556, %v1555
    %v1996 = vpack.c.b16 %v1558, %v1557
    %v1997 = vpack.c.b16 %v1560, %v1559
    %v1998 = vpack.c.b16 %v1562, %v1561
    %v1999 = vpack.c.b16 %v1564, %v1563
    %v2000 = vpack.c.b16 %v1566, %v1565
    %v2001 = vpack.c.b16 %v1568, %v1567
    %v2002 = vpack.c.b16 %v1570, %v1569
    %v2003 = vpack.c.b16 %v1572, %v1571
    %v2004 = vpack.c.b16 %v1574, %v1573
    %v2005 = vpack.c.b16 %v1576, %v1575
    %v2006 = vpack.c.b16 %v1578, %v1577
    %v2007 = vpack.c.b16 %v1580, %v1579
    %v2008 = vpack.c.b16 %v1582, %v1581
    %v2009 = vpack.c.b16 %v1584, %v1583
    %v2010 = vpack.c.b16 %v1586, %v1585
    %v2011 = vpack.c.b16 %v1588, %v1587
    %v2012 = vpack.c.b16 %v1590, %v1589
    %v2013 = vpack.c.b16 %v1592, %v1591
    %v2014 = vpack.c.b16 %v1594, %v1593
    %v2015 = vpack.c.b16 %v1596, %v1595
    %v2016 = vpack.c.b16 %v1598, %v1597
    %v2017 = vpack.c.b16 %v1600, %v1599
    %v2018 = vpack.c.b16 %v1602, %v1601
    %v2019 = vpack.c.b16 %v1604, %v1603
    %v2020 = vpack.c.b16 %v1606, %v1605
    %v2021 = vpack.c.b16 %v1608, %v1607
    %v2022 = vpack.c.b16 %v1610, %v1609
    %v2023 = vpack.c.b16 %v1612, %v1611
    %v2024 = vpack.c.b16 %v1614, %v1613
    %v2025 = vpack.c.b16 %v1616, %v1615
    %v2026 = vpack.c.b16 %v1618, %v1617
    %v2027 = vpack.c.b16 %v1620, %v1619
    %v2028 = vpack.c.b16 %v1622, %v1621
    %v2029 = vpack.c.b16 %v1624, %v1623
    %v2030 = vpack.c.b16 %v1626, %v1625
    %v2031 = vpack.c.b16 %v1628, %v1627
    %v2032 = vpack.c.b16 %v1630, %v1629
    %v2033 = vpack.c.b16 %v1632, %v1631
    %v2034 = vpack.c.b16 %v1634, %v1633
    %v2035 = vpack.c.b16 %v1636, %v1635
    %v2036 = vpack.c.b16 %v1638, %v1637
    %v2037 = vpack.c.b16 %v1640, %v1639
    %v2038 = vpack.c.b16 %v1642, %v1641
    %v2039 = vpack.c.b16 %v1644, %v1643
    %v2040 = vpack.c.b16 %v1646, %v1645
    %v2041 = vpack.c.b16 %v1648, %v1647
    %v2042 = vpack.c.b16 %v1650, %v1649
    %v2043 = vpack.c.b16 %v1652, %v1651
    %v2044 = vpack.c.b16 %v1654, %v1653
    %v2045 = vpack.c.b16 %v1656, %v1655
    %v2046 = vpack.c.b16 %v1658, %v1657
    %v2047 = vpack.c.b16 %v1660, %v1659
    %v2048 = vpack.c.b16 %v1662, %v1661
    %v2049 = vpack.c.b16 %v1664, %v1663
    %v2050 = vpack.c.b16 %v1666, %v1665
    %v2051 = vpack.c.b16 %v1668, %v1667
    %v2052 = vpack.c.b16 %v1670, %v1669
    %v2053 = vpack.c.b16 %v1672, %v1671
    %v2054 = vpack.c.b16 %v1674, %v1673
    %v2055 = vpack.c.b16 %v1676, %v1675
    %v2056 = vpack.c.b16 %v1678, %v1677
    %v2057 = vpack.c.b16 %v1680, %v1679
    %v2058 = vpack.c.b16 %v1682, %v1681
    %v2059 = vpack.c.b16 %v1684, %v1683
    %v2060 = vpack.c.b16 %v1686, %v1685
    %v2061 = vpack.c.b16 %v1688, %v1687
    %v2062 = vpack.c.b16 %v1690, %v1689
    %v2063 = vpack.c.b16 %v1692, %v1691
    %v2064 = vpack.c.b16 %v1694, %v1693
    %v2065 = vpack.c.b16 %v1696, %v1695
    %v2066 = vpack.c.b16 %v1698, %v1697
    %v2067 = vpack.c.b16 %v1700, %v1699
    %v2068 = vpack.c.b16 %v1702, %v1701
    %v2069 = vpack.c.b16 %v1704, %v1703
    %v2070 = vpack.c.b16 %v1706, %v1705
    %v2071 = vpack.c.b16 %v1708, %v1707
    %v2072 = vpack.c.b16 %v1710, %v1709
    %v2073 = vpack.c.b16 %v1712, %v1711
    %v2074 = vpack.c.b16 %v1714, %v1713
    %v2075 = vpack.c.b16 %v1716, %v1715
    %v2076 = vpack.c.b16 %v1718, %v1717
    %v2077 = vpack.c.b16 %v1720, %v1719
    %v2078 = vpack.c.b16 %v1722, %v1721
    %v2079 = vpack.c.b16 %v1724, %v1723
    %v2080 = vpack.c.b16 %v1726, %v1725
    %v2081 = vpack.c.b16 %v1728, %v1727
    %v2082 = vpack.c.b16 %v1730, %v1729
    %v2083 = vpack.c.b16 %v1732, %v1731
    %v2084 = vpack.c.b16 %v1734, %v1733
    %v2085 = vpack.c.b16 %v1736, %v1735
    %v2086 = vpack.c.b16 %v1738, %v1737
    %v2087 = vpack.c.b16 %v1740, %v1739
    %v2088 = vpack.c.b16 %v1742, %v1741
    %v2089 = vpack.c.b16 %v1744, %v1743
    %v2090 = vpack.c.b16 %v1746, %v1745
    %v2091 = vpack.c.b16 %v1748, %v1747
    %v2092 = vpack.c.b16 %v1750, %v1749
    %v2093 = vpack.c.b16 %v1752, %v1751
    %v2094 = vpack.c.b16 %v1754, %v1753
    %v2095 = vpack.c.b16 %v1756, %v1755
    %v2096 = vpack.c.b16 %v1758, %v1757
    %v2097 = vpack.c.b16 %v1760, %v1759
    %v2098 = vpack.c.b16 %v1762, %v1761
    %v2099 = vpack.c.b16 %v1764, %v1763
    %v2100 = vpack.c.b16 %v1766, %v1765
    %v2101 = vpack.c.b16 %v1768, %v1767
    %v2102 = vpack.c.b16 %v1770, %v1769
    %v2103 = vpack.c.b16 %v1772, %v1771
    %v2104 = vpack.c.b16 %v1774, %v1773
    %v2105 = vpack.c.b16 %v1776, %v1775
    %v2106 = vpack.c.b16 %v1778, %v1777
    %v2107 = vpack.c.b16 %v1780, %v1779
    %v2108 = vpack.c.b16 %v1782, %v1781
    %v2109 = vpack.c.b16 %v1784, %v1783
    %v2110 = vpack.c.b16 %v1786, %v1785
    %v2111 = vpack.c.b16 %v1788, %v1787
    %v2112 = vpack.c.b16 %v1790, %v1789
    %v2113 = vpack.c.b16 %v1792, %v1791
    %v2114 = vpack.c.b16 %v1794, %v1793
    %v2115 = vpack.c.b16 %v1796, %v1795
    %v2116 = vpack.c.b16 %v1798, %v1797
    %v2117 = vpack.c.b16 %v1800, %v1799
    %v2118 = vpack.c.b16 %v1802, %v1801
    %v2119 = vpack.c.b16 %v1804, %v1803
    %v2120 = vpack.c.b16 %v1806, %v1805
    %v2121 = vpack.c.b16 %v1808, %v1807
    %v2122 = vpack.c.b16 %v1810, %v1809
    %v2123 = vpack.c.b16 %v1812, %v1811
    %v2124 = vpack.c.b16 %v1814, %v1813
    %v2125 = vpack.c.b16 %v1816, %v1815
    %v2126 = vpack.c.b16 %v1818, %v1817
    %v2127 = vpack.c.b16 %v1820, %v1819
    %v2128 = vpack.c.b16 %v1822, %v1821
    %v2129 = vpack.c.b16 %v1824, %v1823
    %v2130 = vpack.c.b16 %v1826, %v1825
    %v2131 = vpack.c.b16 %v1828, %v1827
    %v2132 = vpack.c.b16 %v1830, %v1829
    %v2133 = vpack.c.b16 %v1832, %v1831
    %v2134 = vpack.c.b16 %v1834, %v1833
    %v2135 = vpack.c.b16 %v1836, %v1835
    %v2136 = vpack.c.b16 %v1838, %v1837
    %v2137 = vpack.c.b16 %v1840, %v1839
    %v2138 = vpack.c.b16 %v1842, %v1841
    %v2139 = vpack.c.b16 %v1844, %v1843
    %v2140 = vpack.c.b16 %v1846, %v1845
    %v2141 = vpack.c.b16 %v1848, %v1847
    %v2142 = vpack.c.b16 %v1850, %v1849
    %v2143 = vpack.c.b16 %v1852, %v1851
    %v2144 = vpack.c.b16 %v1854, %v1853
    %v2145 = vpack.c.b16 %v1856, %v1855
    %v2146 = vpack.c.b16 %v1858, %v1857
    %v2147 = vpack.c.b16 %v1860, %v1859
    %v2148 = vpack.c.b16 %v1862, %v1861
    %v2149 = vpack.c.b16 %v1864, %v1863
    %v2150 = vpack.c.b16 %v1866, %v1865
    %v2151 = vpack.c.b16 %v1868, %v1867
    %v2152 = vpack.c.b16 %v1870, %v1869
    %v2153 = vpack.c.b16 %v1872, %v1871
    %v2154 = vpack.c.b16 %v1874, %v1873
    %v2155 = vpack.c.b16 %v1876, %v1875
    %v2156 = vpack.c.b16 %v1878, %v1877
    %v2157 = vpack.c.b16 %v1880, %v1879
    %v2158 = vpack.c.b16 %v1882, %v1881
    %v2159 = vpack.c.b16 %v1884, %v1883
    %v2160 = vpack.c.b16 %v1886, %v1885
    %v2161 = vpack.c.b16 %v1888, %v1887
    %v2162 = vpack.c.b16 %v1890, %v1889
    %v2163 = vpack.c.b16 %v1892, %v1891
    %v2164 = vpack.c.b16 %v1894, %v1893
    %v2165 = vpack.c.b16 %v1896, %v1895
    %v2166 = vpack.c.b16 %v1898, %v1897
    %v2167 = vpack.c.b16 %v1900, %v1899
    %v2168 = vpack.c.b16 %v1902, %v1901
    %v2169 = vpack.c.b16 %v1904, %v1903
    %v2170 = vpack.c.b16 %v1906, %v1905
    %v2171 = vpack.c.b16 %v1908, %v1907
    %v2172 = vpack.c.b16 %v1910, %v1909
    %v2173 = vpack.c.b16 %v1912, %v1911
    %v2174 = vpack.c.b16 %v1914, %v1913
    %v2175 = vpack.c.b16 %v1916, %v1915
    %v2176 = vpack.c.b16 %v1918, %v1917
    %v2177 = vpack.c.b16 %v1920, %v1919
    %v2178 = vpack.c.b16 %v1922, %v1921
    %2435 = vmatprep.subr.bf16.mxu0 0
    %2436 = vmatpush1.bf16.msra.mxu0 %v1923
    %2437 = vmatprep.subr.bf16.mxu0 0
    %2438 = vmatpush1.bf16.msra.mxu0 %v1924
    %2439 = vmatprep.subr.bf16.mxu0 0
    %2440 = vmatpush1.bf16.msra.mxu0 %v1925
    %2441 = vmatprep.subr.bf16.mxu0 0
    %2442 = vmatpush1.bf16.msra.mxu0 %v1926
    %2443 = vmatprep.subr.bf16.mxu0 0
    %2444 = vmatpush1.bf16.msra.mxu0 %v1927
    %2445 = vmatprep.subr.bf16.mxu0 0
    %2446 = vmatpush1.bf16.msra.mxu0 %v1928
    %2447 = vmatprep.subr.bf16.mxu0 0
    %2448 = vmatpush1.bf16.msra.mxu0 %v1929
    %2449 = vmatprep.subr.bf16.mxu0 0
    %2450 = vmatpush1.bf16.msra.mxu0 %v1930
    %2451 = vmatprep.subr.bf16.mxu0 0
    %2452 = vmatpush1.bf16.msra.mxu0 %v1931
    %2453 = vmatprep.subr.bf16.mxu0 0
    %2454 = vmatpush1.bf16.msra.mxu0 %v1932
    %2455 = vmatprep.subr.bf16.mxu0 0
    %2456 = vmatpush1.bf16.msra.mxu0 %v1933
    %2457 = vmatprep.subr.bf16.mxu0 0
    %2458 = vmatpush1.bf16.msra.mxu0 %v1934
    %2459 = vmatprep.subr.bf16.mxu0 0
    %2460 = vmatpush1.bf16.msra.mxu0 %v1935
    %2461 = vmatprep.subr.bf16.mxu0 0
    %2462 = vmatpush1.bf16.msra.mxu0 %v1936
    %2463 = vmatprep.subr.bf16.mxu0 0
    %2464 = vmatpush1.bf16.msra.mxu0 %v1937
    %2465 = vmatprep.subr.bf16.mxu0 0
    %2466 = vmatpush1.bf16.msra.mxu0 %v1938
    %2467 = vmatprep.mubr.bf16.mxu0 %v708
    %2468 = vmatmul.mubr.bf16.gmra.mrb[0].mxu0 %v694
    %v2469 = vpop.f32.mrb[0].mxu0
    %v2470 = vadd.f32 %v665, %v2469
    %v2471 = vpop.f32.mrb[0].mxu0
    %v2472 = vpop.f32.mrb[0].mxu0
    %v2473 = vpop.f32.mrb[0].mxu0
    %2474 = vdwg.mxu0
    %2475 = vmatprep.subr.bf16.mxu0 0
    %2476 = vmatpush1.bf16.msra.mxu0 %v1939
    %2477 = vmatprep.subr.bf16.mxu0 0
    %2478 = vmatpush1.bf16.msra.mxu0 %v1940
    %2479 = vmatprep.subr.bf16.mxu0 0
    %2480 = vmatpush1.bf16.msra.mxu0 %v1941
    %2481 = vmatprep.subr.bf16.mxu0 0
    %2482 = vmatpush1.bf16.msra.mxu0 %v1942
    %2483 = vmatprep.subr.bf16.mxu0 0
    %2484 = vmatpush1.bf16.msra.mxu0 %v1943
    %2485 = vmatprep.subr.bf16.mxu0 0
    %2486 = vmatpush1.bf16.msra.mxu0 %v1944
    %2487 = vmatprep.subr.bf16.mxu0 0
    %2488 = vmatpush1.bf16.msra.mxu0 %v1945
    %2489 = vmatprep.subr.bf16.mxu0 0
    %2490 = vmatpush1.bf16.msra.mxu0 %v1946
    %2491 = vmatprep.subr.bf16.mxu0 0
    %2492 = vmatpush1.bf16.msra.mxu0 %v1947
    %2493 = vmatprep.subr.bf16.mxu0 0
    %2494 = vmatpush1.bf16.msra.mxu0 %v1948
    %2495 = vmatprep.subr.bf16.mxu0 0
    %2496 = vmatpush1.bf16.msra.mxu0 %v1949
    %2497 = vmatprep.subr.bf16.mxu0 0
    %2498 = vmatpush1.bf16.msra.mxu0 %v1950
    %2499 = vmatprep.subr.bf16.mxu0 0
    %2500 = vmatpush1.bf16.msra.mxu0 %v1951
    %2501 = vmatprep.subr.bf16.mxu0 0
    %2502 = vmatpush1.bf16.msra.mxu0 %v1952
    %2503 = vmatprep.subr.bf16.mxu0 0
    %2504 = vmatpush1.bf16.msra.mxu0 %v1953
    %2505 = vmatprep.subr.bf16.mxu0 0
    %2506 = vmatpush1.bf16.msra.mxu0 %v1954
    %2507 = vmatprep.mubr.bf16.mxu0 %v718
    %2508 = vmatmul.mubr.bf16.gmra.mrb[0].mxu0 %v716
    %v2509 = vpop.f32.mrb[0].mxu0
    %v2510 = vadd.f32 %v2470, %v2509
    %v2511 = vpop.f32.mrb[0].mxu0
    %v2512 = vpop.f32.mrb[0].mxu0
    %v2513 = vpop.f32.mrb[0].mxu0
    %2514 = vdwg.mxu0
    %2515 = vmatprep.subr.bf16.mxu0 0
    %2516 = vmatpush1.bf16.msra.mxu0 %v1955
    %2517 = vmatprep.subr.bf16.mxu0 0
    %2518 = vmatpush1.bf16.msra.mxu0 %v1956
    %2519 = vmatprep.subr.bf16.mxu0 0
    %2520 = vmatpush1.bf16.msra.mxu0 %v1957
    %2521 = vmatprep.subr.bf16.mxu0 0
    %2522 = vmatpush1.bf16.msra.mxu0 %v1958
    %2523 = vmatprep.subr.bf16.mxu0 0
    %2524 = vmatpush1.bf16.msra.mxu0 %v1959
    %2525 = vmatprep.subr.bf16.mxu0 0
    %2526 = vmatpush1.bf16.msra.mxu0 %v1960
    %2527 = vmatprep.subr.bf16.mxu0 0
    %2528 = vmatpush1.bf16.msra.mxu0 %v1961
    %2529 = vmatprep.subr.bf16.mxu0 0
    %2530 = vmatpush1.bf16.msra.mxu0 %v1962
    %2531 = vmatprep.subr.bf16.mxu0 0
    %2532 = vmatpush1.bf16.msra.mxu0 %v1963
    %2533 = vmatprep.subr.bf16.mxu0 0
    %2534 = vmatpush1.bf16.msra.mxu0 %v1964
    %2535 = vmatprep.subr.bf16.mxu0 0
    %2536 = vmatpush1.bf16.msra.mxu0 %v1965
    %2537 = vmatprep.subr.bf16.mxu0 0
    %2538 = vmatpush1.bf16.msra.mxu0 %v1966
    %2539 = vmatprep.subr.bf16.mxu0 0
    %2540 = vmatpush1.bf16.msra.mxu0 %v1967
    %2541 = vmatprep.subr.bf16.mxu0 0
    %2542 = vmatpush1.bf16.msra.mxu0 %v1968
    %2543 = vmatprep.subr.bf16.mxu0 0
    %2544 = vmatpush1.bf16.msra.mxu0 %v1969
    %2545 = vmatprep.subr.bf16.mxu0 0
    %2546 = vmatpush1.bf16.msra.mxu0 %v1970
    %2547 = vmatprep.mubr.bf16.mxu0 %v715
    %2548 = vmatmul.mubr.bf16.gmra.mrb[0].mxu0 %v701
    %v2549 = vpop.f32.mrb[0].mxu0
    %v2550 = vadd.f32 %v2510, %v2549
    %v2551 = vpop.f32.mrb[0].mxu0
    %v2552 = vpop.f32.mrb[0].mxu0
    %v2553 = vpop.f32.mrb[0].mxu0
    %2554 = vdwg.mxu0
    %2555 = vmatprep.subr.bf16.mxu0 0
    %2556 = vmatpush1.bf16.msra.mxu0 %v1971
    %2557 = vmatprep.subr.bf16.mxu0 0
    %2558 = vmatpush1.bf16.msra.mxu0 %v1972
    %2559 = vmatprep.subr.bf16.mxu0 0
    %2560 = vmatpush1.bf16.msra.mxu0 %v1973
    %2561 = vmatprep.subr.bf16.mxu0 0
    %2562 = vmatpush1.bf16.msra.mxu0 %v1974
    %2563 = vmatprep.subr.bf16.mxu0 0
    %2564 = vmatpush1.bf16.msra.mxu0 %v1975
    %2565 = vmatprep.subr.bf16.mxu0 0
    %2566 = vmatpush1.bf16.msra.mxu0 %v1976
    %2567 = vmatprep.subr.bf16.mxu0 0
    %2568 = vmatpush1.bf16.msra.mxu0 %v1977
    %2569 = vmatprep.subr.bf16.mxu0 0
    %2570 = vmatpush1.bf16.msra.mxu0 %v1978
    %2571 = vmatprep.subr.bf16.mxu0 0
    %2572 = vmatpush1.bf16.msra.mxu0 %v1979
    %2573 = vmatprep.subr.bf16.mxu0 0
    %2574 = vmatpush1.bf16.msra.mxu0 %v1980
    %2575 = vmatprep.subr.bf16.mxu0 0
    %2576 = vmatpush1.bf16.msra.mxu0 %v1981
    %2577 = vmatprep.subr.bf16.mxu0 0
    %2578 = vmatpush1.bf16.msra.mxu0 %v1982
    %2579 = vmatprep.subr.bf16.mxu0 0
    %2580 = vmatpush1.bf16.msra.mxu0 %v1983
    %2581 = vmatprep.subr.bf16.mxu0 0
    %2582 = vmatpush1.bf16.msra.mxu0 %v1984
    %2583 = vmatprep.subr.bf16.mxu0 0
    %2584 = vmatpush1.bf16.msra.mxu0 %v1985
    %2585 = vmatprep.subr.bf16.mxu0 0
    %2586 = vmatpush1.bf16.msra.mxu0 %v1986
    %2587 = vmatprep.mubr.bf16.mxu0 %v719
    %2588 = vmatmul.mubr.bf16.gmra.mrb[0].mxu0 %v717
    %v2589 = vpop.f32.mrb[0].mxu0
    %v2590 = vadd.f32 %v2550, %v2589
    %v2591 = vpop.f32.mrb[0].mxu0
    %v2592 = vpop.f32.mrb[0].mxu0
    %v2593 = vpop.f32.mrb[0].mxu0
    %2594 = vdwg.mxu0
    %2595 = vmatprep.subr.bf16.mxu0 0
    %2596 = vmatpush1.bf16.msra.mxu0 %v1987
    %2597 = vmatprep.subr.bf16.mxu0 0
    %2598 = vmatpush1.bf16.msra.mxu0 %v1988
    %2599 = vmatprep.subr.bf16.mxu0 0
    %2600 = vmatpush1.bf16.msra.mxu0 %v1989
    %2601 = vmatprep.subr.bf16.mxu0 0
    %2602 = vmatpush1.bf16.msra.mxu0 %v1990
    %2603 = vmatprep.subr.bf16.mxu0 0
    %2604 = vmatpush1.bf16.msra.mxu0 %v1991
    %2605 = vmatprep.subr.bf16.mxu0 0
    %2606 = vmatpush1.bf16.msra.mxu0 %v1992
    %2607 = vmatprep.subr.bf16.mxu0 0
    %2608 = vmatpush1.bf16.msra.mxu0 %v1993
    %2609 = vmatprep.subr.bf16.mxu0 0
    %2610 = vmatpush1.bf16.msra.mxu0 %v1994
    %2611 = vmatprep.subr.bf16.mxu0 0
    %2612 = vmatpush1.bf16.msra.mxu0 %v1995
    %2613 = vmatprep.subr.bf16.mxu0 0
    %2614 = vmatpush1.bf16.msra.mxu0 %v1996
    %2615 = vmatprep.subr.bf16.mxu0 0
    %2616 = vmatpush1.bf16.msra.mxu0 %v1997
    %2617 = vmatprep.subr.bf16.mxu0 0
    %2618 = vmatpush1.bf16.msra.mxu0 %v1998
    %2619 = vmatprep.subr.bf16.mxu0 0
    %2620 = vmatpush1.bf16.msra.mxu0 %v1999
    %2621 = vmatprep.subr.bf16.mxu0 0
    %2622 = vmatpush1.bf16.msra.mxu0 %v2000
    %2623 = vmatprep.subr.bf16.mxu0 0
    %2624 = vmatpush1.bf16.msra.mxu0 %v2001
    %2625 = vmatprep.subr.bf16.mxu0 0
    %2626 = vmatpush1.bf16.msra.mxu0 %v2002
    %2627 = vmatprep.mubr.bf16.mxu0 %v757
    %2628 = vmatmul.mubr.bf16.gmra.mrb[0].mxu0 %v743
    %v2629 = vpop.f32.mrb[0].mxu0
    %v2630 = vadd.f32 %v2590, %v2629
    %v2631 = vpop.f32.mrb[0].mxu0
    %v2632 = vpop.f32.mrb[0].mxu0
    %v2633 = vpop.f32.mrb[0].mxu0
    %2634 = vdwg.mxu0
    %2635 = vmatprep.subr.bf16.mxu0 0
    %2636 = vmatpush1.bf16.msra.mxu0 %v2003
    %2637 = vmatprep.subr.bf16.mxu0 0
    %2638 = vmatpush1.bf16.msra.mxu0 %v2004
    %2639 = vmatprep.subr.bf16.mxu0 0
    %2640 = vmatpush1.bf16.msra.mxu0 %v2005
    %2641 = vmatprep.subr.bf16.mxu0 0
    %2642 = vmatpush1.bf16.msra.mxu0 %v2006
    %2643 = vmatprep.subr.bf16.mxu0 0
    %2644 = vmatpush1.bf16.msra.mxu0 %v2007
    %2645 = vmatprep.subr.bf16.mxu0 0
    %2646 = vmatpush1.bf16.msra.mxu0 %v2008
    %2647 = vmatprep.subr.bf16.mxu0 0
    %2648 = vmatpush1.bf16.msra.mxu0 %v2009
    %2649 = vmatprep.subr.bf16.mxu0 0
    %2650 = vmatpush1.bf16.msra.mxu0 %v2010
    %2651 = vmatprep.subr.bf16.mxu0 0
    %2652 = vmatpush1.bf16.msra.mxu0 %v2011
    %2653 = vmatprep.subr.bf16.mxu0 0
    %2654 = vmatpush1.bf16.msra.mxu0 %v2012
    %2655 = vmatprep.subr.bf16.mxu0 0
    %2656 = vmatpush1.bf16.msra.mxu0 %v2013
    %2657 = vmatprep.subr.bf16.mxu0 0
    %2658 = vmatpush1.bf16.msra.mxu0 %v2014
    %2659 = vmatprep.subr.bf16.mxu0 0
    %2660 = vmatpush1.bf16.msra.mxu0 %v2015
    %2661 = vmatprep.subr.bf16.mxu0 0
    %2662 = vmatpush1.bf16.msra.mxu0 %v2016
    %2663 = vmatprep.subr.bf16.mxu0 0
    %2664 = vmatpush1.bf16.msra.mxu0 %v2017
    %2665 = vmatprep.subr.bf16.mxu0 0
    %2666 = vmatpush1.bf16.msra.mxu0 %v2018
    %2667 = vmatprep.mubr.bf16.mxu0 %v767
    %2668 = vmatmul.mubr.bf16.gmra.mrb[0].mxu0 %v765
    %v2669 = vpop.f32.mrb[0].mxu0
    %v2670 = vadd.f32 %v2630, %v2669
    %v2671 = vpop.f32.mrb[0].mxu0
    %v2672 = vpop.f32.mrb[0].mxu0
    %v2673 = vpop.f32.mrb[0].mxu0
    %2674 = vdwg.mxu0
    %2675 = vmatprep.subr.bf16.mxu0 0
    %2676 = vmatpush1.bf16.msra.mxu0 %v2019
    %2677 = vmatprep.subr.bf16.mxu0 0
    %2678 = vmatpush1.bf16.msra.mxu0 %v2020
    %2679 = vmatprep.subr.bf16.mxu0 0
    %2680 = vmatpush1.bf16.msra.mxu0 %v2021
    %2681 = vmatprep.subr.bf16.mxu0 0
    %2682 = vmatpush1.bf16.msra.mxu0 %v2022
    %2683 = vmatprep.subr.bf16.mxu0 0
    %2684 = vmatpush1.bf16.msra.mxu0 %v2023
    %2685 = vmatprep.subr.bf16.mxu0 0
    %2686 = vmatpush1.bf16.msra.mxu0 %v2024
    %2687 = vmatprep.subr.bf16.mxu0 0
    %2688 = vmatpush1.bf16.msra.mxu0 %v2025
    %2689 = vmatprep.subr.bf16.mxu0 0
    %2690 = vmatpush1.bf16.msra.mxu0 %v2026
    %2691 = vmatprep.subr.bf16.mxu0 0
    %2692 = vmatpush1.bf16.msra.mxu0 %v2027
    %2693 = vmatprep.subr.bf16.mxu0 0
    %2694 = vmatpush1.bf16.msra.mxu0 %v2028
    %2695 = vmatprep.subr.bf16.mxu0 0
    %2696 = vmatpush1.bf16.msra.mxu0 %v2029
    %2697 = vmatprep.subr.bf16.mxu0 0
    %2698 = vmatpush1.bf16.msra.mxu0 %v2030
    %2699 = vmatprep.subr.bf16.mxu0 0
    %2700 = vmatpush1.bf16.msra.mxu0 %v2031
    %2701 = vmatprep.subr.bf16.mxu0 0
    %2702 = vmatpush1.bf16.msra.mxu0 %v2032
    %2703 = vmatprep.subr.bf16.mxu0 0
    %2704 = vmatpush1.bf16.msra.mxu0 %v2033
    %2705 = vmatprep.subr.bf16.mxu0 0
    %2706 = vmatpush1.bf16.msra.mxu0 %v2034
    %2707 = vmatprep.mubr.bf16.mxu0 %v764
    %2708 = vmatmul.mubr.bf16.gmra.mrb[0].mxu0 %v750
    %v2709 = vpop.f32.mrb[0].mxu0
    %v2710 = vadd.f32 %v2670, %v2709
    %v2711 = vpop.f32.mrb[0].mxu0
    %v2712 = vpop.f32.mrb[0].mxu0
    %v2713 = vpop.f32.mrb[0].mxu0
    %2714 = vdwg.mxu0
    %2715 = vmatprep.subr.bf16.mxu0 0
    %2716 = vmatpush1.bf16.msra.mxu0 %v2035
    %2717 = vmatprep.subr.bf16.mxu0 0
    %2718 = vmatpush1.bf16.msra.mxu0 %v2036
    %2719 = vmatprep.subr.bf16.mxu0 0
    %2720 = vmatpush1.bf16.msra.mxu0 %v2037
    %2721 = vmatprep.subr.bf16.mxu0 0
    %2722 = vmatpush1.bf16.msra.mxu0 %v2038
    %2723 = vmatprep.subr.bf16.mxu0 0
    %2724 = vmatpush1.bf16.msra.mxu0 %v2039
    %2725 = vmatprep.subr.bf16.mxu0 0
    %2726 = vmatpush1.bf16.msra.mxu0 %v2040
    %2727 = vmatprep.subr.bf16.mxu0 0
    %2728 = vmatpush1.bf16.msra.mxu0 %v2041
    %2729 = vmatprep.subr.bf16.mxu0 0
    %2730 = vmatpush1.bf16.msra.mxu0 %v2042
    %2731 = vmatprep.subr.bf16.mxu0 0
    %2732 = vmatpush1.bf16.msra.mxu0 %v2043
    %2733 = vmatprep.subr.bf16.mxu0 0
    %2734 = vmatpush1.bf16.msra.mxu0 %v2044
    %2735 = vmatprep.subr.bf16.mxu0 0
    %2736 = vmatpush1.bf16.msra.mxu0 %v2045
    %2737 = vmatprep.subr.bf16.mxu0 0
    %2738 = vmatpush1.bf16.msra.mxu0 %v2046
    %2739 = vmatprep.subr.bf16.mxu0 0
    %2740 = vmatpush1.bf16.msra.mxu0 %v2047
    %2741 = vmatprep.subr.bf16.mxu0 0
    %2742 = vmatpush1.bf16.msra.mxu0 %v2048
    %2743 = vmatprep.subr.bf16.mxu0 0
    %2744 = vmatpush1.bf16.msra.mxu0 %v2049
    %2745 = vmatprep.subr.bf16.mxu0 0
    %2746 = vmatpush1.bf16.msra.mxu0 %v2050
    %2747 = vmatprep.mubr.bf16.mxu0 %v768
    %2748 = vmatmul.mubr.bf16.gmra.mrb[0].mxu0 %v766
    %v2749 = vpop.f32.mrb[0].mxu0
    %v2750 = vadd.f32 %v2710, %v2749
    %v2751 = vpop.f32.mrb[0].mxu0
    %v2752 = vpop.f32.mrb[0].mxu0
    %v2753 = vpop.f32.mrb[0].mxu0
    %2754 = vdwg.mxu0
    %2755 = vmatprep.subr.bf16.mxu0 0
    %2756 = vmatpush1.bf16.msra.mxu0 %v2051
    %2757 = vmatprep.subr.bf16.mxu0 0
    %2758 = vmatpush1.bf16.msra.mxu0 %v2052
    %2759 = vmatprep.subr.bf16.mxu0 0
    %2760 = vmatpush1.bf16.msra.mxu0 %v2053
    %2761 = vmatprep.subr.bf16.mxu0 0
    %2762 = vmatpush1.bf16.msra.mxu0 %v2054
    %2763 = vmatprep.subr.bf16.mxu0 0
    %2764 = vmatpush1.bf16.msra.mxu0 %v2055
    %2765 = vmatprep.subr.bf16.mxu0 0
    %2766 = vmatpush1.bf16.msra.mxu0 %v2056
    %2767 = vmatprep.subr.bf16.mxu0 0
    %2768 = vmatpush1.bf16.msra.mxu0 %v2057
    %2769 = vmatprep.subr.bf16.mxu0 0
    %2770 = vmatpush1.bf16.msra.mxu0 %v2058
    %2771 = vmatprep.subr.bf16.mxu0 0
    %2772 = vmatpush1.bf16.msra.mxu0 %v2059
    %2773 = vmatprep.subr.bf16.mxu0 0
    %2774 = vmatpush1.bf16.msra.mxu0 %v2060
    %2775 = vmatprep.subr.bf16.mxu0 0
    %2776 = vmatpush1.bf16.msra.mxu0 %v2061
    %2777 = vmatprep.subr.bf16.mxu0 0
    %2778 = vmatpush1.bf16.msra.mxu0 %v2062
    %2779 = vmatprep.subr.bf16.mxu0 0
    %2780 = vmatpush1.bf16.msra.mxu0 %v2063
    %2781 = vmatprep.subr.bf16.mxu0 0
    %2782 = vmatpush1.bf16.msra.mxu0 %v2064
    %2783 = vmatprep.subr.bf16.mxu0 0
    %2784 = vmatpush1.bf16.msra.mxu0 %v2065
    %2785 = vmatprep.subr.bf16.mxu0 0
    %2786 = vmatpush1.bf16.msra.mxu0 %v2066
    %2787 = vmatprep.mubr.bf16.mxu0 %v806
    %2788 = vmatmul.mubr.bf16.gmra.mrb[0].mxu0 %v792
    %v2789 = vpop.f32.mrb[0].mxu0
    %v2790 = vadd.f32 %v2750, %v2789
    %v2791 = vpop.f32.mrb[0].mxu0
    %v2792 = vpop.f32.mrb[0].mxu0
    %v2793 = vpop.f32.mrb[0].mxu0
    %2794 = vdwg.mxu0
    %2795 = vmatprep.subr.bf16.mxu0 0
    %2796 = vmatpush1.bf16.msra.mxu0 %v2067
    %2797 = vmatprep.subr.bf16.mxu0 0
    %2798 = vmatpush1.bf16.msra.mxu0 %v2068
    %2799 = vmatprep.subr.bf16.mxu0 0
    %2800 = vmatpush1.bf16.msra.mxu0 %v2069
    %2801 = vmatprep.subr.bf16.mxu0 0
    %2802 = vmatpush1.bf16.msra.mxu0 %v2070
    %2803 = vmatprep.subr.bf16.mxu0 0
    %2804 = vmatpush1.bf16.msra.mxu0 %v2071
    %2805 = vmatprep.subr.bf16.mxu0 0
    %2806 = vmatpush1.bf16.msra.mxu0 %v2072
    %2807 = vmatprep.subr.bf16.mxu0 0
    %2808 = vmatpush1.bf16.msra.mxu0 %v2073
    %2809 = vmatprep.subr.bf16.mxu0 0
    %2810 = vmatpush1.bf16.msra.mxu0 %v2074
    %2811 = vmatprep.subr.bf16.mxu0 0
    %2812 = vmatpush1.bf16.msra.mxu0 %v2075
    %2813 = vmatprep.subr.bf16.mxu0 0
    %2814 = vmatpush1.bf16.msra.mxu0 %v2076
    %2815 = vmatprep.subr.bf16.mxu0 0
    %2816 = vmatpush1.bf16.msra.mxu0 %v2077
    %2817 = vmatprep.subr.bf16.mxu0 0
    %2818 = vmatpush1.bf16.msra.mxu0 %v2078
    %2819 = vmatprep.subr.bf16.mxu0 0
    %2820 = vmatpush1.bf16.msra.mxu0 %v2079
    %2821 = vmatprep.subr.bf16.mxu0 0
    %2822 = vmatpush1.bf16.msra.mxu0 %v2080
    %2823 = vmatprep.subr.bf16.mxu0 0
    %2824 = vmatpush1.bf16.msra.mxu0 %v2081
    %2825 = vmatprep.subr.bf16.mxu0 0
    %2826 = vmatpush1.bf16.msra.mxu0 %v2082
    %2827 = vmatprep.mubr.bf16.mxu0 %v816
    %2828 = vmatmul.mubr.bf16.gmra.mrb[0].mxu0 %v814
    %v2829 = vpop.f32.mrb[0].mxu0
    %v2830 = vadd.f32 %v2790, %v2829
    %v2831 = vpop.f32.mrb[0].mxu0
    %v2832 = vpop.f32.mrb[0].mxu0
    %v2833 = vpop.f32.mrb[0].mxu0
    %2834 = vdwg.mxu0
    %2835 = vmatprep.subr.bf16.mxu0 0
    %2836 = vmatpush1.bf16.msra.mxu0 %v2083
    %2837 = vmatprep.subr.bf16.mxu0 0
    %2838 = vmatpush1.bf16.msra.mxu0 %v2084
    %2839 = vmatprep.subr.bf16.mxu0 0
    %2840 = vmatpush1.bf16.msra.mxu0 %v2085
    %2841 = vmatprep.subr.bf16.mxu0 0
    %2842 = vmatpush1.bf16.msra.mxu0 %v2086
    %2843 = vmatprep.subr.bf16.mxu0 0
    %2844 = vmatpush1.bf16.msra.mxu0 %v2087
    %2845 = vmatprep.subr.bf16.mxu0 0
    %2846 = vmatpush1.bf16.msra.mxu0 %v2088
    %2847 = vmatprep.subr.bf16.mxu0 0
    %2848 = vmatpush1.bf16.msra.mxu0 %v2089
    %2849 = vmatprep.subr.bf16.mxu0 0
    %2850 = vmatpush1.bf16.msra.mxu0 %v2090
    %2851 = vmatprep.subr.bf16.mxu0 0
    %2852 = vmatpush1.bf16.msra.mxu0 %v2091
    %2853 = vmatprep.subr.bf16.mxu0 0
    %2854 = vmatpush1.bf16.msra.mxu0 %v2092
    %2855 = vmatprep.subr.bf16.mxu0 0
    %2856 = vmatpush1.bf16.msra.mxu0 %v2093
    %2857 = vmatprep.subr.bf16.mxu0 0
    %2858 = vmatpush1.bf16.msra.mxu0 %v2094
    %2859 = vmatprep.subr.bf16.mxu0 0
    %2860 = vmatpush1.bf16.msra.mxu0 %v2095
    %2861 = vmatprep.subr.bf16.mxu0 0
    %2862 = vmatpush1.bf16.msra.mxu0 %v2096
    %2863 = vmatprep.subr.bf16.mxu0 0
    %2864 = vmatpush1.bf16.msra.mxu0 %v2097
    %2865 = vmatprep.subr.bf16.mxu0 0
    %2866 = vmatpush1.bf16.msra.mxu0 %v2098
    %2867 = vmatprep.mubr.bf16.mxu0 %v813
    %2868 = vmatmul.mubr.bf16.gmra.mrb[0].mxu0 %v799
    %v2869 = vpop.f32.mrb[0].mxu0
    %v2870 = vadd.f32 %v2830, %v2869
    %v2871 = vpop.f32.mrb[0].mxu0
    %v2872 = vpop.f32.mrb[0].mxu0
    %v2873 = vpop.f32.mrb[0].mxu0
    %2874 = vdwg.mxu0
    %2875 = vmatprep.subr.bf16.mxu0 0
    %2876 = vmatpush1.bf16.msra.mxu0 %v2099
    %2877 = vmatprep.subr.bf16.mxu0 0
    %2878 = vmatpush1.bf16.msra.mxu0 %v2100
    %2879 = vmatprep.subr.bf16.mxu0 0
    %2880 = vmatpush1.bf16.msra.mxu0 %v2101
    %2881 = vmatprep.subr.bf16.mxu0 0
    %2882 = vmatpush1.bf16.msra.mxu0 %v2102
    %2883 = vmatprep.subr.bf16.mxu0 0
    %2884 = vmatpush1.bf16.msra.mxu0 %v2103
    %2885 = vmatprep.subr.bf16.mxu0 0
    %2886 = vmatpush1.bf16.msra.mxu0 %v2104
    %2887 = vmatprep.subr.bf16.mxu0 0
    %2888 = vmatpush1.bf16.msra.mxu0 %v2105
    %2889 = vmatprep.subr.bf16.mxu0 0
    %2890 = vmatpush1.bf16.msra.mxu0 %v2106
    %2891 = vmatprep.subr.bf16.mxu0 0
    %2892 = vmatpush1.bf16.msra.mxu0 %v2107
    %2893 = vmatprep.subr.bf16.mxu0 0
    %2894 = vmatpush1.bf16.msra.mxu0 %v2108
    %2895 = vmatprep.subr.bf16.mxu0 0
    %2896 = vmatpush1.bf16.msra.mxu0 %v2109
    %2897 = vmatprep.subr.bf16.mxu0 0
    %2898 = vmatpush1.bf16.msra.mxu0 %v2110
    %2899 = vmatprep.subr.bf16.mxu0 0
    %2900 = vmatpush1.bf16.msra.mxu0 %v2111
    %2901 = vmatprep.subr.bf16.mxu0 0
    %2902 = vmatpush1.bf16.msra.mxu0 %v2112
    %2903 = vmatprep.subr.bf16.mxu0 0
    %2904 = vmatpush1.bf16.msra.mxu0 %v2113
    %2905 = vmatprep.subr.bf16.mxu0 0
    %2906 = vmatpush1.bf16.msra.mxu0 %v2114
    %2907 = vmatprep.mubr.bf16.mxu0 %v817
    %2908 = vmatmul.mubr.bf16.gmra.mrb[0].mxu0 %v815
    %v2909 = vpop.f32.mrb[0].mxu0
    %v2910 = vadd.f32 %v2870, %v2909
    %v2911 = vpop.f32.mrb[0].mxu0
    %v2912 = vpop.f32.mrb[0].mxu0
    %v2913 = vpop.f32.mrb[0].mxu0
    %2914 = vdwg.mxu0
    %2915 = vmatprep.subr.bf16.mxu0 0
    %2916 = vmatpush1.bf16.msra.mxu0 %v2115
    %2917 = vmatprep.subr.bf16.mxu0 0
    %2918 = vmatpush1.bf16.msra.mxu0 %v2116
    %2919 = vmatprep.subr.bf16.mxu0 0
    %2920 = vmatpush1.bf16.msra.mxu0 %v2117
    %2921 = vmatprep.subr.bf16.mxu0 0
    %2922 = vmatpush1.bf16.msra.mxu0 %v2118
    %2923 = vmatprep.subr.bf16.mxu0 0
    %2924 = vmatpush1.bf16.msra.mxu0 %v2119
    %2925 = vmatprep.subr.bf16.mxu0 0
    %2926 = vmatpush1.bf16.msra.mxu0 %v2120
    %2927 = vmatprep.subr.bf16.mxu0 0
    %2928 = vmatpush1.bf16.msra.mxu0 %v2121
    %2929 = vmatprep.subr.bf16.mxu0 0
    %2930 = vmatpush1.bf16.msra.mxu0 %v2122
    %2931 = vmatprep.subr.bf16.mxu0 0
    %2932 = vmatpush1.bf16.msra.mxu0 %v2123
    %2933 = vmatprep.subr.bf16.mxu0 0
    %2934 = vmatpush1.bf16.msra.mxu0 %v2124
    %2935 = vmatprep.subr.bf16.mxu0 0
    %2936 = vmatpush1.bf16.msra.mxu0 %v2125
    %2937 = vmatprep.subr.bf16.mxu0 0
    %2938 = vmatpush1.bf16.msra.mxu0 %v2126
    %2939 = vmatprep.subr.bf16.mxu0 0
    %2940 = vmatpush1.bf16.msra.mxu0 %v2127
    %2941 = vmatprep.subr.bf16.mxu0 0
    %2942 = vmatpush1.bf16.msra.mxu0 %v2128
    %2943 = vmatprep.subr.bf16.mxu0 0
    %2944 = vmatpush1.bf16.msra.mxu0 %v2129
    %2945 = vmatprep.subr.bf16.mxu0 0
    %2946 = vmatpush1.bf16.msra.mxu0 %v2130
    %2947 = vmatprep.mubr.bf16.mxu0 %v855
    %2948 = vmatmul.mubr.bf16.gmra.mrb[0].mxu0 %v841
    %v2949 = vpop.f32.mrb[0].mxu0
    %v2950 = vadd.f32 %v2910, %v2949
    %v2951 = vpop.f32.mrb[0].mxu0
    %v2952 = vpop.f32.mrb[0].mxu0
    %v2953 = vpop.f32.mrb[0].mxu0
    %2954 = vdwg.mxu0
    %2955 = vmatprep.subr.bf16.mxu0 0
    %2956 = vmatpush1.bf16.msra.mxu0 %v2131
    %2957 = vmatprep.subr.bf16.mxu0 0
    %2958 = vmatpush1.bf16.msra.mxu0 %v2132
    %2959 = vmatprep.subr.bf16.mxu0 0
    %2960 = vmatpush1.bf16.msra.mxu0 %v2133
    %2961 = vmatprep.subr.bf16.mxu0 0
    %2962 = vmatpush1.bf16.msra.mxu0 %v2134
    %2963 = vmatprep.subr.bf16.mxu0 0
    %2964 = vmatpush1.bf16.msra.mxu0 %v2135
    %2965 = vmatprep.subr.bf16.mxu0 0
    %2966 = vmatpush1.bf16.msra.mxu0 %v2136
    %2967 = vmatprep.subr.bf16.mxu0 0
    %2968 = vmatpush1.bf16.msra.mxu0 %v2137
    %2969 = vmatprep.subr.bf16.mxu0 0
    %2970 = vmatpush1.bf16.msra.mxu0 %v2138
    %2971 = vmatprep.subr.bf16.mxu0 0
    %2972 = vmatpush1.bf16.msra.mxu0 %v2139
    %2973 = vmatprep.subr.bf16.mxu0 0
    %2974 = vmatpush1.bf16.msra.mxu0 %v2140
    %2975 = vmatprep.subr.bf16.mxu0 0
    %2976 = vmatpush1.bf16.msra.mxu0 %v2141
    %2977 = vmatprep.subr.bf16.mxu0 0
    %2978 = vmatpush1.bf16.msra.mxu0 %v2142
    %2979 = vmatprep.subr.bf16.mxu0 0
    %2980 = vmatpush1.bf16.msra.mxu0 %v2143
    %2981 = vmatprep.subr.bf16.mxu0 0
    %2982 = vmatpush1.bf16.msra.mxu0 %v2144
    %2983 = vmatprep.subr.bf16.mxu0 0
    %2984 = vmatpush1.bf16.msra.mxu0 %v2145
    %2985 = vmatprep.subr.bf16.mxu0 0
    %2986 = vmatpush1.bf16.msra.mxu0 %v2146
    %2987 = vmatprep.mubr.bf16.mxu0 %v865
    %2988 = vmatmul.mubr.bf16.gmra.mrb[0].mxu0 %v863
    %v2989 = vpop.f32.mrb[0].mxu0
    %v2990 = vadd.f32 %v2950, %v2989
    %v2991 = vpop.f32.mrb[0].mxu0
    %v2992 = vpop.f32.mrb[0].mxu0
    %v2993 = vpop.f32.mrb[0].mxu0
    %2994 = vdwg.mxu0
    %2995 = vmatprep.subr.bf16.mxu0 0
    %2996 = vmatpush1.bf16.msra.mxu0 %v2147
    %2997 = vmatprep.subr.bf16.mxu0 0
    %2998 = vmatpush1.bf16.msra.mxu0 %v2148
    %2999 = vmatprep.subr.bf16.mxu0 0
    %3000 = vmatpush1.bf16.msra.mxu0 %v2149
    %3001 = vmatprep.subr.bf16.mxu0 0
    %3002 = vmatpush1.bf16.msra.mxu0 %v2150
    %3003 = vmatprep.subr.bf16.mxu0 0
    %3004 = vmatpush1.bf16.msra.mxu0 %v2151
    %3005 = vmatprep.subr.bf16.mxu0 0
    %3006 = vmatpush1.bf16.msra.mxu0 %v2152
    %3007 = vmatprep.subr.bf16.mxu0 0
    %3008 = vmatpush1.bf16.msra.mxu0 %v2153
    %3009 = vmatprep.subr.bf16.mxu0 0
    %3010 = vmatpush1.bf16.msra.mxu0 %v2154
    %3011 = vmatprep.subr.bf16.mxu0 0
    %3012 = vmatpush1.bf16.msra.mxu0 %v2155
    %3013 = vmatprep.subr.bf16.mxu0 0
    %3014 = vmatpush1.bf16.msra.mxu0 %v2156
    %3015 = vmatprep.subr.bf16.mxu0 0
    %3016 = vmatpush1.bf16.msra.mxu0 %v2157
    %3017 = vmatprep.subr.bf16.mxu0 0
    %3018 = vmatpush1.bf16.msra.mxu0 %v2158
    %3019 = vmatprep.subr.bf16.mxu0 0
    %3020 = vmatpush1.bf16.msra.mxu0 %v2159
    %3021 = vmatprep.subr.bf16.mxu0 0
    %3022 = vmatpush1.bf16.msra.mxu0 %v2160
    %3023 = vmatprep.subr.bf16.mxu0 0
    %3024 = vmatpush1.bf16.msra.mxu0 %v2161
    %3025 = vmatprep.subr.bf16.mxu0 0
    %3026 = vmatpush1.bf16.msra.mxu0 %v2162
    %3027 = vmatprep.mubr.bf16.mxu0 %v862
    %3028 = vmatmul.mubr.bf16.gmra.mrb[0].mxu0 %v848
    %v3029 = vpop.f32.mrb[0].mxu0
    %v3030 = vadd.f32 %v2990, %v3029
    %v3031 = vpop.f32.mrb[0].mxu0
    %v3032 = vpop.f32.mrb[0].mxu0
    %v3033 = vpop.f32.mrb[0].mxu0
    %3034 = vdwg.mxu0
    %3035 = vmatprep.subr.bf16.mxu0 0
    %3036 = vmatpush1.bf16.msra.mxu0 %v2163
    %3037 = vmatprep.subr.bf16.mxu0 0
    %3038 = vmatpush1.bf16.msra.mxu0 %v2164
    %3039 = vmatprep.subr.bf16.mxu0 0
    %3040 = vmatpush1.bf16.msra.mxu0 %v2165
    %3041 = vmatprep.subr.bf16.mxu0 0
    %3042 = vmatpush1.bf16.msra.mxu0 %v2166
    %3043 = vmatprep.subr.bf16.mxu0 0
    %3044 = vmatpush1.bf16.msra.mxu0 %v2167
    %3045 = vmatprep.subr.bf16.mxu0 0
    %3046 = vmatpush1.bf16.msra.mxu0 %v2168
    %3047 = vmatprep.subr.bf16.mxu0 0
    %3048 = vmatpush1.bf16.msra.mxu0 %v2169
    %3049 = vmatprep.subr.bf16.mxu0 0
    %3050 = vmatpush1.bf16.msra.mxu0 %v2170
    %3051 = vmatprep.subr.bf16.mxu0 0
    %3052 = vmatpush1.bf16.msra.mxu0 %v2171
    %3053 = vmatprep.subr.bf16.mxu0 0
    %3054 = vmatpush1.bf16.msra.mxu0 %v2172
    %3055 = vmatprep.subr.bf16.mxu0 0
    %3056 = vmatpush1.bf16.msra.mxu0 %v2173
    %3057 = vmatprep.subr.bf16.mxu0 0
    %3058 = vmatpush1.bf16.msra.mxu0 %v2174
    %3059 = vmatprep.subr.bf16.mxu0 0
    %3060 = vmatpush1.bf16.msra.mxu0 %v2175
    %3061 = vmatprep.subr.bf16.mxu0 0
    %3062 = vmatpush1.bf16.msra.mxu0 %v2176
    %3063 = vmatprep.subr.bf16.mxu0 0
    %3064 = vmatpush1.bf16.msra.mxu0 %v2177
    %3065 = vmatprep.subr.bf16.mxu0 0
    %3066 = vmatpush1.bf16.msra.mxu0 %v2178
    %3067 = vmatprep.mubr.bf16.mxu0 %v866
    %3068 = vmatmul.mubr.bf16.gmra.mrb[0].mxu0 %v864
    %v3069 = vpop.f32.mrb[0].mxu0
    %v3070 = vadd.f32 %v3030, %v3069
    %v3071 = vpop.f32.mrb[0].mxu0
    %v3072 = vpop.f32.mrb[0].mxu0
    %v3073 = vpop.f32.mrb[0].mxu0
    %3074 = vdwg.mxu0
    %v3075 = vmax.f32 %v3070, 0.0
    %v3076 = vld [vmem:[%s0] sm:$0x1]
    %v3077 = vld [vmem:[#allocation7] sm:$0xff]
    %v3078 = vld [vmem:[#allocation7 + $0x8] sm:$0xff]
    %v3079 = vld [vmem:[#allocation7 + $0x10] sm:$0xff]
    %v3080 = vld [vmem:[#allocation7 + $0x18] sm:$0xff]
    %v3081 = vld [vmem:[#allocation7 + $0x20] sm:$0xff]
    %v3082 = vld [vmem:[#allocation7 + $0x28] sm:$0xff]
    %v3083 = vld [vmem:[#allocation7 + $0x30] sm:$0xff]
    %v3084 = vld [vmem:[#allocation7 + $0x38] sm:$0xff]
    %v3085 = vld [vmem:[#allocation7 + $0x40] sm:$0xff]
    %v3086 = vld [vmem:[#allocation7 + $0x48] sm:$0xff]
    %v3087 = vld [vmem:[#allocation7 + $0x50] sm:$0xff]
    %v3088 = vld [vmem:[#allocation7 + $0x58] sm:$0xff]
    %v3089 = vld [vmem:[#allocation7 + $0x60] sm:$0xff]
    %v3090 = vld [vmem:[#allocation7 + $0x68] sm:$0xff]
    %v3091 = vld [vmem:[#allocation7 + $0x70] sm:$0xff]
    %v3092 = vld [vmem:[#allocation7 + $0x78] sm:$0xff]
    %v3093 = vld [vmem:[#allocation7 + $0x80] sm:$0xff]
    %v3094 = vld [vmem:[#allocation7 + $0x88] sm:$0xff]
    %v3095 = vld [vmem:[#allocation7 + $0x90] sm:$0xff]
    %v3096 = vld [vmem:[#allocation7 + $0x98] sm:$0xff]
    %v3097 = vld [vmem:[#allocation7 + $0xa0] sm:$0xff]
    %v3098 = vld [vmem:[#allocation7 + $0xa8] sm:$0xff]
    %v3099 = vld [vmem:[#allocation7 + $0xb0] sm:$0xff]
    %v3100 = vld [vmem:[#allocation7 + $0xb8] sm:$0xff]
    %v3101 = vld [vmem:[#allocation7 + $0xc0] sm:$0xff]
    %v3102 = vld [vmem:[#allocation7 + $0xc8] sm:$0xff]
    %v3103 = vld [vmem:[#allocation7 + $0xd0] sm:$0xff]
    %v3104 = vld [vmem:[#allocation7 + $0xd8] sm:$0xff]
    %v3105 = vld [vmem:[#allocation7 + $0xe0] sm:$0xff]
    %v3106 = vld [vmem:[#allocation7 + $0xe8] sm:$0xff]
    %v3107 = vld [vmem:[#allocation7 + $0xf0] sm:$0xff]
    %v3108 = vld [vmem:[#allocation7 + $0xf8] sm:$0xff]
    %v3109 = vld [vmem:[#allocation7 + $0x100] sm:$0xff]
    %v3110 = vld [vmem:[#allocation7 + $0x108] sm:$0xff]
    %v3111 = vld [vmem:[#allocation7 + $0x110] sm:$0xff]
    %v3112 = vld [vmem:[#allocation7 + $0x118] sm:$0xff]
    %v3113 = vld [vmem:[#allocation7 + $0x120] sm:$0xff]
    %v3114 = vld [vmem:[#allocation7 + $0x128] sm:$0xff]
    %v3115 = vld [vmem:[#allocation7 + $0x130] sm:$0xff]
    %v3116 = vld [vmem:[#allocation7 + $0x138] sm:$0xff]
    %v3117 = vld [vmem:[#allocation7 + $0x140] sm:$0xff]
    %v3118 = vld [vmem:[#allocation7 + $0x148] sm:$0xff]
    %v3119 = vld [vmem:[#allocation7 + $0x150] sm:$0xff]
    %v3120 = vld [vmem:[#allocation7 + $0x158] sm:$0xff]
    %v3121 = vld [vmem:[#allocation7 + $0x160] sm:$0xff]
    %v3122 = vld [vmem:[#allocation7 + $0x168] sm:$0xff]
    %v3123 = vld [vmem:[#allocation7 + $0x170] sm:$0xff]
    %v3124 = vld [vmem:[#allocation7 + $0x178] sm:$0xff]
    %v3125 = vld [vmem:[#allocation7 + $0x180] sm:$0xff]
    %v3126 = vld [vmem:[#allocation7 + $0x188] sm:$0xff]
    %v3127 = vld [vmem:[#allocation7 + $0x190] sm:$0xff]
    %v3128 = vld [vmem:[#allocation7 + $0x198] sm:$0xff]
    %v3129 = vld [vmem:[#allocation7 + $0x1a0] sm:$0xff]
    %v3130 = vld [vmem:[#allocation7 + $0x1a8] sm:$0xff]
    %v3131 = vld [vmem:[#allocation7 + $0x1b0] sm:$0xff]
    %v3132 = vld [vmem:[#allocation7 + $0x1b8] sm:$0xff]
    %v3133 = vld [vmem:[#allocation7 + $0x1c0] sm:$0xff]
    %v3134 = vld [vmem:[#allocation7 + $0x1c8] sm:$0xff]
    %v3135 = vld [vmem:[#allocation7 + $0x1d0] sm:$0xff]
    %v3136 = vld [vmem:[#allocation7 + $0x1d8] sm:$0xff]
    %v3137 = vld [vmem:[#allocation7 + $0x1e0] sm:$0xff]
    %v3138 = vld [vmem:[#allocation7 + $0x1e8] sm:$0xff]
    %v3139 = vld [vmem:[#allocation7 + $0x1f0] sm:$0xff]
    %v3140 = vld [vmem:[#allocation7 + $0x1f8] sm:$0xff]
    %v3141 = vpack.c.bf16 %v3075, %v3075
    %v3142 = vld [vmem:[#allocation8] sm:$0xff]
    %v3143 = vld [vmem:[#allocation8 + $0x8] sm:$0xff]
    %v3144 = vld [vmem:[#allocation8 + $0x10] sm:$0xff]
    %v3145 = vld [vmem:[#allocation8 + $0x18] sm:$0xff]
    %v3146 = vld [vmem:[#allocation8 + $0x20] sm:$0xff]
    %v3147 = vld [vmem:[#allocation8 + $0x28] sm:$0xff]
    %v3148 = vld [vmem:[#allocation8 + $0x30] sm:$0xff]
    %v3149 = vld [vmem:[#allocation8 + $0x38] sm:$0xff]
    %v3150 = vld [vmem:[#allocation8 + $0x40] sm:$0xff]
    %v3151 = vld [vmem:[#allocation8 + $0x48] sm:$0xff]
    %v3152 = vld [vmem:[#allocation8 + $0x50] sm:$0xff]
    %v3153 = vld [vmem:[#allocation8 + $0x58] sm:$0xff]
    %v3154 = vld [vmem:[#allocation8 + $0x60] sm:$0xff]
    %v3155 = vld [vmem:[#allocation8 + $0x68] sm:$0xff]
    %v3156 = vld [vmem:[#allocation8 + $0x70] sm:$0xff]
    %v3157 = vld [vmem:[#allocation8 + $0x78] sm:$0xff]
    %v3158 = vld [vmem:[#allocation8 + $0x80] sm:$0xff]
    %v3159 = vld [vmem:[#allocation8 + $0x88] sm:$0xff]
    %v3160 = vld [vmem:[#allocation8 + $0x90] sm:$0xff]
    %v3161 = vld [vmem:[#allocation8 + $0x98] sm:$0xff]
    %v3162 = vld [vmem:[#allocation8 + $0xa0] sm:$0xff]
    %v3163 = vld [vmem:[#allocation8 + $0xa8] sm:$0xff]
    %v3164 = vld [vmem:[#allocation8 + $0xb0] sm:$0xff]
    %v3165 = vld [vmem:[#allocation8 + $0xb8] sm:$0xff]
    %v3166 = vld [vmem:[#allocation8 + $0xc0] sm:$0xff]
    %v3167 = vld [vmem:[#allocation8 + $0xc8] sm:$0xff]
    %v3168 = vld [vmem:[#allocation8 + $0xd0] sm:$0xff]
    %v3169 = vld [vmem:[#allocation8 + $0xd8] sm:$0xff]
    %v3170 = vld [vmem:[#allocation8 + $0xe0] sm:$0xff]
    %v3171 = vld [vmem:[#allocation8 + $0xe8] sm:$0xff]
    %v3172 = vld [vmem:[#allocation8 + $0xf0] sm:$0xff]
    %v3173 = vld [vmem:[#allocation8 + $0xf8] sm:$0xff]
    %v3174 = vld [vmem:[#allocation8 + $0x100] sm:$0xff]
    %v3175 = vld [vmem:[#allocation8 + $0x108] sm:$0xff]
    %v3176 = vld [vmem:[#allocation8 + $0x110] sm:$0xff]
    %v3177 = vld [vmem:[#allocation8 + $0x118] sm:$0xff]
    %v3178 = vld [vmem:[#allocation8 + $0x120] sm:$0xff]
    %v3179 = vld [vmem:[#allocation8 + $0x128] sm:$0xff]
    %v3180 = vld [vmem:[#allocation8 + $0x130] sm:$0xff]
    %v3181 = vld [vmem:[#allocation8 + $0x138] sm:$0xff]
    %v3182 = vld [vmem:[#allocation8 + $0x140] sm:$0xff]
    %v3183 = vld [vmem:[#allocation8 + $0x148] sm:$0xff]
    %v3184 = vld [vmem:[#allocation8 + $0x150] sm:$0xff]
    %v3185 = vld [vmem:[#allocation8 + $0x158] sm:$0xff]
    %v3186 = vld [vmem:[#allocation8 + $0x160] sm:$0xff]
    %v3187 = vld [vmem:[#allocation8 + $0x168] sm:$0xff]
    %v3188 = vld [vmem:[#allocation8 + $0x170] sm:$0xff]
    %v3189 = vld [vmem:[#allocation8 + $0x178] sm:$0xff]
    %v3190 = vld [vmem:[#allocation8 + $0x180] sm:$0xff]
    %v3191 = vld [vmem:[#allocation8 + $0x188] sm:$0xff]
    %v3192 = vld [vmem:[#allocation8 + $0x190] sm:$0xff]
    %v3193 = vld [vmem:[#allocation8 + $0x198] sm:$0xff]
    %v3194 = vld [vmem:[#allocation8 + $0x1a0] sm:$0xff]
    %v3195 = vld [vmem:[#allocation8 + $0x1a8] sm:$0xff]
    %v3196 = vld [vmem:[#allocation8 + $0x1b0] sm:$0xff]
    %v3197 = vld [vmem:[#allocation8 + $0x1b8] sm:$0xff]
    %v3198 = vld [vmem:[#allocation8 + $0x1c0] sm:$0xff]
    %v3199 = vld [vmem:[#allocation8 + $0x1c8] sm:$0xff]
    %v3200 = vld [vmem:[#allocation8 + $0x1d0] sm:$0xff]
    %v3201 = vld [vmem:[#allocation8 + $0x1d8] sm:$0xff]
    %v3202 = vld [vmem:[#allocation8 + $0x1e0] sm:$0xff]
    %v3203 = vld [vmem:[#allocation8 + $0x1e8] sm:$0xff]
    %v3204 = vld [vmem:[#allocation8 + $0x1f0] sm:$0xff]
    %v3205 = vld [vmem:[#allocation8 + $0x1f8] sm:$0xff]
    %v3270 = vunpack.c.l.b16 %v3142
    %v3271 = vunpack.c.h.b16 %v3142
    %v3272 = vunpack.c.l.b16 %v3143
    %v3273 = vunpack.c.h.b16 %v3143
    %v3274 = vunpack.c.l.b16 %v3144
    %v3275 = vunpack.c.h.b16 %v3144
    %v3276 = vunpack.c.l.b16 %v3145
    %v3277 = vunpack.c.h.b16 %v3145
    %v3278 = vunpack.c.l.b16 %v3146
    %v3279 = vunpack.c.h.b16 %v3146
    %v3280 = vunpack.c.l.b16 %v3147
    %v3281 = vunpack.c.h.b16 %v3147
    %v3282 = vunpack.c.l.b16 %v3148
    %v3283 = vunpack.c.h.b16 %v3148
    %v3284 = vunpack.c.l.b16 %v3149
    %v3285 = vunpack.c.h.b16 %v3149
    %v3286 = vunpack.c.l.b16 %v3150
    %v3287 = vunpack.c.h.b16 %v3150
    %v3288 = vunpack.c.l.b16 %v3151
    %v3289 = vunpack.c.h.b16 %v3151
    %v3290 = vunpack.c.l.b16 %v3152
    %v3291 = vunpack.c.h.b16 %v3152
    %v3292 = vunpack.c.l.b16 %v3153
    %v3293 = vunpack.c.h.b16 %v3153
    %v3294 = vunpack.c.l.b16 %v3154
    %v3295 = vunpack.c.h.b16 %v3154
    %v3296 = vunpack.c.l.b16 %v3155
    %v3297 = vunpack.c.h.b16 %v3155
    %v3298 = vunpack.c.l.b16 %v3156
    %v3299 = vunpack.c.h.b16 %v3156
    %v3300 = vunpack.c.l.b16 %v3157
    %v3301 = vunpack.c.h.b16 %v3157
    %v3302 = vunpack.c.l.b16 %v3158
    %v3303 = vunpack.c.h.b16 %v3158
    %v3304 = vunpack.c.l.b16 %v3159
    %v3305 = vunpack.c.h.b16 %v3159
    %v3306 = vunpack.c.l.b16 %v3160
    %v3307 = vunpack.c.h.b16 %v3160
    %v3308 = vunpack.c.l.b16 %v3161
    %v3309 = vunpack.c.h.b16 %v3161
    %v3310 = vunpack.c.l.b16 %v3162
    %v3311 = vunpack.c.h.b16 %v3162
    %v3312 = vunpack.c.l.b16 %v3163
    %v3313 = vunpack.c.h.b16 %v3163
    %v3314 = vunpack.c.l.b16 %v3164
    %v3315 = vunpack.c.h.b16 %v3164
    %v3316 = vunpack.c.l.b16 %v3165
    %v3317 = vunpack.c.h.b16 %v3165
    %v3318 = vunpack.c.l.b16 %v3166
    %v3319 = vunpack.c.h.b16 %v3166
    %v3320 = vunpack.c.l.b16 %v3167
    %v3321 = vunpack.c.h.b16 %v3167
    %v3322 = vunpack.c.l.b16 %v3168
    %v3323 = vunpack.c.h.b16 %v3168
    %v3324 = vunpack.c.l.b16 %v3169
    %v3325 = vunpack.c.h.b16 %v3169
    %v3326 = vunpack.c.l.b16 %v3170
    %v3327 = vunpack.c.h.b16 %v3170
    %v3328 = vunpack.c.l.b16 %v3171
    %v3329 = vunpack.c.h.b16 %v3171
    %v3330 = vunpack.c.l.b16 %v3172
    %v3331 = vunpack.c.h.b16 %v3172
    %v3332 = vunpack.c.l.b16 %v3173
    %v3333 = vunpack.c.h.b16 %v3173
    %v3334 = vunpack.c.l.b16 %v3174
    %v3335 = vunpack.c.h.b16 %v3174
    %v3336 = vunpack.c.l.b16 %v3175
    %v3337 = vunpack.c.h.b16 %v3175
    %v3338 = vunpack.c.l.b16 %v3176
    %v3339 = vunpack.c.h.b16 %v3176
    %v3340 = vunpack.c.l.b16 %v3177
    %v3341 = vunpack.c.h.b16 %v3177
    %v3342 = vunpack.c.l.b16 %v3178
    %v3343 = vunpack.c.h.b16 %v3178
    %v3344 = vunpack.c.l.b16 %v3179
    %v3345 = vunpack.c.h.b16 %v3179
    %v3346 = vunpack.c.l.b16 %v3180
    %v3347 = vunpack.c.h.b16 %v3180
    %v3348 = vunpack.c.l.b16 %v3181
    %v3349 = vunpack.c.h.b16 %v3181
    %v3350 = vunpack.c.l.b16 %v3182
    %v3351 = vunpack.c.h.b16 %v3182
    %v3352 = vunpack.c.l.b16 %v3183
    %v3353 = vunpack.c.h.b16 %v3183
    %v3354 = vunpack.c.l.b16 %v3184
    %v3355 = vunpack.c.h.b16 %v3184
    %v3356 = vunpack.c.l.b16 %v3185
    %v3357 = vunpack.c.h.b16 %v3185
    %v3358 = vunpack.c.l.b16 %v3186
    %v3359 = vunpack.c.h.b16 %v3186
    %v3360 = vunpack.c.l.b16 %v3187
    %v3361 = vunpack.c.h.b16 %v3187
    %v3362 = vunpack.c.l.b16 %v3188
    %v3363 = vunpack.c.h.b16 %v3188
    %v3364 = vunpack.c.l.b16 %v3189
    %v3365 = vunpack.c.h.b16 %v3189
    %v3366 = vunpack.c.l.b16 %v3190
    %v3367 = vunpack.c.h.b16 %v3190
    %v3368 = vunpack.c.l.b16 %v3191
    %v3369 = vunpack.c.h.b16 %v3191
    %v3370 = vunpack.c.l.b16 %v3192
    %v3371 = vunpack.c.h.b16 %v3192
    %v3372 = vunpack.c.l.b16 %v3193
    %v3373 = vunpack.c.h.b16 %v3193
    %v3374 = vunpack.c.l.b16 %v3194
    %v3375 = vunpack.c.h.b16 %v3194
    %v3376 = vunpack.c.l.b16 %v3195
    %v3377 = vunpack.c.h.b16 %v3195
    %v3378 = vunpack.c.l.b16 %v3196
    %v3379 = vunpack.c.h.b16 %v3196
    %v3380 = vunpack.c.l.b16 %v3197
    %v3381 = vunpack.c.h.b16 %v3197
    %v3382 = vunpack.c.l.b16 %v3198
    %v3383 = vunpack.c.h.b16 %v3198
    %v3384 = vunpack.c.l.b16 %v3199
    %v3385 = vunpack.c.h.b16 %v3199
    %v3386 = vunpack.c.l.b16 %v3200
    %v3387 = vunpack.c.h.b16 %v3200
    %v3388 = vunpack.c.l.b16 %v3201
    %v3389 = vunpack.c.h.b16 %v3201
    %v3390 = vunpack.c.l.b16 %v3202
    %v3391 = vunpack.c.h.b16 %v3202
    %v3392 = vunpack.c.l.b16 %v3203
    %v3393 = vunpack.c.h.b16 %v3203
    %v3394 = vunpack.c.l.b16 %v3204
    %v3395 = vunpack.c.h.b16 %v3204
    %v3396 = vunpack.c.l.b16 %v3205
    %v3397 = vunpack.c.h.b16 %v3205
    %v3398 = vpack.c.b16 %v3278, %v3270
    %v3399 = vpack.c.b16 %v3279, %v3271
    %v3400 = vpack.c.b16 %v3280, %v3272
    %v3401 = vpack.c.b16 %v3281, %v3273
    %v3402 = vpack.c.b16 %v3282, %v3274
    %v3403 = vpack.c.b16 %v3283, %v3275
    %v3404 = vpack.c.b16 %v3284, %v3276
    %v3405 = vpack.c.b16 %v3285, %v3277
    %v3406 = vpack.c.b16 %v3294, %v3286
    %v3407 = vpack.c.b16 %v3295, %v3287
    %v3408 = vpack.c.b16 %v3296, %v3288
    %v3409 = vpack.c.b16 %v3297, %v3289
    %v3410 = vpack.c.b16 %v3298, %v3290
    %v3411 = vpack.c.b16 %v3299, %v3291
    %v3412 = vpack.c.b16 %v3300, %v3292
    %v3413 = vpack.c.b16 %v3301, %v3293
    %v3414 = vpack.c.b16 %v3310, %v3302
    %v3415 = vpack.c.b16 %v3311, %v3303
    %v3416 = vpack.c.b16 %v3312, %v3304
    %v3417 = vpack.c.b16 %v3313, %v3305
    %v3418 = vpack.c.b16 %v3314, %v3306
    %v3419 = vpack.c.b16 %v3315, %v3307
    %v3420 = vpack.c.b16 %v3316, %v3308
    %v3421 = vpack.c.b16 %v3317, %v3309
    %v3422 = vpack.c.b16 %v3326, %v3318
    %v3423 = vpack.c.b16 %v3327, %v3319
    %v3424 = vpack.c.b16 %v3328, %v3320
    %v3425 = vpack.c.b16 %v3329, %v3321
    %v3426 = vpack.c.b16 %v3330, %v3322
    %v3427 = vpack.c.b16 %v3331, %v3323
    %v3428 = vpack.c.b16 %v3332, %v3324
    %v3429 = vpack.c.b16 %v3333, %v3325
    %v3430 = vpack.c.b16 %v3342, %v3334
    %v3431 = vpack.c.b16 %v3343, %v3335
    %v3432 = vpack.c.b16 %v3344, %v3336
    %v3433 = vpack.c.b16 %v3345, %v3337
    %v3434 = vpack.c.b16 %v3346, %v3338
    %v3435 = vpack.c.b16 %v3347, %v3339
    %v3436 = vpack.c.b16 %v3348, %v3340
    %v3437 = vpack.c.b16 %v3349, %v3341
    %v3438 = vpack.c.b16 %v3358, %v3350
    %v3439 = vpack.c.b16 %v3359, %v3351
    %v3440 = vpack.c.b16 %v3360, %v3352
    %v3441 = vpack.c.b16 %v3361, %v3353
    %v3442 = vpack.c.b16 %v3362, %v3354
    %v3443 = vpack.c.b16 %v3363, %v3355
    %v3444 = vpack.c.b16 %v3364, %v3356
    %v3445 = vpack.c.b16 %v3365, %v3357
    %v3446 = vpack.c.b16 %v3374, %v3366
    %v3447 = vpack.c.b16 %v3375, %v3367
    %v3448 = vpack.c.b16 %v3376, %v3368
    %v3449 = vpack.c.b16 %v3377, %v3369
    %v3450 = vpack.c.b16 %v3378, %v3370
    %v3451 = vpack.c.b16 %v3379, %v3371
    %v3452 = vpack.c.b16 %v3380, %v3372
    %v3453 = vpack.c.b16 %v3381, %v3373
    %v3454 = vpack.c.b16 %v3390, %v3382
    %v3455 = vpack.c.b16 %v3391, %v3383
    %v3456 = vpack.c.b16 %v3392, %v3384
    %v3457 = vpack.c.b16 %v3393, %v3385
    %v3458 = vpack.c.b16 %v3394, %v3386
    %v3459 = vpack.c.b16 %v3395, %v3387
    %v3460 = vpack.c.b16 %v3396, %v3388
    %v3461 = vpack.c.b16 %v3397, %v3389
    %3526 = vmatprep.subr.bf16.mxu0 %v3399
    %3527 = vmatpush1.bf16.msra.mxu0 %v3398
    %3528 = vmatprep.subr.bf16.mxu0 %v3407
    %3529 = vmatpush1.bf16.msra.mxu0 %v3406
    %3530 = vmatprep.subr.bf16.mxu0 %v3415
    %3531 = vmatpush1.bf16.msra.mxu0 %v3414
    %3532 = vmatprep.subr.bf16.mxu0 %v3423
    %3533 = vmatpush1.bf16.msra.mxu0 %v3422
    %3534 = vmatprep.subr.bf16.mxu0 %v3431
    %3535 = vmatpush1.bf16.msra.mxu0 %v3430
    %3536 = vmatprep.subr.bf16.mxu0 %v3439
    %3537 = vmatpush1.bf16.msra.mxu0 %v3438
    %3538 = vmatprep.subr.bf16.mxu0 %v3447
    %3539 = vmatpush1.bf16.msra.mxu0 %v3446
    %3540 = vmatprep.subr.bf16.mxu0 %v3455
    %3541 = vmatpush1.bf16.msra.mxu0 %v3454
    %3542 = vmatprep.subr.bf16.mxu0 0
    %3543 = vmatpush1.bf16.msra.mxu0 0
    %3544 = vmatprep.subr.bf16.mxu0 0
    %3545 = vmatpush1.bf16.msra.mxu0 0
    %3546 = vmatprep.subr.bf16.mxu0 0
    %3547 = vmatpush1.bf16.msra.mxu0 0
    %3548 = vmatprep.subr.bf16.mxu0 0
    %3549 = vmatpush1.bf16.msra.mxu0 0
    %3550 = vmatprep.subr.bf16.mxu0 0
    %3551 = vmatpush1.bf16.msra.mxu0 0
    %3552 = vmatprep.subr.bf16.mxu0 0
    %3553 = vmatpush1.bf16.msra.mxu0 0
    %3554 = vmatprep.subr.bf16.mxu0 0
    %3555 = vmatpush1.bf16.msra.mxu0 0
    %3556 = vmatprep.subr.bf16.mxu0 0
    %3557 = vmatpush1.bf16.msra.mxu0 0
    %3558 = vmatprep.mubr.bf16.mxu0 0
    %3559 = vmatmul.mubr.bf16.gmra.mrb[0].mxu0 %v3141
    %v3560 = vpop.f32.mrb[0].mxu0
    %v3561 = vadd.f32 0.0, %v3560
    %v3562 = vpop.f32.mrb[0].mxu0
    %v3563 = vadd.f32 0.0, %v3562
    %v3564 = vpop.f32.mrb[0].mxu0
    %v3565 = vpop.f32.mrb[0].mxu0
    %3566 = vdwg.mxu0
    %3567 = vmatprep.subr.bf16.mxu0 %v3401
    %3568 = vmatpush1.bf16.msra.mxu0 %v3400
    %3569 = vmatprep.subr.bf16.mxu0 %v3409
    %3570 = vmatpush1.bf16.msra.mxu0 %v3408
    %3571 = vmatprep.subr.bf16.mxu0 %v3417
    %3572 = vmatpush1.bf16.msra.mxu0 %v3416
    %3573 = vmatprep.subr.bf16.mxu0 %v3425
    %3574 = vmatpush1.bf16.msra.mxu0 %v3424
    %3575 = vmatprep.subr.bf16.mxu0 %v3433
    %3576 = vmatpush1.bf16.msra.mxu0 %v3432
    %3577 = vmatprep.subr.bf16.mxu0 %v3441
    %3578 = vmatpush1.bf16.msra.mxu0 %v3440
    %3579 = vmatprep.subr.bf16.mxu0 %v3449
    %3580 = vmatpush1.bf16.msra.mxu0 %v3448
    %3581 = vmatprep.subr.bf16.mxu0 %v3457
    %3582 = vmatpush1.bf16.msra.mxu0 %v3456
    %3583 = vmatprep.subr.bf16.mxu0 0
    %3584 = vmatpush1.bf16.msra.mxu0 0
    %3585 = vmatprep.subr.bf16.mxu0 0
    %3586 = vmatpush1.bf16.msra.mxu0 0
    %3587 = vmatprep.subr.bf16.mxu0 0
    %3588 = vmatpush1.bf16.msra.mxu0 0
    %3589 = vmatprep.subr.bf16.mxu0 0
    %3590 = vmatpush1.bf16.msra.mxu0 0
    %3591 = vmatprep.subr.bf16.mxu0 0
    %3592 = vmatpush1.bf16.msra.mxu0 0
    %3593 = vmatprep.subr.bf16.mxu0 0
    %3594 = vmatpush1.bf16.msra.mxu0 0
    %3595 = vmatprep.subr.bf16.mxu0 0
    %3596 = vmatpush1.bf16.msra.mxu0 0
    %3597 = vmatprep.subr.bf16.mxu0 0
    %3598 = vmatpush1.bf16.msra.mxu0 0
    %3599 = vmatprep.mubr.bf16.mxu0 0
    %3600 = vmatmul.mubr.bf16.gmra.mrb[0].mxu0 %v3141
    %v3601 = vpop.f32.mrb[0].mxu0
    %v3602 = vadd.f32 0.0, %v3601
    %v3603 = vpop.f32.mrb[0].mxu0
    %v3604 = vadd.f32 0.0, %v3603
    %v3605 = vpop.f32.mrb[0].mxu0
    %v3606 = vpop.f32.mrb[0].mxu0
    %3607 = vdwg.mxu0
    %3608 = vmatprep.subr.bf16.mxu0 %v3403
    %3609 = vmatpush1.bf16.msra.mxu0 %v3402
    %3610 = vmatprep.subr.bf16.mxu0 %v3411
    %3611 = vmatpush1.bf16.msra.mxu0 %v3410
    %3612 = vmatprep.subr.bf16.mxu0 %v3419
    %3613 = vmatpush1.bf16.msra.mxu0 %v3418
    %3614 = vmatprep.subr.bf16.mxu0 %v3427
    %3615 = vmatpush1.bf16.msra.mxu0 %v3426
    %3616 = vmatprep.subr.bf16.mxu0 %v3435
    %3617 = vmatpush1.bf16.msra.mxu0 %v3434
    %3618 = vmatprep.subr.bf16.mxu0 %v3443
    %3619 = vmatpush1.bf16.msra.mxu0 %v3442
    %3620 = vmatprep.subr.bf16.mxu0 %v3451
    %3621 = vmatpush1.bf16.msra.mxu0 %v3450
    %3622 = vmatprep.subr.bf16.mxu0 %v3459
    %3623 = vmatpush1.bf16.msra.mxu0 %v3458
    %3624 = vmatprep.subr.bf16.mxu0 0
    %3625 = vmatpush1.bf16.msra.mxu0 0
    %3626 = vmatprep.subr.bf16.mxu0 0
    %3627 = vmatpush1.bf16.msra.mxu0 0
    %3628 = vmatprep.subr.bf16.mxu0 0
    %3629 = vmatpush1.bf16.msra.mxu0 0
    %3630 = vmatprep.subr.bf16.mxu0 0
    %3631 = vmatpush1.bf16.msra.mxu0 0
    %3632 = vmatprep.subr.bf16.mxu0 0
    %3633 = vmatpush1.bf16.msra.mxu0 0
    %3634 = vmatprep.subr.bf16.mxu0 0
    %3635 = vmatpush1.bf16.msra.mxu0 0
    %3636 = vmatprep.subr.bf16.mxu0 0
    %3637 = vmatpush1.bf16.msra.mxu0 0
    %3638 = vmatprep.subr.bf16.mxu0 0
    %3639 = vmatpush1.bf16.msra.mxu0 0
    %3640 = vmatprep.mubr.bf16.mxu0 0
    %3641 = vmatmul.mubr.bf16.gmra.mrb[0].mxu0 %v3141
    %v3642 = vpop.f32.mrb[0].mxu0
    %v3643 = vadd.f32 0.0, %v3642
    %v3644 = vpop.f32.mrb[0].mxu0
    %v3645 = vadd.f32 0.0, %v3644
    %v3646 = vpop.f32.mrb[0].mxu0
    %v3647 = vpop.f32.mrb[0].mxu0
    %3648 = vdwg.mxu0
    %3649 = vmatprep.subr.bf16.mxu0 %v3405
    %3650 = vmatpush1.bf16.msra.mxu0 %v3404
    %3651 = vmatprep.subr.bf16.mxu0 %v3413
    %3652 = vmatpush1.bf16.msra.mxu0 %v3412
    %3653 = vmatprep.subr.bf16.mxu0 %v3421
    %3654 = vmatpush1.bf16.msra.mxu0 %v3420
    %3655 = vmatprep.subr.bf16.mxu0 %v3429
    %3656 = vmatpush1.bf16.msra.mxu0 %v3428
    %3657 = vmatprep.subr.bf16.mxu0 %v3437
    %3658 = vmatpush1.bf16.msra.mxu0 %v3436
    %3659 = vmatprep.subr.bf16.mxu0 %v3445
    %3660 = vmatpush1.bf16.msra.mxu0 %v3444
    %3661 = vmatprep.subr.bf16.mxu0 %v3453
    %3662 = vmatpush1.bf16.msra.mxu0 %v3452
    %3663 = vmatprep.subr.bf16.mxu0 %v3461
    %3664 = vmatpush1.bf16.msra.mxu0 %v3460
    %3665 = vmatprep.subr.bf16.mxu0 0
    %3666 = vmatpush1.bf16.msra.mxu0 0
    %3667 = vmatprep.subr.bf16.mxu0 0
    %3668 = vmatpush1.bf16.msra.mxu0 0
    %3669 = vmatprep.subr.bf16.mxu0 0
    %3670 = vmatpush1.bf16.msra.mxu0 0
    %3671 = vmatprep.subr.bf16.mxu0 0
    %3672 = vmatpush1.bf16.msra.mxu0 0
    %3673 = vmatprep.subr.bf16.mxu0 0
    %3674 = vmatpush1.bf16.msra.mxu0 0
    %3675 = vmatprep.subr.bf16.mxu0 0
    %3676 = vmatpush1.bf16.msra.mxu0 0
    %3677 = vmatprep.subr.bf16.mxu0 0
    %3678 = vmatpush1.bf16.msra.mxu0 0
    %3679 = vmatprep.subr.bf16.mxu0 0
    %3680 = vmatpush1.bf16.msra.mxu0 0
    %3681 = vmatprep.mubr.bf16.mxu0 0
    %3682 = vmatmul.mubr.bf16.gmra.mrb[0].mxu0 %v3141
    %v3683 = vpop.f32.mrb[0].mxu0
    %v3684 = vadd.f32 0.0, %v3683
    %v3685 = vpop.f32.mrb[0].mxu0
    %v3686 = vadd.f32 0.0, %v3685
    %v3687 = vpop.f32.mrb[0].mxu0
    %v3688 = vpop.f32.mrb[0].mxu0
    %3689 = vdwg.mxu0
    %v3754 = vunpack.c.l.b16 %v3077
    %v3755 = vunpack.c.h.b16 %v3077
    %v3756 = vunpack.c.l.b16 %v3078
    %v3757 = vunpack.c.h.b16 %v3078
    %v3758 = vunpack.c.l.b16 %v3079
    %v3759 = vunpack.c.h.b16 %v3079
    %v3760 = vunpack.c.l.b16 %v3080
    %v3761 = vunpack.c.h.b16 %v3080
    %v3762 = vunpack.c.l.b16 %v3081
    %v3763 = vunpack.c.h.b16 %v3081
    %v3764 = vunpack.c.l.b16 %v3082
    %v3765 = vunpack.c.h.b16 %v3082
    %v3766 = vunpack.c.l.b16 %v3083
    %v3767 = vunpack.c.h.b16 %v3083
    %v3768 = vunpack.c.l.b16 %v3084
    %v3769 = vunpack.c.h.b16 %v3084
    %v3770 = vunpack.c.l.b16 %v3085
    %v3771 = vunpack.c.h.b16 %v3085
    %v3772 = vunpack.c.l.b16 %v3086
    %v3773 = vunpack.c.h.b16 %v3086
    %v3774 = vunpack.c.l.b16 %v3087
    %v3775 = vunpack.c.h.b16 %v3087
    %v3776 = vunpack.c.l.b16 %v3088
    %v3777 = vunpack.c.h.b16 %v3088
    %v3778 = vunpack.c.l.b16 %v3089
    %v3779 = vunpack.c.h.b16 %v3089
    %v3780 = vunpack.c.l.b16 %v3090
    %v3781 = vunpack.c.h.b16 %v3090
    %v3782 = vunpack.c.l.b16 %v3091
    %v3783 = vunpack.c.h.b16 %v3091
    %v3784 = vunpack.c.l.b16 %v3092
    %v3785 = vunpack.c.h.b16 %v3092
    %v3786 = vunpack.c.l.b16 %v3093
    %v3787 = vunpack.c.h.b16 %v3093
    %v3788 = vunpack.c.l.b16 %v3094
    %v3789 = vunpack.c.h.b16 %v3094
    %v3790 = vunpack.c.l.b16 %v3095
    %v3791 = vunpack.c.h.b16 %v3095
    %v3792 = vunpack.c.l.b16 %v3096
    %v3793 = vunpack.c.h.b16 %v3096
    %v3794 = vunpack.c.l.b16 %v3097
    %v3795 = vunpack.c.h.b16 %v3097
    %v3796 = vunpack.c.l.b16 %v3098
    %v3797 = vunpack.c.h.b16 %v3098
    %v3798 = vunpack.c.l.b16 %v3099
    %v3799 = vunpack.c.h.b16 %v3099
    %v3800 = vunpack.c.l.b16 %v3100
    %v3801 = vunpack.c.h.b16 %v3100
    %v3802 = vunpack.c.l.b16 %v3101
    %v3803 = vunpack.c.h.b16 %v3101
    %v3804 = vunpack.c.l.b16 %v3102
    %v3805 = vunpack.c.h.b16 %v3102
    %v3806 = vunpack.c.l.b16 %v3103
    %v3807 = vunpack.c.h.b16 %v3103
    %v3808 = vunpack.c.l.b16 %v3104
    %v3809 = vunpack.c.h.b16 %v3104
    %v3810 = vunpack.c.l.b16 %v3105
    %v3811 = vunpack.c.h.b16 %v3105
    %v3812 = vunpack.c.l.b16 %v3106
    %v3813 = vunpack.c.h.b16 %v3106
    %v3814 = vunpack.c.l.b16 %v3107
    %v3815 = vunpack.c.h.b16 %v3107
    %v3816 = vunpack.c.l.b16 %v3108
    %v3817 = vunpack.c.h.b16 %v3108
    %v3818 = vunpack.c.l.b16 %v3109
    %v3819 = vunpack.c.h.b16 %v3109
    %v3820 = vunpack.c.l.b16 %v3110
    %v3821 = vunpack.c.h.b16 %v3110
    %v3822 = vunpack.c.l.b16 %v3111
    %v3823 = vunpack.c.h.b16 %v3111
    %v3824 = vunpack.c.l.b16 %v3112
    %v3825 = vunpack.c.h.b16 %v3112
    %v3826 = vunpack.c.l.b16 %v3113
    %v3827 = vunpack.c.h.b16 %v3113
    %v3828 = vunpack.c.l.b16 %v3114
    %v3829 = vunpack.c.h.b16 %v3114
    %v3830 = vunpack.c.l.b16 %v3115
    %v3831 = vunpack.c.h.b16 %v3115
    %v3832 = vunpack.c.l.b16 %v3116
    %v3833 = vunpack.c.h.b16 %v3116
    %v3834 = vunpack.c.l.b16 %v3117
    %v3835 = vunpack.c.h.b16 %v3117
    %v3836 = vunpack.c.l.b16 %v3118
    %v3837 = vunpack.c.h.b16 %v3118
    %v3838 = vunpack.c.l.b16 %v3119
    %v3839 = vunpack.c.h.b16 %v3119
    %v3840 = vunpack.c.l.b16 %v3120
    %v3841 = vunpack.c.h.b16 %v3120
    %v3842 = vunpack.c.l.b16 %v3121
    %v3843 = vunpack.c.h.b16 %v3121
    %v3844 = vunpack.c.l.b16 %v3122
    %v3845 = vunpack.c.h.b16 %v3122
    %v3846 = vunpack.c.l.b16 %v3123
    %v3847 = vunpack.c.h.b16 %v3123
    %v3848 = vunpack.c.l.b16 %v3124
    %v3849 = vunpack.c.h.b16 %v3124
    %v3850 = vunpack.c.l.b16 %v3125
    %v3851 = vunpack.c.h.b16 %v3125
    %v3852 = vunpack.c.l.b16 %v3126
    %v3853 = vunpack.c.h.b16 %v3126
    %v3854 = vunpack.c.l.b16 %v3127
    %v3855 = vunpack.c.h.b16 %v3127
    %v3856 = vunpack.c.l.b16 %v3128
    %v3857 = vunpack.c.h.b16 %v3128
    %v3858 = vunpack.c.l.b16 %v3129
    %v3859 = vunpack.c.h.b16 %v3129
    %v3860 = vunpack.c.l.b16 %v3130
    %v3861 = vunpack.c.h.b16 %v3130
    %v3862 = vunpack.c.l.b16 %v3131
    %v3863 = vunpack.c.h.b16 %v3131
    %v3864 = vunpack.c.l.b16 %v3132
    %v3865 = vunpack.c.h.b16 %v3132
    %v3866 = vunpack.c.l.b16 %v3133
    %v3867 = vunpack.c.h.b16 %v3133
    %v3868 = vunpack.c.l.b16 %v3134
    %v3869 = vunpack.c.h.b16 %v3134
    %v3870 = vunpack.c.l.b16 %v3135
    %v3871 = vunpack.c.h.b16 %v3135
    %v3872 = vunpack.c.l.b16 %v3136
    %v3873 = vunpack.c.h.b16 %v3136
    %v3874 = vunpack.c.l.b16 %v3137
    %v3875 = vunpack.c.h.b16 %v3137
    %v3876 = vunpack.c.l.b16 %v3138
    %v3877 = vunpack.c.h.b16 %v3138
    %v3878 = vunpack.c.l.b16 %v3139
    %v3879 = vunpack.c.h.b16 %v3139
    %v3880 = vunpack.c.l.b16 %v3140
    %v3881 = vunpack.c.h.b16 %v3140
    %v3882 = vpack.c.b16 %v3762, %v3754
    %v3883 = vpack.c.b16 %v3763, %v3755
    %v3884 = vpack.c.b16 %v3764, %v3756
    %v3885 = vpack.c.b16 %v3765, %v3757
    %v3886 = vpack.c.b16 %v3766, %v3758
    %v3887 = vpack.c.b16 %v3767, %v3759
    %v3888 = vpack.c.b16 %v3768, %v3760
    %v3889 = vpack.c.b16 %v3769, %v3761
    %v3890 = vpack.c.b16 %v3778, %v3770
    %v3891 = vpack.c.b16 %v3779, %v3771
    %v3892 = vpack.c.b16 %v3780, %v3772
    %v3893 = vpack.c.b16 %v3781, %v3773
    %v3894 = vpack.c.b16 %v3782, %v3774
    %v3895 = vpack.c.b16 %v3783, %v3775
    %v3896 = vpack.c.b16 %v3784, %v3776
    %v3897 = vpack.c.b16 %v3785, %v3777
    %v3898 = vpack.c.b16 %v3794, %v3786
    %v3899 = vpack.c.b16 %v3795, %v3787
    %v3900 = vpack.c.b16 %v3796, %v3788
    %v3901 = vpack.c.b16 %v3797, %v3789
    %v3902 = vpack.c.b16 %v3798, %v3790
    %v3903 = vpack.c.b16 %v3799, %v3791
    %v3904 = vpack.c.b16 %v3800, %v3792
    %v3905 = vpack.c.b16 %v3801, %v3793
    %v3906 = vpack.c.b16 %v3810, %v3802
    %v3907 = vpack.c.b16 %v3811, %v3803
    %v3908 = vpack.c.b16 %v3812, %v3804
    %v3909 = vpack.c.b16 %v3813, %v3805
    %v3910 = vpack.c.b16 %v3814, %v3806
    %v3911 = vpack.c.b16 %v3815, %v3807
    %v3912 = vpack.c.b16 %v3816, %v3808
    %v3913 = vpack.c.b16 %v3817, %v3809
    %v3914 = vpack.c.b16 %v3826, %v3818
    %v3915 = vpack.c.b16 %v3827, %v3819
    %v3916 = vpack.c.b16 %v3828, %v3820
    %v3917 = vpack.c.b16 %v3829, %v3821
    %v3918 = vpack.c.b16 %v3830, %v3822
    %v3919 = vpack.c.b16 %v3831, %v3823
    %v3920 = vpack.c.b16 %v3832, %v3824
    %v3921 = vpack.c.b16 %v3833, %v3825
    %v3922 = vpack.c.b16 %v3842, %v3834
    %v3923 = vpack.c.b16 %v3843, %v3835
    %v3924 = vpack.c.b16 %v3844, %v3836
    %v3925 = vpack.c.b16 %v3845, %v3837
    %v3926 = vpack.c.b16 %v3846, %v3838
    %v3927 = vpack.c.b16 %v3847, %v3839
    %v3928 = vpack.c.b16 %v3848, %v3840
    %v3929 = vpack.c.b16 %v3849, %v3841
    %v3930 = vpack.c.b16 %v3858, %v3850
    %v3931 = vpack.c.b16 %v3859, %v3851
    %v3932 = vpack.c.b16 %v3860, %v3852
    %v3933 = vpack.c.b16 %v3861, %v3853
    %v3934 = vpack.c.b16 %v3862, %v3854
    %v3935 = vpack.c.b16 %v3863, %v3855
    %v3936 = vpack.c.b16 %v3864, %v3856
    %v3937 = vpack.c.b16 %v3865, %v3857
    %v3938 = vpack.c.b16 %v3874, %v3866
    %v3939 = vpack.c.b16 %v3875, %v3867
    %v3940 = vpack.c.b16 %v3876, %v3868
    %v3941 = vpack.c.b16 %v3877, %v3869
    %v3942 = vpack.c.b16 %v3878, %v3870
    %v3943 = vpack.c.b16 %v3879, %v3871
    %v3944 = vpack.c.b16 %v3880, %v3872
    %v3945 = vpack.c.b16 %v3881, %v3873
    %4010 = vmatprep.subr.bf16.mxu0 %v3883
    %4011 = vmatpush1.bf16.msra.mxu0 %v3882
    %4012 = vmatprep.subr.bf16.mxu0 %v3891
    %4013 = vmatpush1.bf16.msra.mxu0 %v3890
    %4014 = vmatprep.subr.bf16.mxu0 %v3899
    %4015 = vmatpush1.bf16.msra.mxu0 %v3898
    %4016 = vmatprep.subr.bf16.mxu0 %v3907
    %4017 = vmatpush1.bf16.msra.mxu0 %v3906
    %4018 = vmatprep.subr.bf16.mxu0 %v3915
    %4019 = vmatpush1.bf16.msra.mxu0 %v3914
    %4020 = vmatprep.subr.bf16.mxu0 %v3923
    %4021 = vmatpush1.bf16.msra.mxu0 %v3922
    %4022 = vmatprep.subr.bf16.mxu0 %v3931
    %4023 = vmatpush1.bf16.msra.mxu0 %v3930
    %4024 = vmatprep.subr.bf16.mxu0 %v3939
    %4025 = vmatpush1.bf16.msra.mxu0 %v3938
    %4026 = vmatprep.subr.bf16.mxu0 0
    %4027 = vmatpush1.bf16.msra.mxu0 0
    %4028 = vmatprep.subr.bf16.mxu0 0
    %4029 = vmatpush1.bf16.msra.mxu0 0
    %4030 = vmatprep.subr.bf16.mxu0 0
    %4031 = vmatpush1.bf16.msra.mxu0 0
    %4032 = vmatprep.subr.bf16.mxu0 0
    %4033 = vmatpush1.bf16.msra.mxu0 0
    %4034 = vmatprep.subr.bf16.mxu0 0
    %4035 = vmatpush1.bf16.msra.mxu0 0
    %4036 = vmatprep.subr.bf16.mxu0 0
    %4037 = vmatpush1.bf16.msra.mxu0 0
    %4038 = vmatprep.subr.bf16.mxu0 0
    %4039 = vmatpush1.bf16.msra.mxu0 0
    %4040 = vmatprep.subr.bf16.mxu0 0
    %4041 = vmatpush1.bf16.msra.mxu0 0
    %4042 = vmatprep.mubr.bf16.mxu0 0
    %4043 = vmatmul.mubr.bf16.gmra.mrb[0].mxu0 %v3076
    %v4044 = vpop.f32.mrb[0].mxu0
    %v4045 = vadd.f32 %v3561, %v4044
    %v4046 = vpop.f32.mrb[0].mxu0
    %v4047 = vadd.f32 %v3563, %v4046
    %v4048 = vpop.f32.mrb[0].mxu0
    %v4049 = vpop.f32.mrb[0].mxu0
    %4050 = vdwg.mxu0
    %4051 = vmatprep.subr.bf16.mxu0 %v3885
    %4052 = vmatpush1.bf16.msra.mxu0 %v3884
    %4053 = vmatprep.subr.bf16.mxu0 %v3893
    %4054 = vmatpush1.bf16.msra.mxu0 %v3892
    %4055 = vmatprep.subr.bf16.mxu0 %v3901
    %4056 = vmatpush1.bf16.msra.mxu0 %v3900
    %4057 = vmatprep.subr.bf16.mxu0 %v3909
    %4058 = vmatpush1.bf16.msra.mxu0 %v3908
    %4059 = vmatprep.subr.bf16.mxu0 %v3917
    %4060 = vmatpush1.bf16.msra.mxu0 %v3916
    %4061 = vmatprep.subr.bf16.mxu0 %v3925
    %4062 = vmatpush1.bf16.msra.mxu0 %v3924
    %4063 = vmatprep.subr.bf16.mxu0 %v3933
    %4064 = vmatpush1.bf16.msra.mxu0 %v3932
    %4065 = vmatprep.subr.bf16.mxu0 %v3941
    %4066 = vmatpush1.bf16.msra.mxu0 %v3940
    %4067 = vmatprep.subr.bf16.mxu0 0
    %4068 = vmatpush1.bf16.msra.mxu0 0
    %4069 = vmatprep.subr.bf16.mxu0 0
    %4070 = vmatpush1.bf16.msra.mxu0 0
    %4071 = vmatprep.subr.bf16.mxu0 0
    %4072 = vmatpush1.bf16.msra.mxu0 0
    %4073 = vmatprep.subr.bf16.mxu0 0
    %4074 = vmatpush1.bf16.msra.mxu0 0
    %4075 = vmatprep.subr.bf16.mxu0 0
    %4076 = vmatpush1.bf16.msra.mxu0 0
    %4077 = vmatprep.subr.bf16.mxu0 0
    %4078 = vmatpush1.bf16.msra.mxu0 0
    %4079 = vmatprep.subr.bf16.mxu0 0
    %4080 = vmatpush1.bf16.msra.mxu0 0
    %4081 = vmatprep.subr.bf16.mxu0 0
    %4082 = vmatpush1.bf16.msra.mxu0 0
    %4083 = vmatprep.mubr.bf16.mxu0 0
    %4084 = vmatmul.mubr.bf16.gmra.mrb[0].mxu0 %v3076
    %v4085 = vpop.f32.mrb[0].mxu0
    %v4086 = vadd.f32 %v3602, %v4085
    %v4087 = vpop.f32.mrb[0].mxu0
    %v4088 = vadd.f32 %v3604, %v4087
    %v4089 = vpop.f32.mrb[0].mxu0
    %v4090 = vpop.f32.mrb[0].mxu0
    %4091 = vdwg.mxu0
    %4092 = vmatprep.subr.bf16.mxu0 %v3887
    %4093 = vmatpush1.bf16.msra.mxu0 %v3886
    %4094 = vmatprep.subr.bf16.mxu0 %v3895
    %4095 = vmatpush1.bf16.msra.mxu0 %v3894
    %4096 = vmatprep.subr.bf16.mxu0 %v3903
    %4097 = vmatpush1.bf16.msra.mxu0 %v3902
    %4098 = vmatprep.subr.bf16.mxu0 %v3911
    %4099 = vmatpush1.bf16.msra.mxu0 %v3910
    %4100 = vmatprep.subr.bf16.mxu0 %v3919
    %4101 = vmatpush1.bf16.msra.mxu0 %v3918
    %4102 = vmatprep.subr.bf16.mxu0 %v3927
    %4103 = vmatpush1.bf16.msra.mxu0 %v3926
    %4104 = vmatprep.subr.bf16.mxu0 %v3935
    %4105 = vmatpush1.bf16.msra.mxu0 %v3934
    %4106 = vmatprep.subr.bf16.mxu0 %v3943
    %4107 = vmatpush1.bf16.msra.mxu0 %v3942
    %4108 = vmatprep.subr.bf16.mxu0 0
    %4109 = vmatpush1.bf16.msra.mxu0 0
    %4110 = vmatprep.subr.bf16.mxu0 0
    %4111 = vmatpush1.bf16.msra.mxu0 0
    %4112 = vmatprep.subr.bf16.mxu0 0
    %4113 = vmatpush1.bf16.msra.mxu0 0
    %4114 = vmatprep.subr.bf16.mxu0 0
    %4115 = vmatpush1.bf16.msra.mxu0 0
    %4116 = vmatprep.subr.bf16.mxu0 0
    %4117 = vmatpush1.bf16.msra.mxu0 0
    %4118 = vmatprep.subr.bf16.mxu0 0
    %4119 = vmatpush1.bf16.msra.mxu0 0
    %4120 = vmatprep.subr.bf16.mxu0 0
    %4121 = vmatpush1.bf16.msra.mxu0 0
    %4122 = vmatprep.subr.bf16.mxu0 0
    %4123 = vmatpush1.bf16.msra.mxu0 0
    %4124 = vmatprep.mubr.bf16.mxu0 0
    %4125 = vmatmul.mubr.bf16.gmra.mrb[0].mxu0 %v3076
    %v4126 = vpop.f32.mrb[0].mxu0
    %v4127 = vadd.f32 %v3643, %v4126
    %v4128 = vpop.f32.mrb[0].mxu0
    %v4129 = vadd.f32 %v3645, %v4128
    %v4130 = vpop.f32.mrb[0].mxu0
    %v4131 = vpop.f32.mrb[0].mxu0
    %4132 = vdwg.mxu0
    %4133 = vmatprep.subr.bf16.mxu0 %v3889
    %4134 = vmatpush1.bf16.msra.mxu0 %v3888
    %4135 = vmatprep.subr.bf16.mxu0 %v3897
    %4136 = vmatpush1.bf16.msra.mxu0 %v3896
    %4137 = vmatprep.subr.bf16.mxu0 %v3905
    %4138 = vmatpush1.bf16.msra.mxu0 %v3904
    %4139 = vmatprep.subr.bf16.mxu0 %v3913
    %4140 = vmatpush1.bf16.msra.mxu0 %v3912
    %4141 = vmatprep.subr.bf16.mxu0 %v3921
    %4142 = vmatpush1.bf16.msra.mxu0 %v3920
    %4143 = vmatprep.subr.bf16.mxu0 %v3929
    %4144 = vmatpush1.bf16.msra.mxu0 %v3928
    %4145 = vmatprep.subr.bf16.mxu0 %v3937
    %4146 = vmatpush1.bf16.msra.mxu0 %v3936
    %4147 = vmatprep.subr.bf16.mxu0 %v3945
    %4148 = vmatpush1.bf16.msra.mxu0 %v3944
    %4149 = vmatprep.subr.bf16.mxu0 0
    %4150 = vmatpush1.bf16.msra.mxu0 0
    %4151 = vmatprep.subr.bf16.mxu0 0
    %4152 = vmatpush1.bf16.msra.mxu0 0
    %4153 = vmatprep.subr.bf16.mxu0 0
    %4154 = vmatpush1.bf16.msra.mxu0 0
    %4155 = vmatprep.subr.bf16.mxu0 0
    %4156 = vmatpush1.bf16.msra.mxu0 0
    %4157 = vmatprep.subr.bf16.mxu0 0
    %4158 = vmatpush1.bf16.msra.mxu0 0
    %4159 = vmatprep.subr.bf16.mxu0 0
    %4160 = vmatpush1.bf16.msra.mxu0 0
    %4161 = vmatprep.subr.bf16.mxu0 0
    %4162 = vmatpush1.bf16.msra.mxu0 0
    %4163 = vmatprep.subr.bf16.mxu0 0
    %4164 = vmatpush1.bf16.msra.mxu0 0
    %4165 = vmatprep.mubr.bf16.mxu0 0
    %4166 = vmatmul.mubr.bf16.gmra.mrb[0].mxu0 %v3076
    %v4167 = vpop.f32.mrb[0].mxu0
    %v4168 = vadd.f32 %v3684, %v4167
    %v4169 = vpop.f32.mrb[0].mxu0
    %v4170 = vadd.f32 %v3686, %v4169
    %v4171 = vpop.f32.mrb[0].mxu0
    %v4172 = vpop.f32.mrb[0].mxu0
    %4173 = vdwg.mxu0
    %v4174 = vld [vmem:[#allocation10] sm:$0xff]
    %v4176 = vlaneseq
    %v4177 = vshrl.u32 %v4176, 7
    %v4178 = vsub.s32 0, %v4177
    %v4179 = vrot.slane %v4174, %v4178
    %v4180 = vlaneseq
    %v4181 = vshrl.u32 %v4180, 7
    %v4182 = vsub.s32 1, %v4181
    %v4183 = vrot.slane %v4174, %v4182
    %v4184 = vlaneseq
    %v4185 = vshrl.u32 %v4184, 7
    %v4186 = vsub.s32 2, %v4185
    %v4187 = vrot.slane %v4174, %v4186
    %v4188 = vlaneseq
    %v4189 = vshrl.u32 %v4188, 7
    %v4190 = vsub.s32 3, %v4189
    %v4191 = vrot.slane %v4174, %v4190
    %v4192 = vlaneseq
    %v4193 = vshrl.u32 %v4192, 7
    %v4194 = vsub.s32 4, %v4193
    %v4195 = vrot.slane %v4174, %v4194
    %v4196 = vlaneseq
    %v4197 = vshrl.u32 %v4196, 7
    %v4198 = vsub.s32 5, %v4197
    %v4199 = vrot.slane %v4174, %v4198
    %v4200 = vlaneseq
    %v4201 = vshrl.u32 %v4200, 7
    %v4202 = vsub.s32 6, %v4201
    %v4203 = vrot.slane %v4174, %v4202
    %v4204 = vlaneseq
    %v4205 = vshrl.u32 %v4204, 7
    %v4206 = vsub.s32 7, %v4205
    %v4207 = vrot.slane %v4174, %v4206
    %v4216 = vadd.f32 %v4045, %v4179
    %v4217 = vadd.f32 %v4047, %v4183
    %v4218 = vadd.f32 %v4086, %v4187
    %v4219 = vadd.f32 %v4088, %v4191
    %v4220 = vadd.f32 %v4127, %v4195
    %v4221 = vadd.f32 %v4129, %v4199
    %v4222 = vadd.f32 %v4168, %v4203
    %v4223 = vadd.f32 %v4170, %v4207
    %v4224 = vmax.f32 %v4216, 0.0
    %v4225 = vmax.f32 %v4217, 0.0
    %v4226 = vmax.f32 %v4218, 0.0
    %v4227 = vmax.f32 %v4219, 0.0
    %v4228 = vmax.f32 %v4220, 0.0
    %v4229 = vmax.f32 %v4221, 0.0
    %v4230 = vmax.f32 %v4222, 0.0
    %v4231 = vmax.f32 %v4223, 0.0
    %v4232 = vpack.c.bf16 %v4224, %v4224
    %v4233 = vpack.c.bf16 %v4225, %v4225
    %v4234 = vpack.c.bf16 %v4226, %v4226
    %v4235 = vpack.c.bf16 %v4227, %v4227
    %v4236 = vpack.c.bf16 %v4228, %v4228
    %v4237 = vpack.c.bf16 %v4229, %v4229
    %v4238 = vpack.c.bf16 %v4230, %v4230
    %v4239 = vpack.c.bf16 %v4231, %v4231
    %v4240 = vld [vmem:[#allocation11] sm:$0xff]
    %v4241 = vld [vmem:[#allocation11 + $0x8] sm:$0xff]
    %v4242 = vld [vmem:[#allocation11 + $0x10] sm:$0xff]
    %v4243 = vld [vmem:[#allocation11 + $0x18] sm:$0xff]
    %v4244 = vld [vmem:[#allocation11 + $0x20] sm:$0xff]
    %v4245 = vld [vmem:[#allocation11 + $0x28] sm:$0xff]
    %v4246 = vld [vmem:[#allocation11 + $0x30] sm:$0xff]
    %v4247 = vld [vmem:[#allocation11 + $0x38] sm:$0xff]
    %v4248 = vld [vmem:[#allocation11 + $0x40] sm:$0xff]
    %v4249 = vld [vmem:[#allocation11 + $0x48] sm:$0xff]
    %v4250 = vld [vmem:[#allocation11 + $0x50] sm:$0xff]
    %v4251 = vld [vmem:[#allocation11 + $0x58] sm:$0xff]
    %v4252 = vld [vmem:[#allocation11 + $0x60] sm:$0xff]
    %v4253 = vld [vmem:[#allocation11 + $0x68] sm:$0xff]
    %v4254 = vld [vmem:[#allocation11 + $0x70] sm:$0xff]
    %v4255 = vld [vmem:[#allocation11 + $0x78] sm:$0xff]
    %v4256 = vld [vmem:[#allocation11 + $0x80] sm:$0xff]
    %v4257 = vld [vmem:[#allocation11 + $0x88] sm:$0xff]
    %v4258 = vld [vmem:[#allocation11 + $0x90] sm:$0xff]
    %v4259 = vld [vmem:[#allocation11 + $0x98] sm:$0xff]
    %v4260 = vld [vmem:[#allocation11 + $0xa0] sm:$0xff]
    %v4261 = vld [vmem:[#allocation11 + $0xa8] sm:$0xff]
    %v4262 = vld [vmem:[#allocation11 + $0xb0] sm:$0xff]
    %v4263 = vld [vmem:[#allocation11 + $0xb8] sm:$0xff]
    %v4264 = vld [vmem:[#allocation11 + $0xc0] sm:$0xff]
    %v4265 = vld [vmem:[#allocation11 + $0xc8] sm:$0xff]
    %v4266 = vld [vmem:[#allocation11 + $0xd0] sm:$0xff]
    %v4267 = vld [vmem:[#allocation11 + $0xd8] sm:$0xff]
    %v4268 = vld [vmem:[#allocation11 + $0xe0] sm:$0xff]
    %v4269 = vld [vmem:[#allocation11 + $0xe8] sm:$0xff]
    %v4270 = vld [vmem:[#allocation11 + $0xf0] sm:$0xff]
    %v4271 = vld [vmem:[#allocation11 + $0xf8] sm:$0xff]
    %v4272 = vld [vmem:[#allocation11 + $0x100] sm:$0xff]
    %v4273 = vld [vmem:[#allocation11 + $0x108] sm:$0xff]
    %v4274 = vld [vmem:[#allocation11 + $0x110] sm:$0xff]
    %v4275 = vld [vmem:[#allocation11 + $0x118] sm:$0xff]
    %v4276 = vld [vmem:[#allocation11 + $0x120] sm:$0xff]
    %v4277 = vld [vmem:[#allocation11 + $0x128] sm:$0xff]
    %v4278 = vld [vmem:[#allocation11 + $0x130] sm:$0xff]
    %v4279 = vld [vmem:[#allocation11 + $0x138] sm:$0xff]
    %v4280 = vld [vmem:[#allocation11 + $0x140] sm:$0xff]
    %v4281 = vld [vmem:[#allocation11 + $0x148] sm:$0xff]
    %v4282 = vld [vmem:[#allocation11 + $0x150] sm:$0xff]
    %v4283 = vld [vmem:[#allocation11 + $0x158] sm:$0xff]
    %v4284 = vld [vmem:[#allocation11 + $0x160] sm:$0xff]
    %v4285 = vld [vmem:[#allocation11 + $0x168] sm:$0xff]
    %v4286 = vld [vmem:[#allocation11 + $0x170] sm:$0xff]
    %v4287 = vld [vmem:[#allocation11 + $0x178] sm:$0xff]
    %v4288 = vld [vmem:[#allocation11 + $0x180] sm:$0xff]
    %v4289 = vld [vmem:[#allocation11 + $0x188] sm:$0xff]
    %v4290 = vld [vmem:[#allocation11 + $0x190] sm:$0xff]
    %v4291 = vld [vmem:[#allocation11 + $0x198] sm:$0xff]
    %v4292 = vld [vmem:[#allocation11 + $0x1a0] sm:$0xff]
    %v4293 = vld [vmem:[#allocation11 + $0x1a8] sm:$0xff]
    %v4294 = vld [vmem:[#allocation11 + $0x1b0] sm:$0xff]
    %v4295 = vld [vmem:[#allocation11 + $0x1b8] sm:$0xff]
    %v4296 = vld [vmem:[#allocation11 + $0x1c0] sm:$0xff]
    %v4297 = vld [vmem:[#allocation11 + $0x1c8] sm:$0xff]
    %v4298 = vld [vmem:[#allocation11 + $0x1d0] sm:$0xff]
    %v4299 = vld [vmem:[#allocation11 + $0x1d8] sm:$0xff]
    %v4300 = vld [vmem:[#allocation11 + $0x1e0] sm:$0xff]
    %v4301 = vld [vmem:[#allocation11 + $0x1e8] sm:$0xff]
    %v4302 = vld [vmem:[#allocation11 + $0x1f0] sm:$0xff]
    %v4303 = vld [vmem:[#allocation11 + $0x1f8] sm:$0xff]
    %v4304 = vld [vmem:[#allocation11 + $0x200] sm:$0xff]
    %v4305 = vld [vmem:[#allocation11 + $0x208] sm:$0xff]
    %v4306 = vld [vmem:[#allocation11 + $0x210] sm:$0xff]
    %v4307 = vld [vmem:[#allocation11 + $0x218] sm:$0xff]
    %v4308 = vld [vmem:[#allocation11 + $0x220] sm:$0xff]
    %v4309 = vld [vmem:[#allocation11 + $0x228] sm:$0xff]
    %v4310 = vld [vmem:[#allocation11 + $0x230] sm:$0xff]
    %v4311 = vld [vmem:[#allocation11 + $0x238] sm:$0xff]
    %v4312 = vld [vmem:[#allocation11 + $0x240] sm:$0xff]
    %v4313 = vld [vmem:[#allocation11 + $0x248] sm:$0xff]
    %v4314 = vld [vmem:[#allocation11 + $0x250] sm:$0xff]
    %v4315 = vld [vmem:[#allocation11 + $0x258] sm:$0xff]
    %v4316 = vld [vmem:[#allocation11 + $0x260] sm:$0xff]
    %v4317 = vld [vmem:[#allocation11 + $0x268] sm:$0xff]
    %v4318 = vld [vmem:[#allocation11 + $0x270] sm:$0xff]
    %v4319 = vld [vmem:[#allocation11 + $0x278] sm:$0xff]
    %v4320 = vld [vmem:[#allocation11 + $0x280] sm:$0xff]
    %v4321 = vld [vmem:[#allocation11 + $0x288] sm:$0xff]
    %v4322 = vld [vmem:[#allocation11 + $0x290] sm:$0xff]
    %v4323 = vld [vmem:[#allocation11 + $0x298] sm:$0xff]
    %v4324 = vld [vmem:[#allocation11 + $0x2a0] sm:$0xff]
    %v4325 = vld [vmem:[#allocation11 + $0x2a8] sm:$0xff]
    %v4326 = vld [vmem:[#allocation11 + $0x2b0] sm:$0xff]
    %v4327 = vld [vmem:[#allocation11 + $0x2b8] sm:$0xff]
    %v4328 = vld [vmem:[#allocation11 + $0x2c0] sm:$0xff]
    %v4329 = vld [vmem:[#allocation11 + $0x2c8] sm:$0xff]
    %v4330 = vld [vmem:[#allocation11 + $0x2d0] sm:$0xff]
    %v4331 = vld [vmem:[#allocation11 + $0x2d8] sm:$0xff]
    %v4332 = vld [vmem:[#allocation11 + $0x2e0] sm:$0xff]
    %v4333 = vld [vmem:[#allocation11 + $0x2e8] sm:$0xff]
    %v4334 = vld [vmem:[#allocation11 + $0x2f0] sm:$0xff]
    %v4335 = vld [vmem:[#allocation11 + $0x2f8] sm:$0xff]
    %v4336 = vld [vmem:[#allocation11 + $0x300] sm:$0xff]
    %v4337 = vld [vmem:[#allocation11 + $0x308] sm:$0xff]
    %v4338 = vld [vmem:[#allocation11 + $0x310] sm:$0xff]
    %v4339 = vld [vmem:[#allocation11 + $0x318] sm:$0xff]
    %v4340 = vld [vmem:[#allocation11 + $0x320] sm:$0xff]
    %v4341 = vld [vmem:[#allocation11 + $0x328] sm:$0xff]
    %v4342 = vld [vmem:[#allocation11 + $0x330] sm:$0xff]
    %v4343 = vld [vmem:[#allocation11 + $0x338] sm:$0xff]
    %v4344 = vld [vmem:[#allocation11 + $0x340] sm:$0xff]
    %v4345 = vld [vmem:[#allocation11 + $0x348] sm:$0xff]
    %v4346 = vld [vmem:[#allocation11 + $0x350] sm:$0xff]
    %v4347 = vld [vmem:[#allocation11 + $0x358] sm:$0xff]
    %v4348 = vld [vmem:[#allocation11 + $0x360] sm:$0xff]
    %v4349 = vld [vmem:[#allocation11 + $0x368] sm:$0xff]
    %v4350 = vld [vmem:[#allocation11 + $0x370] sm:$0xff]
    %v4351 = vld [vmem:[#allocation11 + $0x378] sm:$0xff]
    %v4352 = vld [vmem:[#allocation11 + $0x380] sm:$0xff]
    %v4353 = vld [vmem:[#allocation11 + $0x388] sm:$0xff]
    %v4354 = vld [vmem:[#allocation11 + $0x390] sm:$0xff]
    %v4355 = vld [vmem:[#allocation11 + $0x398] sm:$0xff]
    %v4356 = vld [vmem:[#allocation11 + $0x3a0] sm:$0xff]
    %v4357 = vld [vmem:[#allocation11 + $0x3a8] sm:$0xff]
    %v4358 = vld [vmem:[#allocation11 + $0x3b0] sm:$0xff]
    %v4359 = vld [vmem:[#allocation11 + $0x3b8] sm:$0xff]
    %v4360 = vld [vmem:[#allocation11 + $0x3c0] sm:$0xff]
    %v4361 = vld [vmem:[#allocation11 + $0x3c8] sm:$0xff]
    %v4362 = vld [vmem:[#allocation11 + $0x3d0] sm:$0xff]
    %v4363 = vld [vmem:[#allocation11 + $0x3d8] sm:$0xff]
    %v4364 = vld [vmem:[#allocation11 + $0x3e0] sm:$0xff]
    %v4365 = vld [vmem:[#allocation11 + $0x3e8] sm:$0xff]
    %v4366 = vld [vmem:[#allocation11 + $0x3f0] sm:$0xff]
    %v4367 = vld [vmem:[#allocation11 + $0x3f8] sm:$0xff]
    %v4368 = vld [vmem:[#allocation11 + $0x400] sm:$0xff]
    %v4369 = vld [vmem:[#allocation11 + $0x408] sm:$0xff]
    %v4370 = vld [vmem:[#allocation11 + $0x410] sm:$0xff]
    %v4371 = vld [vmem:[#allocation11 + $0x418] sm:$0xff]
    %v4372 = vld [vmem:[#allocation11 + $0x420] sm:$0xff]
    %v4373 = vld [vmem:[#allocation11 + $0x428] sm:$0xff]
    %v4374 = vld [vmem:[#allocation11 + $0x430] sm:$0xff]
    %v4375 = vld [vmem:[#allocation11 + $0x438] sm:$0xff]
    %v4376 = vld [vmem:[#allocation11 + $0x440] sm:$0xff]
    %v4377 = vld [vmem:[#allocation11 + $0x448] sm:$0xff]
    %v4378 = vld [vmem:[#allocation11 + $0x450] sm:$0xff]
    %v4379 = vld [vmem:[#allocation11 + $0x458] sm:$0xff]
    %v4380 = vld [vmem:[#allocation11 + $0x460] sm:$0xff]
    %v4381 = vld [vmem:[#allocation11 + $0x468] sm:$0xff]
    %v4382 = vld [vmem:[#allocation11 + $0x470] sm:$0xff]
    %v4383 = vld [vmem:[#allocation11 + $0x478] sm:$0xff]
    %v4384 = vld [vmem:[#allocation11 + $0x480] sm:$0xff]
    %v4385 = vld [vmem:[#allocation11 + $0x488] sm:$0xff]
    %v4386 = vld [vmem:[#allocation11 + $0x490] sm:$0xff]
    %v4387 = vld [vmem:[#allocation11 + $0x498] sm:$0xff]
    %v4388 = vld [vmem:[#allocation11 + $0x4a0] sm:$0xff]
    %v4389 = vld [vmem:[#allocation11 + $0x4a8] sm:$0xff]
    %v4390 = vld [vmem:[#allocation11 + $0x4b0] sm:$0xff]
    %v4391 = vld [vmem:[#allocation11 + $0x4b8] sm:$0xff]
    %v4392 = vld [vmem:[#allocation11 + $0x4c0] sm:$0xff]
    %v4393 = vld [vmem:[#allocation11 + $0x4c8] sm:$0xff]
    %v4394 = vld [vmem:[#allocation11 + $0x4d0] sm:$0xff]
    %v4395 = vld [vmem:[#allocation11 + $0x4d8] sm:$0xff]
    %v4396 = vld [vmem:[#allocation11 + $0x4e0] sm:$0xff]
    %v4397 = vld [vmem:[#allocation11 + $0x4e8] sm:$0xff]
    %v4398 = vld [vmem:[#allocation11 + $0x4f0] sm:$0xff]
    %v4399 = vld [vmem:[#allocation11 + $0x4f8] sm:$0xff]
    %v4400 = vld [vmem:[#allocation11 + $0x500] sm:$0xff]
    %v4401 = vld [vmem:[#allocation11 + $0x508] sm:$0xff]
    %v4402 = vld [vmem:[#allocation11 + $0x510] sm:$0xff]
    %v4403 = vld [vmem:[#allocation11 + $0x518] sm:$0xff]
    %v4404 = vld [vmem:[#allocation11 + $0x520] sm:$0xff]
    %v4405 = vld [vmem:[#allocation11 + $0x528] sm:$0xff]
    %v4406 = vld [vmem:[#allocation11 + $0x530] sm:$0xff]
    %v4407 = vld [vmem:[#allocation11 + $0x538] sm:$0xff]
    %v4408 = vld [vmem:[#allocation11 + $0x540] sm:$0xff]
    %v4409 = vld [vmem:[#allocation11 + $0x548] sm:$0xff]
    %v4410 = vld [vmem:[#allocation11 + $0x550] sm:$0xff]
    %v4411 = vld [vmem:[#allocation11 + $0x558] sm:$0xff]
    %v4412 = vld [vmem:[#allocation11 + $0x560] sm:$0xff]
    %v4413 = vld [vmem:[#allocation11 + $0x568] sm:$0xff]
    %v4414 = vld [vmem:[#allocation11 + $0x570] sm:$0xff]
    %v4415 = vld [vmem:[#allocation11 + $0x578] sm:$0xff]
    %v4416 = vld [vmem:[#allocation11 + $0x580] sm:$0xff]
    %v4417 = vld [vmem:[#allocation11 + $0x588] sm:$0xff]
    %v4418 = vld [vmem:[#allocation11 + $0x590] sm:$0xff]
    %v4419 = vld [vmem:[#allocation11 + $0x598] sm:$0xff]
    %v4420 = vld [vmem:[#allocation11 + $0x5a0] sm:$0xff]
    %v4421 = vld [vmem:[#allocation11 + $0x5a8] sm:$0xff]
    %v4422 = vld [vmem:[#allocation11 + $0x5b0] sm:$0xff]
    %v4423 = vld [vmem:[#allocation11 + $0x5b8] sm:$0xff]
    %v4424 = vld [vmem:[#allocation11 + $0x5c0] sm:$0xff]
    %v4425 = vld [vmem:[#allocation11 + $0x5c8] sm:$0xff]
    %v4426 = vld [vmem:[#allocation11 + $0x5d0] sm:$0xff]
    %v4427 = vld [vmem:[#allocation11 + $0x5d8] sm:$0xff]
    %v4428 = vld [vmem:[#allocation11 + $0x5e0] sm:$0xff]
    %v4429 = vld [vmem:[#allocation11 + $0x5e8] sm:$0xff]
    %v4430 = vld [vmem:[#allocation11 + $0x5f0] sm:$0xff]
    %v4431 = vld [vmem:[#allocation11 + $0x5f8] sm:$0xff]
    %v4432 = vld [vmem:[#allocation11 + $0x600] sm:$0xff]
    %v4433 = vld [vmem:[#allocation11 + $0x608] sm:$0xff]
    %v4434 = vld [vmem:[#allocation11 + $0x610] sm:$0xff]
    %v4435 = vld [vmem:[#allocation11 + $0x618] sm:$0xff]
    %v4436 = vld [vmem:[#allocation11 + $0x620] sm:$0xff]
    %v4437 = vld [vmem:[#allocation11 + $0x628] sm:$0xff]
    %v4438 = vld [vmem:[#allocation11 + $0x630] sm:$0xff]
    %v4439 = vld [vmem:[#allocation11 + $0x638] sm:$0xff]
    %v4440 = vld [vmem:[#allocation11 + $0x640] sm:$0xff]
    %v4441 = vld [vmem:[#allocation11 + $0x648] sm:$0xff]
    %v4442 = vld [vmem:[#allocation11 + $0x650] sm:$0xff]
    %v4443 = vld [vmem:[#allocation11 + $0x658] sm:$0xff]
    %v4444 = vld [vmem:[#allocation11 + $0x660] sm:$0xff]
    %v4445 = vld [vmem:[#allocation11 + $0x668] sm:$0xff]
    %v4446 = vld [vmem:[#allocation11 + $0x670] sm:$0xff]
    %v4447 = vld [vmem:[#allocation11 + $0x678] sm:$0xff]
    %v4448 = vld [vmem:[#allocation11 + $0x680] sm:$0xff]
    %v4449 = vld [vmem:[#allocation11 + $0x688] sm:$0xff]
    %v4450 = vld [vmem:[#allocation11 + $0x690] sm:$0xff]
    %v4451 = vld [vmem:[#allocation11 + $0x698] sm:$0xff]
    %v4452 = vld [vmem:[#allocation11 + $0x6a0] sm:$0xff]
    %v4453 = vld [vmem:[#allocation11 + $0x6a8] sm:$0xff]
    %v4454 = vld [vmem:[#allocation11 + $0x6b0] sm:$0xff]
    %v4455 = vld [vmem:[#allocation11 + $0x6b8] sm:$0xff]
    %v4456 = vld [vmem:[#allocation11 + $0x6c0] sm:$0xff]
    %v4457 = vld [vmem:[#allocation11 + $0x6c8] sm:$0xff]
    %v4458 = vld [vmem:[#allocation11 + $0x6d0] sm:$0xff]
    %v4459 = vld [vmem:[#allocation11 + $0x6d8] sm:$0xff]
    %v4460 = vld [vmem:[#allocation11 + $0x6e0] sm:$0xff]
    %v4461 = vld [vmem:[#allocation11 + $0x6e8] sm:$0xff]
    %v4462 = vld [vmem:[#allocation11 + $0x6f0] sm:$0xff]
    %v4463 = vld [vmem:[#allocation11 + $0x6f8] sm:$0xff]
    %v4464 = vld [vmem:[#allocation11 + $0x700] sm:$0xff]
    %v4465 = vld [vmem:[#allocation11 + $0x708] sm:$0xff]
    %v4466 = vld [vmem:[#allocation11 + $0x710] sm:$0xff]
    %v4467 = vld [vmem:[#allocation11 + $0x718] sm:$0xff]
    %v4468 = vld [vmem:[#allocation11 + $0x720] sm:$0xff]
    %v4469 = vld [vmem:[#allocation11 + $0x728] sm:$0xff]
    %v4470 = vld [vmem:[#allocation11 + $0x730] sm:$0xff]
    %v4471 = vld [vmem:[#allocation11 + $0x738] sm:$0xff]
    %v4472 = vld [vmem:[#allocation11 + $0x740] sm:$0xff]
    %v4473 = vld [vmem:[#allocation11 + $0x748] sm:$0xff]
    %v4474 = vld [vmem:[#allocation11 + $0x750] sm:$0xff]
    %v4475 = vld [vmem:[#allocation11 + $0x758] sm:$0xff]
    %v4476 = vld [vmem:[#allocation11 + $0x760] sm:$0xff]
    %v4477 = vld [vmem:[#allocation11 + $0x768] sm:$0xff]
    %v4478 = vld [vmem:[#allocation11 + $0x770] sm:$0xff]
    %v4479 = vld [vmem:[#allocation11 + $0x778] sm:$0xff]
    %v4480 = vld [vmem:[#allocation11 + $0x780] sm:$0xff]
    %v4481 = vld [vmem:[#allocation11 + $0x788] sm:$0xff]
    %v4482 = vld [vmem:[#allocation11 + $0x790] sm:$0xff]
    %v4483 = vld [vmem:[#allocation11 + $0x798] sm:$0xff]
    %v4484 = vld [vmem:[#allocation11 + $0x7a0] sm:$0xff]
    %v4485 = vld [vmem:[#allocation11 + $0x7a8] sm:$0xff]
    %v4486 = vld [vmem:[#allocation11 + $0x7b0] sm:$0xff]
    %v4487 = vld [vmem:[#allocation11 + $0x7b8] sm:$0xff]
    %v4488 = vld [vmem:[#allocation11 + $0x7c0] sm:$0xff]
    %v4489 = vld [vmem:[#allocation11 + $0x7c8] sm:$0xff]
    %v4490 = vld [vmem:[#allocation11 + $0x7d0] sm:$0xff]
    %v4491 = vld [vmem:[#allocation11 + $0x7d8] sm:$0xff]
    %v4492 = vld [vmem:[#allocation11 + $0x7e0] sm:$0xff]
    %v4493 = vld [vmem:[#allocation11 + $0x7e8] sm:$0xff]
    %v4494 = vld [vmem:[#allocation11 + $0x7f0] sm:$0xff]
    %v4495 = vld [vmem:[#allocation11 + $0x7f8] sm:$0xff]
    %v4496 = vld [vmem:[#allocation13] sm:$0xf]
    %v4498 = vlaneseq
    %v4499 = vshrl.u32 %v4498, 7
    %v4500 = vsub.s32 0, %v4499
    %v4501 = vrot.slane %v4496, %v4500
    %v4502 = vlaneseq
    %v4503 = vshrl.u32 %v4502, 7
    %v4504 = vsub.s32 1, %v4503
    %v4505 = vrot.slane %v4496, %v4504
    %v4506 = vlaneseq
    %v4507 = vshrl.u32 %v4506, 7
    %v4508 = vsub.s32 2, %v4507
    %v4509 = vrot.slane %v4496, %v4508
    %v4510 = vlaneseq
    %v4511 = vshrl.u32 %v4510, 7
    %v4512 = vsub.s32 3, %v4511
    %v4513 = vrot.slane %v4496, %v4512
    %v4774 = vunpack.c.l.b16 %v4240
    %v4775 = vunpack.c.h.b16 %v4240
    %v4776 = vunpack.c.l.b16 %v4241
    %v4777 = vunpack.c.h.b16 %v4241
    %v4778 = vunpack.c.l.b16 %v4242
    %v4779 = vunpack.c.h.b16 %v4242
    %v4780 = vunpack.c.l.b16 %v4243
    %v4781 = vunpack.c.h.b16 %v4243
    %v4782 = vunpack.c.l.b16 %v4244
    %v4783 = vunpack.c.h.b16 %v4244
    %v4784 = vunpack.c.l.b16 %v4245
    %v4785 = vunpack.c.h.b16 %v4245
    %v4786 = vunpack.c.l.b16 %v4246
    %v4787 = vunpack.c.h.b16 %v4246
    %v4788 = vunpack.c.l.b16 %v4247
    %v4789 = vunpack.c.h.b16 %v4247
    %v4790 = vunpack.c.l.b16 %v4248
    %v4791 = vunpack.c.h.b16 %v4248
    %v4792 = vunpack.c.l.b16 %v4249
    %v4793 = vunpack.c.h.b16 %v4249
    %v4794 = vunpack.c.l.b16 %v4250
    %v4795 = vunpack.c.h.b16 %v4250
    %v4796 = vunpack.c.l.b16 %v4251
    %v4797 = vunpack.c.h.b16 %v4251
    %v4798 = vunpack.c.l.b16 %v4252
    %v4799 = vunpack.c.h.b16 %v4252
    %v4800 = vunpack.c.l.b16 %v4253
    %v4801 = vunpack.c.h.b16 %v4253
    %v4802 = vunpack.c.l.b16 %v4254
    %v4803 = vunpack.c.h.b16 %v4254
    %v4804 = vunpack.c.l.b16 %v4255
    %v4805 = vunpack.c.h.b16 %v4255
    %v4806 = vunpack.c.l.b16 %v4256
    %v4807 = vunpack.c.h.b16 %v4256
    %v4808 = vunpack.c.l.b16 %v4257
    %v4809 = vunpack.c.h.b16 %v4257
    %v4810 = vunpack.c.l.b16 %v4258
    %v4811 = vunpack.c.h.b16 %v4258
    %v4812 = vunpack.c.l.b16 %v4259
    %v4813 = vunpack.c.h.b16 %v4259
    %v4814 = vunpack.c.l.b16 %v4260
    %v4815 = vunpack.c.h.b16 %v4260
    %v4816 = vunpack.c.l.b16 %v4261
    %v4817 = vunpack.c.h.b16 %v4261
    %v4818 = vunpack.c.l.b16 %v4262
    %v4819 = vunpack.c.h.b16 %v4262
    %v4820 = vunpack.c.l.b16 %v4263
    %v4821 = vunpack.c.h.b16 %v4263
    %v4822 = vunpack.c.l.b16 %v4264
    %v4823 = vunpack.c.h.b16 %v4264
    %v4824 = vunpack.c.l.b16 %v4265
    %v4825 = vunpack.c.h.b16 %v4265
    %v4826 = vunpack.c.l.b16 %v4266
    %v4827 = vunpack.c.h.b16 %v4266
    %v4828 = vunpack.c.l.b16 %v4267
    %v4829 = vunpack.c.h.b16 %v4267
    %v4830 = vunpack.c.l.b16 %v4268
    %v4831 = vunpack.c.h.b16 %v4268
    %v4832 = vunpack.c.l.b16 %v4269
    %v4833 = vunpack.c.h.b16 %v4269
    %v4834 = vunpack.c.l.b16 %v4270
    %v4835 = vunpack.c.h.b16 %v4270
    %v4836 = vunpack.c.l.b16 %v4271
    %v4837 = vunpack.c.h.b16 %v4271
    %v4838 = vunpack.c.l.b16 %v4272
    %v4839 = vunpack.c.h.b16 %v4272
    %v4840 = vunpack.c.l.b16 %v4273
    %v4841 = vunpack.c.h.b16 %v4273
    %v4842 = vunpack.c.l.b16 %v4274
    %v4843 = vunpack.c.h.b16 %v4274
    %v4844 = vunpack.c.l.b16 %v4275
    %v4845 = vunpack.c.h.b16 %v4275
    %v4846 = vunpack.c.l.b16 %v4276
    %v4847 = vunpack.c.h.b16 %v4276
    %v4848 = vunpack.c.l.b16 %v4277
    %v4849 = vunpack.c.h.b16 %v4277
    %v4850 = vunpack.c.l.b16 %v4278
    %v4851 = vunpack.c.h.b16 %v4278
    %v4852 = vunpack.c.l.b16 %v4279
    %v4853 = vunpack.c.h.b16 %v4279
    %v4854 = vunpack.c.l.b16 %v4280
    %v4855 = vunpack.c.h.b16 %v4280
    %v4856 = vunpack.c.l.b16 %v4281
    %v4857 = vunpack.c.h.b16 %v4281
    %v4858 = vunpack.c.l.b16 %v4282
    %v4859 = vunpack.c.h.b16 %v4282
    %v4860 = vunpack.c.l.b16 %v4283
    %v4861 = vunpack.c.h.b16 %v4283
    %v4862 = vunpack.c.l.b16 %v4284
    %v4863 = vunpack.c.h.b16 %v4284
    %v4864 = vunpack.c.l.b16 %v4285
    %v4865 = vunpack.c.h.b16 %v4285
    %v4866 = vunpack.c.l.b16 %v4286
    %v4867 = vunpack.c.h.b16 %v4286
    %v4868 = vunpack.c.l.b16 %v4287
    %v4869 = vunpack.c.h.b16 %v4287
    %v4870 = vunpack.c.l.b16 %v4288
    %v4871 = vunpack.c.h.b16 %v4288
    %v4872 = vunpack.c.l.b16 %v4289
    %v4873 = vunpack.c.h.b16 %v4289
    %v4874 = vunpack.c.l.b16 %v4290
    %v4875 = vunpack.c.h.b16 %v4290
    %v4876 = vunpack.c.l.b16 %v4291
    %v4877 = vunpack.c.h.b16 %v4291
    %v4878 = vunpack.c.l.b16 %v4292
    %v4879 = vunpack.c.h.b16 %v4292
    %v4880 = vunpack.c.l.b16 %v4293
    %v4881 = vunpack.c.h.b16 %v4293
    %v4882 = vunpack.c.l.b16 %v4294
    %v4883 = vunpack.c.h.b16 %v4294
    %v4884 = vunpack.c.l.b16 %v4295
    %v4885 = vunpack.c.h.b16 %v4295
    %v4886 = vunpack.c.l.b16 %v4296
    %v4887 = vunpack.c.h.b16 %v4296
    %v4888 = vunpack.c.l.b16 %v4297
    %v4889 = vunpack.c.h.b16 %v4297
    %v4890 = vunpack.c.l.b16 %v4298
    %v4891 = vunpack.c.h.b16 %v4298
    %v4892 = vunpack.c.l.b16 %v4299
    %v4893 = vunpack.c.h.b16 %v4299
    %v4894 = vunpack.c.l.b16 %v4300
    %v4895 = vunpack.c.h.b16 %v4300
    %v4896 = vunpack.c.l.b16 %v4301
    %v4897 = vunpack.c.h.b16 %v4301
    %v4898 = vunpack.c.l.b16 %v4302
    %v4899 = vunpack.c.h.b16 %v4302
    %v4900 = vunpack.c.l.b16 %v4303
    %v4901 = vunpack.c.h.b16 %v4303
    %v4902 = vunpack.c.l.b16 %v4304
    %v4903 = vunpack.c.h.b16 %v4304
    %v4904 = vunpack.c.l.b16 %v4305
    %v4905 = vunpack.c.h.b16 %v4305
    %v4906 = vunpack.c.l.b16 %v4306
    %v4907 = vunpack.c.h.b16 %v4306
    %v4908 = vunpack.c.l.b16 %v4307
    %v4909 = vunpack.c.h.b16 %v4307
    %v4910 = vunpack.c.l.b16 %v4308
    %v4911 = vunpack.c.h.b16 %v4308
    %v4912 = vunpack.c.l.b16 %v4309
    %v4913 = vunpack.c.h.b16 %v4309
    %v4914 = vunpack.c.l.b16 %v4310
    %v4915 = vunpack.c.h.b16 %v4310
    %v4916 = vunpack.c.l.b16 %v4311
    %v4917 = vunpack.c.h.b16 %v4311
    %v4918 = vunpack.c.l.b16 %v4312
    %v4919 = vunpack.c.h.b16 %v4312
    %v4920 = vunpack.c.l.b16 %v4313
    %v4921 = vunpack.c.h.b16 %v4313
    %v4922 = vunpack.c.l.b16 %v4314
    %v4923 = vunpack.c.h.b16 %v4314
    %v4924 = vunpack.c.l.b16 %v4315
    %v4925 = vunpack.c.h.b16 %v4315
    %v4926 = vunpack.c.l.b16 %v4316
    %v4927 = vunpack.c.h.b16 %v4316
    %v4928 = vunpack.c.l.b16 %v4317
    %v4929 = vunpack.c.h.b16 %v4317
    %v4930 = vunpack.c.l.b16 %v4318
    %v4931 = vunpack.c.h.b16 %v4318
    %v4932 = vunpack.c.l.b16 %v4319
    %v4933 = vunpack.c.h.b16 %v4319
    %v4934 = vunpack.c.l.b16 %v4320
    %v4935 = vunpack.c.h.b16 %v4320
    %v4936 = vunpack.c.l.b16 %v4321
    %v4937 = vunpack.c.h.b16 %v4321
    %v4938 = vunpack.c.l.b16 %v4322
    %v4939 = vunpack.c.h.b16 %v4322
    %v4940 = vunpack.c.l.b16 %v4323
    %v4941 = vunpack.c.h.b16 %v4323
    %v4942 = vunpack.c.l.b16 %v4324
    %v4943 = vunpack.c.h.b16 %v4324
    %v4944 = vunpack.c.l.b16 %v4325
    %v4945 = vunpack.c.h.b16 %v4325
    %v4946 = vunpack.c.l.b16 %v4326
    %v4947 = vunpack.c.h.b16 %v4326
    %v4948 = vunpack.c.l.b16 %v4327
    %v4949 = vunpack.c.h.b16 %v4327
    %v4950 = vunpack.c.l.b16 %v4328
    %v4951 = vunpack.c.h.b16 %v4328
    %v4952 = vunpack.c.l.b16 %v4329
    %v4953 = vunpack.c.h.b16 %v4329
    %v4954 = vunpack.c.l.b16 %v4330
    %v4955 = vunpack.c.h.b16 %v4330
    %v4956 = vunpack.c.l.b16 %v4331
    %v4957 = vunpack.c.h.b16 %v4331
    %v4958 = vunpack.c.l.b16 %v4332
    %v4959 = vunpack.c.h.b16 %v4332
    %v4960 = vunpack.c.l.b16 %v4333
    %v4961 = vunpack.c.h.b16 %v4333
    %v4962 = vunpack.c.l.b16 %v4334
    %v4963 = vunpack.c.h.b16 %v4334
    %v4964 = vunpack.c.l.b16 %v4335
    %v4965 = vunpack.c.h.b16 %v4335
    %v4966 = vunpack.c.l.b16 %v4336
    %v4967 = vunpack.c.h.b16 %v4336
    %v4968 = vunpack.c.l.b16 %v4337
    %v4969 = vunpack.c.h.b16 %v4337
    %v4970 = vunpack.c.l.b16 %v4338
    %v4971 = vunpack.c.h.b16 %v4338
    %v4972 = vunpack.c.l.b16 %v4339
    %v4973 = vunpack.c.h.b16 %v4339
    %v4974 = vunpack.c.l.b16 %v4340
    %v4975 = vunpack.c.h.b16 %v4340
    %v4976 = vunpack.c.l.b16 %v4341
    %v4977 = vunpack.c.h.b16 %v4341
    %v4978 = vunpack.c.l.b16 %v4342
    %v4979 = vunpack.c.h.b16 %v4342
    %v4980 = vunpack.c.l.b16 %v4343
    %v4981 = vunpack.c.h.b16 %v4343
    %v4982 = vunpack.c.l.b16 %v4344
    %v4983 = vunpack.c.h.b16 %v4344
    %v4984 = vunpack.c.l.b16 %v4345
    %v4985 = vunpack.c.h.b16 %v4345
    %v4986 = vunpack.c.l.b16 %v4346
    %v4987 = vunpack.c.h.b16 %v4346
    %v4988 = vunpack.c.l.b16 %v4347
    %v4989 = vunpack.c.h.b16 %v4347
    %v4990 = vunpack.c.l.b16 %v4348
    %v4991 = vunpack.c.h.b16 %v4348
    %v4992 = vunpack.c.l.b16 %v4349
    %v4993 = vunpack.c.h.b16 %v4349
    %v4994 = vunpack.c.l.b16 %v4350
    %v4995 = vunpack.c.h.b16 %v4350
    %v4996 = vunpack.c.l.b16 %v4351
    %v4997 = vunpack.c.h.b16 %v4351
    %v4998 = vunpack.c.l.b16 %v4352
    %v4999 = vunpack.c.h.b16 %v4352
    %v5000 = vunpack.c.l.b16 %v4353
    %v5001 = vunpack.c.h.b16 %v4353
    %v5002 = vunpack.c.l.b16 %v4354
    %v5003 = vunpack.c.h.b16 %v4354
    %v5004 = vunpack.c.l.b16 %v4355
    %v5005 = vunpack.c.h.b16 %v4355
    %v5006 = vunpack.c.l.b16 %v4356
    %v5007 = vunpack.c.h.b16 %v4356
    %v5008 = vunpack.c.l.b16 %v4357
    %v5009 = vunpack.c.h.b16 %v4357
    %v5010 = vunpack.c.l.b16 %v4358
    %v5011 = vunpack.c.h.b16 %v4358
    %v5012 = vunpack.c.l.b16 %v4359
    %v5013 = vunpack.c.h.b16 %v4359
    %v5014 = vunpack.c.l.b16 %v4360
    %v5015 = vunpack.c.h.b16 %v4360
    %v5016 = vunpack.c.l.b16 %v4361
    %v5017 = vunpack.c.h.b16 %v4361
    %v5018 = vunpack.c.l.b16 %v4362
    %v5019 = vunpack.c.h.b16 %v4362
    %v5020 = vunpack.c.l.b16 %v4363
    %v5021 = vunpack.c.h.b16 %v4363
    %v5022 = vunpack.c.l.b16 %v4364
    %v5023 = vunpack.c.h.b16 %v4364
    %v5024 = vunpack.c.l.b16 %v4365
    %v5025 = vunpack.c.h.b16 %v4365
    %v5026 = vunpack.c.l.b16 %v4366
    %v5027 = vunpack.c.h.b16 %v4366
    %v5028 = vunpack.c.l.b16 %v4367
    %v5029 = vunpack.c.h.b16 %v4367
    %v5030 = vunpack.c.l.b16 %v4368
    %v5031 = vunpack.c.h.b16 %v4368
    %v5032 = vunpack.c.l.b16 %v4369
    %v5033 = vunpack.c.h.b16 %v4369
    %v5034 = vunpack.c.l.b16 %v4370
    %v5035 = vunpack.c.h.b16 %v4370
    %v5036 = vunpack.c.l.b16 %v4371
    %v5037 = vunpack.c.h.b16 %v4371
    %v5038 = vunpack.c.l.b16 %v4372
    %v5039 = vunpack.c.h.b16 %v4372
    %v5040 = vunpack.c.l.b16 %v4373
    %v5041 = vunpack.c.h.b16 %v4373
    %v5042 = vunpack.c.l.b16 %v4374
    %v5043 = vunpack.c.h.b16 %v4374
    %v5044 = vunpack.c.l.b16 %v4375
    %v5045 = vunpack.c.h.b16 %v4375
    %v5046 = vunpack.c.l.b16 %v4376
    %v5047 = vunpack.c.h.b16 %v4376
    %v5048 = vunpack.c.l.b16 %v4377
    %v5049 = vunpack.c.h.b16 %v4377
    %v5050 = vunpack.c.l.b16 %v4378
    %v5051 = vunpack.c.h.b16 %v4378
    %v5052 = vunpack.c.l.b16 %v4379
    %v5053 = vunpack.c.h.b16 %v4379
    %v5054 = vunpack.c.l.b16 %v4380
    %v5055 = vunpack.c.h.b16 %v4380
    %v5056 = vunpack.c.l.b16 %v4381
    %v5057 = vunpack.c.h.b16 %v4381
    %v5058 = vunpack.c.l.b16 %v4382
    %v5059 = vunpack.c.h.b16 %v4382
    %v5060 = vunpack.c.l.b16 %v4383
    %v5061 = vunpack.c.h.b16 %v4383
    %v5062 = vunpack.c.l.b16 %v4384
    %v5063 = vunpack.c.h.b16 %v4384
    %v5064 = vunpack.c.l.b16 %v4385
    %v5065 = vunpack.c.h.b16 %v4385
    %v5066 = vunpack.c.l.b16 %v4386
    %v5067 = vunpack.c.h.b16 %v4386
    %v5068 = vunpack.c.l.b16 %v4387
    %v5069 = vunpack.c.h.b16 %v4387
    %v5070 = vunpack.c.l.b16 %v4388
    %v5071 = vunpack.c.h.b16 %v4388
    %v5072 = vunpack.c.l.b16 %v4389
    %v5073 = vunpack.c.h.b16 %v4389
    %v5074 = vunpack.c.l.b16 %v4390
    %v5075 = vunpack.c.h.b16 %v4390
    %v5076 = vunpack.c.l.b16 %v4391
    %v5077 = vunpack.c.h.b16 %v4391
    %v5078 = vunpack.c.l.b16 %v4392
    %v5079 = vunpack.c.h.b16 %v4392
    %v5080 = vunpack.c.l.b16 %v4393
    %v5081 = vunpack.c.h.b16 %v4393
    %v5082 = vunpack.c.l.b16 %v4394
    %v5083 = vunpack.c.h.b16 %v4394
    %v5084 = vunpack.c.l.b16 %v4395
    %v5085 = vunpack.c.h.b16 %v4395
    %v5086 = vunpack.c.l.b16 %v4396
    %v5087 = vunpack.c.h.b16 %v4396
    %v5088 = vunpack.c.l.b16 %v4397
    %v5089 = vunpack.c.h.b16 %v4397
    %v5090 = vunpack.c.l.b16 %v4398
    %v5091 = vunpack.c.h.b16 %v4398
    %v5092 = vunpack.c.l.b16 %v4399
    %v5093 = vunpack.c.h.b16 %v4399
    %v5094 = vunpack.c.l.b16 %v4400
    %v5095 = vunpack.c.h.b16 %v4400
    %v5096 = vunpack.c.l.b16 %v4401
    %v5097 = vunpack.c.h.b16 %v4401
    %v5098 = vunpack.c.l.b16 %v4402
    %v5099 = vunpack.c.h.b16 %v4402
    %v5100 = vunpack.c.l.b16 %v4403
    %v5101 = vunpack.c.h.b16 %v4403
    %v5102 = vunpack.c.l.b16 %v4404
    %v5103 = vunpack.c.h.b16 %v4404
    %v5104 = vunpack.c.l.b16 %v4405
    %v5105 = vunpack.c.h.b16 %v4405
    %v5106 = vunpack.c.l.b16 %v4406
    %v5107 = vunpack.c.h.b16 %v4406
    %v5108 = vunpack.c.l.b16 %v4407
    %v5109 = vunpack.c.h.b16 %v4407
    %v5110 = vunpack.c.l.b16 %v4408
    %v5111 = vunpack.c.h.b16 %v4408
    %v5112 = vunpack.c.l.b16 %v4409
    %v5113 = vunpack.c.h.b16 %v4409
    %v5114 = vunpack.c.l.b16 %v4410
    %v5115 = vunpack.c.h.b16 %v4410
    %v5116 = vunpack.c.l.b16 %v4411
    %v5117 = vunpack.c.h.b16 %v4411
    %v5118 = vunpack.c.l.b16 %v4412
    %v5119 = vunpack.c.h.b16 %v4412
    %v5120 = vunpack.c.l.b16 %v4413
    %v5121 = vunpack.c.h.b16 %v4413
    %v5122 = vunpack.c.l.b16 %v4414
    %v5123 = vunpack.c.h.b16 %v4414
    %v5124 = vunpack.c.l.b16 %v4415
    %v5125 = vunpack.c.h.b16 %v4415
    %v5126 = vunpack.c.l.b16 %v4416
    %v5127 = vunpack.c.h.b16 %v4416
    %v5128 = vunpack.c.l.b16 %v4417
    %v5129 = vunpack.c.h.b16 %v4417
    %v5130 = vunpack.c.l.b16 %v4418
    %v5131 = vunpack.c.h.b16 %v4418
    %v5132 = vunpack.c.l.b16 %v4419
    %v5133 = vunpack.c.h.b16 %v4419
    %v5134 = vunpack.c.l.b16 %v4420
    %v5135 = vunpack.c.h.b16 %v4420
    %v5136 = vunpack.c.l.b16 %v4421
    %v5137 = vunpack.c.h.b16 %v4421
    %v5138 = vunpack.c.l.b16 %v4422
    %v5139 = vunpack.c.h.b16 %v4422
    %v5140 = vunpack.c.l.b16 %v4423
    %v5141 = vunpack.c.h.b16 %v4423
    %v5142 = vunpack.c.l.b16 %v4424
    %v5143 = vunpack.c.h.b16 %v4424
    %v5144 = vunpack.c.l.b16 %v4425
    %v5145 = vunpack.c.h.b16 %v4425
    %v5146 = vunpack.c.l.b16 %v4426
    %v5147 = vunpack.c.h.b16 %v4426
    %v5148 = vunpack.c.l.b16 %v4427
    %v5149 = vunpack.c.h.b16 %v4427
    %v5150 = vunpack.c.l.b16 %v4428
    %v5151 = vunpack.c.h.b16 %v4428
    %v5152 = vunpack.c.l.b16 %v4429
    %v5153 = vunpack.c.h.b16 %v4429
    %v5154 = vunpack.c.l.b16 %v4430
    %v5155 = vunpack.c.h.b16 %v4430
    %v5156 = vunpack.c.l.b16 %v4431
    %v5157 = vunpack.c.h.b16 %v4431
    %v5158 = vunpack.c.l.b16 %v4432
    %v5159 = vunpack.c.h.b16 %v4432
    %v5160 = vunpack.c.l.b16 %v4433
    %v5161 = vunpack.c.h.b16 %v4433
    %v5162 = vunpack.c.l.b16 %v4434
    %v5163 = vunpack.c.h.b16 %v4434
    %v5164 = vunpack.c.l.b16 %v4435
    %v5165 = vunpack.c.h.b16 %v4435
    %v5166 = vunpack.c.l.b16 %v4436
    %v5167 = vunpack.c.h.b16 %v4436
    %v5168 = vunpack.c.l.b16 %v4437
    %v5169 = vunpack.c.h.b16 %v4437
    %v5170 = vunpack.c.l.b16 %v4438
    %v5171 = vunpack.c.h.b16 %v4438
    %v5172 = vunpack.c.l.b16 %v4439
    %v5173 = vunpack.c.h.b16 %v4439
    %v5174 = vunpack.c.l.b16 %v4440
    %v5175 = vunpack.c.h.b16 %v4440
    %v5176 = vunpack.c.l.b16 %v4441
    %v5177 = vunpack.c.h.b16 %v4441
    %v5178 = vunpack.c.l.b16 %v4442
    %v5179 = vunpack.c.h.b16 %v4442
    %v5180 = vunpack.c.l.b16 %v4443
    %v5181 = vunpack.c.h.b16 %v4443
    %v5182 = vunpack.c.l.b16 %v4444
    %v5183 = vunpack.c.h.b16 %v4444
    %v5184 = vunpack.c.l.b16 %v4445
    %v5185 = vunpack.c.h.b16 %v4445
    %v5186 = vunpack.c.l.b16 %v4446
    %v5187 = vunpack.c.h.b16 %v4446
    %v5188 = vunpack.c.l.b16 %v4447
    %v5189 = vunpack.c.h.b16 %v4447
    %v5190 = vunpack.c.l.b16 %v4448
    %v5191 = vunpack.c.h.b16 %v4448
    %v5192 = vunpack.c.l.b16 %v4449
    %v5193 = vunpack.c.h.b16 %v4449
    %v5194 = vunpack.c.l.b16 %v4450
    %v5195 = vunpack.c.h.b16 %v4450
    %v5196 = vunpack.c.l.b16 %v4451
    %v5197 = vunpack.c.h.b16 %v4451
    %v5198 = vunpack.c.l.b16 %v4452
    %v5199 = vunpack.c.h.b16 %v4452
    %v5200 = vunpack.c.l.b16 %v4453
    %v5201 = vunpack.c.h.b16 %v4453
    %v5202 = vunpack.c.l.b16 %v4454
    %v5203 = vunpack.c.h.b16 %v4454
    %v5204 = vunpack.c.l.b16 %v4455
    %v5205 = vunpack.c.h.b16 %v4455
    %v5206 = vunpack.c.l.b16 %v4456
    %v5207 = vunpack.c.h.b16 %v4456
    %v5208 = vunpack.c.l.b16 %v4457
    %v5209 = vunpack.c.h.b16 %v4457
    %v5210 = vunpack.c.l.b16 %v4458
    %v5211 = vunpack.c.h.b16 %v4458
    %v5212 = vunpack.c.l.b16 %v4459
    %v5213 = vunpack.c.h.b16 %v4459
    %v5214 = vunpack.c.l.b16 %v4460
    %v5215 = vunpack.c.h.b16 %v4460
    %v5216 = vunpack.c.l.b16 %v4461
    %v5217 = vunpack.c.h.b16 %v4461
    %v5218 = vunpack.c.l.b16 %v4462
    %v5219 = vunpack.c.h.b16 %v4462
    %v5220 = vunpack.c.l.b16 %v4463
    %v5221 = vunpack.c.h.b16 %v4463
    %v5222 = vunpack.c.l.b16 %v4464
    %v5223 = vunpack.c.h.b16 %v4464
    %v5224 = vunpack.c.l.b16 %v4465
    %v5225 = vunpack.c.h.b16 %v4465
    %v5226 = vunpack.c.l.b16 %v4466
    %v5227 = vunpack.c.h.b16 %v4466
    %v5228 = vunpack.c.l.b16 %v4467
    %v5229 = vunpack.c.h.b16 %v4467
    %v5230 = vunpack.c.l.b16 %v4468
    %v5231 = vunpack.c.h.b16 %v4468
    %v5232 = vunpack.c.l.b16 %v4469
    %v5233 = vunpack.c.h.b16 %v4469
    %v5234 = vunpack.c.l.b16 %v4470
    %v5235 = vunpack.c.h.b16 %v4470
    %v5236 = vunpack.c.l.b16 %v4471
    %v5237 = vunpack.c.h.b16 %v4471
    %v5238 = vunpack.c.l.b16 %v4472
    %v5239 = vunpack.c.h.b16 %v4472
    %v5240 = vunpack.c.l.b16 %v4473
    %v5241 = vunpack.c.h.b16 %v4473
    %v5242 = vunpack.c.l.b16 %v4474
    %v5243 = vunpack.c.h.b16 %v4474
    %v5244 = vunpack.c.l.b16 %v4475
    %v5245 = vunpack.c.h.b16 %v4475
    %v5246 = vunpack.c.l.b16 %v4476
    %v5247 = vunpack.c.h.b16 %v4476
    %v5248 = vunpack.c.l.b16 %v4477
    %v5249 = vunpack.c.h.b16 %v4477
    %v5250 = vunpack.c.l.b16 %v4478
    %v5251 = vunpack.c.h.b16 %v4478
    %v5252 = vunpack.c.l.b16 %v4479
    %v5253 = vunpack.c.h.b16 %v4479
    %v5254 = vunpack.c.l.b16 %v4480
    %v5255 = vunpack.c.h.b16 %v4480
    %v5256 = vunpack.c.l.b16 %v4481
    %v5257 = vunpack.c.h.b16 %v4481
    %v5258 = vunpack.c.l.b16 %v4482
    %v5259 = vunpack.c.h.b16 %v4482
    %v5260 = vunpack.c.l.b16 %v4483
    %v5261 = vunpack.c.h.b16 %v4483
    %v5262 = vunpack.c.l.b16 %v4484
    %v5263 = vunpack.c.h.b16 %v4484
    %v5264 = vunpack.c.l.b16 %v4485
    %v5265 = vunpack.c.h.b16 %v4485
    %v5266 = vunpack.c.l.b16 %v4486
    %v5267 = vunpack.c.h.b16 %v4486
    %v5268 = vunpack.c.l.b16 %v4487
    %v5269 = vunpack.c.h.b16 %v4487
    %v5270 = vunpack.c.l.b16 %v4488
    %v5271 = vunpack.c.h.b16 %v4488
    %v5272 = vunpack.c.l.b16 %v4489
    %v5273 = vunpack.c.h.b16 %v4489
    %v5274 = vunpack.c.l.b16 %v4490
    %v5275 = vunpack.c.h.b16 %v4490
    %v5276 = vunpack.c.l.b16 %v4491
    %v5277 = vunpack.c.h.b16 %v4491
    %v5278 = vunpack.c.l.b16 %v4492
    %v5279 = vunpack.c.h.b16 %v4492
    %v5280 = vunpack.c.l.b16 %v4493
    %v5281 = vunpack.c.h.b16 %v4493
    %v5282 = vunpack.c.l.b16 %v4494
    %v5283 = vunpack.c.h.b16 %v4494
    %v5284 = vunpack.c.l.b16 %v4495
    %v5285 = vunpack.c.h.b16 %v4495
    %v5286 = vpack.c.b16 %v4778, %v4774
    %v5287 = vpack.c.b16 %v4779, %v4775
    %v5288 = vpack.c.b16 %v4780, %v4776
    %v5289 = vpack.c.b16 %v4781, %v4777
    %v5290 = vpack.c.b16 %v4786, %v4782
    %v5291 = vpack.c.b16 %v4787, %v4783
    %v5292 = vpack.c.b16 %v4788, %v4784
    %v5293 = vpack.c.b16 %v4789, %v4785
    %v5294 = vpack.c.b16 %v4794, %v4790
    %v5295 = vpack.c.b16 %v4795, %v4791
    %v5296 = vpack.c.b16 %v4796, %v4792
    %v5297 = vpack.c.b16 %v4797, %v4793
    %v5298 = vpack.c.b16 %v4802, %v4798
    %v5299 = vpack.c.b16 %v4803, %v4799
    %v5300 = vpack.c.b16 %v4804, %v4800
    %v5301 = vpack.c.b16 %v4805, %v4801
    %v5302 = vpack.c.b16 %v4810, %v4806
    %v5303 = vpack.c.b16 %v4811, %v4807
    %v5304 = vpack.c.b16 %v4812, %v4808
    %v5305 = vpack.c.b16 %v4813, %v4809
    %v5306 = vpack.c.b16 %v4818, %v4814
    %v5307 = vpack.c.b16 %v4819, %v4815
    %v5308 = vpack.c.b16 %v4820, %v4816
    %v5309 = vpack.c.b16 %v4821, %v4817
    %v5310 = vpack.c.b16 %v4826, %v4822
    %v5311 = vpack.c.b16 %v4827, %v4823
    %v5312 = vpack.c.b16 %v4828, %v4824
    %v5313 = vpack.c.b16 %v4829, %v4825
    %v5314 = vpack.c.b16 %v4834, %v4830
    %v5315 = vpack.c.b16 %v4835, %v4831
    %v5316 = vpack.c.b16 %v4836, %v4832
    %v5317 = vpack.c.b16 %v4837, %v4833
    %v5318 = vpack.c.b16 %v4842, %v4838
    %v5319 = vpack.c.b16 %v4843, %v4839
    %v5320 = vpack.c.b16 %v4844, %v4840
    %v5321 = vpack.c.b16 %v4845, %v4841
    %v5322 = vpack.c.b16 %v4850, %v4846
    %v5323 = vpack.c.b16 %v4851, %v4847
    %v5324 = vpack.c.b16 %v4852, %v4848
    %v5325 = vpack.c.b16 %v4853, %v4849
    %v5326 = vpack.c.b16 %v4858, %v4854
    %v5327 = vpack.c.b16 %v4859, %v4855
    %v5328 = vpack.c.b16 %v4860, %v4856
    %v5329 = vpack.c.b16 %v4861, %v4857
    %v5330 = vpack.c.b16 %v4866, %v4862
    %v5331 = vpack.c.b16 %v4867, %v4863
    %v5332 = vpack.c.b16 %v4868, %v4864
    %v5333 = vpack.c.b16 %v4869, %v4865
    %v5334 = vpack.c.b16 %v4874, %v4870
    %v5335 = vpack.c.b16 %v4875, %v4871
    %v5336 = vpack.c.b16 %v4876, %v4872
    %v5337 = vpack.c.b16 %v4877, %v4873
    %v5338 = vpack.c.b16 %v4882, %v4878
    %v5339 = vpack.c.b16 %v4883, %v4879
    %v5340 = vpack.c.b16 %v4884, %v4880
    %v5341 = vpack.c.b16 %v4885, %v4881
    %v5342 = vpack.c.b16 %v4890, %v4886
    %v5343 = vpack.c.b16 %v4891, %v4887
    %v5344 = vpack.c.b16 %v4892, %v4888
    %v5345 = vpack.c.b16 %v4893, %v4889
    %v5346 = vpack.c.b16 %v4898, %v4894
    %v5347 = vpack.c.b16 %v4899, %v4895
    %v5348 = vpack.c.b16 %v4900, %v4896
    %v5349 = vpack.c.b16 %v4901, %v4897
    %v5350 = vpack.c.b16 %v4906, %v4902
    %v5351 = vpack.c.b16 %v4907, %v4903
    %v5352 = vpack.c.b16 %v4908, %v4904
    %v5353 = vpack.c.b16 %v4909, %v4905
    %v5354 = vpack.c.b16 %v4914, %v4910
    %v5355 = vpack.c.b16 %v4915, %v4911
    %v5356 = vpack.c.b16 %v4916, %v4912
    %v5357 = vpack.c.b16 %v4917, %v4913
    %v5358 = vpack.c.b16 %v4922, %v4918
    %v5359 = vpack.c.b16 %v4923, %v4919
    %v5360 = vpack.c.b16 %v4924, %v4920
    %v5361 = vpack.c.b16 %v4925, %v4921
    %v5362 = vpack.c.b16 %v4930, %v4926
    %v5363 = vpack.c.b16 %v4931, %v4927
    %v5364 = vpack.c.b16 %v4932, %v4928
    %v5365 = vpack.c.b16 %v4933, %v4929
    %v5366 = vpack.c.b16 %v4938, %v4934
    %v5367 = vpack.c.b16 %v4939, %v4935
    %v5368 = vpack.c.b16 %v4940, %v4936
    %v5369 = vpack.c.b16 %v4941, %v4937
    %v5370 = vpack.c.b16 %v4946, %v4942
    %v5371 = vpack.c.b16 %v4947, %v4943
    %v5372 = vpack.c.b16 %v4948, %v4944
    %v5373 = vpack.c.b16 %v4949, %v4945
    %v5374 = vpack.c.b16 %v4954, %v4950
    %v5375 = vpack.c.b16 %v4955, %v4951
    %v5376 = vpack.c.b16 %v4956, %v4952
    %v5377 = vpack.c.b16 %v4957, %v4953
    %v5378 = vpack.c.b16 %v4962, %v4958
    %v5379 = vpack.c.b16 %v4963, %v4959
    %v5380 = vpack.c.b16 %v4964, %v4960
    %v5381 = vpack.c.b16 %v4965, %v4961
    %v5382 = vpack.c.b16 %v4970, %v4966
    %v5383 = vpack.c.b16 %v4971, %v4967
    %v5384 = vpack.c.b16 %v4972, %v4968
    %v5385 = vpack.c.b16 %v4973, %v4969
    %v5386 = vpack.c.b16 %v4978, %v4974
    %v5387 = vpack.c.b16 %v4979, %v4975
    %v5388 = vpack.c.b16 %v4980, %v4976
    %v5389 = vpack.c.b16 %v4981, %v4977
    %v5390 = vpack.c.b16 %v4986, %v4982
    %v5391 = vpack.c.b16 %v4987, %v4983
    %v5392 = vpack.c.b16 %v4988, %v4984
    %v5393 = vpack.c.b16 %v4989, %v4985
    %v5394 = vpack.c.b16 %v4994, %v4990
    %v5395 = vpack.c.b16 %v4995, %v4991
    %v5396 = vpack.c.b16 %v4996, %v4992
    %v5397 = vpack.c.b16 %v4997, %v4993
    %v5398 = vpack.c.b16 %v5002, %v4998
    %v5399 = vpack.c.b16 %v5003, %v4999
    %v5400 = vpack.c.b16 %v5004, %v5000
    %v5401 = vpack.c.b16 %v5005, %v5001
    %v5402 = vpack.c.b16 %v5010, %v5006
    %v5403 = vpack.c.b16 %v5011, %v5007
    %v5404 = vpack.c.b16 %v5012, %v5008
    %v5405 = vpack.c.b16 %v5013, %v5009
    %v5406 = vpack.c.b16 %v5018, %v5014
    %v5407 = vpack.c.b16 %v5019, %v5015
    %v5408 = vpack.c.b16 %v5020, %v5016
    %v5409 = vpack.c.b16 %v5021, %v5017
    %v5410 = vpack.c.b16 %v5026, %v5022
    %v5411 = vpack.c.b16 %v5027, %v5023
    %v5412 = vpack.c.b16 %v5028, %v5024
    %v5413 = vpack.c.b16 %v5029, %v5025
    %v5414 = vpack.c.b16 %v5034, %v5030
    %v5415 = vpack.c.b16 %v5035, %v5031
    %v5416 = vpack.c.b16 %v5036, %v5032
    %v5417 = vpack.c.b16 %v5037, %v5033
    %v5418 = vpack.c.b16 %v5042, %v5038
    %v5419 = vpack.c.b16 %v5043, %v5039
    %v5420 = vpack.c.b16 %v5044, %v5040
    %v5421 = vpack.c.b16 %v5045, %v5041
    %v5422 = vpack.c.b16 %v5050, %v5046
    %v5423 = vpack.c.b16 %v5051, %v5047
    %v5424 = vpack.c.b16 %v5052, %v5048
    %v5425 = vpack.c.b16 %v5053, %v5049
    %v5426 = vpack.c.b16 %v5058, %v5054
    %v5427 = vpack.c.b16 %v5059, %v5055
    %v5428 = vpack.c.b16 %v5060, %v5056
    %v5429 = vpack.c.b16 %v5061, %v5057
    %v5430 = vpack.c.b16 %v5066, %v5062
    %v5431 = vpack.c.b16 %v5067, %v5063
    %v5432 = vpack.c.b16 %v5068, %v5064
    %v5433 = vpack.c.b16 %v5069, %v5065
    %v5434 = vpack.c.b16 %v5074, %v5070
    %v5435 = vpack.c.b16 %v5075, %v5071
    %v5436 = vpack.c.b16 %v5076, %v5072
    %v5437 = vpack.c.b16 %v5077, %v5073
    %v5438 = vpack.c.b16 %v5082, %v5078
    %v5439 = vpack.c.b16 %v5083, %v5079
    %v5440 = vpack.c.b16 %v5084, %v5080
    %v5441 = vpack.c.b16 %v5085, %v5081
    %v5442 = vpack.c.b16 %v5090, %v5086
    %v5443 = vpack.c.b16 %v5091, %v5087
    %v5444 = vpack.c.b16 %v5092, %v5088
    %v5445 = vpack.c.b16 %v5093, %v5089
    %v5446 = vpack.c.b16 %v5098, %v5094
    %v5447 = vpack.c.b16 %v5099, %v5095
    %v5448 = vpack.c.b16 %v5100, %v5096
    %v5449 = vpack.c.b16 %v5101, %v5097
    %v5450 = vpack.c.b16 %v5106, %v5102
    %v5451 = vpack.c.b16 %v5107, %v5103
    %v5452 = vpack.c.b16 %v5108, %v5104
    %v5453 = vpack.c.b16 %v5109, %v5105
    %v5454 = vpack.c.b16 %v5114, %v5110
    %v5455 = vpack.c.b16 %v5115, %v5111
    %v5456 = vpack.c.b16 %v5116, %v5112
    %v5457 = vpack.c.b16 %v5117, %v5113
    %v5458 = vpack.c.b16 %v5122, %v5118
    %v5459 = vpack.c.b16 %v5123, %v5119
    %v5460 = vpack.c.b16 %v5124, %v5120
    %v5461 = vpack.c.b16 %v5125, %v5121
    %v5462 = vpack.c.b16 %v5130, %v5126
    %v5463 = vpack.c.b16 %v5131, %v5127
    %v5464 = vpack.c.b16 %v5132, %v5128
    %v5465 = vpack.c.b16 %v5133, %v5129
    %v5466 = vpack.c.b16 %v5138, %v5134
    %v5467 = vpack.c.b16 %v5139, %v5135
    %v5468 = vpack.c.b16 %v5140, %v5136
    %v5469 = vpack.c.b16 %v5141, %v5137
    %v5470 = vpack.c.b16 %v5146, %v5142
    %v5471 = vpack.c.b16 %v5147, %v5143
    %v5472 = vpack.c.b16 %v5148, %v5144
    %v5473 = vpack.c.b16 %v5149, %v5145
    %v5474 = vpack.c.b16 %v5154, %v5150
    %v5475 = vpack.c.b16 %v5155, %v5151
    %v5476 = vpack.c.b16 %v5156, %v5152
    %v5477 = vpack.c.b16 %v5157, %v5153
    %v5478 = vpack.c.b16 %v5162, %v5158
    %v5479 = vpack.c.b16 %v5163, %v5159
    %v5480 = vpack.c.b16 %v5164, %v5160
    %v5481 = vpack.c.b16 %v5165, %v5161
    %v5482 = vpack.c.b16 %v5170, %v5166
    %v5483 = vpack.c.b16 %v5171, %v5167
    %v5484 = vpack.c.b16 %v5172, %v5168
    %v5485 = vpack.c.b16 %v5173, %v5169
    %v5486 = vpack.c.b16 %v5178, %v5174
    %v5487 = vpack.c.b16 %v5179, %v5175
    %v5488 = vpack.c.b16 %v5180, %v5176
    %v5489 = vpack.c.b16 %v5181, %v5177
    %v5490 = vpack.c.b16 %v5186, %v5182
    %v5491 = vpack.c.b16 %v5187, %v5183
    %v5492 = vpack.c.b16 %v5188, %v5184
    %v5493 = vpack.c.b16 %v5189, %v5185
    %v5494 = vpack.c.b16 %v5194, %v5190
    %v5495 = vpack.c.b16 %v5195, %v5191
    %v5496 = vpack.c.b16 %v5196, %v5192
    %v5497 = vpack.c.b16 %v5197, %v5193
    %v5498 = vpack.c.b16 %v5202, %v5198
    %v5499 = vpack.c.b16 %v5203, %v5199
    %v5500 = vpack.c.b16 %v5204, %v5200
    %v5501 = vpack.c.b16 %v5205, %v5201
    %v5502 = vpack.c.b16 %v5210, %v5206
    %v5503 = vpack.c.b16 %v5211, %v5207
    %v5504 = vpack.c.b16 %v5212, %v5208
    %v5505 = vpack.c.b16 %v5213, %v5209
    %v5506 = vpack.c.b16 %v5218, %v5214
    %v5507 = vpack.c.b16 %v5219, %v5215
    %v5508 = vpack.c.b16 %v5220, %v5216
    %v5509 = vpack.c.b16 %v5221, %v5217
    %v5510 = vpack.c.b16 %v5226, %v5222
    %v5511 = vpack.c.b16 %v5227, %v5223
    %v5512 = vpack.c.b16 %v5228, %v5224
    %v5513 = vpack.c.b16 %v5229, %v5225
    %v5514 = vpack.c.b16 %v5234, %v5230
    %v5515 = vpack.c.b16 %v5235, %v5231
    %v5516 = vpack.c.b16 %v5236, %v5232
    %v5517 = vpack.c.b16 %v5237, %v5233
    %v5518 = vpack.c.b16 %v5242, %v5238
    %v5519 = vpack.c.b16 %v5243, %v5239
    %v5520 = vpack.c.b16 %v5244, %v5240
    %v5521 = vpack.c.b16 %v5245, %v5241
    %v5522 = vpack.c.b16 %v5250, %v5246
    %v5523 = vpack.c.b16 %v5251, %v5247
    %v5524 = vpack.c.b16 %v5252, %v5248
    %v5525 = vpack.c.b16 %v5253, %v5249
    %v5526 = vpack.c.b16 %v5258, %v5254
    %v5527 = vpack.c.b16 %v5259, %v5255
    %v5528 = vpack.c.b16 %v5260, %v5256
    %v5529 = vpack.c.b16 %v5261, %v5257
    %v5530 = vpack.c.b16 %v5266, %v5262
    %v5531 = vpack.c.b16 %v5267, %v5263
    %v5532 = vpack.c.b16 %v5268, %v5264
    %v5533 = vpack.c.b16 %v5269, %v5265
    %v5534 = vpack.c.b16 %v5274, %v5270
    %v5535 = vpack.c.b16 %v5275, %v5271
    %v5536 = vpack.c.b16 %v5276, %v5272
    %v5537 = vpack.c.b16 %v5277, %v5273
    %v5538 = vpack.c.b16 %v5282, %v5278
    %v5539 = vpack.c.b16 %v5283, %v5279
    %v5540 = vpack.c.b16 %v5284, %v5280
    %v5541 = vpack.c.b16 %v5285, %v5281
    %5798 = vmatprep.subr.bf16.mxu0 %v5287
    %5799 = vmatpush1.bf16.msra.mxu0 %v5286
    %5800 = vmatprep.subr.bf16.mxu0 %v5291
    %5801 = vmatpush1.bf16.msra.mxu0 %v5290
    %5802 = vmatprep.subr.bf16.mxu0 %v5295
    %5803 = vmatpush1.bf16.msra.mxu0 %v5294
    %5804 = vmatprep.subr.bf16.mxu0 %v5299
    %5805 = vmatpush1.bf16.msra.mxu0 %v5298
    %5806 = vmatprep.subr.bf16.mxu0 %v5303
    %5807 = vmatpush1.bf16.msra.mxu0 %v5302
    %5808 = vmatprep.subr.bf16.mxu0 %v5307
    %5809 = vmatpush1.bf16.msra.mxu0 %v5306
    %5810 = vmatprep.subr.bf16.mxu0 %v5311
    %5811 = vmatpush1.bf16.msra.mxu0 %v5310
    %5812 = vmatprep.subr.bf16.mxu0 %v5315
    %5813 = vmatpush1.bf16.msra.mxu0 %v5314
    %5814 = vmatprep.subr.bf16.mxu0 %v5319
    %5815 = vmatpush1.bf16.msra.mxu0 %v5318
    %5816 = vmatprep.subr.bf16.mxu0 %v5323
    %5817 = vmatpush1.bf16.msra.mxu0 %v5322
    %5818 = vmatprep.subr.bf16.mxu0 %v5327
    %5819 = vmatpush1.bf16.msra.mxu0 %v5326
    %5820 = vmatprep.subr.bf16.mxu0 %v5331
    %5821 = vmatpush1.bf16.msra.mxu0 %v5330
    %5822 = vmatprep.subr.bf16.mxu0 %v5335
    %5823 = vmatpush1.bf16.msra.mxu0 %v5334
    %5824 = vmatprep.subr.bf16.mxu0 %v5339
    %5825 = vmatpush1.bf16.msra.mxu0 %v5338
    %5826 = vmatprep.subr.bf16.mxu0 %v5343
    %5827 = vmatpush1.bf16.msra.mxu0 %v5342
    %5828 = vmatprep.subr.bf16.mxu0 %v5347
    %5829 = vmatpush1.bf16.msra.mxu0 %v5346
    %5830 = vmatprep.mubr.bf16.mxu0 %v4233
    %5831 = vmatmul.mubr.bf16.gmra.mrb[0].mxu0 %v4232
    %v5832 = vpop.f32.mrb[0].mxu0
    %v5833 = vadd.f32 %v4501, %v5832
    %v5834 = vpop.f32.mrb[0].mxu0
    %v5835 = vadd.f32 %v4505, %v5834
    %v5836 = vpop.f32.mrb[0].mxu0
    %v5837 = vpop.f32.mrb[0].mxu0
    %5838 = vdwg.mxu0
    %5839 = vmatprep.subr.bf16.mxu0 %v5351
    %5840 = vmatpush1.bf16.msra.mxu0 %v5350
    %5841 = vmatprep.subr.bf16.mxu0 %v5355
    %5842 = vmatpush1.bf16.msra.mxu0 %v5354
    %5843 = vmatprep.subr.bf16.mxu0 %v5359
    %5844 = vmatpush1.bf16.msra.mxu0 %v5358
    %5845 = vmatprep.subr.bf16.mxu0 %v5363
    %5846 = vmatpush1.bf16.msra.mxu0 %v5362
    %5847 = vmatprep.subr.bf16.mxu0 %v5367
    %5848 = vmatpush1.bf16.msra.mxu0 %v5366
    %5849 = vmatprep.subr.bf16.mxu0 %v5371
    %5850 = vmatpush1.bf16.msra.mxu0 %v5370
    %5851 = vmatprep.subr.bf16.mxu0 %v5375
    %5852 = vmatpush1.bf16.msra.mxu0 %v5374
    %5853 = vmatprep.subr.bf16.mxu0 %v5379
    %5854 = vmatpush1.bf16.msra.mxu0 %v5378
    %5855 = vmatprep.subr.bf16.mxu0 %v5383
    %5856 = vmatpush1.bf16.msra.mxu0 %v5382
    %5857 = vmatprep.subr.bf16.mxu0 %v5387
    %5858 = vmatpush1.bf16.msra.mxu0 %v5386
    %5859 = vmatprep.subr.bf16.mxu0 %v5391
    %5860 = vmatpush1.bf16.msra.mxu0 %v5390
    %5861 = vmatprep.subr.bf16.mxu0 %v5395
    %5862 = vmatpush1.bf16.msra.mxu0 %v5394
    %5863 = vmatprep.subr.bf16.mxu0 %v5399
    %5864 = vmatpush1.bf16.msra.mxu0 %v5398
    %5865 = vmatprep.subr.bf16.mxu0 %v5403
    %5866 = vmatpush1.bf16.msra.mxu0 %v5402
    %5867 = vmatprep.subr.bf16.mxu0 %v5407
    %5868 = vmatpush1.bf16.msra.mxu0 %v5406
    %5869 = vmatprep.subr.bf16.mxu0 %v5411
    %5870 = vmatpush1.bf16.msra.mxu0 %v5410
    %5871 = vmatprep.mubr.bf16.mxu0 %v4235
    %5872 = vmatmul.mubr.bf16.gmra.mrb[0].mxu0 %v4234
    %v5873 = vpop.f32.mrb[0].mxu0
    %v5874 = vadd.f32 %v5833, %v5873
    %v5875 = vpop.f32.mrb[0].mxu0
    %v5876 = vadd.f32 %v5835, %v5875
    %v5877 = vpop.f32.mrb[0].mxu0
    %v5878 = vpop.f32.mrb[0].mxu0
    %5879 = vdwg.mxu0
    %5880 = vmatprep.subr.bf16.mxu0 %v5415
    %5881 = vmatpush1.bf16.msra.mxu0 %v5414
    %5882 = vmatprep.subr.bf16.mxu0 %v5419
    %5883 = vmatpush1.bf16.msra.mxu0 %v5418
    %5884 = vmatprep.subr.bf16.mxu0 %v5423
    %5885 = vmatpush1.bf16.msra.mxu0 %v5422
    %5886 = vmatprep.subr.bf16.mxu0 %v5427
    %5887 = vmatpush1.bf16.msra.mxu0 %v5426
    %5888 = vmatprep.subr.bf16.mxu0 %v5431
    %5889 = vmatpush1.bf16.msra.mxu0 %v5430
    %5890 = vmatprep.subr.bf16.mxu0 %v5435
    %5891 = vmatpush1.bf16.msra.mxu0 %v5434
    %5892 = vmatprep.subr.bf16.mxu0 %v5439
    %5893 = vmatpush1.bf16.msra.mxu0 %v5438
    %5894 = vmatprep.subr.bf16.mxu0 %v5443
    %5895 = vmatpush1.bf16.msra.mxu0 %v5442
    %5896 = vmatprep.subr.bf16.mxu0 %v5447
    %5897 = vmatpush1.bf16.msra.mxu0 %v5446
    %5898 = vmatprep.subr.bf16.mxu0 %v5451
    %5899 = vmatpush1.bf16.msra.mxu0 %v5450
    %5900 = vmatprep.subr.bf16.mxu0 %v5455
    %5901 = vmatpush1.bf16.msra.mxu0 %v5454
    %5902 = vmatprep.subr.bf16.mxu0 %v5459
    %5903 = vmatpush1.bf16.msra.mxu0 %v5458
    %5904 = vmatprep.subr.bf16.mxu0 %v5463
    %5905 = vmatpush1.bf16.msra.mxu0 %v5462
    %5906 = vmatprep.subr.bf16.mxu0 %v5467
    %5907 = vmatpush1.bf16.msra.mxu0 %v5466
    %5908 = vmatprep.subr.bf16.mxu0 %v5471
    %5909 = vmatpush1.bf16.msra.mxu0 %v5470
    %5910 = vmatprep.subr.bf16.mxu0 %v5475
    %5911 = vmatpush1.bf16.msra.mxu0 %v5474
    %5912 = vmatprep.mubr.bf16.mxu0 %v4237
    %5913 = vmatmul.mubr.bf16.gmra.mrb[0].mxu0 %v4236
    %v5914 = vpop.f32.mrb[0].mxu0
    %v5915 = vadd.f32 %v5874, %v5914
    %v5916 = vpop.f32.mrb[0].mxu0
    %v5917 = vadd.f32 %v5876, %v5916
    %v5918 = vpop.f32.mrb[0].mxu0
    %v5919 = vpop.f32.mrb[0].mxu0
    %5920 = vdwg.mxu0
    %5921 = vmatprep.subr.bf16.mxu0 %v5479
    %5922 = vmatpush1.bf16.msra.mxu0 %v5478
    %5923 = vmatprep.subr.bf16.mxu0 %v5483
    %5924 = vmatpush1.bf16.msra.mxu0 %v5482
    %5925 = vmatprep.subr.bf16.mxu0 %v5487
    %5926 = vmatpush1.bf16.msra.mxu0 %v5486
    %5927 = vmatprep.subr.bf16.mxu0 %v5491
    %5928 = vmatpush1.bf16.msra.mxu0 %v5490
    %5929 = vmatprep.subr.bf16.mxu0 %v5495
    %5930 = vmatpush1.bf16.msra.mxu0 %v5494
    %5931 = vmatprep.subr.bf16.mxu0 %v5499
    %5932 = vmatpush1.bf16.msra.mxu0 %v5498
    %5933 = vmatprep.subr.bf16.mxu0 %v5503
    %5934 = vmatpush1.bf16.msra.mxu0 %v5502
    %5935 = vmatprep.subr.bf16.mxu0 %v5507
    %5936 = vmatpush1.bf16.msra.mxu0 %v5506
    %5937 = vmatprep.subr.bf16.mxu0 %v5511
    %5938 = vmatpush1.bf16.msra.mxu0 %v5510
    %5939 = vmatprep.subr.bf16.mxu0 %v5515
    %5940 = vmatpush1.bf16.msra.mxu0 %v5514
    %5941 = vmatprep.subr.bf16.mxu0 %v5519
    %5942 = vmatpush1.bf16.msra.mxu0 %v5518
    %5943 = vmatprep.subr.bf16.mxu0 %v5523
    %5944 = vmatpush1.bf16.msra.mxu0 %v5522
    %5945 = vmatprep.subr.bf16.mxu0 %v5527
    %5946 = vmatpush1.bf16.msra.mxu0 %v5526
    %5947 = vmatprep.subr.bf16.mxu0 %v5531
    %5948 = vmatpush1.bf16.msra.mxu0 %v5530
    %5949 = vmatprep.subr.bf16.mxu0 %v5535
    %5950 = vmatpush1.bf16.msra.mxu0 %v5534
    %5951 = vmatprep.subr.bf16.mxu0 %v5539
    %5952 = vmatpush1.bf16.msra.mxu0 %v5538
    %5953 = vmatprep.mubr.bf16.mxu0 %v4239
    %5954 = vmatmul.mubr.bf16.gmra.mrb[0].mxu0 %v4238
    %v5955 = vpop.f32.mrb[0].mxu0
    %v5956 = vadd.f32 %v5915, %v5955
    %v5957 = vpop.f32.mrb[0].mxu0
    %v5958 = vadd.f32 %v5917, %v5957
    %v5959 = vpop.f32.mrb[0].mxu0
    %v5960 = vpop.f32.mrb[0].mxu0
    %5961 = vdwg.mxu0
    %5962 = vmatprep.subr.bf16.mxu0 %v5289
    %5963 = vmatpush1.bf16.msra.mxu0 %v5288
    %5964 = vmatprep.subr.bf16.mxu0 %v5293
    %5965 = vmatpush1.bf16.msra.mxu0 %v5292
    %5966 = vmatprep.subr.bf16.mxu0 %v5297
    %5967 = vmatpush1.bf16.msra.mxu0 %v5296
    %5968 = vmatprep.subr.bf16.mxu0 %v5301
    %5969 = vmatpush1.bf16.msra.mxu0 %v5300
    %5970 = vmatprep.subr.bf16.mxu0 %v5305
    %5971 = vmatpush1.bf16.msra.mxu0 %v5304
    %5972 = vmatprep.subr.bf16.mxu0 %v5309
    %5973 = vmatpush1.bf16.msra.mxu0 %v5308
    %5974 = vmatprep.subr.bf16.mxu0 %v5313
    %5975 = vmatpush1.bf16.msra.mxu0 %v5312
    %5976 = vmatprep.subr.bf16.mxu0 %v5317
    %5977 = vmatpush1.bf16.msra.mxu0 %v5316
    %5978 = vmatprep.subr.bf16.mxu0 %v5321
    %5979 = vmatpush1.bf16.msra.mxu0 %v5320
    %5980 = vmatprep.subr.bf16.mxu0 %v5325
    %5981 = vmatpush1.bf16.msra.mxu0 %v5324
    %5982 = vmatprep.subr.bf16.mxu0 %v5329
    %5983 = vmatpush1.bf16.msra.mxu0 %v5328
    %5984 = vmatprep.subr.bf16.mxu0 %v5333
    %5985 = vmatpush1.bf16.msra.mxu0 %v5332
    %5986 = vmatprep.subr.bf16.mxu0 %v5337
    %5987 = vmatpush1.bf16.msra.mxu0 %v5336
    %5988 = vmatprep.subr.bf16.mxu0 %v5341
    %5989 = vmatpush1.bf16.msra.mxu0 %v5340
    %5990 = vmatprep.subr.bf16.mxu0 %v5345
    %5991 = vmatpush1.bf16.msra.mxu0 %v5344
    %5992 = vmatprep.subr.bf16.mxu0 %v5349
    %5993 = vmatpush1.bf16.msra.mxu0 %v5348
    %5994 = vmatprep.mubr.bf16.mxu0 %v4233
    %5995 = vmatmul.mubr.bf16.gmra.mrb[0].mxu0 %v4232
    %v5996 = vpop.f32.mrb[0].mxu0
    %v5997 = vadd.f32 %v4509, %v5996
    %v5998 = vpop.f32.mrb[0].mxu0
    %v5999 = vadd.f32 %v4513, %v5998
    %v6000 = vpop.f32.mrb[0].mxu0
    %v6001 = vpop.f32.mrb[0].mxu0
    %6002 = vdwg.mxu0
    %6003 = vmatprep.subr.bf16.mxu0 %v5353
    %6004 = vmatpush1.bf16.msra.mxu0 %v5352
    %6005 = vmatprep.subr.bf16.mxu0 %v5357
    %6006 = vmatpush1.bf16.msra.mxu0 %v5356
    %6007 = vmatprep.subr.bf16.mxu0 %v5361
    %6008 = vmatpush1.bf16.msra.mxu0 %v5360
    %6009 = vmatprep.subr.bf16.mxu0 %v5365
    %6010 = vmatpush1.bf16.msra.mxu0 %v5364
    %6011 = vmatprep.subr.bf16.mxu0 %v5369
    %6012 = vmatpush1.bf16.msra.mxu0 %v5368
    %6013 = vmatprep.subr.bf16.mxu0 %v5373
    %6014 = vmatpush1.bf16.msra.mxu0 %v5372
    %6015 = vmatprep.subr.bf16.mxu0 %v5377
    %6016 = vmatpush1.bf16.msra.mxu0 %v5376
    %6017 = vmatprep.subr.bf16.mxu0 %v5381
    %6018 = vmatpush1.bf16.msra.mxu0 %v5380
    %6019 = vmatprep.subr.bf16.mxu0 %v5385
    %6020 = vmatpush1.bf16.msra.mxu0 %v5384
    %6021 = vmatprep.subr.bf16.mxu0 %v5389
    %6022 = vmatpush1.bf16.msra.mxu0 %v5388
    %6023 = vmatprep.subr.bf16.mxu0 %v5393
    %6024 = vmatpush1.bf16.msra.mxu0 %v5392
    %6025 = vmatprep.subr.bf16.mxu0 %v5397
    %6026 = vmatpush1.bf16.msra.mxu0 %v5396
    %6027 = vmatprep.subr.bf16.mxu0 %v5401
    %6028 = vmatpush1.bf16.msra.mxu0 %v5400
    %6029 = vmatprep.subr.bf16.mxu0 %v5405
    %6030 = vmatpush1.bf16.msra.mxu0 %v5404
    %6031 = vmatprep.subr.bf16.mxu0 %v5409
    %6032 = vmatpush1.bf16.msra.mxu0 %v5408
    %6033 = vmatprep.subr.bf16.mxu0 %v5413
    %6034 = vmatpush1.bf16.msra.mxu0 %v5412
    %6035 = vmatprep.mubr.bf16.mxu0 %v4235
    %6036 = vmatmul.mubr.bf16.gmra.mrb[0].mxu0 %v4234
    %v6037 = vpop.f32.mrb[0].mxu0
    %v6038 = vadd.f32 %v5997, %v6037
    %v6039 = vpop.f32.mrb[0].mxu0
    %v6040 = vadd.f32 %v5999, %v6039
    %v6041 = vpop.f32.mrb[0].mxu0
    %v6042 = vpop.f32.mrb[0].mxu0
    %6043 = vdwg.mxu0
    %6044 = vmatprep.subr.bf16.mxu0 %v5417
    %6045 = vmatpush1.bf16.msra.mxu0 %v5416
    %6046 = vmatprep.subr.bf16.mxu0 %v5421
    %6047 = vmatpush1.bf16.msra.mxu0 %v5420
    %6048 = vmatprep.subr.bf16.mxu0 %v5425
    %6049 = vmatpush1.bf16.msra.mxu0 %v5424
    %6050 = vmatprep.subr.bf16.mxu0 %v5429
    %6051 = vmatpush1.bf16.msra.mxu0 %v5428
    %6052 = vmatprep.subr.bf16.mxu0 %v5433
    %6053 = vmatpush1.bf16.msra.mxu0 %v5432
    %6054 = vmatprep.subr.bf16.mxu0 %v5437
    %6055 = vmatpush1.bf16.msra.mxu0 %v5436
    %6056 = vmatprep.subr.bf16.mxu0 %v5441
    %6057 = vmatpush1.bf16.msra.mxu0 %v5440
    %6058 = vmatprep.subr.bf16.mxu0 %v5445
    %6059 = vmatpush1.bf16.msra.mxu0 %v5444
    %6060 = vmatprep.subr.bf16.mxu0 %v5449
    %6061 = vmatpush1.bf16.msra.mxu0 %v5448
    %6062 = vmatprep.subr.bf16.mxu0 %v5453
    %6063 = vmatpush1.bf16.msra.mxu0 %v5452
    %6064 = vmatprep.subr.bf16.mxu0 %v5457
    %6065 = vmatpush1.bf16.msra.mxu0 %v5456
    %6066 = vmatprep.subr.bf16.mxu0 %v5461
    %6067 = vmatpush1.bf16.msra.mxu0 %v5460
    %6068 = vmatprep.subr.bf16.mxu0 %v5465
    %6069 = vmatpush1.bf16.msra.mxu0 %v5464
    %6070 = vmatprep.subr.bf16.mxu0 %v5469
    %6071 = vmatpush1.bf16.msra.mxu0 %v5468
    %6072 = vmatprep.subr.bf16.mxu0 %v5473
    %6073 = vmatpush1.bf16.msra.mxu0 %v5472
    %6074 = vmatprep.subr.bf16.mxu0 %v5477
    %6075 = vmatpush1.bf16.msra.mxu0 %v5476
    %6076 = vmatprep.mubr.bf16.mxu0 %v4237
    %6077 = vmatmul.mubr.bf16.gmra.mrb[0].mxu0 %v4236
    %v6078 = vpop.f32.mrb[0].mxu0
    %v6079 = vadd.f32 %v6038, %v6078
    %v6080 = vpop.f32.mrb[0].mxu0
    %v6081 = vadd.f32 %v6040, %v6080
    %v6082 = vpop.f32.mrb[0].mxu0
    %v6083 = vpop.f32.mrb[0].mxu0
    %6084 = vdwg.mxu0
    %6085 = vmatprep.subr.bf16.mxu0 %v5481
    %6086 = vmatpush1.bf16.msra.mxu0 %v5480
    %6087 = vmatprep.subr.bf16.mxu0 %v5485
    %6088 = vmatpush1.bf16.msra.mxu0 %v5484
    %6089 = vmatprep.subr.bf16.mxu0 %v5489
    %6090 = vmatpush1.bf16.msra.mxu0 %v5488
    %6091 = vmatprep.subr.bf16.mxu0 %v5493
    %6092 = vmatpush1.bf16.msra.mxu0 %v5492
    %6093 = vmatprep.subr.bf16.mxu0 %v5497
    %6094 = vmatpush1.bf16.msra.mxu0 %v5496
    %6095 = vmatprep.subr.bf16.mxu0 %v5501
    %6096 = vmatpush1.bf16.msra.mxu0 %v5500
    %6097 = vmatprep.subr.bf16.mxu0 %v5505
    %6098 = vmatpush1.bf16.msra.mxu0 %v5504
    %6099 = vmatprep.subr.bf16.mxu0 %v5509
    %6100 = vmatpush1.bf16.msra.mxu0 %v5508
    %6101 = vmatprep.subr.bf16.mxu0 %v5513
    %6102 = vmatpush1.bf16.msra.mxu0 %v5512
    %6103 = vmatprep.subr.bf16.mxu0 %v5517
    %6104 = vmatpush1.bf16.msra.mxu0 %v5516
    %6105 = vmatprep.subr.bf16.mxu0 %v5521
    %6106 = vmatpush1.bf16.msra.mxu0 %v5520
    %6107 = vmatprep.subr.bf16.mxu0 %v5525
    %6108 = vmatpush1.bf16.msra.mxu0 %v5524
    %6109 = vmatprep.subr.bf16.mxu0 %v5529
    %6110 = vmatpush1.bf16.msra.mxu0 %v5528
    %6111 = vmatprep.subr.bf16.mxu0 %v5533
    %6112 = vmatpush1.bf16.msra.mxu0 %v5532
    %6113 = vmatprep.subr.bf16.mxu0 %v5537
    %6114 = vmatpush1.bf16.msra.mxu0 %v5536
    %6115 = vmatprep.subr.bf16.mxu0 %v5541
    %6116 = vmatpush1.bf16.msra.mxu0 %v5540
    %6117 = vmatprep.mubr.bf16.mxu0 %v4239
    %6118 = vmatmul.mubr.bf16.gmra.mrb[0].mxu0 %v4238
    %v6119 = vpop.f32.mrb[0].mxu0
    %v6120 = vadd.f32 %v6079, %v6119
    %v6121 = vpop.f32.mrb[0].mxu0
    %v6122 = vadd.f32 %v6081, %v6121
    %v6123 = vpop.f32.mrb[0].mxu0
    %v6124 = vpop.f32.mrb[0].mxu0
    %6125 = vdwg.mxu0
    %v6126 = vmax.f32 %v5956, 0.0
    %v6127 = vmax.f32 %v5958, 0.0
    %v6128 = vmax.f32 %v6120, 0.0
    %v6129 = vmax.f32 %v6122, 0.0
    %v6130 = vpack.c.bf16 %v6126, %v6126
    %v6131 = vpack.c.bf16 %v6127, %v6127
    %v6132 = vpack.c.bf16 %v6128, %v6128
    %v6133 = vpack.c.bf16 %v6129, %v6129
    %v6134 = vld [vmem:[#allocation14] sm:$0xf]
    %v6135 = vld [vmem:[#allocation14 + $0x4] sm:$0xf]
    %v6136 = vld [vmem:[#allocation14 + $0x8] sm:$0xf]
    %v6137 = vld [vmem:[#allocation14 + $0xc] sm:$0xf]
    %v6138 = vld [vmem:[#allocation14 + $0x10] sm:$0xf]
    %v6139 = vld [vmem:[#allocation14 + $0x14] sm:$0xf]
    %v6140 = vld [vmem:[#allocation14 + $0x18] sm:$0xf]
    %v6141 = vld [vmem:[#allocation14 + $0x1c] sm:$0xf]
    %v6142 = vld [vmem:[#allocation14 + $0x20] sm:$0xf]
    %v6143 = vld [vmem:[#allocation14 + $0x24] sm:$0xf]
    %v6144 = vld [vmem:[#allocation14 + $0x28] sm:$0xf]
    %v6145 = vld [vmem:[#allocation14 + $0x2c] sm:$0xf]
    %v6146 = vld [vmem:[#allocation14 + $0x30] sm:$0xf]
    %v6147 = vld [vmem:[#allocation14 + $0x34] sm:$0xf]
    %v6148 = vld [vmem:[#allocation14 + $0x38] sm:$0xf]
    %v6149 = vld [vmem:[#allocation14 + $0x3c] sm:$0xf]
    %v6150 = vld [vmem:[#allocation14 + $0x40] sm:$0xf]
    %v6151 = vld [vmem:[#allocation14 + $0x44] sm:$0xf]
    %v6152 = vld [vmem:[#allocation14 + $0x48] sm:$0xf]
    %v6153 = vld [vmem:[#allocation14 + $0x4c] sm:$0xf]
    %v6154 = vld [vmem:[#allocation14 + $0x50] sm:$0xf]
    %v6155 = vld [vmem:[#allocation14 + $0x54] sm:$0xf]
    %v6156 = vld [vmem:[#allocation14 + $0x58] sm:$0xf]
    %v6157 = vld [vmem:[#allocation14 + $0x5c] sm:$0xf]
    %v6158 = vld [vmem:[#allocation14 + $0x60] sm:$0xf]
    %v6159 = vld [vmem:[#allocation14 + $0x64] sm:$0xf]
    %v6160 = vld [vmem:[#allocation14 + $0x68] sm:$0xf]
    %v6161 = vld [vmem:[#allocation14 + $0x6c] sm:$0xf]
    %v6162 = vld [vmem:[#allocation14 + $0x70] sm:$0xf]
    %v6163 = vld [vmem:[#allocation14 + $0x74] sm:$0xf]
    %v6164 = vld [vmem:[#allocation14 + $0x78] sm:$0xf]
    %v6165 = vld [vmem:[#allocation14 + $0x7c] sm:$0xf]
    %v6166 = vld [vmem:[#allocation14 + $0x80] sm:$0xf]
    %v6167 = vld [vmem:[#allocation14 + $0x84] sm:$0xf]
    %v6168 = vld [vmem:[#allocation14 + $0x88] sm:$0xf]
    %v6169 = vld [vmem:[#allocation14 + $0x8c] sm:$0xf]
    %v6170 = vld [vmem:[#allocation14 + $0x90] sm:$0xf]
    %v6171 = vld [vmem:[#allocation14 + $0x94] sm:$0xf]
    %v6172 = vld [vmem:[#allocation14 + $0x98] sm:$0xf]
    %v6173 = vld [vmem:[#allocation14 + $0x9c] sm:$0xf]
    %v6174 = vld [vmem:[#allocation14 + $0xa0] sm:$0xf]
    %v6175 = vld [vmem:[#allocation14 + $0xa4] sm:$0xf]
    %v6176 = vld [vmem:[#allocation14 + $0xa8] sm:$0xf]
    %v6177 = vld [vmem:[#allocation14 + $0xac] sm:$0xf]
    %v6178 = vld [vmem:[#allocation14 + $0xb0] sm:$0xf]
    %v6179 = vld [vmem:[#allocation14 + $0xb4] sm:$0xf]
    %v6180 = vld [vmem:[#allocation14 + $0xb8] sm:$0xf]
    %v6181 = vld [vmem:[#allocation14 + $0xbc] sm:$0xf]
    %v6182 = vld [vmem:[#allocation14 + $0xc0] sm:$0xf]
    %v6183 = vld [vmem:[#allocation14 + $0xc4] sm:$0xf]
    %v6184 = vld [vmem:[#allocation14 + $0xc8] sm:$0xf]
    %v6185 = vld [vmem:[#allocation14 + $0xcc] sm:$0xf]
    %v6186 = vld [vmem:[#allocation14 + $0xd0] sm:$0xf]
    %v6187 = vld [vmem:[#allocation14 + $0xd4] sm:$0xf]
    %v6188 = vld [vmem:[#allocation14 + $0xd8] sm:$0xf]
    %v6189 = vld [vmem:[#allocation14 + $0xdc] sm:$0xf]
    %v6190 = vld [vmem:[#allocation14 + $0xe0] sm:$0xf]
    %v6191 = vld [vmem:[#allocation14 + $0xe4] sm:$0xf]
    %v6192 = vld [vmem:[#allocation14 + $0xe8] sm:$0xf]
    %v6193 = vld [vmem:[#allocation14 + $0xec] sm:$0xf]
    %v6194 = vld [vmem:[#allocation14 + $0xf0] sm:$0xf]
    %v6195 = vld [vmem:[#allocation14 + $0xf4] sm:$0xf]
    %v6196 = vld [vmem:[#allocation14 + $0xf8] sm:$0xf]
    %v6197 = vld [vmem:[#allocation14 + $0xfc] sm:$0xf]
    %v6198 = vld [vmem:[#allocation2] sm:$0x1]
    %v6200 = vlaneseq
    %v6201 = vshrl.u32 %v6200, 7
    %v6202 = vsub.s32 0, %v6201
    %v6203 = vrot.slane %v6198, %v6202
    %v6269 = vunpack.c.l.b16 %v6134
    %v6270 = vunpack.c.l.b16 %v6135
    %v6271 = vunpack.c.l.b16 %v6136
    %v6272 = vunpack.c.l.b16 %v6137
    %v6273 = vunpack.c.l.b16 %v6138
    %v6274 = vunpack.c.l.b16 %v6139
    %v6275 = vunpack.c.l.b16 %v6140
    %v6276 = vunpack.c.l.b16 %v6141
    %v6277 = vunpack.c.l.b16 %v6142
    %v6278 = vunpack.c.l.b16 %v6143
    %v6279 = vunpack.c.l.b16 %v6144
    %v6280 = vunpack.c.l.b16 %v6145
    %v6281 = vunpack.c.l.b16 %v6146
    %v6282 = vunpack.c.l.b16 %v6147
    %v6283 = vunpack.c.l.b16 %v6148
    %v6284 = vunpack.c.l.b16 %v6149
    %v6285 = vunpack.c.l.b16 %v6150
    %v6286 = vunpack.c.l.b16 %v6151
    %v6287 = vunpack.c.l.b16 %v6152
    %v6288 = vunpack.c.l.b16 %v6153
    %v6289 = vunpack.c.l.b16 %v6154
    %v6290 = vunpack.c.l.b16 %v6155
    %v6291 = vunpack.c.l.b16 %v6156
    %v6292 = vunpack.c.l.b16 %v6157
    %v6293 = vunpack.c.l.b16 %v6158
    %v6294 = vunpack.c.l.b16 %v6159
    %v6295 = vunpack.c.l.b16 %v6160
    %v6296 = vunpack.c.l.b16 %v6161
    %v6297 = vunpack.c.l.b16 %v6162
    %v6298 = vunpack.c.l.b16 %v6163
    %v6299 = vunpack.c.l.b16 %v6164
    %v6300 = vunpack.c.l.b16 %v6165
    %v6301 = vunpack.c.l.b16 %v6166
    %v6302 = vunpack.c.l.b16 %v6167
    %v6303 = vunpack.c.l.b16 %v6168
    %v6304 = vunpack.c.l.b16 %v6169
    %v6305 = vunpack.c.l.b16 %v6170
    %v6306 = vunpack.c.l.b16 %v6171
    %v6307 = vunpack.c.l.b16 %v6172
    %v6308 = vunpack.c.l.b16 %v6173
    %v6309 = vunpack.c.l.b16 %v6174
    %v6310 = vunpack.c.l.b16 %v6175
    %v6311 = vunpack.c.l.b16 %v6176
    %v6312 = vunpack.c.l.b16 %v6177
    %v6313 = vunpack.c.l.b16 %v6178
    %v6314 = vunpack.c.l.b16 %v6179
    %v6315 = vunpack.c.l.b16 %v6180
    %v6316 = vunpack.c.l.b16 %v6181
    %v6317 = vunpack.c.l.b16 %v6182
    %v6318 = vunpack.c.l.b16 %v6183
    %v6319 = vunpack.c.l.b16 %v6184
    %v6320 = vunpack.c.l.b16 %v6185
    %v6321 = vunpack.c.l.b16 %v6186
    %v6322 = vunpack.c.l.b16 %v6187
    %v6323 = vunpack.c.l.b16 %v6188
    %v6324 = vunpack.c.l.b16 %v6189
    %v6325 = vunpack.c.l.b16 %v6190
    %v6326 = vunpack.c.l.b16 %v6191
    %v6327 = vunpack.c.l.b16 %v6192
    %v6328 = vunpack.c.l.b16 %v6193
    %v6329 = vunpack.c.l.b16 %v6194
    %v6330 = vunpack.c.l.b16 %v6195
    %v6331 = vunpack.c.l.b16 %v6196
    %v6332 = vunpack.c.l.b16 %v6197
    %v6333 = vpack.c.b16 %v6270, %v6269
    %v6334 = vpack.c.b16 %v6272, %v6271
    %v6335 = vpack.c.b16 %v6274, %v6273
    %v6336 = vpack.c.b16 %v6276, %v6275
    %v6337 = vpack.c.b16 %v6278, %v6277
    %v6338 = vpack.c.b16 %v6280, %v6279
    %v6339 = vpack.c.b16 %v6282, %v6281
    %v6340 = vpack.c.b16 %v6284, %v6283
    %v6341 = vpack.c.b16 %v6286, %v6285
    %v6342 = vpack.c.b16 %v6288, %v6287
    %v6343 = vpack.c.b16 %v6290, %v6289
    %v6344 = vpack.c.b16 %v6292, %v6291
    %v6345 = vpack.c.b16 %v6294, %v6293
    %v6346 = vpack.c.b16 %v6296, %v6295
    %v6347 = vpack.c.b16 %v6298, %v6297
    %v6348 = vpack.c.b16 %v6300, %v6299
    %v6349 = vpack.c.b16 %v6302, %v6301
    %v6350 = vpack.c.b16 %v6304, %v6303
    %v6351 = vpack.c.b16 %v6306, %v6305
    %v6352 = vpack.c.b16 %v6308, %v6307
    %v6353 = vpack.c.b16 %v6310, %v6309
    %v6354 = vpack.c.b16 %v6312, %v6311
    %v6355 = vpack.c.b16 %v6314, %v6313
    %v6356 = vpack.c.b16 %v6316, %v6315
    %v6357 = vpack.c.b16 %v6318, %v6317
    %v6358 = vpack.c.b16 %v6320, %v6319
    %v6359 = vpack.c.b16 %v6322, %v6321
    %v6360 = vpack.c.b16 %v6324, %v6323
    %v6361 = vpack.c.b16 %v6326, %v6325
    %v6362 = vpack.c.b16 %v6328, %v6327
    %v6363 = vpack.c.b16 %v6330, %v6329
    %v6364 = vpack.c.b16 %v6332, %v6331
    %6397 = vmatprep.subr.bf16.mxu0 0
    %6398 = vmatpush1.bf16.msra.mxu0 %v6333
    %6399 = vmatprep.subr.bf16.mxu0 0
    %6400 = vmatpush1.bf16.msra.mxu0 %v6334
    %6401 = vmatprep.subr.bf16.mxu0 0
    %6402 = vmatpush1.bf16.msra.mxu0 %v6335
    %6403 = vmatprep.subr.bf16.mxu0 0
    %6404 = vmatpush1.bf16.msra.mxu0 %v6336
    %6405 = vmatprep.subr.bf16.mxu0 0
    %6406 = vmatpush1.bf16.msra.mxu0 %v6337
    %6407 = vmatprep.subr.bf16.mxu0 0
    %6408 = vmatpush1.bf16.msra.mxu0 %v6338
    %6409 = vmatprep.subr.bf16.mxu0 0
    %6410 = vmatpush1.bf16.msra.mxu0 %v6339
    %6411 = vmatprep.subr.bf16.mxu0 0
    %6412 = vmatpush1.bf16.msra.mxu0 %v6340
    %6413 = vmatprep.subr.bf16.mxu0 0
    %6414 = vmatpush1.bf16.msra.mxu0 %v6341
    %6415 = vmatprep.subr.bf16.mxu0 0
    %6416 = vmatpush1.bf16.msra.mxu0 %v6342
    %6417 = vmatprep.subr.bf16.mxu0 0
    %6418 = vmatpush1.bf16.msra.mxu0 %v6343
    %6419 = vmatprep.subr.bf16.mxu0 0
    %6420 = vmatpush1.bf16.msra.mxu0 %v6344
    %6421 = vmatprep.subr.bf16.mxu0 0
    %6422 = vmatpush1.bf16.msra.mxu0 %v6345
    %6423 = vmatprep.subr.bf16.mxu0 0
    %6424 = vmatpush1.bf16.msra.mxu0 %v6346
    %6425 = vmatprep.subr.bf16.mxu0 0
    %6426 = vmatpush1.bf16.msra.mxu0 %v6347
    %6427 = vmatprep.subr.bf16.mxu0 0
    %6428 = vmatpush1.bf16.msra.mxu0 %v6348
    %6429 = vmatprep.mubr.bf16.mxu0 %v6131
    %6430 = vmatmul.mubr.bf16.gmra.mrb[0].mxu0 %v6130
    %v6431 = vpop.f32.mrb[0].mxu0
    %v6432 = vadd.f32 %v6203, %v6431
    %v6433 = vpop.f32.mrb[0].mxu0
    %v6434 = vpop.f32.mrb[0].mxu0
    %v6435 = vpop.f32.mrb[0].mxu0
    %6436 = vdwg.mxu0
    %6437 = vmatprep.subr.bf16.mxu0 0
    %6438 = vmatpush1.bf16.msra.mxu0 %v6349
    %6439 = vmatprep.subr.bf16.mxu0 0
    %6440 = vmatpush1.bf16.msra.mxu0 %v6350
    %6441 = vmatprep.subr.bf16.mxu0 0
    %6442 = vmatpush1.bf16.msra.mxu0 %v6351
    %6443 = vmatprep.subr.bf16.mxu0 0
    %6444 = vmatpush1.bf16.msra.mxu0 %v6352
    %6445 = vmatprep.subr.bf16.mxu0 0
    %6446 = vmatpush1.bf16.msra.mxu0 %v6353
    %6447 = vmatprep.subr.bf16.mxu0 0
    %6448 = vmatpush1.bf16.msra.mxu0 %v6354
    %6449 = vmatprep.subr.bf16.mxu0 0
    %6450 = vmatpush1.bf16.msra.mxu0 %v6355
    %6451 = vmatprep.subr.bf16.mxu0 0
    %6452 = vmatpush1.bf16.msra.mxu0 %v6356
    %6453 = vmatprep.subr.bf16.mxu0 0
    %6454 = vmatpush1.bf16.msra.mxu0 %v6357
    %6455 = vmatprep.subr.bf16.mxu0 0
    %6456 = vmatpush1.bf16.msra.mxu0 %v6358
    %6457 = vmatprep.subr.bf16.mxu0 0
    %6458 = vmatpush1.bf16.msra.mxu0 %v6359
    %6459 = vmatprep.subr.bf16.mxu0 0
    %6460 = vmatpush1.bf16.msra.mxu0 %v6360
    %6461 = vmatprep.subr.bf16.mxu0 0
    %6462 = vmatpush1.bf16.msra.mxu0 %v6361
    %6463 = vmatprep.subr.bf16.mxu0 0
    %6464 = vmatpush1.bf16.msra.mxu0 %v6362
    %6465 = vmatprep.subr.bf16.mxu0 0
    %6466 = vmatpush1.bf16.msra.mxu0 %v6363
    %6467 = vmatprep.subr.bf16.mxu0 0
    %6468 = vmatpush1.bf16.msra.mxu0 %v6364
    %6469 = vmatprep.mubr.bf16.mxu0 %v6133
    %6470 = vmatmul.mubr.bf16.gmra.mrb[0].mxu0 %v6132
    %v6471 = vpop.f32.mrb[0].mxu0
    %v6472 = vadd.f32 %v6432, %v6471
    %v6473 = vpop.f32.mrb[0].mxu0
    %v6474 = vpop.f32.mrb[0].mxu0
    %v6475 = vpop.f32.mrb[0].mxu0
    %6476 = vdwg.mxu0
    %vm6477 = vcmask 1024
    %6478 = vst.msk [vmem:[%s11] sm:$0x3] %vm6477, %v6472
    // Predicated region
    $region78: #{sagnet_forward.5} parent=1 // pred_check
      _
    $region79: #{sagnet_forward.5} parent=1 // pred_check_branch
      %6480 = sbr.rel (0) target = $region81
    $region80: #{sagnet_forward.5} parent=1 // pred_region
      _
    $region81: #{sagnet_forward.5} parent=1 // pred_fallthru
      _
    // Predicated region
    $region82: #{sagnet_forward.5} parent=1 // pred_check
      _
    $region83: #{sagnet_forward.5} parent=1 // pred_check_branch
      %6482 = sbr.rel (0) target = $region85
    $region84: #{sagnet_forward.5} parent=1 // pred_region
      _
    $region85: #{sagnet_forward.5} parent=1 // pred_fallthru
      _
    %6483 = vsyncpa [#allocation4], 1
    %6484 = vsyncpa [#allocation6], 1
    %6485 = vsyncpa [#allocation9], 1
    %6486 = vsyncpa [#allocation12], 1
    %6487 = vsyncpa [#allocation15], 1

</llo_original>
